<compile_context>
chip_gen: v7x
topology: tpu7x:2x2x1
jax: 0.10.0
libtpu: 0.0.40
codegen_flags: <defaults>
</compile_context>

<pallas_src>
import functools

import jax
import jax.numpy as jnp
from jax import lax
from jax.experimental import pallas as pl
from jax.experimental.pallas import tpu as pltpu


LANE = 128
SUBLANE = 8
NEG = -1e30


def _round_up(x, m):
    return ((x + m - 1) // m) * m


# ----------------------------------------------------------------------------
# Pallas kernels
# ----------------------------------------------------------------------------

def _linear_kernel(x_ref, w_ref, b_ref, o_ref):
    # one big lane-dense MXU matmul: [N, Din] @ [Din, Dout] + [1, Dout]
    o_ref[...] = (jnp.dot(x_ref[...].astype(jnp.bfloat16), w_ref[...],
                          preferred_element_type=jnp.float32)
                  + b_ref[...])


def linear_pallas(x, w, b2d):
    """x: [N, Din], w: [Din, Dout] (bf16), b2d: [1, Dout] (f32) -> f32 [N, Dout]."""
    return pl.pallas_call(
        _linear_kernel,
        out_shape=jax.ShapeDtypeStruct((x.shape[0], w.shape[1]), jnp.float32),
    )(x, w, b2d)


def _matmul_kernel(x_ref, w_ref, o_ref):
    o_ref[...] = jnp.dot(x_ref[...].astype(jnp.bfloat16), w_ref[...],
                         preferred_element_type=jnp.float32)


def matmul_pallas(x, w):
    """x: [N, Din], w: [Din, Dout] (bf16) -> f32 [N, Dout] (no bias)."""
    return pl.pallas_call(
        _matmul_kernel,
        out_shape=jax.ShapeDtypeStruct((x.shape[0], w.shape[1]), jnp.float32),
    )(x, w)


def _enc_kernel(gx_ref, whf_ref, whb_ref,
                bhw_ref, bhb_ref, bcw_ref, bcb_ref,
                hid_ref, cell_ref):
    """Fused bi-directional LSTM recurrence + bridge linears (single launch).

    gx_ref: [S, B, 8H] precomputed input-side gates (fwd gates | bwd gates).
    """
    S = gx_ref.shape[0]
    B = gx_ref.shape[1]
    G = gx_ref.shape[2] // 2          # 4*H for one direction
    H = G // 4

    def gate_math(gates, c_prev):
        i = jax.nn.sigmoid(gates[:, 0 * H:1 * H])
        f = jax.nn.sigmoid(gates[:, 1 * H:2 * H])
        g = jnp.tanh(gates[:, 2 * H:3 * H])
        o = jax.nn.sigmoid(gates[:, 3 * H:4 * H])
        c = f * c_prev + i * g
        h = o * jnp.tanh(c)
        return h, c

    def step(s, carry):
        h_f, c_f, h_b, c_b = carry
        g_fwd = gx_ref[s]                 # [B, 2G]
        g_bwd = gx_ref[S - 1 - s]         # backward direction walks reversed time
        gates_f = g_fwd[:, :G] + jnp.dot(h_f.astype(jnp.bfloat16), whf_ref[...],
                                         preferred_element_type=jnp.float32)
        gates_b = g_bwd[:, G:] + jnp.dot(h_b.astype(jnp.bfloat16), whb_ref[...],
                                         preferred_element_type=jnp.float32)
        h_f, c_f = gate_math(gates_f, c_f)
        h_b, c_b = gate_math(gates_b, c_b)
        return h_f, c_f, h_b, c_b

    z = jnp.zeros((B, H), jnp.float32)
    h_f, c_f, h_b, c_b = lax.fori_loop(0, S, step, (z, z, z, z), unroll=True)

    # fused bridge linears (2H -> H) for hidden and cell
    h_cat = jnp.concatenate([h_f, h_b], axis=1).astype(jnp.bfloat16)
    c_cat = jnp.concatenate([c_f, c_b], axis=1).astype(jnp.bfloat16)
    hid_ref[...] = (jnp.dot(h_cat, bhw_ref[...], preferred_element_type=jnp.float32)
                    + bhb_ref[...])
    cell_ref[...] = (jnp.dot(c_cat, bcw_ref[...], preferred_element_type=jnp.float32)
                     + bcb_ref[...])


def encoder_pallas(gx, wh_f, wh_b, br_h_w, br_h_b, br_c_w, br_c_b):
    B = gx.shape[1]
    H = gx.shape[2] // 8
    return pl.pallas_call(
        _enc_kernel,
        out_shape=(jax.ShapeDtypeStruct((B, H), jnp.float32),
                   jax.ShapeDtypeStruct((B, H), jnp.float32)),
    )(gx, wh_f, wh_b, br_h_w, br_h_b, br_c_w, br_c_b)


def _dec_kernel(flags_ref, tfgx_ref, dembwx_ref, h0_ref, c0_ref,
                wh_ref, b_ref, wfc_ref, bfc_ref,
                out_ref, h_sc, c_sc, gx_sc):
    """One grid step = one decoder timestep; state carried in VMEM scratch.

    tfgx_ref:   [max_len, B, 4H] precomputed teacher-forced input-side gates.
    dembwx_ref: [V, 4H]          dec_embed @ Wx, so argmax path skips the
                                 embedding + Wx matmuls entirely.
    """
    t = pl.program_id(0)
    H = h_sc.shape[1]
    V = wfc_ref.shape[1]

    @pl.when(t == 0)
    def _():
        h_sc[...] = h0_ref[...]
        c_sc[...] = c0_ref[...]
        gx_sc[...] = tfgx_ref[0]          # embed(linear_formula[:, 0]) @ Wx

    gates = (gx_sc[...]
             + jnp.dot(h_sc[...].astype(jnp.bfloat16), wh_ref[...],
                       preferred_element_type=jnp.float32)
             + b_ref[...])
    i = jax.nn.sigmoid(gates[:, 0 * H:1 * H])
    f = jax.nn.sigmoid(gates[:, 1 * H:2 * H])
    g = jnp.tanh(gates[:, 2 * H:3 * H])
    o = jax.nn.sigmoid(gates[:, 3 * H:4 * H])
    c_new = f * c_sc[...] + i * g
    h_new = o * jnp.tanh(c_new)

    logits = (jnp.dot(h_new.astype(jnp.bfloat16), wfc_ref[...],
                      preferred_element_type=jnp.float32)
              + bfc_ref[...])             # [B, V]; padded cols are -1e30
    out_ref[0] = logits
    h_sc[...] = h_new
    c_sc[...] = c_new

    # next-input selection (skipped on the last step): first-max argmax ->
    # one-hot -> gate-row gather via matmul against precomputed dec_embed@Wx,
    # blended with the precomputed teacher-forced gates via the batch-wide coin.
    @pl.when(t + 1 < pl.num_programs(0))
    def _():
        col = lax.broadcasted_iota(jnp.int32, logits.shape, 1)
        mx = jnp.max(logits, axis=1, keepdims=True)
        first = jnp.min(jnp.where(logits >= mx, col, V), axis=1, keepdims=True)
        one_hot = (col == first).astype(jnp.bfloat16)
        pred_gx = jnp.dot(one_hot, dembwx_ref[...],
                          preferred_element_type=jnp.float32)
        tf_w = (flags_ref[t + 1] > 0).astype(jnp.float32)
        gx_sc[...] = tf_w * tfgx_ref[t + 1] + (1.0 - tf_w) * pred_gx


def decoder_pallas(tf_flags, tf_gx, dembwx, h0, c0, wh, b2d, fc_w, fc_b):
    max_len, B, G = tf_gx.shape           # G = 4*H_pad
    H = h0.shape[1]
    V = fc_w.shape[1]
    steps = max_len - 1
    const2 = lambda t, flags: (0, 0)
    const3 = lambda t, flags: (0, 0, 0)
    return pl.pallas_call(
        _dec_kernel,
        out_shape=jax.ShapeDtypeStruct((steps, B, V), jnp.float32),
        grid_spec=pltpu.PrefetchScalarGridSpec(
            num_scalar_prefetch=1,
            grid=(steps,),
            in_specs=[
                pl.BlockSpec((max_len, B, G), const3),   # teacher-forced gates
                pl.BlockSpec((V, G), const2),            # dec_embed @ Wx
                pl.BlockSpec((B, H), const2),            # h0
                pl.BlockSpec((B, H), const2),            # c0
                pl.BlockSpec((H, G), const2),            # dec wh
                pl.BlockSpec((1, G), const2),            # dec b
                pl.BlockSpec((H, V), const2),            # fc w
                pl.BlockSpec((1, V), const2),            # fc b
            ],
            out_specs=pl.BlockSpec((1, B, V), lambda t, flags: (t, 0, 0)),
            scratch_shapes=[
                pltpu.VMEM((B, H), jnp.float32),         # h
                pltpu.VMEM((B, H), jnp.float32),         # c
                pltpu.VMEM((B, G), jnp.float32),         # current input-side gates
            ],
        ),
        compiler_params=pltpu.CompilerParams(
            dimension_semantics=("arbitrary",)),
    )(tf_flags, tf_gx, dembwx, h0, c0, wh, b2d, fc_w, fc_b)


# ----------------------------------------------------------------------------
# Parameters (padded to lane/sublane-friendly shapes; pads are zero except
# the fc bias pad which is -1e30 so argmax never selects padded columns)
# ----------------------------------------------------------------------------

def _pad2(x, rows, cols, fill=0.0):
    return jnp.pad(x, ((0, rows - x.shape[0]), (0, cols - x.shape[1])),
                   constant_values=fill)


def _pad_gate_cols(w, h, h_pad):
    """[in, 4h] -> [in, 4*h_pad], zero-padding each (i,f,g,o) gate block."""
    r = w.reshape(w.shape[0], 4, h)
    r = jnp.pad(r, ((0, 0), (0, 0), (0, h_pad - h)))
    return r.reshape(w.shape[0], 4 * h_pad)


def init_params(key, vocab_en, vocab_de, embed_dim, hidden):
    E_pad = _round_up(embed_dim, LANE)
    H_pad = _round_up(hidden, LANE)
    V_pad = _round_up(vocab_de, LANE)
    ks = jax.random.split(key, 20)
    s = 0.1

    def mat(k, shape):
        return (s * jax.random.normal(k, shape)).astype(jnp.float32)

    def lstm_w(kx, kh, kb, in_dim, in_pad):
        wx = _pad2(_pad_gate_cols(mat(kx, (in_dim, 4 * hidden)), hidden, H_pad),
                   in_pad, 4 * H_pad)
        wh = _pad2(_pad_gate_cols(mat(kh, (hidden, 4 * hidden)), hidden, H_pad),
                   H_pad, 4 * H_pad)
        b = _pad_gate_cols(mat(kb, (1, 4 * hidden)), hidden, H_pad)
        return wx.astype(jnp.bfloat16), wh.astype(jnp.bfloat16), b

    def bridge_w(kw, kb):
        w = mat(kw, (2 * hidden, hidden)).reshape(2, hidden, hidden)
        w = jnp.pad(w, ((0, 0), (0, H_pad - hidden), (0, H_pad - hidden)))
        w = w.reshape(2 * H_pad, H_pad).astype(jnp.bfloat16)
        b = _pad2(mat(kb, (1, hidden)), 1, H_pad)
        return w, b

    embed = _pad2(mat(ks[0], (vocab_en, embed_dim)), vocab_en, E_pad)
    embed = embed.at[0].set(0.0)                  # padding_idx=0 fidelity

    enc_wx_f, enc_wh_f, enc_b_f = lstm_w(ks[1], ks[2], ks[3], embed_dim, E_pad)
    enc_wx_b, enc_wh_b, enc_b_b = lstm_w(ks[4], ks[5], ks[6], embed_dim, E_pad)
    br_h_w, br_h_b = bridge_w(ks[7], ks[8])
    br_c_w, br_c_b = bridge_w(ks[9], ks[10])
    dec_wx, dec_wh, dec_b = lstm_w(ks[11], ks[12], ks[13], embed_dim, E_pad)

    fc_w = _pad2(mat(ks[14], (hidden, vocab_de)), H_pad, V_pad).astype(jnp.bfloat16)
    fc_b = _pad2(mat(ks[15], (1, vocab_de)), 1, V_pad, fill=NEG)

    # shared-embedding rows indexed by decoder-vocab argmax ids, pre-multiplied
    # by the decoder's input-side gate weights so the greedy path in the
    # decoder kernel is a single one_hot @ [V, 4H] matmul (no per-step x@Wx).
    dec_embed = _pad2(embed[:vocab_de], V_pad, E_pad)
    dec_embed_wx = jnp.dot(dec_embed, dec_wx.astype(jnp.float32)
                           ).astype(jnp.bfloat16)                 # [V_pad, 4H_pad]

    return {
        "embed": embed.astype(jnp.bfloat16),                       # [V_en, E_pad]
        "dec_embed_wx": dec_embed_wx,
        # encoder input-side weights for both directions, fused on the out axis
        "enc_wx_fb": jnp.concatenate([enc_wx_f, enc_wx_b], axis=1),  # [E_pad, 8H]
        "enc_b_fb": jnp.concatenate([enc_b_f, enc_b_b], axis=1),     # [1, 8H]
        "enc_wh_f": enc_wh_f, "enc_wh_b": enc_wh_b,
        "br_h_w": br_h_w, "br_h_b": br_h_b,
        "br_c_w": br_c_w, "br_c_b": br_c_b,
        "dec_wx": dec_wx, "dec_wh": dec_wh, "dec_b": dec_b,
        "fc_w": fc_w, "fc_b": fc_b,
    }


# ----------------------------------------------------------------------------
# Seq2Seq forward
# ----------------------------------------------------------------------------

@functools.partial(jax.jit, static_argnames=("teacher_forcing_ratio", "out_vocab"))
def seq2seq_forward(params, problem, linear_formula, tf_key,
                    teacher_forcing_ratio=0.6, out_vocab=None):
    """problem: [B, S] int32, linear_formula: [B, max_len] int32."""
    B, S = problem.shape
    max_len = linear_formula.shape[1]
    B_pad = _round_up(B, SUBLANE)

    prob_p = jnp.pad(problem, ((0, B_pad - B), (0, 0)))
    lf_p = jnp.pad(linear_formula, ((0, B_pad - B), (0, 0)))

    embed = params["embed"]
    # gather encoder embeddings directly in TIME-MAJOR order (no [B,S,E]
    # transpose copy); the embedding table itself stays out of VMEM.
    enc_emb = jnp.take(embed, prob_p.T, axis=0)          # [S, B_pad, E_pad] bf16

    # hoisted input-side matmul for BOTH directions: one big lane-dense matmul
    gx2d = linear_pallas(enc_emb.reshape(S * B_pad, -1),
                         params["enc_wx_fb"], params["enc_b_fb"])
    gx = gx2d.reshape(S, B_pad, -1)                      # [S, B_pad, 8*H_pad] f32

    # fused bi-directional recurrence + bridge linears (single pallas_call)
    hidden, cell = encoder_pallas(gx, params["enc_wh_f"], params["enc_wh_b"],
                                  params["br_h_w"], params["br_h_b"],
                                  params["br_c_w"], params["br_c_b"])

    # hoisted decoder input-side gates for the teacher-forced path, time-major
    tf_emb = jnp.take(embed, lf_p.T, axis=0)             # [max_len, B_pad, E_pad]
    tf_gx = matmul_pallas(tf_emb.reshape(max_len * B_pad, -1),
                          params["dec_wx"]).reshape(max_len, B_pad, -1)

    # deterministic replacement for python `random.random() < ratio`:
    # one coin per timestep, applied batch-wide (same as the torch loop)
    coins = jax.random.uniform(tf_key, (max_len,))
    tf_flags = (coins < teacher_forcing_ratio).astype(jnp.int32)

    # entire decoder loop in ONE pallas_call
    logits_seq = decoder_pallas(tf_flags, tf_gx, params["dec_embed_wx"],
                                hidden, cell,
                                params["dec_wh"], params["dec_b"],
                                params["fc_w"], params["fc_b"])

    v_de = out_vocab if out_vocab is not None else params["fc_w"].shape[1]
    outputs = jnp.zeros((B, max_len, v_de), dtype=jnp.float32)
    outputs = outputs.at[:, 1:, :].set(
        jnp.transpose(logits_seq[:, :B, :v_de], (1, 0, 2)))
    return outputs, linear_formula


# ----------------------------------------------------------------------------
# main
# ----------------------------------------------------------------------------

if __name__ == "__main__":
    B = 2           # batch
    S_IN = 12       # encoder sequence length
    MAX_LEN = 8     # decoder sequence length
    E = 32          # embed_dim      (200 in the original)
    H = 32          # en/de hidden   (512 in the original)
    V_EN = 64       # encoder vocab size
    V_DE = 48       # decoder vocab size

    root = jax.random.PRNGKey(0)
    k_param, k_prob, k_form, k_tf = jax.random.split(root, 4)

    params = init_params(k_param, V_EN, V_DE, E, H)
    problem = jax.random.randint(k_prob, (B, S_IN), 1, V_EN, dtype=jnp.int32)
    linear_formula = jax.random.randint(k_form, (B, MAX_LEN), 1, V_DE,
                                        dtype=jnp.int32)

    outputs, lf = seq2seq_forward(params, problem, linear_formula, k_tf,
                                  teacher_forcing_ratio=0.6, out_vocab=V_DE)
    outputs = jax.block_until_ready(outputs)

    assert outputs.shape == (B, MAX_LEN, V_DE)
    assert bool(jnp.all(outputs[:, 0, :] == 0.0))   # t=0 row untouched, like torch
    assert bool(jnp.all(jnp.isfinite(outputs)))
    print("KERNEL_OK")
</pallas_src>

<mosaic_0001>
module attributes {stable_mosaic.version = 11 : i64} {
  func.func @_linear_kernel(%arg0: memref<96x128xbf16, #tpu.memory_space<vmem>>, %arg1: memref<128x1024xbf16, #tpu.memory_space<vmem>>, %arg2: memref<1x1024xf32, #tpu.memory_space<vmem>>, %arg3: memref<96x1024xf32, #tpu.memory_space<vmem>>) attributes {dimension_semantics = [], scalar_prefetch = 0 : i64, scratch_operands = 0 : i64, tpu.core_type = #tpu.core_type<tc>} {
    %c0 = arith.constant 0 : index
    %c0_0 = arith.constant 0 : index
    %0 = vector.load %arg0[%c0, %c0_0] : memref<96x128xbf16, #tpu.memory_space<vmem>>, vector<96x128xbf16>
    %c0_1 = arith.constant 0 : index
    %c0_2 = arith.constant 0 : index
    %1 = vector.load %arg1[%c0_1, %c0_2] : memref<128x1024xbf16, #tpu.memory_space<vmem>>, vector<128x1024xbf16>
    %cst = arith.constant dense<0.000000e+00> : vector<96x1024xf32>
    %2 = tpu.matmul %0, %1, %cst {dimension_numbers = #tpu.dot_dimension_numbers<[1], [0], [0], [1], [0, 0, 1, 1], [], []>} : vector<96x128xbf16>, vector<128x1024xbf16>, vector<96x1024xf32> -> vector<96x1024xf32>
    %c0_3 = arith.constant 0 : index
    %c0_4 = arith.constant 0 : index
    %3 = vector.load %arg2[%c0_3, %c0_4] : memref<1x1024xf32, #tpu.memory_space<vmem>>, vector<1x1024xf32>
    %4 = vector.broadcast %3 : vector<1x1024xf32> to vector<96x1024xf32>
    %5 = arith.addf %2, %4 : vector<96x1024xf32>
    %c0_5 = arith.constant 0 : index
    %c0_6 = arith.constant 0 : index
    %6 = vector.load %arg3[%c0_5, %c0_6] : memref<96x1024xf32, #tpu.memory_space<vmem>>, vector<96x1024xf32>
    tpu.vector_store %arg3[%c0_5, %c0_6], %5 {strides = array<i32>} : memref<96x1024xf32, #tpu.memory_space<vmem>>, vector<96x1024xf32>,
    return
  }
}

module attributes {stable_mosaic.version = 11 : i64} {
  func.func @_matmul_kernel(%arg0: memref<64x128xbf16, #tpu.memory_space<vmem>>, %arg1: memref<128x512xbf16, #tpu.memory_space<vmem>>, %arg2: memref<64x512xf32, #tpu.memory_space<vmem>>) attributes {dimension_semantics = [], scalar_prefetch = 0 : i64, scratch_operands = 0 : i64, tpu.core_type = #tpu.core_type<tc>} {
    %c0 = arith.constant 0 : index
    %c0_0 = arith.constant 0 : index
    %0 = vector.load %arg0[%c0, %c0_0] : memref<64x128xbf16, #tpu.memory_space<vmem>>, vector<64x128xbf16>
    %c0_1 = arith.constant 0 : index
    %c0_2 = arith.constant 0 : index
    %1 = vector.load %arg1[%c0_1, %c0_2] : memref<128x512xbf16, #tpu.memory_space<vmem>>, vector<128x512xbf16>
    %cst = arith.constant dense<0.000000e+00> : vector<64x512xf32>
    %2 = tpu.matmul %0, %1, %cst {dimension_numbers = #tpu.dot_dimension_numbers<[1], [0], [0], [1], [0, 0, 1, 1], [], []>} : vector<64x128xbf16>, vector<128x512xbf16>, vector<64x512xf32> -> vector<64x512xf32>
    %c0_3 = arith.constant 0 : index
    %c0_4 = arith.constant 0 : index
    %3 = vector.load %arg2[%c0_3, %c0_4] : memref<64x512xf32, #tpu.memory_space<vmem>>, vector<64x512xf32>
    tpu.vector_store %arg2[%c0_3, %c0_4], %2 {strides = array<i32>} : memref<64x512xf32, #tpu.memory_space<vmem>>, vector<64x512xf32>,
    return
  }
}

module attributes {stable_mosaic.version = 11 : i64} {
  func.func @_enc_kernel(%arg0: memref<12x8x1024xf32, #tpu.memory_space<vmem>>, %arg1: memref<128x512xbf16, #tpu.memory_space<vmem>>, %arg2: memref<128x512xbf16, #tpu.memory_space<vmem>>, %arg3: memref<256x128xbf16, #tpu.memory_space<vmem>>, %arg4: memref<1x128xf32, #tpu.memory_space<vmem>>, %arg5: memref<256x128xbf16, #tpu.memory_space<vmem>>, %arg6: memref<1x128xf32, #tpu.memory_space<vmem>>, %arg7: memref<8x128xf32, #tpu.memory_space<vmem>>, %arg8: memref<8x128xf32, #tpu.memory_space<vmem>>) attributes {dimension_semantics = [], scalar_prefetch = 0 : i64, scratch_operands = 0 : i64, tpu.core_type = #tpu.core_type<tc>} {
    %cst = arith.constant 0.000000e+00 : f32
    %0 = vector.broadcast %cst : f32 to vector<8x128xf32>
    %c0_i32 = arith.constant 0 : i32
    %1 = arith.index_cast %c0_i32 : i32 to index
    %c0 = arith.constant 0 : index
    %c0_0 = arith.constant 0 : index
    %2 = vector.load %arg0[%1, %c0, %c0_0] : memref<12x8x1024xf32, #tpu.memory_space<vmem>>, vector<1x8x1024xf32>
    %3 = vector.shape_cast %2 : vector<1x8x1024xf32> to vector<8x1024xf32>
    %c11_i32 = arith.constant 11 : i32
    %4 = arith.subi %c11_i32, %c0_i32 : i32
    %5 = arith.index_cast %4 : i32 to index
    %c0_1 = arith.constant 0 : index
    %c0_2 = arith.constant 0 : index
    %6 = vector.load %arg0[%5, %c0_1, %c0_2] : memref<12x8x1024xf32, #tpu.memory_space<vmem>>, vector<1x8x1024xf32>
    %7 = vector.shape_cast %6 : vector<1x8x1024xf32> to vector<8x1024xf32>
    %8 = vector.extract_strided_slice %3 {offsets = [0, 0], sizes = [8, 512], strides = [1, 1]} : vector<8x1024xf32> to vector<8x512xf32>
    %9 = arith.truncf %0 : vector<8x128xf32> to vector<8x128xbf16>
    %c0_3 = arith.constant 0 : index
    %c0_4 = arith.constant 0 : index
    %10 = vector.load %arg1[%c0_3, %c0_4] : memref<128x512xbf16, #tpu.memory_space<vmem>>, vector<128x512xbf16>
    %cst_5 = arith.constant dense<0.000000e+00> : vector<8x512xf32>
    %11 = tpu.matmul %9, %10, %cst_5 {dimension_numbers = #tpu.dot_dimension_numbers<[1], [0], [0], [1], [0, 0, 1, 1], [], []>} : vector<8x128xbf16>, vector<128x512xbf16>, vector<8x512xf32> -> vector<8x512xf32>
    %12 = arith.addf %8, %11 : vector<8x512xf32>
    %13 = vector.extract_strided_slice %7 {offsets = [0, 512], sizes = [8, 512], strides = [1, 1]} : vector<8x1024xf32> to vector<8x512xf32>
    %14 = arith.truncf %0 : vector<8x128xf32> to vector<8x128xbf16>
    %c0_6 = arith.constant 0 : index
    %c0_7 = arith.constant 0 : index
    %15 = vector.load %arg2[%c0_6, %c0_7] : memref<128x512xbf16, #tpu.memory_space<vmem>>, vector<128x512xbf16>
    %cst_8 = arith.constant dense<0.000000e+00> : vector<8x512xf32>
    %16 = tpu.matmul %14, %15, %cst_8 {dimension_numbers = #tpu.dot_dimension_numbers<[1], [0], [0], [1], [0, 0, 1, 1], [], []>} : vector<8x128xbf16>, vector<128x512xbf16>, vector<8x512xf32> -> vector<8x512xf32>
    %17 = arith.addf %13, %16 : vector<8x512xf32>
    %18 = vector.extract_strided_slice %12 {offsets = [0, 0], sizes = [8, 128], strides = [1, 1]} : vector<8x512xf32> to vector<8x128xf32>
    %19 = arith.negf %18 : vector<8x128xf32>
    %20 = math.exp %19 : vector<8x128xf32>
    %cst_9 = arith.constant 1.000000e+00 : f32
    %21 = vector.broadcast %cst_9 : f32 to vector<8x128xf32>
    %22 = arith.addf %21, %20 : vector<8x128xf32>
    %23 = arith.divf %21, %22 : vector<8x128xf32>
    %24 = vector.extract_strided_slice %12 {offsets = [0, 128], sizes = [8, 128], strides = [1, 1]} : vector<8x512xf32> to vector<8x128xf32>
    %25 = arith.negf %24 : vector<8x128xf32>
    %26 = math.exp %25 : vector<8x128xf32>
    %cst_10 = arith.constant 1.000000e+00 : f32
    %27 = vector.broadcast %cst_10 : f32 to vector<8x128xf32>
    %28 = arith.addf %27, %26 : vector<8x128xf32>
    %29 = arith.divf %27, %28 : vector<8x128xf32>
    %30 = vector.extract_strided_slice %12 {offsets = [0, 256], sizes = [8, 128], strides = [1, 1]} : vector<8x512xf32> to vector<8x128xf32>
    %31 = math.tanh %30 : vector<8x128xf32>
    %32 = vector.extract_strided_slice %12 {offsets = [0, 384], sizes = [8, 128], strides = [1, 1]} : vector<8x512xf32> to vector<8x128xf32>
    %33 = arith.negf %32 : vector<8x128xf32>
    %34 = math.exp %33 : vector<8x128xf32>
    %cst_11 = arith.constant 1.000000e+00 : f32
    %35 = vector.broadcast %cst_11 : f32 to vector<8x128xf32>
    %36 = arith.addf %35, %34 : vector<8x128xf32>
    %37 = arith.divf %35, %36 : vector<8x128xf32>
    %38 = arith.mulf %29, %0 : vector<8x128xf32>
    %39 = arith.mulf %23, %31 : vector<8x128xf32>
    %40 = arith.addf %38, %39 : vector<8x128xf32>
    %41 = math.tanh %40 : vector<8x128xf32>
    %42 = arith.mulf %37, %41 : vector<8x128xf32>
    %43 = vector.extract_strided_slice %17 {offsets = [0, 0], sizes = [8, 128], strides = [1, 1]} : vector<8x512xf32> to vector<8x128xf32>
    %44 = arith.negf %43 : vector<8x128xf32>
    %45 = math.exp %44 : vector<8x128xf32>
    %cst_12 = arith.constant 1.000000e+00 : f32
    %46 = vector.broadcast %cst_12 : f32 to vector<8x128xf32>
    %47 = arith.addf %46, %45 : vector<8x128xf32>
    %48 = arith.divf %46, %47 : vector<8x128xf32>
    %49 = vector.extract_strided_slice %17 {offsets = [0, 128], sizes = [8, 128], strides = [1, 1]} : vector<8x512xf32> to vector<8x128xf32>
    %50 = arith.negf %49 : vector<8x128xf32>
    %51 = math.exp %50 : vector<8x128xf32>
    %cst_13 = arith.constant 1.000000e+00 : f32
    %52 = vector.broadcast %cst_13 : f32 to vector<8x128xf32>
    %53 = arith.addf %52, %51 : vector<8x128xf32>
    %54 = arith.divf %52, %53 : vector<8x128xf32>
    %55 = vector.extract_strided_slice %17 {offsets = [0, 256], sizes = [8, 128], strides = [1, 1]} : vector<8x512xf32> to vector<8x128xf32>
    %56 = math.tanh %55 : vector<8x128xf32>
    %57 = vector.extract_strided_slice %17 {offsets = [0, 384], sizes = [8, 128], strides = [1, 1]} : vector<8x512xf32> to vector<8x128xf32>
    %58 = arith.negf %57 : vector<8x128xf32>
    %59 = math.exp %58 : vector<8x128xf32>
    %cst_14 = arith.constant 1.000000e+00 : f32
    %60 = vector.broadcast %cst_14 : f32 to vector<8x128xf32>
    %61 = arith.addf %60, %59 : vector<8x128xf32>
    %62 = arith.divf %60, %61 : vector<8x128xf32>
    %63 = arith.mulf %54, %0 : vector<8x128xf32>
    %64 = arith.mulf %48, %56 : vector<8x128xf32>
    %65 = arith.addf %63, %64 : vector<8x128xf32>
    %66 = math.tanh %65 : vector<8x128xf32>
    %67 = arith.mulf %62, %66 : vector<8x128xf32>
    %c1_i32 = arith.constant 1 : i32
    %68 = arith.index_cast %c1_i32 : i32 to index
    %c0_15 = arith.constant 0 : index
    %c0_16 = arith.constant 0 : index
    %69 = vector.load %arg0[%68, %c0_15, %c0_16] : memref<12x8x1024xf32, #tpu.memory_space<vmem>>, vector<1x8x1024xf32>
    %70 = vector.shape_cast %69 : vector<1x8x1024xf32> to vector<8x1024xf32>
    %c11_i32_17 = arith.constant 11 : i32
    %71 = arith.subi %c11_i32_17, %c1_i32 : i32
    %72 = arith.index_cast %71 : i32 to index
    %c0_18 = arith.constant 0 : index
    %c0_19 = arith.constant 0 : index
    %73 = vector.load %arg0[%72, %c0_18, %c0_19] : memref<12x8x1024xf32, #tpu.memory_space<vmem>>, vector<1x8x1024xf32>
    %74 = vector.shape_cast %73 : vector<1x8x1024xf32> to vector<8x1024xf32>
    %75 = vector.extract_strided_slice %70 {offsets = [0, 0], sizes = [8, 512], strides = [1, 1]} : vector<8x1024xf32> to vector<8x512xf32>
    %76 = arith.truncf %42 : vector<8x128xf32> to vector<8x128xbf16>
    %c0_20 = arith.constant 0 : index
    %c0_21 = arith.constant 0 : index
    %77 = vector.load %arg1[%c0_20, %c0_21] : memref<128x512xbf16, #tpu.memory_space<vmem>>, vector<128x512xbf16>
    %cst_22 = arith.constant dense<0.000000e+00> : vector<8x512xf32>
    %78 = tpu.matmul %76, %77, %cst_22 {dimension_numbers = #tpu.dot_dimension_numbers<[1], [0], [0], [1], [0, 0, 1, 1], [], []>} : vector<8x128xbf16>, vector<128x512xbf16>, vector<8x512xf32> -> vector<8x512xf32>
    %79 = arith.addf %75, %78 : vector<8x512xf32>
    %80 = vector.extract_strided_slice %74 {offsets = [0, 512], sizes = [8, 512], strides = [1, 1]} : vector<8x1024xf32> to vector<8x512xf32>
    %81 = arith.truncf %67 : vector<8x128xf32> to vector<8x128xbf16>
    %c0_23 = arith.constant 0 : index
    %c0_24 = arith.constant 0 : index
    %82 = vector.load %arg2[%c0_23, %c0_24] : memref<128x512xbf16, #tpu.memory_space<vmem>>, vector<128x512xbf16>
    %cst_25 = arith.constant dense<0.000000e+00> : vector<8x512xf32>
    %83 = tpu.matmul %81, %82, %cst_25 {dimension_numbers = #tpu.dot_dimension_numbers<[1], [0], [0], [1], [0, 0, 1, 1], [], []>} : vector<8x128xbf16>, vector<128x512xbf16>, vector<8x512xf32> -> vector<8x512xf32>
    %84 = arith.addf %80, %83 : vector<8x512xf32>
    %85 = vector.extract_strided_slice %79 {offsets = [0, 0], sizes = [8, 128], strides = [1, 1]} : vector<8x512xf32> to vector<8x128xf32>
    %86 = arith.negf %85 : vector<8x128xf32>
    %87 = math.exp %86 : vector<8x128xf32>
    %cst_26 = arith.constant 1.000000e+00 : f32
    %88 = vector.broadcast %cst_26 : f32 to vector<8x128xf32>
    %89 = arith.addf %88, %87 : vector<8x128xf32>
    %90 = arith.divf %88, %89 : vector<8x128xf32>
    %91 = vector.extract_strided_slice %79 {offsets = [0, 128], sizes = [8, 128], strides = [1, 1]} : vector<8x512xf32> to vector<8x128xf32>
    %92 = arith.negf %91 : vector<8x128xf32>
    %93 = math.exp %92 : vector<8x128xf32>
    %cst_27 = arith.constant 1.000000e+00 : f32
    %94 = vector.broadcast %cst_27 : f32 to vector<8x128xf32>
    %95 = arith.addf %94, %93 : vector<8x128xf32>
    %96 = arith.divf %94, %95 : vector<8x128xf32>
    %97 = vector.extract_strided_slice %79 {offsets = [0, 256], sizes = [8, 128], strides = [1, 1]} : vector<8x512xf32> to vector<8x128xf32>
    %98 = math.tanh %97 : vector<8x128xf32>
    %99 = vector.extract_strided_slice %79 {offsets = [0, 384], sizes = [8, 128], strides = [1, 1]} : vector<8x512xf32> to vector<8x128xf32>
    %100 = arith.negf %99 : vector<8x128xf32>
    %101 = math.exp %100 : vector<8x128xf32>
    %cst_28 = arith.constant 1.000000e+00 : f32
    %102 = vector.broadcast %cst_28 : f32 to vector<8x128xf32>
    %103 = arith.addf %102, %101 : vector<8x128xf32>
    %104 = arith.divf %102, %103 : vector<8x128xf32>
    %105 = arith.mulf %96, %40 : vector<8x128xf32>
    %106 = arith.mulf %90, %98 : vector<8x128xf32>
    %107 = arith.addf %105, %106 : vector<8x128xf32>
    %108 = math.tanh %107 : vector<8x128xf32>
    %109 = arith.mulf %104, %108 : vector<8x128xf32>
    %110 = vector.extract_strided_slice %84 {offsets = [0, 0], sizes = [8, 128], strides = [1, 1]} : vector<8x512xf32> to vector<8x128xf32>
    %111 = arith.negf %110 : vector<8x128xf32>
    %112 = math.exp %111 : vector<8x128xf32>
    %cst_29 = arith.constant 1.000000e+00 : f32
    %113 = vector.broadcast %cst_29 : f32 to vector<8x128xf32>
    %114 = arith.addf %113, %112 : vector<8x128xf32>
    %115 = arith.divf %113, %114 : vector<8x128xf32>
    %116 = vector.extract_strided_slice %84 {offsets = [0, 128], sizes = [8, 128], strides = [1, 1]} : vector<8x512xf32> to vector<8x128xf32>
    %117 = arith.negf %116 : vector<8x128xf32>
    %118 = math.exp %117 : vector<8x128xf32>
    %cst_30 = arith.constant 1.000000e+00 : f32
    %119 = vector.broadcast %cst_30 : f32 to vector<8x128xf32>
    %120 = arith.addf %119, %118 : vector<8x128xf32>
    %121 = arith.divf %119, %120 : vector<8x128xf32>
    %122 = vector.extract_strided_slice %84 {offsets = [0, 256], sizes = [8, 128], strides = [1, 1]} : vector<8x512xf32> to vector<8x128xf32>
    %123 = math.tanh %122 : vector<8x128xf32>
    %124 = vector.extract_strided_slice %84 {offsets = [0, 384], sizes = [8, 128], strides = [1, 1]} : vector<8x512xf32> to vector<8x128xf32>
    %125 = arith.negf %124 : vector<8x128xf32>
    %126 = math.exp %125 : vector<8x128xf32>
    %cst_31 = arith.constant 1.000000e+00 : f32
    %127 = vector.broadcast %cst_31 : f32 to vector<8x128xf32>
    %128 = arith.addf %127, %126 : vector<8x128xf32>
    %129 = arith.divf %127, %128 : vector<8x128xf32>
    %130 = arith.mulf %121, %65 : vector<8x128xf32>
    %131 = arith.mulf %115, %123 : vector<8x128xf32>
    %132 = arith.addf %130, %131 : vector<8x128xf32>
    %133 = math.tanh %132 : vector<8x128xf32>
    %134 = arith.mulf %129, %133 : vector<8x128xf32>
    %c2_i32 = arith.constant 2 : i32
    %135 = arith.index_cast %c2_i32 : i32 to index
    %c0_32 = arith.constant 0 : index
    %c0_33 = arith.constant 0 : index
    %136 = vector.load %arg0[%135, %c0_32, %c0_33] : memref<12x8x1024xf32, #tpu.memory_space<vmem>>, vector<1x8x1024xf32>
    %137 = vector.shape_cast %136 : vector<1x8x1024xf32> to vector<8x1024xf32>
    %c11_i32_34 = arith.constant 11 : i32
    %138 = arith.subi %c11_i32_34, %c2_i32 : i32
    %139 = arith.index_cast %138 : i32 to index
    %c0_35 = arith.constant 0 : index
    %c0_36 = arith.constant 0 : index
    %140 = vector.load %arg0[%139, %c0_35, %c0_36] : memref<12x8x1024xf32, #tpu.memory_space<vmem>>, vector<1x8x1024xf32>
    %141 = vector.shape_cast %140 : vector<1x8x1024xf32> to vector<8x1024xf32>
    %142 = vector.extract_strided_slice %137 {offsets = [0, 0], sizes = [8, 512], strides = [1, 1]} : vector<8x1024xf32> to vector<8x512xf32>
    %143 = arith.truncf %109 : vector<8x128xf32> to vector<8x128xbf16>
    %c0_37 = arith.constant 0 : index
    %c0_38 = arith.constant 0 : index
    %144 = vector.load %arg1[%c0_37, %c0_38] : memref<128x512xbf16, #tpu.memory_space<vmem>>, vector<128x512xbf16>
    %cst_39 = arith.constant dense<0.000000e+00> : vector<8x512xf32>
    %145 = tpu.matmul %143, %144, %cst_39 {dimension_numbers = #tpu.dot_dimension_numbers<[1], [0], [0], [1], [0, 0, 1, 1], [], []>} : vector<8x128xbf16>, vector<128x512xbf16>, vector<8x512xf32> -> vector<8x512xf32>
    %146 = arith.addf %142, %145 : vector<8x512xf32>
    %147 = vector.extract_strided_slice %141 {offsets = [0, 512], sizes = [8, 512], strides = [1, 1]} : vector<8x1024xf32> to vector<8x512xf32>
    %148 = arith.truncf %134 : vector<8x128xf32> to vector<8x128xbf16>
    %c0_40 = arith.constant 0 : index
    %c0_41 = arith.constant 0 : index
    %149 = vector.load %arg2[%c0_40, %c0_41] : memref<128x512xbf16, #tpu.memory_space<vmem>>, vector<128x512xbf16>
    %cst_42 = arith.constant dense<0.000000e+00> : vector<8x512xf32>
    %150 = tpu.matmul %148, %149, %cst_42 {dimension_numbers = #tpu.dot_dimension_numbers<[1], [0], [0], [1], [0, 0, 1, 1], [], []>} : vector<8x128xbf16>, vector<128x512xbf16>, vector<8x512xf32> -> vector<8x512xf32>
    %151 = arith.addf %147, %150 : vector<8x512xf32>
    %152 = vector.extract_strided_slice %146 {offsets = [0, 0], sizes = [8, 128], strides = [1, 1]} : vector<8x512xf32> to vector<8x128xf32>
    %153 = arith.negf %152 : vector<8x128xf32>
    %154 = math.exp %153 : vector<8x128xf32>
    %cst_43 = arith.constant 1.000000e+00 : f32
    %155 = vector.broadcast %cst_43 : f32 to vector<8x128xf32>
    %156 = arith.addf %155, %154 : vector<8x128xf32>
    %157 = arith.divf %155, %156 : vector<8x128xf32>
    %158 = vector.extract_strided_slice %146 {offsets = [0, 128], sizes = [8, 128], strides = [1, 1]} : vector<8x512xf32> to vector<8x128xf32>
    %159 = arith.negf %158 : vector<8x128xf32>
    %160 = math.exp %159 : vector<8x128xf32>
    %cst_44 = arith.constant 1.000000e+00 : f32
    %161 = vector.broadcast %cst_44 : f32 to vector<8x128xf32>
    %162 = arith.addf %161, %160 : vector<8x128xf32>
    %163 = arith.divf %161, %162 : vector<8x128xf32>
    %164 = vector.extract_strided_slice %146 {offsets = [0, 256], sizes = [8, 128], strides = [1, 1]} : vector<8x512xf32> to vector<8x128xf32>
    %165 = math.tanh %164 : vector<8x128xf32>
    %166 = vector.extract_strided_slice %146 {offsets = [0, 384], sizes = [8, 128], strides = [1, 1]} : vector<8x512xf32> to vector<8x128xf32>
    %167 = arith.negf %166 : vector<8x128xf32>
    %168 = math.exp %167 : vector<8x128xf32>
    %cst_45 = arith.constant 1.000000e+00 : f32
    %169 = vector.broadcast %cst_45 : f32 to vector<8x128xf32>
    %170 = arith.addf %169, %168 : vector<8x128xf32>
    %171 = arith.divf %169, %170 : vector<8x128xf32>
    %172 = arith.mulf %163, %107 : vector<8x128xf32>
    %173 = arith.mulf %157, %165 : vector<8x128xf32>
    %174 = arith.addf %172, %173 : vector<8x128xf32>
    %175 = math.tanh %174 : vector<8x128xf32>
    %176 = arith.mulf %171, %175 : vector<8x128xf32>
    %177 = vector.extract_strided_slice %151 {offsets = [0, 0], sizes = [8, 128], strides = [1, 1]} : vector<8x512xf32> to vector<8x128xf32>
    %178 = arith.negf %177 : vector<8x128xf32>
    %179 = math.exp %178 : vector<8x128xf32>
    %cst_46 = arith.constant 1.000000e+00 : f32
    %180 = vector.broadcast %cst_46 : f32 to vector<8x128xf32>
    %181 = arith.addf %180, %179 : vector<8x128xf32>
    %182 = arith.divf %180, %181 : vector<8x128xf32>
    %183 = vector.extract_strided_slice %151 {offsets = [0, 128], sizes = [8, 128], strides = [1, 1]} : vector<8x512xf32> to vector<8x128xf32>
    %184 = arith.negf %183 : vector<8x128xf32>
    %185 = math.exp %184 : vector<8x128xf32>
    %cst_47 = arith.constant 1.000000e+00 : f32
    %186 = vector.broadcast %cst_47 : f32 to vector<8x128xf32>
    %187 = arith.addf %186, %185 : vector<8x128xf32>
    %188 = arith.divf %186, %187 : vector<8x128xf32>
    %189 = vector.extract_strided_slice %151 {offsets = [0, 256], sizes = [8, 128], strides = [1, 1]} : vector<8x512xf32> to vector<8x128xf32>
    %190 = math.tanh %189 : vector<8x128xf32>
    %191 = vector.extract_strided_slice %151 {offsets = [0, 384], sizes = [8, 128], strides = [1, 1]} : vector<8x512xf32> to vector<8x128xf32>
    %192 = arith.negf %191 : vector<8x128xf32>
    %193 = math.exp %192 : vector<8x128xf32>
    %cst_48 = arith.constant 1.000000e+00 : f32
    %194 = vector.broadcast %cst_48 : f32 to vector<8x128xf32>
    %195 = arith.addf %194, %193 : vector<8x128xf32>
    %196 = arith.divf %194, %195 : vector<8x128xf32>
    %197 = arith.mulf %188, %132 : vector<8x128xf32>
    %198 = arith.mulf %182, %190 : vector<8x128xf32>
    %199 = arith.addf %197, %198 : vector<8x128xf32>
    %200 = math.tanh %199 : vector<8x128xf32>
    %201 = arith.mulf %196, %200 : vector<8x128xf32>
    %c3_i32 = arith.constant 3 : i32
    %202 = arith.index_cast %c3_i32 : i32 to index
    %c0_49 = arith.constant 0 : index
    %c0_50 = arith.constant 0 : index
    %203 = vector.load %arg0[%202, %c0_49, %c0_50] : memref<12x8x1024xf32, #tpu.memory_space<vmem>>, vector<1x8x1024xf32>
    %204 = vector.shape_cast %203 : vector<1x8x1024xf32> to vector<8x1024xf32>
    %c11_i32_51 = arith.constant 11 : i32
    %205 = arith.subi %c11_i32_51, %c3_i32 : i32
    %206 = arith.index_cast %205 : i32 to index
    %c0_52 = arith.constant 0 : index
    %c0_53 = arith.constant 0 : index
    %207 = vector.load %arg0[%206, %c0_52, %c0_53] : memref<12x8x1024xf32, #tpu.memory_space<vmem>>, vector<1x8x1024xf32>
    %208 = vector.shape_cast %207 : vector<1x8x1024xf32> to vector<8x1024xf32>
    %209 = vector.extract_strided_slice %204 {offsets = [0, 0], sizes = [8, 512], strides = [1, 1]} : vector<8x1024xf32> to vector<8x512xf32>
    %210 = arith.truncf %176 : vector<8x128xf32> to vector<8x128xbf16>
    %c0_54 = arith.constant 0 : index
    %c0_55 = arith.constant 0 : index
    %211 = vector.load %arg1[%c0_54, %c0_55] : memref<128x512xbf16, #tpu.memory_space<vmem>>, vector<128x512xbf16>
    %cst_56 = arith.constant dense<0.000000e+00> : vector<8x512xf32>
    %212 = tpu.matmul %210, %211, %cst_56 {dimension_numbers = #tpu.dot_dimension_numbers<[1], [0], [0], [1], [0, 0, 1, 1], [], []>} : vector<8x128xbf16>, vector<128x512xbf16>, vector<8x512xf32> -> vector<8x512xf32>
    %213 = arith.addf %209, %212 : vector<8x512xf32>
    %214 = vector.extract_strided_slice %208 {offsets = [0, 512], sizes = [8, 512], strides = [1, 1]} : vector<8x1024xf32> to vector<8x512xf32>
    %215 = arith.truncf %201 : vector<8x128xf32> to vector<8x128xbf16>
    %c0_57 = arith.constant 0 : index
    %c0_58 = arith.constant 0 : index
    %216 = vector.load %arg2[%c0_57, %c0_58] : memref<128x512xbf16, #tpu.memory_space<vmem>>, vector<128x512xbf16>
    %cst_59 = arith.constant dense<0.000000e+00> : vector<8x512xf32>
    %217 = tpu.matmul %215, %216, %cst_59 {dimension_numbers = #tpu.dot_dimension_numbers<[1], [0], [0], [1], [0, 0, 1, 1], [], []>} : vector<8x128xbf16>, vector<128x512xbf16>, vector<8x512xf32> -> vector<8x512xf32>
    %218 = arith.addf %214, %217 : vector<8x512xf32>
    %219 = vector.extract_strided_slice %213 {offsets = [0, 0], sizes = [8, 128], strides = [1, 1]} : vector<8x512xf32> to vector<8x128xf32>
    %220 = arith.negf %219 : vector<8x128xf32>
    %221 = math.exp %220 : vector<8x128xf32>
    %cst_60 = arith.constant 1.000000e+00 : f32
    %222 = vector.broadcast %cst_60 : f32 to vector<8x128xf32>
    %223 = arith.addf %222, %221 : vector<8x128xf32>
    %224 = arith.divf %222, %223 : vector<8x128xf32>
    %225 = vector.extract_strided_slice %213 {offsets = [0, 128], sizes = [8, 128], strides = [1, 1]} : vector<8x512xf32> to vector<8x128xf32>
    %226 = arith.negf %225 : vector<8x128xf32>
    %227 = math.exp %226 : vector<8x128xf32>
    %cst_61 = arith.constant 1.000000e+00 : f32
    %228 = vector.broadcast %cst_61 : f32 to vector<8x128xf32>
    %229 = arith.addf %228, %227 : vector<8x128xf32>
    %230 = arith.divf %228, %229 : vector<8x128xf32>
    %231 = vector.extract_strided_slice %213 {offsets = [0, 256], sizes = [8, 128], strides = [1, 1]} : vector<8x512xf32> to vector<8x128xf32>
    %232 = math.tanh %231 : vector<8x128xf32>
    %233 = vector.extract_strided_slice %213 {offsets = [0, 384], sizes = [8, 128], strides = [1, 1]} : vector<8x512xf32> to vector<8x128xf32>
    %234 = arith.negf %233 : vector<8x128xf32>
    %235 = math.exp %234 : vector<8x128xf32>
    %cst_62 = arith.constant 1.000000e+00 : f32
    %236 = vector.broadcast %cst_62 : f32 to vector<8x128xf32>
    %237 = arith.addf %236, %235 : vector<8x128xf32>
    %238 = arith.divf %236, %237 : vector<8x128xf32>
    %239 = arith.mulf %230, %174 : vector<8x128xf32>
    %240 = arith.mulf %224, %232 : vector<8x128xf32>
    %241 = arith.addf %239, %240 : vector<8x128xf32>
    %242 = math.tanh %241 : vector<8x128xf32>
    %243 = arith.mulf %238, %242 : vector<8x128xf32>
    %244 = vector.extract_strided_slice %218 {offsets = [0, 0], sizes = [8, 128], strides = [1, 1]} : vector<8x512xf32> to vector<8x128xf32>
    %245 = arith.negf %244 : vector<8x128xf32>
    %246 = math.exp %245 : vector<8x128xf32>
    %cst_63 = arith.constant 1.000000e+00 : f32
    %247 = vector.broadcast %cst_63 : f32 to vector<8x128xf32>
    %248 = arith.addf %247, %246 : vector<8x128xf32>
    %249 = arith.divf %247, %248 : vector<8x128xf32>
    %250 = vector.extract_strided_slice %218 {offsets = [0, 128], sizes = [8, 128], strides = [1, 1]} : vector<8x512xf32> to vector<8x128xf32>
    %251 = arith.negf %250 : vector<8x128xf32>
    %252 = math.exp %251 : vector<8x128xf32>
    %cst_64 = arith.constant 1.000000e+00 : f32
    %253 = vector.broadcast %cst_64 : f32 to vector<8x128xf32>
    %254 = arith.addf %253, %252 : vector<8x128xf32>
    %255 = arith.divf %253, %254 : vector<8x128xf32>
    %256 = vector.extract_strided_slice %218 {offsets = [0, 256], sizes = [8, 128], strides = [1, 1]} : vector<8x512xf32> to vector<8x128xf32>
    %257 = math.tanh %256 : vector<8x128xf32>
    %258 = vector.extract_strided_slice %218 {offsets = [0, 384], sizes = [8, 128], strides = [1, 1]} : vector<8x512xf32> to vector<8x128xf32>
    %259 = arith.negf %258 : vector<8x128xf32>
    %260 = math.exp %259 : vector<8x128xf32>
    %cst_65 = arith.constant 1.000000e+00 : f32
    %261 = vector.broadcast %cst_65 : f32 to vector<8x128xf32>
    %262 = arith.addf %261, %260 : vector<8x128xf32>
    %263 = arith.divf %261, %262 : vector<8x128xf32>
    %264 = arith.mulf %255, %199 : vector<8x128xf32>
    %265 = arith.mulf %249, %257 : vector<8x128xf32>
    %266 = arith.addf %264, %265 : vector<8x128xf32>
    %267 = math.tanh %266 : vector<8x128xf32>
    %268 = arith.mulf %263, %267 : vector<8x128xf32>
    %c4_i32 = arith.constant 4 : i32
    %269 = arith.index_cast %c4_i32 : i32 to index
    %c0_66 = arith.constant 0 : index
    %c0_67 = arith.constant 0 : index
    %270 = vector.load %arg0[%269, %c0_66, %c0_67] : memref<12x8x1024xf32, #tpu.memory_space<vmem>>, vector<1x8x1024xf32>
    %271 = vector.shape_cast %270 : vector<1x8x1024xf32> to vector<8x1024xf32>
    %c11_i32_68 = arith.constant 11 : i32
    %272 = arith.subi %c11_i32_68, %c4_i32 : i32
    %273 = arith.index_cast %272 : i32 to index
    %c0_69 = arith.constant 0 : index
    %c0_70 = arith.constant 0 : index
    %274 = vector.load %arg0[%273, %c0_69, %c0_70] : memref<12x8x1024xf32, #tpu.memory_space<vmem>>, vector<1x8x1024xf32>
    %275 = vector.shape_cast %274 : vector<1x8x1024xf32> to vector<8x1024xf32>
    %276 = vector.extract_strided_slice %271 {offsets = [0, 0], sizes = [8, 512], strides = [1, 1]} : vector<8x1024xf32> to vector<8x512xf32>
    %277 = arith.truncf %243 : vector<8x128xf32> to vector<8x128xbf16>
    %c0_71 = arith.constant 0 : index
    %c0_72 = arith.constant 0 : index
    %278 = vector.load %arg1[%c0_71, %c0_72] : memref<128x512xbf16, #tpu.memory_space<vmem>>, vector<128x512xbf16>
    %cst_73 = arith.constant dense<0.000000e+00> : vector<8x512xf32>
    %279 = tpu.matmul %277, %278, %cst_73 {dimension_numbers = #tpu.dot_dimension_numbers<[1], [0], [0], [1], [0, 0, 1, 1], [], []>} : vector<8x128xbf16>, vector<128x512xbf16>, vector<8x512xf32> -> vector<8x512xf32>
    %280 = arith.addf %276, %279 : vector<8x512xf32>
    %281 = vector.extract_strided_slice %275 {offsets = [0, 512], sizes = [8, 512], strides = [1, 1]} : vector<8x1024xf32> to vector<8x512xf32>
    %282 = arith.truncf %268 : vector<8x128xf32> to vector<8x128xbf16>
    %c0_74 = arith.constant 0 : index
    %c0_75 = arith.constant 0 : index
    %283 = vector.load %arg2[%c0_74, %c0_75] : memref<128x512xbf16, #tpu.memory_space<vmem>>, vector<128x512xbf16>
    %cst_76 = arith.constant dense<0.000000e+00> : vector<8x512xf32>
    %284 = tpu.matmul %282, %283, %cst_76 {dimension_numbers = #tpu.dot_dimension_numbers<[1], [0], [0], [1], [0, 0, 1, 1], [], []>} : vector<8x128xbf16>, vector<128x512xbf16>, vector<8x512xf32> -> vector<8x512xf32>
    %285 = arith.addf %281, %284 : vector<8x512xf32>
    %286 = vector.extract_strided_slice %280 {offsets = [0, 0], sizes = [8, 128], strides = [1, 1]} : vector<8x512xf32> to vector<8x128xf32>
    %287 = arith.negf %286 : vector<8x128xf32>
    %288 = math.exp %287 : vector<8x128xf32>
    %cst_77 = arith.constant 1.000000e+00 : f32
    %289 = vector.broadcast %cst_77 : f32 to vector<8x128xf32>
    %290 = arith.addf %289, %288 : vector<8x128xf32>
    %291 = arith.divf %289, %290 : vector<8x128xf32>
    %292 = vector.extract_strided_slice %280 {offsets = [0, 128], sizes = [8, 128], strides = [1, 1]} : vector<8x512xf32> to vector<8x128xf32>
    %293 = arith.negf %292 : vector<8x128xf32>
    %294 = math.exp %293 : vector<8x128xf32>
    %cst_78 = arith.constant 1.000000e+00 : f32
    %295 = vector.broadcast %cst_78 : f32 to vector<8x128xf32>
    %296 = arith.addf %295, %294 : vector<8x128xf32>
    %297 = arith.divf %295, %296 : vector<8x128xf32>
    %298 = vector.extract_strided_slice %280 {offsets = [0, 256], sizes = [8, 128], strides = [1, 1]} : vector<8x512xf32> to vector<8x128xf32>
    %299 = math.tanh %298 : vector<8x128xf32>
    %300 = vector.extract_strided_slice %280 {offsets = [0, 384], sizes = [8, 128], strides = [1, 1]} : vector<8x512xf32> to vector<8x128xf32>
    %301 = arith.negf %300 : vector<8x128xf32>
    %302 = math.exp %301 : vector<8x128xf32>
    %cst_79 = arith.constant 1.000000e+00 : f32
    %303 = vector.broadcast %cst_79 : f32 to vector<8x128xf32>
    %304 = arith.addf %303, %302 : vector<8x128xf32>
    %305 = arith.divf %303, %304 : vector<8x128xf32>
    %306 = arith.mulf %297, %241 : vector<8x128xf32>
    %307 = arith.mulf %291, %299 : vector<8x128xf32>
    %308 = arith.addf %306, %307 : vector<8x128xf32>
    %309 = math.tanh %308 : vector<8x128xf32>
    %310 = arith.mulf %305, %309 : vector<8x128xf32>
    %311 = vector.extract_strided_slice %285 {offsets = [0, 0], sizes = [8, 128], strides = [1, 1]} : vector<8x512xf32> to vector<8x128xf32>
    %312 = arith.negf %311 : vector<8x128xf32>
    %313 = math.exp %312 : vector<8x128xf32>
    %cst_80 = arith.constant 1.000000e+00 : f32
    %314 = vector.broadcast %cst_80 : f32 to vector<8x128xf32>
    %315 = arith.addf %314, %313 : vector<8x128xf32>
    %316 = arith.divf %314, %315 : vector<8x128xf32>
    %317 = vector.extract_strided_slice %285 {offsets = [0, 128], sizes = [8, 128], strides = [1, 1]} : vector<8x512xf32> to vector<8x128xf32>
    %318 = arith.negf %317 : vector<8x128xf32>
    %319 = math.exp %318 : vector<8x128xf32>
    %cst_81 = arith.constant 1.000000e+00 : f32
    %320 = vector.broadcast %cst_81 : f32 to vector<8x128xf32>
    %321 = arith.addf %320, %319 : vector<8x128xf32>
    %322 = arith.divf %320, %321 : vector<8x128xf32>
    %323 = vector.extract_strided_slice %285 {offsets = [0, 256], sizes = [8, 128], strides = [1, 1]} : vector<8x512xf32> to vector<8x128xf32>
    %324 = math.tanh %323 : vector<8x128xf32>
    %325 = vector.extract_strided_slice %285 {offsets = [0, 384], sizes = [8, 128], strides = [1, 1]} : vector<8x512xf32> to vector<8x128xf32>
    %326 = arith.negf %325 : vector<8x128xf32>
    %327 = math.exp %326 : vector<8x128xf32>
    %cst_82 = arith.constant 1.000000e+00 : f32
    %328 = vector.broadcast %cst_82 : f32 to vector<8x128xf32>
    %329 = arith.addf %328, %327 : vector<8x128xf32>
    %330 = arith.divf %328, %329 : vector<8x128xf32>
    %331 = arith.mulf %322, %266 : vector<8x128xf32>
    %332 = arith.mulf %316, %324 : vector<8x128xf32>
    %333 = arith.addf %331, %332 : vector<8x128xf32>
    %334 = math.tanh %333 : vector<8x128xf32>
    %335 = arith.mulf %330, %334 : vector<8x128xf32>
    %c5_i32 = arith.constant 5 : i32
    %336 = arith.index_cast %c5_i32 : i32 to index
    %c0_83 = arith.constant 0 : index
    %c0_84 = arith.constant 0 : index
    %337 = vector.load %arg0[%336, %c0_83, %c0_84] : memref<12x8x1024xf32, #tpu.memory_space<vmem>>, vector<1x8x1024xf32>
    %338 = vector.shape_cast %337 : vector<1x8x1024xf32> to vector<8x1024xf32>
    %c11_i32_85 = arith.constant 11 : i32
    %339 = arith.subi %c11_i32_85, %c5_i32 : i32
    %340 = arith.index_cast %339 : i32 to index
    %c0_86 = arith.constant 0 : index
    %c0_87 = arith.constant 0 : index
    %341 = vector.load %arg0[%340, %c0_86, %c0_87] : memref<12x8x1024xf32, #tpu.memory_space<vmem>>, vector<1x8x1024xf32>
    %342 = vector.shape_cast %341 : vector<1x8x1024xf32> to vector<8x1024xf32>
    %343 = vector.extract_strided_slice %338 {offsets = [0, 0], sizes = [8, 512], strides = [1, 1]} : vector<8x1024xf32> to vector<8x512xf32>
    %344 = arith.truncf %310 : vector<8x128xf32> to vector<8x128xbf16>
    %c0_88 = arith.constant 0 : index
    %c0_89 = arith.constant 0 : index
    %345 = vector.load %arg1[%c0_88, %c0_89] : memref<128x512xbf16, #tpu.memory_space<vmem>>, vector<128x512xbf16>
    %cst_90 = arith.constant dense<0.000000e+00> : vector<8x512xf32>
    %346 = tpu.matmul %344, %345, %cst_90 {dimension_numbers = #tpu.dot_dimension_numbers<[1], [0], [0], [1], [0, 0, 1, 1], [], []>} : vector<8x128xbf16>, vector<128x512xbf16>, vector<8x512xf32> -> vector<8x512xf32>
    %347 = arith.addf %343, %346 : vector<8x512xf32>
    %348 = vector.extract_strided_slice %342 {offsets = [0, 512], sizes = [8, 512], strides = [1, 1]} : vector<8x1024xf32> to vector<8x512xf32>
    %349 = arith.truncf %335 : vector<8x128xf32> to vector<8x128xbf16>
    %c0_91 = arith.constant 0 : index
    %c0_92 = arith.constant 0 : index
    %350 = vector.load %arg2[%c0_91, %c0_92] : memref<128x512xbf16, #tpu.memory_space<vmem>>, vector<128x512xbf16>
    %cst_93 = arith.constant dense<0.000000e+00> : vector<8x512xf32>
    %351 = tpu.matmul %349, %350, %cst_93 {dimension_numbers = #tpu.dot_dimension_numbers<[1], [0], [0], [1], [0, 0, 1, 1], [], []>} : vector<8x128xbf16>, vector<128x512xbf16>, vector<8x512xf32> -> vector<8x512xf32>
    %352 = arith.addf %348, %351 : vector<8x512xf32>
    %353 = vector.extract_strided_slice %347 {offsets = [0, 0], sizes = [8, 128], strides = [1, 1]} : vector<8x512xf32> to vector<8x128xf32>
    %354 = arith.negf %353 : vector<8x128xf32>
    %355 = math.exp %354 : vector<8x128xf32>
    %cst_94 = arith.constant 1.000000e+00 : f32
    %356 = vector.broadcast %cst_94 : f32 to vector<8x128xf32>
    %357 = arith.addf %356, %355 : vector<8x128xf32>
    %358 = arith.divf %356, %357 : vector<8x128xf32>
    %359 = vector.extract_strided_slice %347 {offsets = [0, 128], sizes = [8, 128], strides = [1, 1]} : vector<8x512xf32> to vector<8x128xf32>
    %360 = arith.negf %359 : vector<8x128xf32>
    %361 = math.exp %360 : vector<8x128xf32>
    %cst_95 = arith.constant 1.000000e+00 : f32
    %362 = vector.broadcast %cst_95 : f32 to vector<8x128xf32>
    %363 = arith.addf %362, %361 : vector<8x128xf32>
    %364 = arith.divf %362, %363 : vector<8x128xf32>
    %365 = vector.extract_strided_slice %347 {offsets = [0, 256], sizes = [8, 128], strides = [1, 1]} : vector<8x512xf32> to vector<8x128xf32>
    %366 = math.tanh %365 : vector<8x128xf32>
    %367 = vector.extract_strided_slice %347 {offsets = [0, 384], sizes = [8, 128], strides = [1, 1]} : vector<8x512xf32> to vector<8x128xf32>
    %368 = arith.negf %367 : vector<8x128xf32>
    %369 = math.exp %368 : vector<8x128xf32>
    %cst_96 = arith.constant 1.000000e+00 : f32
    %370 = vector.broadcast %cst_96 : f32 to vector<8x128xf32>
    %371 = arith.addf %370, %369 : vector<8x128xf32>
    %372 = arith.divf %370, %371 : vector<8x128xf32>
    %373 = arith.mulf %364, %308 : vector<8x128xf32>
    %374 = arith.mulf %358, %366 : vector<8x128xf32>
    %375 = arith.addf %373, %374 : vector<8x128xf32>
    %376 = math.tanh %375 : vector<8x128xf32>
    %377 = arith.mulf %372, %376 : vector<8x128xf32>
    %378 = vector.extract_strided_slice %352 {offsets = [0, 0], sizes = [8, 128], strides = [1, 1]} : vector<8x512xf32> to vector<8x128xf32>
    %379 = arith.negf %378 : vector<8x128xf32>
    %380 = math.exp %379 : vector<8x128xf32>
    %cst_97 = arith.constant 1.000000e+00 : f32
    %381 = vector.broadcast %cst_97 : f32 to vector<8x128xf32>
    %382 = arith.addf %381, %380 : vector<8x128xf32>
    %383 = arith.divf %381, %382 : vector<8x128xf32>
    %384 = vector.extract_strided_slice %352 {offsets = [0, 128], sizes = [8, 128], strides = [1, 1]} : vector<8x512xf32> to vector<8x128xf32>
    %385 = arith.negf %384 : vector<8x128xf32>
    %386 = math.exp %385 : vector<8x128xf32>
    %cst_98 = arith.constant 1.000000e+00 : f32
    %387 = vector.broadcast %cst_98 : f32 to vector<8x128xf32>
    %388 = arith.addf %387, %386 : vector<8x128xf32>
    %389 = arith.divf %387, %388 : vector<8x128xf32>
    %390 = vector.extract_strided_slice %352 {offsets = [0, 256], sizes = [8, 128], strides = [1, 1]} : vector<8x512xf32> to vector<8x128xf32>
    %391 = math.tanh %390 : vector<8x128xf32>
    %392 = vector.extract_strided_slice %352 {offsets = [0, 384], sizes = [8, 128], strides = [1, 1]} : vector<8x512xf32> to vector<8x128xf32>
    %393 = arith.negf %392 : vector<8x128xf32>
    %394 = math.exp %393 : vector<8x128xf32>
    %cst_99 = arith.constant 1.000000e+00 : f32
    %395 = vector.broadcast %cst_99 : f32 to vector<8x128xf32>
    %396 = arith.addf %395, %394 : vector<8x128xf32>
    %397 = arith.divf %395, %396 : vector<8x128xf32>
    %398 = arith.mulf %389, %333 : vector<8x128xf32>
    %399 = arith.mulf %383, %391 : vector<8x128xf32>
    %400 = arith.addf %398, %399 : vector<8x128xf32>
    %401 = math.tanh %400 : vector<8x128xf32>
    %402 = arith.mulf %397, %401 : vector<8x128xf32>
    %c6_i32 = arith.constant 6 : i32
    %403 = arith.index_cast %c6_i32 : i32 to index
    %c0_100 = arith.constant 0 : index
    %c0_101 = arith.constant 0 : index
    %404 = vector.load %arg0[%403, %c0_100, %c0_101] : memref<12x8x1024xf32, #tpu.memory_space<vmem>>, vector<1x8x1024xf32>
    %405 = vector.shape_cast %404 : vector<1x8x1024xf32> to vector<8x1024xf32>
    %c11_i32_102 = arith.constant 11 : i32
    %406 = arith.subi %c11_i32_102, %c6_i32 : i32
    %407 = arith.index_cast %406 : i32 to index
    %c0_103 = arith.constant 0 : index
    %c0_104 = arith.constant 0 : index
    %408 = vector.load %arg0[%407, %c0_103, %c0_104] : memref<12x8x1024xf32, #tpu.memory_space<vmem>>, vector<1x8x1024xf32>
    %409 = vector.shape_cast %408 : vector<1x8x1024xf32> to vector<8x1024xf32>
    %410 = vector.extract_strided_slice %405 {offsets = [0, 0], sizes = [8, 512], strides = [1, 1]} : vector<8x1024xf32> to vector<8x512xf32>
    %411 = arith.truncf %377 : vector<8x128xf32> to vector<8x128xbf16>
    %c0_105 = arith.constant 0 : index
    %c0_106 = arith.constant 0 : index
    %412 = vector.load %arg1[%c0_105, %c0_106] : memref<128x512xbf16, #tpu.memory_space<vmem>>, vector<128x512xbf16>
    %cst_107 = arith.constant dense<0.000000e+00> : vector<8x512xf32>
    %413 = tpu.matmul %411, %412, %cst_107 {dimension_numbers = #tpu.dot_dimension_numbers<[1], [0], [0], [1], [0, 0, 1, 1], [], []>} : vector<8x128xbf16>, vector<128x512xbf16>, vector<8x512xf32> -> vector<8x512xf32>
    %414 = arith.addf %410, %413 : vector<8x512xf32>
    %415 = vector.extract_strided_slice %409 {offsets = [0, 512], sizes = [8, 512], strides = [1, 1]} : vector<8x1024xf32> to vector<8x512xf32>
    %416 = arith.truncf %402 : vector<8x128xf32> to vector<8x128xbf16>
    %c0_108 = arith.constant 0 : index
    %c0_109 = arith.constant 0 : index
    %417 = vector.load %arg2[%c0_108, %c0_109] : memref<128x512xbf16, #tpu.memory_space<vmem>>, vector<128x512xbf16>
    %cst_110 = arith.constant dense<0.000000e+00> : vector<8x512xf32>
    %418 = tpu.matmul %416, %417, %cst_110 {dimension_numbers = #tpu.dot_dimension_numbers<[1], [0], [0], [1], [0, 0, 1, 1], [], []>} : vector<8x128xbf16>, vector<128x512xbf16>, vector<8x512xf32> -> vector<8x512xf32>
    %419 = arith.addf %415, %418 : vector<8x512xf32>
    %420 = vector.extract_strided_slice %414 {offsets = [0, 0], sizes = [8, 128], strides = [1, 1]} : vector<8x512xf32> to vector<8x128xf32>
    %421 = arith.negf %420 : vector<8x128xf32>
    %422 = math.exp %421 : vector<8x128xf32>
    %cst_111 = arith.constant 1.000000e+00 : f32
    %423 = vector.broadcast %cst_111 : f32 to vector<8x128xf32>
    %424 = arith.addf %423, %422 : vector<8x128xf32>
    %425 = arith.divf %423, %424 : vector<8x128xf32>
    %426 = vector.extract_strided_slice %414 {offsets = [0, 128], sizes = [8, 128], strides = [1, 1]} : vector<8x512xf32> to vector<8x128xf32>
    %427 = arith.negf %426 : vector<8x128xf32>
    %428 = math.exp %427 : vector<8x128xf32>
    %cst_112 = arith.constant 1.000000e+00 : f32
    %429 = vector.broadcast %cst_112 : f32 to vector<8x128xf32>
    %430 = arith.addf %429, %428 : vector<8x128xf32>
    %431 = arith.divf %429, %430 : vector<8x128xf32>
    %432 = vector.extract_strided_slice %414 {offsets = [0, 256], sizes = [8, 128], strides = [1, 1]} : vector<8x512xf32> to vector<8x128xf32>
    %433 = math.tanh %432 : vector<8x128xf32>
    %434 = vector.extract_strided_slice %414 {offsets = [0, 384], sizes = [8, 128], strides = [1, 1]} : vector<8x512xf32> to vector<8x128xf32>
    %435 = arith.negf %434 : vector<8x128xf32>
    %436 = math.exp %435 : vector<8x128xf32>
    %cst_113 = arith.constant 1.000000e+00 : f32
    %437 = vector.broadcast %cst_113 : f32 to vector<8x128xf32>
    %438 = arith.addf %437, %436 : vector<8x128xf32>
    %439 = arith.divf %437, %438 : vector<8x128xf32>
    %440 = arith.mulf %431, %375 : vector<8x128xf32>
    %441 = arith.mulf %425, %433 : vector<8x128xf32>
    %442 = arith.addf %440, %441 : vector<8x128xf32>
    %443 = math.tanh %442 : vector<8x128xf32>
    %444 = arith.mulf %439, %443 : vector<8x128xf32>
    %445 = vector.extract_strided_slice %419 {offsets = [0, 0], sizes = [8, 128], strides = [1, 1]} : vector<8x512xf32> to vector<8x128xf32>
    %446 = arith.negf %445 : vector<8x128xf32>
    %447 = math.exp %446 : vector<8x128xf32>
    %cst_114 = arith.constant 1.000000e+00 : f32
    %448 = vector.broadcast %cst_114 : f32 to vector<8x128xf32>
    %449 = arith.addf %448, %447 : vector<8x128xf32>
    %450 = arith.divf %448, %449 : vector<8x128xf32>
    %451 = vector.extract_strided_slice %419 {offsets = [0, 128], sizes = [8, 128], strides = [1, 1]} : vector<8x512xf32> to vector<8x128xf32>
    %452 = arith.negf %451 : vector<8x128xf32>
    %453 = math.exp %452 : vector<8x128xf32>
    %cst_115 = arith.constant 1.000000e+00 : f32
    %454 = vector.broadcast %cst_115 : f32 to vector<8x128xf32>
    %455 = arith.addf %454, %453 : vector<8x128xf32>
    %456 = arith.divf %454, %455 : vector<8x128xf32>
    %457 = vector.extract_strided_slice %419 {offsets = [0, 256], sizes = [8, 128], strides = [1, 1]} : vector<8x512xf32> to vector<8x128xf32>
    %458 = math.tanh %457 : vector<8x128xf32>
    %459 = vector.extract_strided_slice %419 {offsets = [0, 384], sizes = [8, 128], strides = [1, 1]} : vector<8x512xf32> to vector<8x128xf32>
    %460 = arith.negf %459 : vector<8x128xf32>
    %461 = math.exp %460 : vector<8x128xf32>
    %cst_116 = arith.constant 1.000000e+00 : f32
    %462 = vector.broadcast %cst_116 : f32 to vector<8x128xf32>
    %463 = arith.addf %462, %461 : vector<8x128xf32>
    %464 = arith.divf %462, %463 : vector<8x128xf32>
    %465 = arith.mulf %456, %400 : vector<8x128xf32>
    %466 = arith.mulf %450, %458 : vector<8x128xf32>
    %467 = arith.addf %465, %466 : vector<8x128xf32>
    %468 = math.tanh %467 : vector<8x128xf32>
    %469 = arith.mulf %464, %468 : vector<8x128xf32>
    %c7_i32 = arith.constant 7 : i32
    %470 = arith.index_cast %c7_i32 : i32 to index
    %c0_117 = arith.constant 0 : index
    %c0_118 = arith.constant 0 : index
    %471 = vector.load %arg0[%470, %c0_117, %c0_118] : memref<12x8x1024xf32, #tpu.memory_space<vmem>>, vector<1x8x1024xf32>
    %472 = vector.shape_cast %471 : vector<1x8x1024xf32> to vector<8x1024xf32>
    %c11_i32_119 = arith.constant 11 : i32
    %473 = arith.subi %c11_i32_119, %c7_i32 : i32
    %474 = arith.index_cast %473 : i32 to index
    %c0_120 = arith.constant 0 : index
    %c0_121 = arith.constant 0 : index
    %475 = vector.load %arg0[%474, %c0_120, %c0_121] : memref<12x8x1024xf32, #tpu.memory_space<vmem>>, vector<1x8x1024xf32>
    %476 = vector.shape_cast %475 : vector<1x8x1024xf32> to vector<8x1024xf32>
    %477 = vector.extract_strided_slice %472 {offsets = [0, 0], sizes = [8, 512], strides = [1, 1]} : vector<8x1024xf32> to vector<8x512xf32>
    %478 = arith.truncf %444 : vector<8x128xf32> to vector<8x128xbf16>
    %c0_122 = arith.constant 0 : index
    %c0_123 = arith.constant 0 : index
    %479 = vector.load %arg1[%c0_122, %c0_123] : memref<128x512xbf16, #tpu.memory_space<vmem>>, vector<128x512xbf16>
    %cst_124 = arith.constant dense<0.000000e+00> : vector<8x512xf32>
    %480 = tpu.matmul %478, %479, %cst_124 {dimension_numbers = #tpu.dot_dimension_numbers<[1], [0], [0], [1], [0, 0, 1, 1], [], []>} : vector<8x128xbf16>, vector<128x512xbf16>, vector<8x512xf32> -> vector<8x512xf32>
    %481 = arith.addf %477, %480 : vector<8x512xf32>
    %482 = vector.extract_strided_slice %476 {offsets = [0, 512], sizes = [8, 512], strides = [1, 1]} : vector<8x1024xf32> to vector<8x512xf32>
    %483 = arith.truncf %469 : vector<8x128xf32> to vector<8x128xbf16>
    %c0_125 = arith.constant 0 : index
    %c0_126 = arith.constant 0 : index
    %484 = vector.load %arg2[%c0_125, %c0_126] : memref<128x512xbf16, #tpu.memory_space<vmem>>, vector<128x512xbf16>
    %cst_127 = arith.constant dense<0.000000e+00> : vector<8x512xf32>
    %485 = tpu.matmul %483, %484, %cst_127 {dimension_numbers = #tpu.dot_dimension_numbers<[1], [0], [0], [1], [0, 0, 1, 1], [], []>} : vector<8x128xbf16>, vector<128x512xbf16>, vector<8x512xf32> -> vector<8x512xf32>
    %486 = arith.addf %482, %485 : vector<8x512xf32>
    %487 = vector.extract_strided_slice %481 {offsets = [0, 0], sizes = [8, 128], strides = [1, 1]} : vector<8x512xf32> to vector<8x128xf32>
    %488 = arith.negf %487 : vector<8x128xf32>
    %489 = math.exp %488 : vector<8x128xf32>
    %cst_128 = arith.constant 1.000000e+00 : f32
    %490 = vector.broadcast %cst_128 : f32 to vector<8x128xf32>
    %491 = arith.addf %490, %489 : vector<8x128xf32>
    %492 = arith.divf %490, %491 : vector<8x128xf32>
    %493 = vector.extract_strided_slice %481 {offsets = [0, 128], sizes = [8, 128], strides = [1, 1]} : vector<8x512xf32> to vector<8x128xf32>
    %494 = arith.negf %493 : vector<8x128xf32>
    %495 = math.exp %494 : vector<8x128xf32>
    %cst_129 = arith.constant 1.000000e+00 : f32
    %496 = vector.broadcast %cst_129 : f32 to vector<8x128xf32>
    %497 = arith.addf %496, %495 : vector<8x128xf32>
    %498 = arith.divf %496, %497 : vector<8x128xf32>
    %499 = vector.extract_strided_slice %481 {offsets = [0, 256], sizes = [8, 128], strides = [1, 1]} : vector<8x512xf32> to vector<8x128xf32>
    %500 = math.tanh %499 : vector<8x128xf32>
    %501 = vector.extract_strided_slice %481 {offsets = [0, 384], sizes = [8, 128], strides = [1, 1]} : vector<8x512xf32> to vector<8x128xf32>
    %502 = arith.negf %501 : vector<8x128xf32>
    %503 = math.exp %502 : vector<8x128xf32>
    %cst_130 = arith.constant 1.000000e+00 : f32
    %504 = vector.broadcast %cst_130 : f32 to vector<8x128xf32>
    %505 = arith.addf %504, %503 : vector<8x128xf32>
    %506 = arith.divf %504, %505 : vector<8x128xf32>
    %507 = arith.mulf %498, %442 : vector<8x128xf32>
    %508 = arith.mulf %492, %500 : vector<8x128xf32>
    %509 = arith.addf %507, %508 : vector<8x128xf32>
    %510 = math.tanh %509 : vector<8x128xf32>
    %511 = arith.mulf %506, %510 : vector<8x128xf32>
    %512 = vector.extract_strided_slice %486 {offsets = [0, 0], sizes = [8, 128], strides = [1, 1]} : vector<8x512xf32> to vector<8x128xf32>
    %513 = arith.negf %512 : vector<8x128xf32>
    %514 = math.exp %513 : vector<8x128xf32>
    %cst_131 = arith.constant 1.000000e+00 : f32
    %515 = vector.broadcast %cst_131 : f32 to vector<8x128xf32>
    %516 = arith.addf %515, %514 : vector<8x128xf32>
    %517 = arith.divf %515, %516 : vector<8x128xf32>
    %518 = vector.extract_strided_slice %486 {offsets = [0, 128], sizes = [8, 128], strides = [1, 1]} : vector<8x512xf32> to vector<8x128xf32>
    %519 = arith.negf %518 : vector<8x128xf32>
    %520 = math.exp %519 : vector<8x128xf32>
    %cst_132 = arith.constant 1.000000e+00 : f32
    %521 = vector.broadcast %cst_132 : f32 to vector<8x128xf32>
    %522 = arith.addf %521, %520 : vector<8x128xf32>
    %523 = arith.divf %521, %522 : vector<8x128xf32>
    %524 = vector.extract_strided_slice %486 {offsets = [0, 256], sizes = [8, 128], strides = [1, 1]} : vector<8x512xf32> to vector<8x128xf32>
    %525 = math.tanh %524 : vector<8x128xf32>
    %526 = vector.extract_strided_slice %486 {offsets = [0, 384], sizes = [8, 128], strides = [1, 1]} : vector<8x512xf32> to vector<8x128xf32>
    %527 = arith.negf %526 : vector<8x128xf32>
    %528 = math.exp %527 : vector<8x128xf32>
    %cst_133 = arith.constant 1.000000e+00 : f32
    %529 = vector.broadcast %cst_133 : f32 to vector<8x128xf32>
    %530 = arith.addf %529, %528 : vector<8x128xf32>
    %531 = arith.divf %529, %530 : vector<8x128xf32>
    %532 = arith.mulf %523, %467 : vector<8x128xf32>
    %533 = arith.mulf %517, %525 : vector<8x128xf32>
    %534 = arith.addf %532, %533 : vector<8x128xf32>
    %535 = math.tanh %534 : vector<8x128xf32>
    %536 = arith.mulf %531, %535 : vector<8x128xf32>
    %c8_i32 = arith.constant 8 : i32
    %537 = arith.index_cast %c8_i32 : i32 to index
    %c0_134 = arith.constant 0 : index
    %c0_135 = arith.constant 0 : index
    %538 = vector.load %arg0[%537, %c0_134, %c0_135] : memref<12x8x1024xf32, #tpu.memory_space<vmem>>, vector<1x8x1024xf32>
    %539 = vector.shape_cast %538 : vector<1x8x1024xf32> to vector<8x1024xf32>
    %c11_i32_136 = arith.constant 11 : i32
    %540 = arith.subi %c11_i32_136, %c8_i32 : i32
    %541 = arith.index_cast %540 : i32 to index
    %c0_137 = arith.constant 0 : index
    %c0_138 = arith.constant 0 : index
    %542 = vector.load %arg0[%541, %c0_137, %c0_138] : memref<12x8x1024xf32, #tpu.memory_space<vmem>>, vector<1x8x1024xf32>
    %543 = vector.shape_cast %542 : vector<1x8x1024xf32> to vector<8x1024xf32>
    %544 = vector.extract_strided_slice %539 {offsets = [0, 0], sizes = [8, 512], strides = [1, 1]} : vector<8x1024xf32> to vector<8x512xf32>
    %545 = arith.truncf %511 : vector<8x128xf32> to vector<8x128xbf16>
    %c0_139 = arith.constant 0 : index
    %c0_140 = arith.constant 0 : index
    %546 = vector.load %arg1[%c0_139, %c0_140] : memref<128x512xbf16, #tpu.memory_space<vmem>>, vector<128x512xbf16>
    %cst_141 = arith.constant dense<0.000000e+00> : vector<8x512xf32>
    %547 = tpu.matmul %545, %546, %cst_141 {dimension_numbers = #tpu.dot_dimension_numbers<[1], [0], [0], [1], [0, 0, 1, 1], [], []>} : vector<8x128xbf16>, vector<128x512xbf16>, vector<8x512xf32> -> vector<8x512xf32>
    %548 = arith.addf %544, %547 : vector<8x512xf32>
    %549 = vector.extract_strided_slice %543 {offsets = [0, 512], sizes = [8, 512], strides = [1, 1]} : vector<8x1024xf32> to vector<8x512xf32>
    %550 = arith.truncf %536 : vector<8x128xf32> to vector<8x128xbf16>
    %c0_142 = arith.constant 0 : index
    %c0_143 = arith.constant 0 : index
    %551 = vector.load %arg2[%c0_142, %c0_143] : memref<128x512xbf16, #tpu.memory_space<vmem>>, vector<128x512xbf16>
    %cst_144 = arith.constant dense<0.000000e+00> : vector<8x512xf32>
    %552 = tpu.matmul %550, %551, %cst_144 {dimension_numbers = #tpu.dot_dimension_numbers<[1], [0], [0], [1], [0, 0, 1, 1], [], []>} : vector<8x128xbf16>, vector<128x512xbf16>, vector<8x512xf32> -> vector<8x512xf32>
    %553 = arith.addf %549, %552 : vector<8x512xf32>
    %554 = vector.extract_strided_slice %548 {offsets = [0, 0], sizes = [8, 128], strides = [1, 1]} : vector<8x512xf32> to vector<8x128xf32>
    %555 = arith.negf %554 : vector<8x128xf32>
    %556 = math.exp %555 : vector<8x128xf32>
    %cst_145 = arith.constant 1.000000e+00 : f32
    %557 = vector.broadcast %cst_145 : f32 to vector<8x128xf32>
    %558 = arith.addf %557, %556 : vector<8x128xf32>
    %559 = arith.divf %557, %558 : vector<8x128xf32>
    %560 = vector.extract_strided_slice %548 {offsets = [0, 128], sizes = [8, 128], strides = [1, 1]} : vector<8x512xf32> to vector<8x128xf32>
    %561 = arith.negf %560 : vector<8x128xf32>
    %562 = math.exp %561 : vector<8x128xf32>
    %cst_146 = arith.constant 1.000000e+00 : f32
    %563 = vector.broadcast %cst_146 : f32 to vector<8x128xf32>
    %564 = arith.addf %563, %562 : vector<8x128xf32>
    %565 = arith.divf %563, %564 : vector<8x128xf32>
    %566 = vector.extract_strided_slice %548 {offsets = [0, 256], sizes = [8, 128], strides = [1, 1]} : vector<8x512xf32> to vector<8x128xf32>
    %567 = math.tanh %566 : vector<8x128xf32>
    %568 = vector.extract_strided_slice %548 {offsets = [0, 384], sizes = [8, 128], strides = [1, 1]} : vector<8x512xf32> to vector<8x128xf32>
    %569 = arith.negf %568 : vector<8x128xf32>
    %570 = math.exp %569 : vector<8x128xf32>
    %cst_147 = arith.constant 1.000000e+00 : f32
    %571 = vector.broadcast %cst_147 : f32 to vector<8x128xf32>
    %572 = arith.addf %571, %570 : vector<8x128xf32>
    %573 = arith.divf %571, %572 : vector<8x128xf32>
    %574 = arith.mulf %565, %509 : vector<8x128xf32>
    %575 = arith.mulf %559, %567 : vector<8x128xf32>
    %576 = arith.addf %574, %575 : vector<8x128xf32>
    %577 = math.tanh %576 : vector<8x128xf32>
    %578 = arith.mulf %573, %577 : vector<8x128xf32>
    %579 = vector.extract_strided_slice %553 {offsets = [0, 0], sizes = [8, 128], strides = [1, 1]} : vector<8x512xf32> to vector<8x128xf32>
    %580 = arith.negf %579 : vector<8x128xf32>
    %581 = math.exp %580 : vector<8x128xf32>
    %cst_148 = arith.constant 1.000000e+00 : f32
    %582 = vector.broadcast %cst_148 : f32 to vector<8x128xf32>
    %583 = arith.addf %582, %581 : vector<8x128xf32>
    %584 = arith.divf %582, %583 : vector<8x128xf32>
    %585 = vector.extract_strided_slice %553 {offsets = [0, 128], sizes = [8, 128], strides = [1, 1]} : vector<8x512xf32> to vector<8x128xf32>
    %586 = arith.negf %585 : vector<8x128xf32>
    %587 = math.exp %586 : vector<8x128xf32>
    %cst_149 = arith.constant 1.000000e+00 : f32
    %588 = vector.broadcast %cst_149 : f32 to vector<8x128xf32>
    %589 = arith.addf %588, %587 : vector<8x128xf32>
    %590 = arith.divf %588, %589 : vector<8x128xf32>
    %591 = vector.extract_strided_slice %553 {offsets = [0, 256], sizes = [8, 128], strides = [1, 1]} : vector<8x512xf32> to vector<8x128xf32>
    %592 = math.tanh %591 : vector<8x128xf32>
    %593 = vector.extract_strided_slice %553 {offsets = [0, 384], sizes = [8, 128], strides = [1, 1]} : vector<8x512xf32> to vector<8x128xf32>
    %594 = arith.negf %593 : vector<8x128xf32>
    %595 = math.exp %594 : vector<8x128xf32>
    %cst_150 = arith.constant 1.000000e+00 : f32
    %596 = vector.broadcast %cst_150 : f32 to vector<8x128xf32>
    %597 = arith.addf %596, %595 : vector<8x128xf32>
    %598 = arith.divf %596, %597 : vector<8x128xf32>
    %599 = arith.mulf %590, %534 : vector<8x128xf32>
    %600 = arith.mulf %584, %592 : vector<8x128xf32>
    %601 = arith.addf %599, %600 : vector<8x128xf32>
    %602 = math.tanh %601 : vector<8x128xf32>
    %603 = arith.mulf %598, %602 : vector<8x128xf32>
    %c9_i32 = arith.constant 9 : i32
    %604 = arith.index_cast %c9_i32 : i32 to index
    %c0_151 = arith.constant 0 : index
    %c0_152 = arith.constant 0 : index
    %605 = vector.load %arg0[%604, %c0_151, %c0_152] : memref<12x8x1024xf32, #tpu.memory_space<vmem>>, vector<1x8x1024xf32>
    %606 = vector.shape_cast %605 : vector<1x8x1024xf32> to vector<8x1024xf32>
    %c11_i32_153 = arith.constant 11 : i32
    %607 = arith.subi %c11_i32_153, %c9_i32 : i32
    %608 = arith.index_cast %607 : i32 to index
    %c0_154 = arith.constant 0 : index
    %c0_155 = arith.constant 0 : index
    %609 = vector.load %arg0[%608, %c0_154, %c0_155] : memref<12x8x1024xf32, #tpu.memory_space<vmem>>, vector<1x8x1024xf32>
    %610 = vector.shape_cast %609 : vector<1x8x1024xf32> to vector<8x1024xf32>
    %611 = vector.extract_strided_slice %606 {offsets = [0, 0], sizes = [8, 512], strides = [1, 1]} : vector<8x1024xf32> to vector<8x512xf32>
    %612 = arith.truncf %578 : vector<8x128xf32> to vector<8x128xbf16>
    %c0_156 = arith.constant 0 : index
    %c0_157 = arith.constant 0 : index
    %613 = vector.load %arg1[%c0_156, %c0_157] : memref<128x512xbf16, #tpu.memory_space<vmem>>, vector<128x512xbf16>
    %cst_158 = arith.constant dense<0.000000e+00> : vector<8x512xf32>
    %614 = tpu.matmul %612, %613, %cst_158 {dimension_numbers = #tpu.dot_dimension_numbers<[1], [0], [0], [1], [0, 0, 1, 1], [], []>} : vector<8x128xbf16>, vector<128x512xbf16>, vector<8x512xf32> -> vector<8x512xf32>
    %615 = arith.addf %611, %614 : vector<8x512xf32>
    %616 = vector.extract_strided_slice %610 {offsets = [0, 512], sizes = [8, 512], strides = [1, 1]} : vector<8x1024xf32> to vector<8x512xf32>
    %617 = arith.truncf %603 : vector<8x128xf32> to vector<8x128xbf16>
    %c0_159 = arith.constant 0 : index
    %c0_160 = arith.constant 0 : index
    %618 = vector.load %arg2[%c0_159, %c0_160] : memref<128x512xbf16, #tpu.memory_space<vmem>>, vector<128x512xbf16>
    %cst_161 = arith.constant dense<0.000000e+00> : vector<8x512xf32>
    %619 = tpu.matmul %617, %618, %cst_161 {dimension_numbers = #tpu.dot_dimension_numbers<[1], [0], [0], [1], [0, 0, 1, 1], [], []>} : vector<8x128xbf16>, vector<128x512xbf16>, vector<8x512xf32> -> vector<8x512xf32>
    %620 = arith.addf %616, %619 : vector<8x512xf32>
    %621 = vector.extract_strided_slice %615 {offsets = [0, 0], sizes = [8, 128], strides = [1, 1]} : vector<8x512xf32> to vector<8x128xf32>
    %622 = arith.negf %621 : vector<8x128xf32>
    %623 = math.exp %622 : vector<8x128xf32>
    %cst_162 = arith.constant 1.000000e+00 : f32
    %624 = vector.broadcast %cst_162 : f32 to vector<8x128xf32>
    %625 = arith.addf %624, %623 : vector<8x128xf32>
    %626 = arith.divf %624, %625 : vector<8x128xf32>
    %627 = vector.extract_strided_slice %615 {offsets = [0, 128], sizes = [8, 128], strides = [1, 1]} : vector<8x512xf32> to vector<8x128xf32>
    %628 = arith.negf %627 : vector<8x128xf32>
    %629 = math.exp %628 : vector<8x128xf32>
    %cst_163 = arith.constant 1.000000e+00 : f32
    %630 = vector.broadcast %cst_163 : f32 to vector<8x128xf32>
    %631 = arith.addf %630, %629 : vector<8x128xf32>
    %632 = arith.divf %630, %631 : vector<8x128xf32>
    %633 = vector.extract_strided_slice %615 {offsets = [0, 256], sizes = [8, 128], strides = [1, 1]} : vector<8x512xf32> to vector<8x128xf32>
    %634 = math.tanh %633 : vector<8x128xf32>
    %635 = vector.extract_strided_slice %615 {offsets = [0, 384], sizes = [8, 128], strides = [1, 1]} : vector<8x512xf32> to vector<8x128xf32>
    %636 = arith.negf %635 : vector<8x128xf32>
    %637 = math.exp %636 : vector<8x128xf32>
    %cst_164 = arith.constant 1.000000e+00 : f32
    %638 = vector.broadcast %cst_164 : f32 to vector<8x128xf32>
    %639 = arith.addf %638, %637 : vector<8x128xf32>
    %640 = arith.divf %638, %639 : vector<8x128xf32>
    %641 = arith.mulf %632, %576 : vector<8x128xf32>
    %642 = arith.mulf %626, %634 : vector<8x128xf32>
    %643 = arith.addf %641, %642 : vector<8x128xf32>
    %644 = math.tanh %643 : vector<8x128xf32>
    %645 = arith.mulf %640, %644 : vector<8x128xf32>
    %646 = vector.extract_strided_slice %620 {offsets = [0, 0], sizes = [8, 128], strides = [1, 1]} : vector<8x512xf32> to vector<8x128xf32>
    %647 = arith.negf %646 : vector<8x128xf32>
    %648 = math.exp %647 : vector<8x128xf32>
    %cst_165 = arith.constant 1.000000e+00 : f32
    %649 = vector.broadcast %cst_165 : f32 to vector<8x128xf32>
    %650 = arith.addf %649, %648 : vector<8x128xf32>
    %651 = arith.divf %649, %650 : vector<8x128xf32>
    %652 = vector.extract_strided_slice %620 {offsets = [0, 128], sizes = [8, 128], strides = [1, 1]} : vector<8x512xf32> to vector<8x128xf32>
    %653 = arith.negf %652 : vector<8x128xf32>
    %654 = math.exp %653 : vector<8x128xf32>
    %cst_166 = arith.constant 1.000000e+00 : f32
    %655 = vector.broadcast %cst_166 : f32 to vector<8x128xf32>
    %656 = arith.addf %655, %654 : vector<8x128xf32>
    %657 = arith.divf %655, %656 : vector<8x128xf32>
    %658 = vector.extract_strided_slice %620 {offsets = [0, 256], sizes = [8, 128], strides = [1, 1]} : vector<8x512xf32> to vector<8x128xf32>
    %659 = math.tanh %658 : vector<8x128xf32>
    %660 = vector.extract_strided_slice %620 {offsets = [0, 384], sizes = [8, 128], strides = [1, 1]} : vector<8x512xf32> to vector<8x128xf32>
    %661 = arith.negf %660 : vector<8x128xf32>
    %662 = math.exp %661 : vector<8x128xf32>
    %cst_167 = arith.constant 1.000000e+00 : f32
    %663 = vector.broadcast %cst_167 : f32 to vector<8x128xf32>
    %664 = arith.addf %663, %662 : vector<8x128xf32>
    %665 = arith.divf %663, %664 : vector<8x128xf32>
    %666 = arith.mulf %657, %601 : vector<8x128xf32>
    %667 = arith.mulf %651, %659 : vector<8x128xf32>
    %668 = arith.addf %666, %667 : vector<8x128xf32>
    %669 = math.tanh %668 : vector<8x128xf32>
    %670 = arith.mulf %665, %669 : vector<8x128xf32>
    %c10_i32 = arith.constant 10 : i32
    %671 = arith.index_cast %c10_i32 : i32 to index
    %c0_168 = arith.constant 0 : index
    %c0_169 = arith.constant 0 : index
    %672 = vector.load %arg0[%671, %c0_168, %c0_169] : memref<12x8x1024xf32, #tpu.memory_space<vmem>>, vector<1x8x1024xf32>
    %673 = vector.shape_cast %672 : vector<1x8x1024xf32> to vector<8x1024xf32>
    %c11_i32_170 = arith.constant 11 : i32
    %674 = arith.subi %c11_i32_170, %c10_i32 : i32
    %675 = arith.index_cast %674 : i32 to index
    %c0_171 = arith.constant 0 : index
    %c0_172 = arith.constant 0 : index
    %676 = vector.load %arg0[%675, %c0_171, %c0_172] : memref<12x8x1024xf32, #tpu.memory_space<vmem>>, vector<1x8x1024xf32>
    %677 = vector.shape_cast %676 : vector<1x8x1024xf32> to vector<8x1024xf32>
    %678 = vector.extract_strided_slice %673 {offsets = [0, 0], sizes = [8, 512], strides = [1, 1]} : vector<8x1024xf32> to vector<8x512xf32>
    %679 = arith.truncf %645 : vector<8x128xf32> to vector<8x128xbf16>
    %c0_173 = arith.constant 0 : index
    %c0_174 = arith.constant 0 : index
    %680 = vector.load %arg1[%c0_173, %c0_174] : memref<128x512xbf16, #tpu.memory_space<vmem>>, vector<128x512xbf16>
    %cst_175 = arith.constant dense<0.000000e+00> : vector<8x512xf32>
    %681 = tpu.matmul %679, %680, %cst_175 {dimension_numbers = #tpu.dot_dimension_numbers<[1], [0], [0], [1], [0, 0, 1, 1], [], []>} : vector<8x128xbf16>, vector<128x512xbf16>, vector<8x512xf32> -> vector<8x512xf32>
    %682 = arith.addf %678, %681 : vector<8x512xf32>
    %683 = vector.extract_strided_slice %677 {offsets = [0, 512], sizes = [8, 512], strides = [1, 1]} : vector<8x1024xf32> to vector<8x512xf32>
    %684 = arith.truncf %670 : vector<8x128xf32> to vector<8x128xbf16>
    %c0_176 = arith.constant 0 : index
    %c0_177 = arith.constant 0 : index
    %685 = vector.load %arg2[%c0_176, %c0_177] : memref<128x512xbf16, #tpu.memory_space<vmem>>, vector<128x512xbf16>
    %cst_178 = arith.constant dense<0.000000e+00> : vector<8x512xf32>
    %686 = tpu.matmul %684, %685, %cst_178 {dimension_numbers = #tpu.dot_dimension_numbers<[1], [0], [0], [1], [0, 0, 1, 1], [], []>} : vector<8x128xbf16>, vector<128x512xbf16>, vector<8x512xf32> -> vector<8x512xf32>
    %687 = arith.addf %683, %686 : vector<8x512xf32>
    %688 = vector.extract_strided_slice %682 {offsets = [0, 0], sizes = [8, 128], strides = [1, 1]} : vector<8x512xf32> to vector<8x128xf32>
    %689 = arith.negf %688 : vector<8x128xf32>
    %690 = math.exp %689 : vector<8x128xf32>
    %cst_179 = arith.constant 1.000000e+00 : f32
    %691 = vector.broadcast %cst_179 : f32 to vector<8x128xf32>
    %692 = arith.addf %691, %690 : vector<8x128xf32>
    %693 = arith.divf %691, %692 : vector<8x128xf32>
    %694 = vector.extract_strided_slice %682 {offsets = [0, 128], sizes = [8, 128], strides = [1, 1]} : vector<8x512xf32> to vector<8x128xf32>
    %695 = arith.negf %694 : vector<8x128xf32>
    %696 = math.exp %695 : vector<8x128xf32>
    %cst_180 = arith.constant 1.000000e+00 : f32
    %697 = vector.broadcast %cst_180 : f32 to vector<8x128xf32>
    %698 = arith.addf %697, %696 : vector<8x128xf32>
    %699 = arith.divf %697, %698 : vector<8x128xf32>
    %700 = vector.extract_strided_slice %682 {offsets = [0, 256], sizes = [8, 128], strides = [1, 1]} : vector<8x512xf32> to vector<8x128xf32>
    %701 = math.tanh %700 : vector<8x128xf32>
    %702 = vector.extract_strided_slice %682 {offsets = [0, 384], sizes = [8, 128], strides = [1, 1]} : vector<8x512xf32> to vector<8x128xf32>
    %703 = arith.negf %702 : vector<8x128xf32>
    %704 = math.exp %703 : vector<8x128xf32>
    %cst_181 = arith.constant 1.000000e+00 : f32
    %705 = vector.broadcast %cst_181 : f32 to vector<8x128xf32>
    %706 = arith.addf %705, %704 : vector<8x128xf32>
    %707 = arith.divf %705, %706 : vector<8x128xf32>
    %708 = arith.mulf %699, %643 : vector<8x128xf32>
    %709 = arith.mulf %693, %701 : vector<8x128xf32>
    %710 = arith.addf %708, %709 : vector<8x128xf32>
    %711 = math.tanh %710 : vector<8x128xf32>
    %712 = arith.mulf %707, %711 : vector<8x128xf32>
    %713 = vector.extract_strided_slice %687 {offsets = [0, 0], sizes = [8, 128], strides = [1, 1]} : vector<8x512xf32> to vector<8x128xf32>
    %714 = arith.negf %713 : vector<8x128xf32>
    %715 = math.exp %714 : vector<8x128xf32>
    %cst_182 = arith.constant 1.000000e+00 : f32
    %716 = vector.broadcast %cst_182 : f32 to vector<8x128xf32>
    %717 = arith.addf %716, %715 : vector<8x128xf32>
    %718 = arith.divf %716, %717 : vector<8x128xf32>
    %719 = vector.extract_strided_slice %687 {offsets = [0, 128], sizes = [8, 128], strides = [1, 1]} : vector<8x512xf32> to vector<8x128xf32>
    %720 = arith.negf %719 : vector<8x128xf32>
    %721 = math.exp %720 : vector<8x128xf32>
    %cst_183 = arith.constant 1.000000e+00 : f32
    %722 = vector.broadcast %cst_183 : f32 to vector<8x128xf32>
    %723 = arith.addf %722, %721 : vector<8x128xf32>
    %724 = arith.divf %722, %723 : vector<8x128xf32>
    %725 = vector.extract_strided_slice %687 {offsets = [0, 256], sizes = [8, 128], strides = [1, 1]} : vector<8x512xf32> to vector<8x128xf32>
    %726 = math.tanh %725 : vector<8x128xf32>
    %727 = vector.extract_strided_slice %687 {offsets = [0, 384], sizes = [8, 128], strides = [1, 1]} : vector<8x512xf32> to vector<8x128xf32>
    %728 = arith.negf %727 : vector<8x128xf32>
    %729 = math.exp %728 : vector<8x128xf32>
    %cst_184 = arith.constant 1.000000e+00 : f32
    %730 = vector.broadcast %cst_184 : f32 to vector<8x128xf32>
    %731 = arith.addf %730, %729 : vector<8x128xf32>
    %732 = arith.divf %730, %731 : vector<8x128xf32>
    %733 = arith.mulf %724, %668 : vector<8x128xf32>
    %734 = arith.mulf %718, %726 : vector<8x128xf32>
    %735 = arith.addf %733, %734 : vector<8x128xf32>
    %736 = math.tanh %735 : vector<8x128xf32>
    %737 = arith.mulf %732, %736 : vector<8x128xf32>
    %c11_i32_185 = arith.constant 11 : i32
    %738 = arith.index_cast %c11_i32_185 : i32 to index
    %c0_186 = arith.constant 0 : index
    %c0_187 = arith.constant 0 : index
    %739 = vector.load %arg0[%738, %c0_186, %c0_187] : memref<12x8x1024xf32, #tpu.memory_space<vmem>>, vector<1x8x1024xf32>
    %740 = vector.shape_cast %739 : vector<1x8x1024xf32> to vector<8x1024xf32>
    %c11_i32_188 = arith.constant 11 : i32
    %741 = arith.subi %c11_i32_188, %c11_i32_185 : i32
    %742 = arith.index_cast %741 : i32 to index
    %c0_189 = arith.constant 0 : index
    %c0_190 = arith.constant 0 : index
    %743 = vector.load %arg0[%742, %c0_189, %c0_190] : memref<12x8x1024xf32, #tpu.memory_space<vmem>>, vector<1x8x1024xf32>
    %744 = vector.shape_cast %743 : vector<1x8x1024xf32> to vector<8x1024xf32>
    %745 = vector.extract_strided_slice %740 {offsets = [0, 0], sizes = [8, 512], strides = [1, 1]} : vector<8x1024xf32> to vector<8x512xf32>
    %746 = arith.truncf %712 : vector<8x128xf32> to vector<8x128xbf16>
    %c0_191 = arith.constant 0 : index
    %c0_192 = arith.constant 0 : index
    %747 = vector.load %arg1[%c0_191, %c0_192] : memref<128x512xbf16, #tpu.memory_space<vmem>>, vector<128x512xbf16>
    %cst_193 = arith.constant dense<0.000000e+00> : vector<8x512xf32>
    %748 = tpu.matmul %746, %747, %cst_193 {dimension_numbers = #tpu.dot_dimension_numbers<[1], [0], [0], [1], [0, 0, 1, 1], [], []>} : vector<8x128xbf16>, vector<128x512xbf16>, vector<8x512xf32> -> vector<8x512xf32>
    %749 = arith.addf %745, %748 : vector<8x512xf32>
    %750 = vector.extract_strided_slice %744 {offsets = [0, 512], sizes = [8, 512], strides = [1, 1]} : vector<8x1024xf32> to vector<8x512xf32>
    %751 = arith.truncf %737 : vector<8x128xf32> to vector<8x128xbf16>
    %c0_194 = arith.constant 0 : index
    %c0_195 = arith.constant 0 : index
    %752 = vector.load %arg2[%c0_194, %c0_195] : memref<128x512xbf16, #tpu.memory_space<vmem>>, vector<128x512xbf16>
    %cst_196 = arith.constant dense<0.000000e+00> : vector<8x512xf32>
    %753 = tpu.matmul %751, %752, %cst_196 {dimension_numbers = #tpu.dot_dimension_numbers<[1], [0], [0], [1], [0, 0, 1, 1], [], []>} : vector<8x128xbf16>, vector<128x512xbf16>, vector<8x512xf32> -> vector<8x512xf32>
    %754 = arith.addf %750, %753 : vector<8x512xf32>
    %755 = vector.extract_strided_slice %749 {offsets = [0, 0], sizes = [8, 128], strides = [1, 1]} : vector<8x512xf32> to vector<8x128xf32>
    %756 = arith.negf %755 : vector<8x128xf32>
    %757 = math.exp %756 : vector<8x128xf32>
    %cst_197 = arith.constant 1.000000e+00 : f32
    %758 = vector.broadcast %cst_197 : f32 to vector<8x128xf32>
    %759 = arith.addf %758, %757 : vector<8x128xf32>
    %760 = arith.divf %758, %759 : vector<8x128xf32>
    %761 = vector.extract_strided_slice %749 {offsets = [0, 128], sizes = [8, 128], strides = [1, 1]} : vector<8x512xf32> to vector<8x128xf32>
    %762 = arith.negf %761 : vector<8x128xf32>
    %763 = math.exp %762 : vector<8x128xf32>
    %cst_198 = arith.constant 1.000000e+00 : f32
    %764 = vector.broadcast %cst_198 : f32 to vector<8x128xf32>
    %765 = arith.addf %764, %763 : vector<8x128xf32>
    %766 = arith.divf %764, %765 : vector<8x128xf32>
    %767 = vector.extract_strided_slice %749 {offsets = [0, 256], sizes = [8, 128], strides = [1, 1]} : vector<8x512xf32> to vector<8x128xf32>
    %768 = math.tanh %767 : vector<8x128xf32>
    %769 = vector.extract_strided_slice %749 {offsets = [0, 384], sizes = [8, 128], strides = [1, 1]} : vector<8x512xf32> to vector<8x128xf32>
    %770 = arith.negf %769 : vector<8x128xf32>
    %771 = math.exp %770 : vector<8x128xf32>
    %cst_199 = arith.constant 1.000000e+00 : f32
    %772 = vector.broadcast %cst_199 : f32 to vector<8x128xf32>
    %773 = arith.addf %772, %771 : vector<8x128xf32>
    %774 = arith.divf %772, %773 : vector<8x128xf32>
    %775 = arith.mulf %766, %710 : vector<8x128xf32>
    %776 = arith.mulf %760, %768 : vector<8x128xf32>
    %777 = arith.addf %775, %776 : vector<8x128xf32>
    %778 = math.tanh %777 : vector<8x128xf32>
    %779 = arith.mulf %774, %778 : vector<8x128xf32>
    %780 = vector.extract_strided_slice %754 {offsets = [0, 0], sizes = [8, 128], strides = [1, 1]} : vector<8x512xf32> to vector<8x128xf32>
    %781 = arith.negf %780 : vector<8x128xf32>
    %782 = math.exp %781 : vector<8x128xf32>
    %cst_200 = arith.constant 1.000000e+00 : f32
    %783 = vector.broadcast %cst_200 : f32 to vector<8x128xf32>
    %784 = arith.addf %783, %782 : vector<8x128xf32>
    %785 = arith.divf %783, %784 : vector<8x128xf32>
    %786 = vector.extract_strided_slice %754 {offsets = [0, 128], sizes = [8, 128], strides = [1, 1]} : vector<8x512xf32> to vector<8x128xf32>
    %787 = arith.negf %786 : vector<8x128xf32>
    %788 = math.exp %787 : vector<8x128xf32>
    %cst_201 = arith.constant 1.000000e+00 : f32
    %789 = vector.broadcast %cst_201 : f32 to vector<8x128xf32>
    %790 = arith.addf %789, %788 : vector<8x128xf32>
    %791 = arith.divf %789, %790 : vector<8x128xf32>
    %792 = vector.extract_strided_slice %754 {offsets = [0, 256], sizes = [8, 128], strides = [1, 1]} : vector<8x512xf32> to vector<8x128xf32>
    %793 = math.tanh %792 : vector<8x128xf32>
    %794 = vector.extract_strided_slice %754 {offsets = [0, 384], sizes = [8, 128], strides = [1, 1]} : vector<8x512xf32> to vector<8x128xf32>
    %795 = arith.negf %794 : vector<8x128xf32>
    %796 = math.exp %795 : vector<8x128xf32>
    %cst_202 = arith.constant 1.000000e+00 : f32
    %797 = vector.broadcast %cst_202 : f32 to vector<8x128xf32>
    %798 = arith.addf %797, %796 : vector<8x128xf32>
    %799 = arith.divf %797, %798 : vector<8x128xf32>
    %800 = arith.mulf %791, %735 : vector<8x128xf32>
    %801 = arith.mulf %785, %793 : vector<8x128xf32>
    %802 = arith.addf %800, %801 : vector<8x128xf32>
    %803 = math.tanh %802 : vector<8x128xf32>
    %804 = arith.mulf %799, %803 : vector<8x128xf32>
    %c12_i32 = arith.constant 12 : i32
    %805 = tpu.concatenate %779, %804 in 1 : vector<8x128xf32>, vector<8x128xf32> -> vector<8x256xf32>
    %806 = arith.truncf %805 : vector<8x256xf32> to vector<8x256xbf16>
    %807 = tpu.concatenate %777, %802 in 1 : vector<8x128xf32>, vector<8x128xf32> -> vector<8x256xf32>
    %808 = arith.truncf %807 : vector<8x256xf32> to vector<8x256xbf16>
    %c0_203 = arith.constant 0 : index
    %c0_204 = arith.constant 0 : index
    %809 = vector.load %arg3[%c0_203, %c0_204] : memref<256x128xbf16, #tpu.memory_space<vmem>>, vector<256x128xbf16>
    %cst_205 = arith.constant dense<0.000000e+00> : vector<8x128xf32>
    %810 = tpu.matmul %806, %809, %cst_205 {dimension_numbers = #tpu.dot_dimension_numbers<[1], [0], [0], [1], [0, 0, 1, 1], [], []>} : vector<8x256xbf16>, vector<256x128xbf16>, vector<8x128xf32> -> vector<8x128xf32>
    %c0_206 = arith.constant 0 : index
    %c0_207 = arith.constant 0 : index
    %811 = vector.load %arg4[%c0_206, %c0_207] : memref<1x128xf32, #tpu.memory_space<vmem>>, vector<1x128xf32>
    %812 = vector.broadcast %811 : vector<1x128xf32> to vector<8x128xf32>
    %813 = arith.addf %810, %812 : vector<8x128xf32>
    %c0_208 = arith.constant 0 : index
    %c0_209 = arith.constant 0 : index
    %814 = vector.load %arg7[%c0_208, %c0_209] : memref<8x128xf32, #tpu.memory_space<vmem>>, vector<8x128xf32>
    tpu.vector_store %arg7[%c0_208, %c0_209], %813 {strides = array<i32>} : memref<8x128xf32, #tpu.memory_space<vmem>>, vector<8x128xf32>,
    %c0_210 = arith.constant 0 : index
    %c0_211 = arith.constant 0 : index
    %815 = vector.load %arg5[%c0_210, %c0_211] : memref<256x128xbf16, #tpu.memory_space<vmem>>, vector<256x128xbf16>
    %cst_212 = arith.constant dense<0.000000e+00> : vector<8x128xf32>
    %816 = tpu.matmul %808, %815, %cst_212 {dimension_numbers = #tpu.dot_dimension_numbers<[1], [0], [0], [1], [0, 0, 1, 1], [], []>} : vector<8x256xbf16>, vector<256x128xbf16>, vector<8x128xf32> -> vector<8x128xf32>
    %c0_213 = arith.constant 0 : index
    %c0_214 = arith.constant 0 : index
    %817 = vector.load %arg6[%c0_213, %c0_214] : memref<1x128xf32, #tpu.memory_space<vmem>>, vector<1x128xf32>
    %818 = vector.broadcast %817 : vector<1x128xf32> to vector<8x128xf32>
    %819 = arith.addf %816, %818 : vector<8x128xf32>
    %c0_215 = arith.constant 0 : index
    %c0_216 = arith.constant 0 : index
    %820 = vector.load %arg8[%c0_215, %c0_216] : memref<8x128xf32, #tpu.memory_space<vmem>>, vector<8x128xf32>
    tpu.vector_store %arg8[%c0_215, %c0_216], %819 {strides = array<i32>} : memref<8x128xf32, #tpu.memory_space<vmem>>, vector<8x128xf32>,
    return
  }
}

module attributes {stable_mosaic.version = 11 : i64} {
  func.func @_dec_kernel(%arg0: i32, %arg1: memref<8xi32, #tpu.memory_space<smem>>, %arg2: memref<8x8x512xf32, #tpu.memory_space<vmem>>, %arg3: memref<128x512xbf16, #tpu.memory_space<vmem>>, %arg4: memref<8x128xf32, #tpu.memory_space<vmem>>, %arg5: memref<8x128xf32, #tpu.memory_space<vmem>>, %arg6: memref<128x512xbf16, #tpu.memory_space<vmem>>, %arg7: memref<1x512xf32, #tpu.memory_space<vmem>>, %arg8: memref<128x128xbf16, #tpu.memory_space<vmem>>, %arg9: memref<1x128xf32, #tpu.memory_space<vmem>>, %arg10: memref<1x8x128xf32, #tpu.memory_space<vmem>>, %arg11: memref<8x128xf32, #tpu.memory_space<vmem>>, %arg12: memref<8x128xf32, #tpu.memory_space<vmem>>, %arg13: memref<8x512xf32, #tpu.memory_space<vmem>>) attributes {dimension_semantics = [#tpu.dimension_semantics<arbitrary>], iteration_bounds = array<i64: 7>, scalar_prefetch = 1 : i64, scratch_operands = 3 : i64, tpu.core_type = #tpu.core_type<tc>, window_params = [{pipeline_mode = #tpu.pipeline_mode<synchronous>, transform_indices = @transform_0, window_bounds = array<i64: 8, 8, 512>}, {pipeline_mode = #tpu.pipeline_mode<synchronous>, transform_indices = @transform_1, window_bounds = array<i64: 128, 512>}, {pipeline_mode = #tpu.pipeline_mode<synchronous>, transform_indices = @transform_2, window_bounds = array<i64: 8, 128>}, {pipeline_mode = #tpu.pipeline_mode<synchronous>, transform_indices = @transform_3, window_bounds = array<i64: 8, 128>}, {pipeline_mode = #tpu.pipeline_mode<synchronous>, transform_indices = @transform_4, window_bounds = array<i64: 128, 512>}, {pipeline_mode = #tpu.pipeline_mode<synchronous>, transform_indices = @transform_5, window_bounds = array<i64: 1, 512>}, {pipeline_mode = #tpu.pipeline_mode<synchronous>, transform_indices = @transform_6, window_bounds = array<i64: 128, 128>}, {pipeline_mode = #tpu.pipeline_mode<synchronous>, transform_indices = @transform_7, window_bounds = array<i64: 1, 128>}, {transform_indices = @transform_8, window_bounds = array<i64: 1, 8, 128>}]} {
    %c0_i32 = arith.constant 0 : i32
    %0 = arith.cmpi eq, %arg0, %c0_i32 : i32
    %1 = arith.extui %0 : i1 to i32
    %c0_i32_0 = arith.constant 0 : i32
    %2 = arith.cmpi ne, %1, %c0_i32_0 : i32
    scf.if %2 {
      %c0_26 = arith.constant 0 : index
      %c0_27 = arith.constant 0 : index
      %53 = vector.load %arg4[%c0_26, %c0_27] : memref<8x128xf32, #tpu.memory_space<vmem>>, vector<8x128xf32>
      %c0_28 = arith.constant 0 : index
      %c0_29 = arith.constant 0 : index
      %54 = vector.load %arg11[%c0_28, %c0_29] : memref<8x128xf32, #tpu.memory_space<vmem>>, vector<8x128xf32>
      tpu.vector_store %arg11[%c0_28, %c0_29], %53 {strides = array<i32>} : memref<8x128xf32, #tpu.memory_space<vmem>>, vector<8x128xf32>,
      %c0_30 = arith.constant 0 : index
      %c0_31 = arith.constant 0 : index
      %55 = vector.load %arg5[%c0_30, %c0_31] : memref<8x128xf32, #tpu.memory_space<vmem>>, vector<8x128xf32>
      %c0_32 = arith.constant 0 : index
      %c0_33 = arith.constant 0 : index
      %56 = vector.load %arg12[%c0_32, %c0_33] : memref<8x128xf32, #tpu.memory_space<vmem>>, vector<8x128xf32>
      tpu.vector_store %arg12[%c0_32, %c0_33], %55 {strides = array<i32>} : memref<8x128xf32, #tpu.memory_space<vmem>>, vector<8x128xf32>,
      %c0_34 = arith.constant 0 : index
      %c0_35 = arith.constant 0 : index
      %c0_36 = arith.constant 0 : index
      %57 = vector.load %arg2[%c0_34, %c0_35, %c0_36] : memref<8x8x512xf32, #tpu.memory_space<vmem>>, vector<1x8x512xf32>
      %58 = vector.shape_cast %57 : vector<1x8x512xf32> to vector<8x512xf32>
      %c0_37 = arith.constant 0 : index
      %c0_38 = arith.constant 0 : index
      %59 = vector.load %arg13[%c0_37, %c0_38] : memref<8x512xf32, #tpu.memory_space<vmem>>, vector<8x512xf32>
      tpu.vector_store %arg13[%c0_37, %c0_38], %58 {strides = array<i32>} : memref<8x512xf32, #tpu.memory_space<vmem>>, vector<8x512xf32>,
    } else {
    }
    %c0 = arith.constant 0 : index
    %c0_1 = arith.constant 0 : index
    %3 = vector.load %arg13[%c0, %c0_1] : memref<8x512xf32, #tpu.memory_space<vmem>>, vector<8x512xf32>
    %c0_2 = arith.constant 0 : index
    %c0_3 = arith.constant 0 : index
    %4 = vector.load %arg11[%c0_2, %c0_3] : memref<8x128xf32, #tpu.memory_space<vmem>>, vector<8x128xf32>
    %5 = arith.truncf %4 : vector<8x128xf32> to vector<8x128xbf16>
    %c0_4 = arith.constant 0 : index
    %c0_5 = arith.constant 0 : index
    %6 = vector.load %arg6[%c0_4, %c0_5] : memref<128x512xbf16, #tpu.memory_space<vmem>>, vector<128x512xbf16>
    %cst = arith.constant dense<0.000000e+00> : vector<8x512xf32>
    %7 = tpu.matmul %5, %6, %cst {dimension_numbers = #tpu.dot_dimension_numbers<[1], [0], [0], [1], [0, 0, 1, 1], [], []>} : vector<8x128xbf16>, vector<128x512xbf16>, vector<8x512xf32> -> vector<8x512xf32>
    %8 = arith.addf %3, %7 : vector<8x512xf32>
    %c0_6 = arith.constant 0 : index
    %c0_7 = arith.constant 0 : index
    %9 = vector.load %arg7[%c0_6, %c0_7] : memref<1x512xf32, #tpu.memory_space<vmem>>, vector<1x512xf32>
    %10 = vector.broadcast %9 : vector<1x512xf32> to vector<8x512xf32>
    %11 = arith.addf %8, %10 : vector<8x512xf32>
    %12 = vector.extract_strided_slice %11 {offsets = [0, 0], sizes = [8, 128], strides = [1, 1]} : vector<8x512xf32> to vector<8x128xf32>
    %13 = arith.negf %12 : vector<8x128xf32>
    %14 = math.exp %13 : vector<8x128xf32>
    %cst_8 = arith.constant 1.000000e+00 : f32
    %15 = vector.broadcast %cst_8 : f32 to vector<8x128xf32>
    %16 = arith.addf %15, %14 : vector<8x128xf32>
    %17 = arith.divf %15, %16 : vector<8x128xf32>
    %18 = vector.extract_strided_slice %11 {offsets = [0, 128], sizes = [8, 128], strides = [1, 1]} : vector<8x512xf32> to vector<8x128xf32>
    %19 = arith.negf %18 : vector<8x128xf32>
    %20 = math.exp %19 : vector<8x128xf32>
    %cst_9 = arith.constant 1.000000e+00 : f32
    %21 = vector.broadcast %cst_9 : f32 to vector<8x128xf32>
    %22 = arith.addf %21, %20 : vector<8x128xf32>
    %23 = arith.divf %21, %22 : vector<8x128xf32>
    %24 = vector.extract_strided_slice %11 {offsets = [0, 256], sizes = [8, 128], strides = [1, 1]} : vector<8x512xf32> to vector<8x128xf32>
    %25 = math.tanh %24 : vector<8x128xf32>
    %26 = vector.extract_strided_slice %11 {offsets = [0, 384], sizes = [8, 128], strides = [1, 1]} : vector<8x512xf32> to vector<8x128xf32>
    %27 = arith.negf %26 : vector<8x128xf32>
    %28 = math.exp %27 : vector<8x128xf32>
    %cst_10 = arith.constant 1.000000e+00 : f32
    %29 = vector.broadcast %cst_10 : f32 to vector<8x128xf32>
    %30 = arith.addf %29, %28 : vector<8x128xf32>
    %31 = arith.divf %29, %30 : vector<8x128xf32>
    %c0_11 = arith.constant 0 : index
    %c0_12 = arith.constant 0 : index
    %32 = vector.load %arg12[%c0_11, %c0_12] : memref<8x128xf32, #tpu.memory_space<vmem>>, vector<8x128xf32>
    %33 = arith.mulf %23, %32 : vector<8x128xf32>
    %34 = arith.mulf %17, %25 : vector<8x128xf32>
    %35 = arith.addf %33, %34 : vector<8x128xf32>
    %36 = math.tanh %35 : vector<8x128xf32>
    %37 = arith.mulf %31, %36 : vector<8x128xf32>
    %38 = arith.truncf %37 : vector<8x128xf32> to vector<8x128xbf16>
    %c0_13 = arith.constant 0 : index
    %c0_14 = arith.constant 0 : index
    %39 = vector.load %arg8[%c0_13, %c0_14] : memref<128x128xbf16, #tpu.memory_space<vmem>>, vector<128x128xbf16>
    %cst_15 = arith.constant dense<0.000000e+00> : vector<8x128xf32>
    %40 = tpu.matmul %38, %39, %cst_15 {dimension_numbers = #tpu.dot_dimension_numbers<[1], [0], [0], [1], [0, 0, 1, 1], [], []>} : vector<8x128xbf16>, vector<128x128xbf16>, vector<8x128xf32> -> vector<8x128xf32>
    %c0_16 = arith.constant 0 : index
    %c0_17 = arith.constant 0 : index
    %41 = vector.load %arg9[%c0_16, %c0_17] : memref<1x128xf32, #tpu.memory_space<vmem>>, vector<1x128xf32>
    %42 = vector.broadcast %41 : vector<1x128xf32> to vector<8x128xf32>
    %43 = arith.addf %40, %42 : vector<8x128xf32>
    %c0_18 = arith.constant 0 : index
    %c0_19 = arith.constant 0 : index
    %c0_20 = arith.constant 0 : index
    %44 = vector.load %arg10[%c0_18, %c0_19, %c0_20] : memref<1x8x128xf32, #tpu.memory_space<vmem>>, vector<1x8x128xf32>
    %45 = vector.shape_cast %44 : vector<1x8x128xf32> to vector<8x128xf32>
    %46 = vector.shape_cast %43 : vector<8x128xf32> to vector<1x8x128xf32>
    tpu.vector_store %arg10[%c0_18, %c0_19, %c0_20], %46 {strides = array<i32>} : memref<1x8x128xf32, #tpu.memory_space<vmem>>, vector<1x8x128xf32>,
    %c0_21 = arith.constant 0 : index
    %c0_22 = arith.constant 0 : index
    %47 = vector.load %arg11[%c0_21, %c0_22] : memref<8x128xf32, #tpu.memory_space<vmem>>, vector<8x128xf32>
    tpu.vector_store %arg11[%c0_21, %c0_22], %37 {strides = array<i32>} : memref<8x128xf32, #tpu.memory_space<vmem>>, vector<8x128xf32>,
    %c0_23 = arith.constant 0 : index
    %c0_24 = arith.constant 0 : index
    %48 = vector.load %arg12[%c0_23, %c0_24] : memref<8x128xf32, #tpu.memory_space<vmem>>, vector<8x128xf32>
    tpu.vector_store %arg12[%c0_23, %c0_24], %35 {strides = array<i32>} : memref<8x128xf32, #tpu.memory_space<vmem>>, vector<8x128xf32>,
    %c1_i32 = arith.constant 1 : i32
    %49 = arith.addi %arg0, %c1_i32 : i32
    %c7_i32 = arith.constant 7 : i32
    %50 = arith.cmpi slt, %49, %c7_i32 : i32
    %51 = arith.extui %50 : i1 to i32
    %c0_i32_25 = arith.constant 0 : i32
    %52 = arith.cmpi ne, %51, %c0_i32_25 : i32
    scf.if %52 {
      %53 = tpu.iota {dimensions = array<i32: 1>} : vector<8x128xi32>
      %cst_26 = arith.constant dense<0xFF800000> : vector<8xf32>
      %54 = vector.multi_reduction <maximumf>, %43, %cst_26 [1] : vector<8x128xf32> to vector<8xf32>
      %55 = vector.shape_cast %54 : vector<8xf32> to vector<8x1xf32>
      %56 = vector.broadcast %55 : vector<8x1xf32> to vector<8x128xf32>
      %57 = arith.cmpf oge, %43, %56 : vector<8x128xf32>
      %c128_i32 = arith.constant 128 : i32
      %58 = vector.broadcast %c128_i32 : i32 to vector<8x128xi32>
      %59 = arith.select %57, %53, %58 : vector<8x128xi1>, vector<8x128xi32>
      %cst_27 = arith.constant dense<2147483647> : vector<8xi32>
      %60 = vector.multi_reduction <minsi>, %59, %cst_27 [1] : vector<8x128xi32> to vector<8xi32>
      %61 = vector.shape_cast %60 : vector<8xi32> to vector<8x1xi32>
      %62 = vector.broadcast %61 : vector<8x1xi32> to vector<8x128xi32>
      %63 = arith.cmpi eq, %53, %62 : vector<8x128xi32>
      %64 = arith.extui %63 : vector<8x128xi1> to vector<8x128xi32>
      %65 = arith.sitofp %64 : vector<8x128xi32> to vector<8x128xf32>
      %66 = arith.truncf %65 : vector<8x128xf32> to vector<8x128xbf16>
      %c0_28 = arith.constant 0 : index
      %c0_29 = arith.constant 0 : index
      %67 = vector.load %arg3[%c0_28, %c0_29] : memref<128x512xbf16, #tpu.memory_space<vmem>>, vector<128x512xbf16>
      %cst_30 = arith.constant dense<0.000000e+00> : vector<8x512xf32>
      %68 = tpu.matmul %66, %67, %cst_30 {dimension_numbers = #tpu.dot_dimension_numbers<[1], [0], [0], [1], [0, 0, 1, 1], [], []>} : vector<8x128xbf16>, vector<128x512xbf16>, vector<8x512xf32> -> vector<8x512xf32>
      %c1_i32_31 = arith.constant 1 : i32
      %69 = arith.addi %arg0, %c1_i32_31 : i32
      %70 = arith.index_cast %69 : i32 to index
      %71 = memref.load %arg1[%70] : memref<8xi32, #tpu.memory_space<smem>>
      %c0_i32_32 = arith.constant 0 : i32
      %72 = arith.cmpi sgt, %71, %c0_i32_32 : i32
      %73 = arith.extui %72 : i1 to i32
      %74 = arith.sitofp %73 : i32 to f32
      %c1_i32_33 = arith.constant 1 : i32
      %75 = arith.addi %arg0, %c1_i32_33 : i32
      %76 = arith.index_cast %75 : i32 to index
      %c0_34 = arith.constant 0 : index
      %c0_35 = arith.constant 0 : index
      %77 = vector.load %arg2[%76, %c0_34, %c0_35] : memref<8x8x512xf32, #tpu.memory_space<vmem>>, vector<1x8x512xf32>
      %78 = vector.shape_cast %77 : vector<1x8x512xf32> to vector<8x512xf32>
      %79 = vector.broadcast %74 : f32 to vector<8x512xf32>
      %80 = arith.mulf %79, %78 : vector<8x512xf32>
      %cst_36 = arith.constant 1.000000e+00 : f32
      %81 = arith.subf %cst_36, %74 : f32
      %82 = vector.broadcast %81 : f32 to vector<8x512xf32>
      %83 = arith.mulf %82, %68 : vector<8x512xf32>
      %84 = arith.addf %80, %83 : vector<8x512xf32>
      %c0_37 = arith.constant 0 : index
      %c0_38 = arith.constant 0 : index
      %85 = vector.load %arg13[%c0_37, %c0_38] : memref<8x512xf32, #tpu.memory_space<vmem>>, vector<8x512xf32>
      tpu.vector_store %arg13[%c0_37, %c0_38], %84 {strides = array<i32>} : memref<8x512xf32, #tpu.memory_space<vmem>>, vector<8x512xf32>,
    } else {
    }
    return
  }
  func.func @transform_0(%arg0: i32, %arg1: memref<8xi32, #tpu.memory_space<smem>>) -> (i32, i32, i32) {
    %c0_i32 = arith.constant 0 : i32
    %c0_i32_0 = arith.constant 0 : i32
    %c0_i32_1 = arith.constant 0 : i32
    %c0_i32_2 = arith.constant 0 : i32
    return %c0_i32, %c0_i32_0, %c0_i32_1 : i32, i32, i32
  }
  func.func @transform_1(%arg0: i32, %arg1: memref<8xi32, #tpu.memory_space<smem>>) -> (i32, i32) {
    %c0_i32 = arith.constant 0 : i32
    %c0_i32_0 = arith.constant 0 : i32
    %c0_i32_1 = arith.constant 0 : i32
    return %c0_i32, %c0_i32_0 : i32, i32
  }
  func.func @transform_2(%arg0: i32, %arg1: memref<8xi32, #tpu.memory_space<smem>>) -> (i32, i32) {
    %c0_i32 = arith.constant 0 : i32
    %c0_i32_0 = arith.constant 0 : i32
    %c0_i32_1 = arith.constant 0 : i32
    return %c0_i32, %c0_i32_0 : i32, i32
  }
  func.func @transform_3(%arg0: i32, %arg1: memref<8xi32, #tpu.memory_space<smem>>) -> (i32, i32) {
    %c0_i32 = arith.constant 0 : i32
    %c0_i32_0 = arith.constant 0 : i32
    %c0_i32_1 = arith.constant 0 : i32
    return %c0_i32, %c0_i32_0 : i32, i32
  }
  func.func @transform_4(%arg0: i32, %arg1: memref<8xi32, #tpu.memory_space<smem>>) -> (i32, i32) {
    %c0_i32 = arith.constant 0 : i32
    %c0_i32_0 = arith.constant 0 : i32
    %c0_i32_1 = arith.constant 0 : i32
    return %c0_i32, %c0_i32_0 : i32, i32
  }
  func.func @transform_5(%arg0: i32, %arg1: memref<8xi32, #tpu.memory_space<smem>>) -> (i32, i32) {
    %c0_i32 = arith.constant 0 : i32
    %c0_i32_0 = arith.constant 0 : i32
    %c0_i32_1 = arith.constant 0 : i32
    return %c0_i32, %c0_i32_0 : i32, i32
  }
  func.func @transform_6(%arg0: i32, %arg1: memref<8xi32, #tpu.memory_space<smem>>) -> (i32, i32) {
    %c0_i32 = arith.constant 0 : i32
    %c0_i32_0 = arith.constant 0 : i32
    %c0_i32_1 = arith.constant 0 : i32
    return %c0_i32, %c0_i32_0 : i32, i32
  }
  func.func @transform_7(%arg0: i32, %arg1: memref<8xi32, #tpu.memory_space<smem>>) -> (i32, i32) {
    %c0_i32 = arith.constant 0 : i32
    %c0_i32_0 = arith.constant 0 : i32
    %c0_i32_1 = arith.constant 0 : i32
    return %c0_i32, %c0_i32_0 : i32, i32
  }
  func.func @transform_8(%arg0: i32, %arg1: memref<8xi32, #tpu.memory_space<smem>>) -> (i32, i32, i32) {
    %c0_i32 = arith.constant 0 : i32
    %c0_i32_0 = arith.constant 0 : i32
    %c0_i32_1 = arith.constant 0 : i32
    return %arg0, %c0_i32, %c0_i32_0 : i32, i32, i32
  }
}

</mosaic_0001>

<llo_original>
// kernel: seq2seq_forward.4
$region0: #{seq2seq_forward.4}
  #allocation0 [shape = 'u32[]', space=smem, size = 0x4, offset = 0x4, fixed_abs, tag = 'smem constant byte address 0x4 - core index']
  #allocation1 [shape = 'u32[144,128]{1,0:T(1,128)}', space=vmem, size = 0x12000, scoped, tag = 'internal scratch']
  %s0 = inlined_call_operand.vmem [shape: bf16[64,128], index: 0, kind: input, shape index: {}]
  %s1 = inlined_call_operand.vmem [shape: bf16[128,512], index: 1, kind: input, shape index: {}]
  %s2 = inlined_call_operand.vmem [shape: f32[64,512], index: 2, kind: output, shape index: {}]
  %s3 = sld [smem:[#allocation0]]
  $region18: #{seq2seq_forward.4} parent=0
    _
  %s5 = ssub.s32 1, %s3
  %s6 = scalar_select 0, %s5, %s3
  // Predicated region
  $region2: #{seq2seq_forward.4} parent=0 // pred_check
    _
  $region3: #{seq2seq_forward.4} parent=0 // pred_check_branch
    %8 = sbr.rel (0) target = $region5
  $region4: #{seq2seq_forward.4} parent=0 // pred_region
    _
  $region5: #{seq2seq_forward.4} parent=0 // pred_fallthru
    _
  // Predicated region
  $region6: #{seq2seq_forward.4} parent=0 // pred_check
    _
  $region7: #{seq2seq_forward.4} parent=0 // pred_check_branch
    %10 = sbr.rel (0) target = $region9
  $region8: #{seq2seq_forward.4} parent=0 // pred_region
    _
  $region9: #{seq2seq_forward.4} parent=0 // pred_fallthru
    _
  %v12 = vld [vmem:[%s0] sm:$0xf]
  %v13 = vld [vmem:[%s0 + $0x4] sm:$0xf]
  %v14 = vld [vmem:[%s0 + $0x8] sm:$0xf]
  %v15 = vld [vmem:[%s0 + $0xc] sm:$0xf]
  %v16 = vld [vmem:[%s0 + $0x10] sm:$0xf]
  %v17 = vld [vmem:[%s0 + $0x14] sm:$0xf]
  %v18 = vld [vmem:[%s0 + $0x18] sm:$0xf]
  %v19 = vld [vmem:[%s0 + $0x1c] sm:$0xf]
  %v20 = vld [vmem:[%s1] sm:$0xff]
  %v21 = vld [vmem:[%s1 + $0x8] sm:$0xff]
  %v22 = vld [vmem:[%s1 + $0x10] sm:$0xff]
  %v23 = vld [vmem:[%s1 + $0x18] sm:$0xff]
  %v24 = vld [vmem:[%s1 + $0x20] sm:$0xff]
  %v25 = vld [vmem:[%s1 + $0x28] sm:$0xff]
  %v26 = vld [vmem:[%s1 + $0x30] sm:$0xff]
  %v27 = vld [vmem:[%s1 + $0x38] sm:$0xff]
  %v28 = vld [vmem:[%s1 + $0x40] sm:$0xff]
  %v29 = vld [vmem:[%s1 + $0x48] sm:$0xff]
  %v30 = vld [vmem:[%s1 + $0x50] sm:$0xff]
  %v31 = vld [vmem:[%s1 + $0x58] sm:$0xff]
  %v32 = vld [vmem:[%s1 + $0x60] sm:$0xff]
  %v33 = vld [vmem:[%s1 + $0x68] sm:$0xff]
  %v34 = vld [vmem:[%s1 + $0x70] sm:$0xff]
  %v35 = vld [vmem:[%s1 + $0x78] sm:$0xff]
  %v36 = vld [vmem:[%s1 + $0x80] sm:$0xff]
  %v37 = vld [vmem:[%s1 + $0x88] sm:$0xff]
  %v38 = vld [vmem:[%s1 + $0x90] sm:$0xff]
  %v39 = vld [vmem:[%s1 + $0x98] sm:$0xff]
  %v40 = vld [vmem:[%s1 + $0xa0] sm:$0xff]
  %v41 = vld [vmem:[%s1 + $0xa8] sm:$0xff]
  %v42 = vld [vmem:[%s1 + $0xb0] sm:$0xff]
  %v43 = vld [vmem:[%s1 + $0xb8] sm:$0xff]
  %v44 = vld [vmem:[%s1 + $0xc0] sm:$0xff]
  %v45 = vld [vmem:[%s1 + $0xc8] sm:$0xff]
  %v46 = vld [vmem:[%s1 + $0xd0] sm:$0xff]
  %v47 = vld [vmem:[%s1 + $0xd8] sm:$0xff]
  %v48 = vld [vmem:[%s1 + $0xe0] sm:$0xff]
  %v49 = vld [vmem:[%s1 + $0xe8] sm:$0xff]
  %v50 = vld [vmem:[%s1 + $0xf0] sm:$0xff]
  %v51 = vld [vmem:[%s1 + $0xf8] sm:$0xff]
  %v60 = vunpack.c.l.b16 %v12
  %v61 = vunpack.c.l.b16 %v13
  %v62 = vunpack.c.l.b16 %v14
  %v63 = vunpack.c.l.b16 %v15
  %v64 = vunpack.c.l.b16 %v16
  %v65 = vunpack.c.l.b16 %v17
  %v66 = vunpack.c.l.b16 %v18
  %v67 = vunpack.c.l.b16 %v19
  %v68 = vpack.c.b16 %v61, %v60
  %v69 = vpack.c.b16 %v63, %v62
  %v70 = vpack.c.b16 %v65, %v64
  %v71 = vpack.c.b16 %v67, %v66
  %v108 = vunpack.c.l.b16 %v20
  %v109 = vunpack.c.h.b16 %v20
  %v110 = vunpack.c.l.b16 %v21
  %v111 = vunpack.c.h.b16 %v21
  %v112 = vunpack.c.l.b16 %v22
  %v113 = vunpack.c.h.b16 %v22
  %v114 = vunpack.c.l.b16 %v23
  %v115 = vunpack.c.h.b16 %v23
  %v116 = vunpack.c.l.b16 %v24
  %v117 = vunpack.c.h.b16 %v24
  %v118 = vunpack.c.l.b16 %v25
  %v119 = vunpack.c.h.b16 %v25
  %v120 = vunpack.c.l.b16 %v26
  %v121 = vunpack.c.h.b16 %v26
  %v122 = vunpack.c.l.b16 %v27
  %v123 = vunpack.c.h.b16 %v27
  %v124 = vunpack.c.l.b16 %v28
  %v125 = vunpack.c.h.b16 %v28
  %v126 = vunpack.c.l.b16 %v29
  %v127 = vunpack.c.h.b16 %v29
  %v128 = vunpack.c.l.b16 %v30
  %v129 = vunpack.c.h.b16 %v30
  %v130 = vunpack.c.l.b16 %v31
  %v131 = vunpack.c.h.b16 %v31
  %v132 = vunpack.c.l.b16 %v32
  %v133 = vunpack.c.h.b16 %v32
  %v134 = vunpack.c.l.b16 %v33
  %v135 = vunpack.c.h.b16 %v33
  %v136 = vunpack.c.l.b16 %v34
  %v137 = vunpack.c.h.b16 %v34
  %v138 = vunpack.c.l.b16 %v35
  %v139 = vunpack.c.h.b16 %v35
  %v140 = vunpack.c.l.b16 %v36
  %v141 = vunpack.c.h.b16 %v36
  %v142 = vunpack.c.l.b16 %v37
  %v143 = vunpack.c.h.b16 %v37
  %v144 = vunpack.c.l.b16 %v38
  %v145 = vunpack.c.h.b16 %v38
  %v146 = vunpack.c.l.b16 %v39
  %v147 = vunpack.c.h.b16 %v39
  %v148 = vunpack.c.l.b16 %v40
  %v149 = vunpack.c.h.b16 %v40
  %v150 = vunpack.c.l.b16 %v41
  %v151 = vunpack.c.h.b16 %v41
  %v152 = vunpack.c.l.b16 %v42
  %v153 = vunpack.c.h.b16 %v42
  %v154 = vunpack.c.l.b16 %v43
  %v155 = vunpack.c.h.b16 %v43
  %v156 = vunpack.c.l.b16 %v44
  %v157 = vunpack.c.h.b16 %v44
  %v158 = vunpack.c.l.b16 %v45
  %v159 = vunpack.c.h.b16 %v45
  %v160 = vunpack.c.l.b16 %v46
  %v161 = vunpack.c.h.b16 %v46
  %v162 = vunpack.c.l.b16 %v47
  %v163 = vunpack.c.h.b16 %v47
  %v164 = vunpack.c.l.b16 %v48
  %v165 = vunpack.c.h.b16 %v48
  %v166 = vunpack.c.l.b16 %v49
  %v167 = vunpack.c.h.b16 %v49
  %v168 = vunpack.c.l.b16 %v50
  %v169 = vunpack.c.h.b16 %v50
  %v170 = vunpack.c.l.b16 %v51
  %v171 = vunpack.c.h.b16 %v51
  %v172 = vpack.c.b16 %v112, %v108
  %v173 = vpack.c.b16 %v113, %v109
  %v174 = vpack.c.b16 %v114, %v110
  %v175 = vpack.c.b16 %v115, %v111
  %v176 = vpack.c.b16 %v120, %v116
  %v177 = vpack.c.b16 %v121, %v117
  %v178 = vpack.c.b16 %v122, %v118
  %v179 = vpack.c.b16 %v123, %v119
  %v180 = vpack.c.b16 %v128, %v124
  %v181 = vpack.c.b16 %v129, %v125
  %v182 = vpack.c.b16 %v130, %v126
  %v183 = vpack.c.b16 %v131, %v127
  %v184 = vpack.c.b16 %v136, %v132
  %v185 = vpack.c.b16 %v137, %v133
  %v186 = vpack.c.b16 %v138, %v134
  %v187 = vpack.c.b16 %v139, %v135
  %v188 = vpack.c.b16 %v144, %v140
  %v189 = vpack.c.b16 %v145, %v141
  %v190 = vpack.c.b16 %v146, %v142
  %v191 = vpack.c.b16 %v147, %v143
  %v192 = vpack.c.b16 %v152, %v148
  %v193 = vpack.c.b16 %v153, %v149
  %v194 = vpack.c.b16 %v154, %v150
  %v195 = vpack.c.b16 %v155, %v151
  %v196 = vpack.c.b16 %v160, %v156
  %v197 = vpack.c.b16 %v161, %v157
  %v198 = vpack.c.b16 %v162, %v158
  %v199 = vpack.c.b16 %v163, %v159
  %v200 = vpack.c.b16 %v168, %v164
  %v201 = vpack.c.b16 %v169, %v165
  %v202 = vpack.c.b16 %v170, %v166
  %v203 = vpack.c.b16 %v171, %v167
  %236 = vmatprep.subr.bf16.mxu0 %v173
  %237 = vmatpush1.bf16.msra.mxu0 %v172
  %238 = vmatprep.subr.bf16.mxu0 %v177
  %239 = vmatpush1.bf16.msra.mxu0 %v176
  %240 = vmatprep.subr.bf16.mxu0 %v181
  %241 = vmatpush1.bf16.msra.mxu0 %v180
  %242 = vmatprep.subr.bf16.mxu0 %v185
  %243 = vmatpush1.bf16.msra.mxu0 %v184
  %244 = vmatprep.subr.bf16.mxu0 %v189
  %245 = vmatpush1.bf16.msra.mxu0 %v188
  %246 = vmatprep.subr.bf16.mxu0 %v193
  %247 = vmatpush1.bf16.msra.mxu0 %v192
  %248 = vmatprep.subr.bf16.mxu0 %v197
  %249 = vmatpush1.bf16.msra.mxu0 %v196
  %250 = vmatprep.subr.bf16.mxu0 %v201
  %251 = vmatpush1.bf16.msra.mxu0 %v200
  %252 = vmatprep.subr.bf16.mxu0 0
  %253 = vmatpush1.bf16.msra.mxu0 0
  %254 = vmatprep.subr.bf16.mxu0 0
  %255 = vmatpush1.bf16.msra.mxu0 0
  %256 = vmatprep.subr.bf16.mxu0 0
  %257 = vmatpush1.bf16.msra.mxu0 0
  %258 = vmatprep.subr.bf16.mxu0 0
  %259 = vmatpush1.bf16.msra.mxu0 0
  %260 = vmatprep.subr.bf16.mxu0 0
  %261 = vmatpush1.bf16.msra.mxu0 0
  %262 = vmatprep.subr.bf16.mxu0 0
  %263 = vmatpush1.bf16.msra.mxu0 0
  %264 = vmatprep.subr.bf16.mxu0 0
  %265 = vmatpush1.bf16.msra.mxu0 0
  %266 = vmatprep.subr.bf16.mxu0 0
  %267 = vmatpush1.bf16.msra.mxu0 0
  %268 = vmatprep.mubr.bf16.mxu0 0
  %269 = vmatmul.mubr.bf16.gmra.mrb[0].mxu0 %v68
  %v270 = vpop.f32.mrb[0].mxu0
  %v271 = vadd.f32 0.0, %v270
  %v272 = vpop.f32.mrb[0].mxu0
  %v273 = vadd.f32 0.0, %v272
  %v274 = vpop.f32.mrb[0].mxu0
  %v275 = vadd.f32 0.0, %v274
  %v276 = vpop.f32.mrb[0].mxu0
  %v277 = vadd.f32 0.0, %v276
  %278 = vmatprep.mubr.bf16.mxu0 0
  %279 = vmatmul.mubr.bf16.gmra.mrb[0].mxu0 %v69
  %v280 = vpop.f32.mrb[0].mxu0
  %v281 = vadd.f32 0.0, %v280
  %v282 = vpop.f32.mrb[0].mxu0
  %v283 = vadd.f32 0.0, %v282
  %v284 = vpop.f32.mrb[0].mxu0
  %v285 = vadd.f32 0.0, %v284
  %v286 = vpop.f32.mrb[0].mxu0
  %v287 = vadd.f32 0.0, %v286
  %288 = vmatprep.mubr.bf16.mxu0 0
  %289 = vmatmul.mubr.bf16.gmra.mrb[0].mxu0 %v70
  %v290 = vpop.f32.mrb[0].mxu0
  %v291 = vadd.f32 0.0, %v290
  %v292 = vpop.f32.mrb[0].mxu0
  %v293 = vadd.f32 0.0, %v292
  %v294 = vpop.f32.mrb[0].mxu0
  %v295 = vadd.f32 0.0, %v294
  %v296 = vpop.f32.mrb[0].mxu0
  %v297 = vadd.f32 0.0, %v296
  %298 = vmatprep.mubr.bf16.mxu0 0
  %299 = vmatmul.mubr.bf16.gmra.mrb[0].mxu0 %v71
  %v300 = vpop.f32.mrb[0].mxu0
  %v301 = vadd.f32 0.0, %v300
  %v302 = vpop.f32.mrb[0].mxu0
  %v303 = vadd.f32 0.0, %v302
  %v304 = vpop.f32.mrb[0].mxu0
  %v305 = vadd.f32 0.0, %v304
  %v306 = vpop.f32.mrb[0].mxu0
  %v307 = vadd.f32 0.0, %v306
  %308 = vdwg.mxu0
  %309 = vmatprep.subr.bf16.mxu0 %v175
  %310 = vmatpush1.bf16.msra.mxu0 %v174
  %311 = vmatprep.subr.bf16.mxu0 %v179
  %312 = vmatpush1.bf16.msra.mxu0 %v178
  %313 = vmatprep.subr.bf16.mxu0 %v183
  %314 = vmatpush1.bf16.msra.mxu0 %v182
  %315 = vmatprep.subr.bf16.mxu0 %v187
  %316 = vmatpush1.bf16.msra.mxu0 %v186
  %317 = vmatprep.subr.bf16.mxu0 %v191
  %318 = vmatpush1.bf16.msra.mxu0 %v190
  %319 = vmatprep.subr.bf16.mxu0 %v195
  %320 = vmatpush1.bf16.msra.mxu0 %v194
  %321 = vmatprep.subr.bf16.mxu0 %v199
  %322 = vmatpush1.bf16.msra.mxu0 %v198
  %323 = vmatprep.subr.bf16.mxu0 %v203
  %324 = vmatpush1.bf16.msra.mxu0 %v202
  %325 = vmatprep.subr.bf16.mxu0 0
  %326 = vmatpush1.bf16.msra.mxu0 0
  %327 = vmatprep.subr.bf16.mxu0 0
  %328 = vmatpush1.bf16.msra.mxu0 0
  %329 = vmatprep.subr.bf16.mxu0 0
  %330 = vmatpush1.bf16.msra.mxu0 0
  %331 = vmatprep.subr.bf16.mxu0 0
  %332 = vmatpush1.bf16.msra.mxu0 0
  %333 = vmatprep.subr.bf16.mxu0 0
  %334 = vmatpush1.bf16.msra.mxu0 0
  %335 = vmatprep.subr.bf16.mxu0 0
  %336 = vmatpush1.bf16.msra.mxu0 0
  %337 = vmatprep.subr.bf16.mxu0 0
  %338 = vmatpush1.bf16.msra.mxu0 0
  %339 = vmatprep.subr.bf16.mxu0 0
  %340 = vmatpush1.bf16.msra.mxu0 0
  %341 = vmatprep.mubr.bf16.mxu0 0
  %342 = vmatmul.mubr.bf16.gmra.mrb[0].mxu0 %v68
  %v343 = vpop.f32.mrb[0].mxu0
  %v344 = vadd.f32 0.0, %v343
  %v345 = vpop.f32.mrb[0].mxu0
  %v346 = vadd.f32 0.0, %v345
  %v347 = vpop.f32.mrb[0].mxu0
  %v348 = vadd.f32 0.0, %v347
  %v349 = vpop.f32.mrb[0].mxu0
  %v350 = vadd.f32 0.0, %v349
  %351 = vmatprep.mubr.bf16.mxu0 0
  %352 = vmatmul.mubr.bf16.gmra.mrb[0].mxu0 %v69
  %v353 = vpop.f32.mrb[0].mxu0
  %v354 = vadd.f32 0.0, %v353
  %v355 = vpop.f32.mrb[0].mxu0
  %v356 = vadd.f32 0.0, %v355
  %v357 = vpop.f32.mrb[0].mxu0
  %v358 = vadd.f32 0.0, %v357
  %v359 = vpop.f32.mrb[0].mxu0
  %v360 = vadd.f32 0.0, %v359
  %361 = vmatprep.mubr.bf16.mxu0 0
  %362 = vmatmul.mubr.bf16.gmra.mrb[0].mxu0 %v70
  %v363 = vpop.f32.mrb[0].mxu0
  %v364 = vadd.f32 0.0, %v363
  %v365 = vpop.f32.mrb[0].mxu0
  %v366 = vadd.f32 0.0, %v365
  %v367 = vpop.f32.mrb[0].mxu0
  %v368 = vadd.f32 0.0, %v367
  %v369 = vpop.f32.mrb[0].mxu0
  %v370 = vadd.f32 0.0, %v369
  %371 = vmatprep.mubr.bf16.mxu0 0
  %372 = vmatmul.mubr.bf16.gmra.mrb[0].mxu0 %v71
  %v373 = vpop.f32.mrb[0].mxu0
  %v374 = vadd.f32 0.0, %v373
  %v375 = vpop.f32.mrb[0].mxu0
  %v376 = vadd.f32 0.0, %v375
  %v377 = vpop.f32.mrb[0].mxu0
  %v378 = vadd.f32 0.0, %v377
  %v379 = vpop.f32.mrb[0].mxu0
  %v380 = vadd.f32 0.0, %v379
  %381 = vdwg.mxu0
  %382 = vst [vmem:[%s2] sm:$0xff] %v271
  %383 = vst [vmem:[%s2 + $0x8] sm:$0xff] %v273
  %384 = vst [vmem:[%s2 + $0x10] sm:$0xff] %v344
  %385 = vst [vmem:[%s2 + $0x18] sm:$0xff] %v346
  %386 = vst [vmem:[%s2 + $0x20] sm:$0xff] %v275
  %387 = vst [vmem:[%s2 + $0x28] sm:$0xff] %v277
  %388 = vst [vmem:[%s2 + $0x30] sm:$0xff] %v348
  %389 = vst [vmem:[%s2 + $0x38] sm:$0xff] %v350
  %390 = vst [vmem:[%s2 + $0x40] sm:$0xff] %v281
  %391 = vst [vmem:[%s2 + $0x48] sm:$0xff] %v283
  %392 = vst [vmem:[%s2 + $0x50] sm:$0xff] %v354
  %393 = vst [vmem:[%s2 + $0x58] sm:$0xff] %v356
  %394 = vst [vmem:[%s2 + $0x60] sm:$0xff] %v285
  %395 = vst [vmem:[%s2 + $0x68] sm:$0xff] %v287
  %396 = vst [vmem:[%s2 + $0x70] sm:$0xff] %v358
  %397 = vst [vmem:[%s2 + $0x78] sm:$0xff] %v360
  %398 = vst [vmem:[%s2 + $0x80] sm:$0xff] %v291
  %399 = vst [vmem:[%s2 + $0x88] sm:$0xff] %v293
  %400 = vst [vmem:[%s2 + $0x90] sm:$0xff] %v364
  %401 = vst [vmem:[%s2 + $0x98] sm:$0xff] %v366
  %402 = vst [vmem:[%s2 + $0xa0] sm:$0xff] %v295
  %403 = vst [vmem:[%s2 + $0xa8] sm:$0xff] %v297
  %404 = vst [vmem:[%s2 + $0xb0] sm:$0xff] %v368
  %405 = vst [vmem:[%s2 + $0xb8] sm:$0xff] %v370
  %406 = vst [vmem:[%s2 + $0xc0] sm:$0xff] %v301
  %407 = vst [vmem:[%s2 + $0xc8] sm:$0xff] %v303
  %408 = vst [vmem:[%s2 + $0xd0] sm:$0xff] %v374
  %409 = vst [vmem:[%s2 + $0xd8] sm:$0xff] %v376
  %410 = vst [vmem:[%s2 + $0xe0] sm:$0xff] %v305
  %411 = vst [vmem:[%s2 + $0xe8] sm:$0xff] %v307
  %412 = vst [vmem:[%s2 + $0xf0] sm:$0xff] %v378
  %413 = vst [vmem:[%s2 + $0xf8] sm:$0xff] %v380
  // Predicated region
  $region10: #{seq2seq_forward.4} parent=0 // pred_check
    _
  $region11: #{seq2seq_forward.4} parent=0 // pred_check_branch
    %415 = sbr.rel (0) target = $region13
  $region12: #{seq2seq_forward.4} parent=0 // pred_region
    _
  $region13: #{seq2seq_forward.4} parent=0 // pred_fallthru
    _
  // Predicated region
  $region14: #{seq2seq_forward.4} parent=0 // pred_check
    _
  $region15: #{seq2seq_forward.4} parent=0 // pred_check_branch
    %417 = sbr.rel (0) target = $region17
  $region16: #{seq2seq_forward.4} parent=0 // pred_region
    _
  $region17: #{seq2seq_forward.4} parent=0 // pred_fallthru
    _

// kernel: seq2seq_forward.5
$region0: #{seq2seq_forward.5}
  #allocation0 [shape = 'u32[]', space=smem, size = 0x4, offset = 0x4, fixed_abs, tag = 'smem constant byte address 0x4 - core index']
  #allocation1 [shape = 'u32[144,128]{1,0:T(1,128)}', space=vmem, size = 0x12000, scoped, tag = 'internal scratch']
  %s0 = inlined_call_operand.vmem [shape: bf16[96,128], index: 0, kind: input, shape index: {}]
  %s1 = inlined_call_operand.vmem [shape: bf16[128,1024], index: 1, kind: input, shape index: {}]
  %s2 = inlined_call_operand.vmem [shape: f32[1,1024], index: 2, kind: input, shape index: {}]
  %s3 = inlined_call_operand.vmem [shape: f32[96,1024], index: 3, kind: output, shape index: {}]
  %s4 = sld [smem:[#allocation0]]
  $region22: #{seq2seq_forward.5} parent=0
    _
  %s6 = ssub.s32 1, %s4
  %s7 = scalar_select 0, %s6, %s4
  // Predicated region
  $region2: #{seq2seq_forward.5} parent=0 // pred_check
    _
  $region3: #{seq2seq_forward.5} parent=0 // pred_check_branch
    %9 = sbr.rel (0) target = $region5
  $region4: #{seq2seq_forward.5} parent=0 // pred_region
    _
  $region5: #{seq2seq_forward.5} parent=0 // pred_fallthru
    _
  // Predicated region
  $region6: #{seq2seq_forward.5} parent=0 // pred_check
    _
  $region7: #{seq2seq_forward.5} parent=0 // pred_check_branch
    %11 = sbr.rel (0) target = $region9
  $region8: #{seq2seq_forward.5} parent=0 // pred_region
    _
  $region9: #{seq2seq_forward.5} parent=0 // pred_fallthru
    _
  // Predicated region
  $region10: #{seq2seq_forward.5} parent=0 // pred_check
    _
  $region11: #{seq2seq_forward.5} parent=0 // pred_check_branch
    %13 = sbr.rel (0) target = $region13
  $region12: #{seq2seq_forward.5} parent=0 // pred_region
    _
  $region13: #{seq2seq_forward.5} parent=0 // pred_fallthru
    _
  %v15 = vld [vmem:[%s0] sm:$0xf]
  %v16 = vld [vmem:[%s0 + $0x4] sm:$0xf]
  %v17 = vld [vmem:[%s0 + $0x8] sm:$0xf]
  %v18 = vld [vmem:[%s0 + $0xc] sm:$0xf]
  %v19 = vld [vmem:[%s0 + $0x10] sm:$0xf]
  %v20 = vld [vmem:[%s0 + $0x14] sm:$0xf]
  %v21 = vld [vmem:[%s0 + $0x18] sm:$0xf]
  %v22 = vld [vmem:[%s0 + $0x1c] sm:$0xf]
  %v23 = vld [vmem:[%s0 + $0x20] sm:$0xf]
  %v24 = vld [vmem:[%s0 + $0x24] sm:$0xf]
  %v25 = vld [vmem:[%s0 + $0x28] sm:$0xf]
  %v26 = vld [vmem:[%s0 + $0x2c] sm:$0xf]
  %v27 = vld [vmem:[%s1] sm:$0xff]
  %v28 = vld [vmem:[%s1 + $0x8] sm:$0xff]
  %v29 = vld [vmem:[%s1 + $0x10] sm:$0xff]
  %v30 = vld [vmem:[%s1 + $0x18] sm:$0xff]
  %v31 = vld [vmem:[%s1 + $0x20] sm:$0xff]
  %v32 = vld [vmem:[%s1 + $0x28] sm:$0xff]
  %v33 = vld [vmem:[%s1 + $0x30] sm:$0xff]
  %v34 = vld [vmem:[%s1 + $0x38] sm:$0xff]
  %v35 = vld [vmem:[%s1 + $0x40] sm:$0xff]
  %v36 = vld [vmem:[%s1 + $0x48] sm:$0xff]
  %v37 = vld [vmem:[%s1 + $0x50] sm:$0xff]
  %v38 = vld [vmem:[%s1 + $0x58] sm:$0xff]
  %v39 = vld [vmem:[%s1 + $0x60] sm:$0xff]
  %v40 = vld [vmem:[%s1 + $0x68] sm:$0xff]
  %v41 = vld [vmem:[%s1 + $0x70] sm:$0xff]
  %v42 = vld [vmem:[%s1 + $0x78] sm:$0xff]
  %v43 = vld [vmem:[%s1 + $0x80] sm:$0xff]
  %v44 = vld [vmem:[%s1 + $0x88] sm:$0xff]
  %v45 = vld [vmem:[%s1 + $0x90] sm:$0xff]
  %v46 = vld [vmem:[%s1 + $0x98] sm:$0xff]
  %v47 = vld [vmem:[%s1 + $0xa0] sm:$0xff]
  %v48 = vld [vmem:[%s1 + $0xa8] sm:$0xff]
  %v49 = vld [vmem:[%s1 + $0xb0] sm:$0xff]
  %v50 = vld [vmem:[%s1 + $0xb8] sm:$0xff]
  %v51 = vld [vmem:[%s1 + $0xc0] sm:$0xff]
  %v52 = vld [vmem:[%s1 + $0xc8] sm:$0xff]
  %v53 = vld [vmem:[%s1 + $0xd0] sm:$0xff]
  %v54 = vld [vmem:[%s1 + $0xd8] sm:$0xff]
  %v55 = vld [vmem:[%s1 + $0xe0] sm:$0xff]
  %v56 = vld [vmem:[%s1 + $0xe8] sm:$0xff]
  %v57 = vld [vmem:[%s1 + $0xf0] sm:$0xff]
  %v58 = vld [vmem:[%s1 + $0xf8] sm:$0xff]
  %v59 = vld [vmem:[%s1 + $0x100] sm:$0xff]
  %v60 = vld [vmem:[%s1 + $0x108] sm:$0xff]
  %v61 = vld [vmem:[%s1 + $0x110] sm:$0xff]
  %v62 = vld [vmem:[%s1 + $0x118] sm:$0xff]
  %v63 = vld [vmem:[%s1 + $0x120] sm:$0xff]
  %v64 = vld [vmem:[%s1 + $0x128] sm:$0xff]
  %v65 = vld [vmem:[%s1 + $0x130] sm:$0xff]
  %v66 = vld [vmem:[%s1 + $0x138] sm:$0xff]
  %v67 = vld [vmem:[%s1 + $0x140] sm:$0xff]
  %v68 = vld [vmem:[%s1 + $0x148] sm:$0xff]
  %v69 = vld [vmem:[%s1 + $0x150] sm:$0xff]
  %v70 = vld [vmem:[%s1 + $0x158] sm:$0xff]
  %v71 = vld [vmem:[%s1 + $0x160] sm:$0xff]
  %v72 = vld [vmem:[%s1 + $0x168] sm:$0xff]
  %v73 = vld [vmem:[%s1 + $0x170] sm:$0xff]
  %v74 = vld [vmem:[%s1 + $0x178] sm:$0xff]
  %v75 = vld [vmem:[%s1 + $0x180] sm:$0xff]
  %v76 = vld [vmem:[%s1 + $0x188] sm:$0xff]
  %v77 = vld [vmem:[%s1 + $0x190] sm:$0xff]
  %v78 = vld [vmem:[%s1 + $0x198] sm:$0xff]
  %v79 = vld [vmem:[%s1 + $0x1a0] sm:$0xff]
  %v80 = vld [vmem:[%s1 + $0x1a8] sm:$0xff]
  %v81 = vld [vmem:[%s1 + $0x1b0] sm:$0xff]
  %v82 = vld [vmem:[%s1 + $0x1b8] sm:$0xff]
  %v83 = vld [vmem:[%s1 + $0x1c0] sm:$0xff]
  %v84 = vld [vmem:[%s1 + $0x1c8] sm:$0xff]
  %v85 = vld [vmem:[%s1 + $0x1d0] sm:$0xff]
  %v86 = vld [vmem:[%s1 + $0x1d8] sm:$0xff]
  %v87 = vld [vmem:[%s1 + $0x1e0] sm:$0xff]
  %v88 = vld [vmem:[%s1 + $0x1e8] sm:$0xff]
  %v89 = vld [vmem:[%s1 + $0x1f0] sm:$0xff]
  %v90 = vld [vmem:[%s1 + $0x1f8] sm:$0xff]
  %v91 = vld [vmem:[%s2] sm:$0xff]
  %v93 = vlaneseq
  %v94 = vshrl.u32 %v93, 7
  %v95 = vsub.s32 0, %v94
  %v96 = vrot.slane %v91, %v95
  %v97 = vlaneseq
  %v98 = vshrl.u32 %v97, 7
  %v99 = vsub.s32 1, %v98
  %v100 = vrot.slane %v91, %v99
  %v101 = vlaneseq
  %v102 = vshrl.u32 %v101, 7
  %v103 = vsub.s32 2, %v102
  %v104 = vrot.slane %v91, %v103
  %v105 = vlaneseq
  %v106 = vshrl.u32 %v105, 7
  %v107 = vsub.s32 3, %v106
  %v108 = vrot.slane %v91, %v107
  %v109 = vlaneseq
  %v110 = vshrl.u32 %v109, 7
  %v111 = vsub.s32 4, %v110
  %v112 = vrot.slane %v91, %v111
  %v113 = vlaneseq
  %v114 = vshrl.u32 %v113, 7
  %v115 = vsub.s32 5, %v114
  %v116 = vrot.slane %v91, %v115
  %v117 = vlaneseq
  %v118 = vshrl.u32 %v117, 7
  %v119 = vsub.s32 6, %v118
  %v120 = vrot.slane %v91, %v119
  %v121 = vlaneseq
  %v122 = vshrl.u32 %v121, 7
  %v123 = vsub.s32 7, %v122
  %v124 = vrot.slane %v91, %v123
  %v145 = vunpack.c.l.b16 %v15
  %v146 = vunpack.c.l.b16 %v16
  %v147 = vunpack.c.l.b16 %v17
  %v148 = vunpack.c.l.b16 %v18
  %v149 = vunpack.c.l.b16 %v19
  %v150 = vunpack.c.l.b16 %v20
  %v151 = vunpack.c.l.b16 %v21
  %v152 = vunpack.c.l.b16 %v22
  %v153 = vunpack.c.l.b16 %v23
  %v154 = vunpack.c.l.b16 %v24
  %v155 = vunpack.c.l.b16 %v25
  %v156 = vunpack.c.l.b16 %v26
  %v157 = vpack.c.b16 %v146, %v145
  %v158 = vpack.c.b16 %v148, %v147
  %v159 = vpack.c.b16 %v150, %v149
  %v160 = vpack.c.b16 %v152, %v151
  %v161 = vpack.c.b16 %v154, %v153
  %v162 = vpack.c.b16 %v156, %v155
  %v233 = vunpack.c.l.b16 %v27
  %v234 = vunpack.c.h.b16 %v27
  %v235 = vunpack.c.l.b16 %v28
  %v236 = vunpack.c.h.b16 %v28
  %v237 = vunpack.c.l.b16 %v29
  %v238 = vunpack.c.h.b16 %v29
  %v239 = vunpack.c.l.b16 %v30
  %v240 = vunpack.c.h.b16 %v30
  %v241 = vunpack.c.l.b16 %v31
  %v242 = vunpack.c.h.b16 %v31
  %v243 = vunpack.c.l.b16 %v32
  %v244 = vunpack.c.h.b16 %v32
  %v245 = vunpack.c.l.b16 %v33
  %v246 = vunpack.c.h.b16 %v33
  %v247 = vunpack.c.l.b16 %v34
  %v248 = vunpack.c.h.b16 %v34
  %v249 = vunpack.c.l.b16 %v35
  %v250 = vunpack.c.h.b16 %v35
  %v251 = vunpack.c.l.b16 %v36
  %v252 = vunpack.c.h.b16 %v36
  %v253 = vunpack.c.l.b16 %v37
  %v254 = vunpack.c.h.b16 %v37
  %v255 = vunpack.c.l.b16 %v38
  %v256 = vunpack.c.h.b16 %v38
  %v257 = vunpack.c.l.b16 %v39
  %v258 = vunpack.c.h.b16 %v39
  %v259 = vunpack.c.l.b16 %v40
  %v260 = vunpack.c.h.b16 %v40
  %v261 = vunpack.c.l.b16 %v41
  %v262 = vunpack.c.h.b16 %v41
  %v263 = vunpack.c.l.b16 %v42
  %v264 = vunpack.c.h.b16 %v42
  %v265 = vunpack.c.l.b16 %v43
  %v266 = vunpack.c.h.b16 %v43
  %v267 = vunpack.c.l.b16 %v44
  %v268 = vunpack.c.h.b16 %v44
  %v269 = vunpack.c.l.b16 %v45
  %v270 = vunpack.c.h.b16 %v45
  %v271 = vunpack.c.l.b16 %v46
  %v272 = vunpack.c.h.b16 %v46
  %v273 = vunpack.c.l.b16 %v47
  %v274 = vunpack.c.h.b16 %v47
  %v275 = vunpack.c.l.b16 %v48
  %v276 = vunpack.c.h.b16 %v48
  %v277 = vunpack.c.l.b16 %v49
  %v278 = vunpack.c.h.b16 %v49
  %v279 = vunpack.c.l.b16 %v50
  %v280 = vunpack.c.h.b16 %v50
  %v281 = vunpack.c.l.b16 %v51
  %v282 = vunpack.c.h.b16 %v51
  %v283 = vunpack.c.l.b16 %v52
  %v284 = vunpack.c.h.b16 %v52
  %v285 = vunpack.c.l.b16 %v53
  %v286 = vunpack.c.h.b16 %v53
  %v287 = vunpack.c.l.b16 %v54
  %v288 = vunpack.c.h.b16 %v54
  %v289 = vunpack.c.l.b16 %v55
  %v290 = vunpack.c.h.b16 %v55
  %v291 = vunpack.c.l.b16 %v56
  %v292 = vunpack.c.h.b16 %v56
  %v293 = vunpack.c.l.b16 %v57
  %v294 = vunpack.c.h.b16 %v57
  %v295 = vunpack.c.l.b16 %v58
  %v296 = vunpack.c.h.b16 %v58
  %v297 = vunpack.c.l.b16 %v59
  %v298 = vunpack.c.h.b16 %v59
  %v299 = vunpack.c.l.b16 %v60
  %v300 = vunpack.c.h.b16 %v60
  %v301 = vunpack.c.l.b16 %v61
  %v302 = vunpack.c.h.b16 %v61
  %v303 = vunpack.c.l.b16 %v62
  %v304 = vunpack.c.h.b16 %v62
  %v305 = vunpack.c.l.b16 %v63
  %v306 = vunpack.c.h.b16 %v63
  %v307 = vunpack.c.l.b16 %v64
  %v308 = vunpack.c.h.b16 %v64
  %v309 = vunpack.c.l.b16 %v65
  %v310 = vunpack.c.h.b16 %v65
  %v311 = vunpack.c.l.b16 %v66
  %v312 = vunpack.c.h.b16 %v66
  %v313 = vunpack.c.l.b16 %v67
  %v314 = vunpack.c.h.b16 %v67
  %v315 = vunpack.c.l.b16 %v68
  %v316 = vunpack.c.h.b16 %v68
  %v317 = vunpack.c.l.b16 %v69
  %v318 = vunpack.c.h.b16 %v69
  %v319 = vunpack.c.l.b16 %v70
  %v320 = vunpack.c.h.b16 %v70
  %v321 = vunpack.c.l.b16 %v71
  %v322 = vunpack.c.h.b16 %v71
  %v323 = vunpack.c.l.b16 %v72
  %v324 = vunpack.c.h.b16 %v72
  %v325 = vunpack.c.l.b16 %v73
  %v326 = vunpack.c.h.b16 %v73
  %v327 = vunpack.c.l.b16 %v74
  %v328 = vunpack.c.h.b16 %v74
  %v329 = vunpack.c.l.b16 %v75
  %v330 = vunpack.c.h.b16 %v75
  %v331 = vunpack.c.l.b16 %v76
  %v332 = vunpack.c.h.b16 %v76
  %v333 = vunpack.c.l.b16 %v77
  %v334 = vunpack.c.h.b16 %v77
  %v335 = vunpack.c.l.b16 %v78
  %v336 = vunpack.c.h.b16 %v78
  %v337 = vunpack.c.l.b16 %v79
  %v338 = vunpack.c.h.b16 %v79
  %v339 = vunpack.c.l.b16 %v80
  %v340 = vunpack.c.h.b16 %v80
  %v341 = vunpack.c.l.b16 %v81
  %v342 = vunpack.c.h.b16 %v81
  %v343 = vunpack.c.l.b16 %v82
  %v344 = vunpack.c.h.b16 %v82
  %v345 = vunpack.c.l.b16 %v83
  %v346 = vunpack.c.h.b16 %v83
  %v347 = vunpack.c.l.b16 %v84
  %v348 = vunpack.c.h.b16 %v84
  %v349 = vunpack.c.l.b16 %v85
  %v350 = vunpack.c.h.b16 %v85
  %v351 = vunpack.c.l.b16 %v86
  %v352 = vunpack.c.h.b16 %v86
  %v353 = vunpack.c.l.b16 %v87
  %v354 = vunpack.c.h.b16 %v87
  %v355 = vunpack.c.l.b16 %v88
  %v356 = vunpack.c.h.b16 %v88
  %v357 = vunpack.c.l.b16 %v89
  %v358 = vunpack.c.h.b16 %v89
  %v359 = vunpack.c.l.b16 %v90
  %v360 = vunpack.c.h.b16 %v90
  %v361 = vpack.c.b16 %v241, %v233
  %v362 = vpack.c.b16 %v242, %v234
  %v363 = vpack.c.b16 %v243, %v235
  %v364 = vpack.c.b16 %v244, %v236
  %v365 = vpack.c.b16 %v245, %v237
  %v366 = vpack.c.b16 %v246, %v238
  %v367 = vpack.c.b16 %v247, %v239
  %v368 = vpack.c.b16 %v248, %v240
  %v369 = vpack.c.b16 %v257, %v249
  %v370 = vpack.c.b16 %v258, %v250
  %v371 = vpack.c.b16 %v259, %v251
  %v372 = vpack.c.b16 %v260, %v252
  %v373 = vpack.c.b16 %v261, %v253
  %v374 = vpack.c.b16 %v262, %v254
  %v375 = vpack.c.b16 %v263, %v255
  %v376 = vpack.c.b16 %v264, %v256
  %v377 = vpack.c.b16 %v273, %v265
  %v378 = vpack.c.b16 %v274, %v266
  %v379 = vpack.c.b16 %v275, %v267
  %v380 = vpack.c.b16 %v276, %v268
  %v381 = vpack.c.b16 %v277, %v269
  %v382 = vpack.c.b16 %v278, %v270
  %v383 = vpack.c.b16 %v279, %v271
  %v384 = vpack.c.b16 %v280, %v272
  %v385 = vpack.c.b16 %v289, %v281
  %v386 = vpack.c.b16 %v290, %v282
  %v387 = vpack.c.b16 %v291, %v283
  %v388 = vpack.c.b16 %v292, %v284
  %v389 = vpack.c.b16 %v293, %v285
  %v390 = vpack.c.b16 %v294, %v286
  %v391 = vpack.c.b16 %v295, %v287
  %v392 = vpack.c.b16 %v296, %v288
  %v393 = vpack.c.b16 %v305, %v297
  %v394 = vpack.c.b16 %v306, %v298
  %v395 = vpack.c.b16 %v307, %v299
  %v396 = vpack.c.b16 %v308, %v300
  %v397 = vpack.c.b16 %v309, %v301
  %v398 = vpack.c.b16 %v310, %v302
  %v399 = vpack.c.b16 %v311, %v303
  %v400 = vpack.c.b16 %v312, %v304
  %v401 = vpack.c.b16 %v321, %v313
  %v402 = vpack.c.b16 %v322, %v314
  %v403 = vpack.c.b16 %v323, %v315
  %v404 = vpack.c.b16 %v324, %v316
  %v405 = vpack.c.b16 %v325, %v317
  %v406 = vpack.c.b16 %v326, %v318
  %v407 = vpack.c.b16 %v327, %v319
  %v408 = vpack.c.b16 %v328, %v320
  %v409 = vpack.c.b16 %v337, %v329
  %v410 = vpack.c.b16 %v338, %v330
  %v411 = vpack.c.b16 %v339, %v331
  %v412 = vpack.c.b16 %v340, %v332
  %v413 = vpack.c.b16 %v341, %v333
  %v414 = vpack.c.b16 %v342, %v334
  %v415 = vpack.c.b16 %v343, %v335
  %v416 = vpack.c.b16 %v344, %v336
  %v417 = vpack.c.b16 %v353, %v345
  %v418 = vpack.c.b16 %v354, %v346
  %v419 = vpack.c.b16 %v355, %v347
  %v420 = vpack.c.b16 %v356, %v348
  %v421 = vpack.c.b16 %v357, %v349
  %v422 = vpack.c.b16 %v358, %v350
  %v423 = vpack.c.b16 %v359, %v351
  %v424 = vpack.c.b16 %v360, %v352
  %489 = vmatprep.subr.bf16.mxu0 %v362
  %490 = vmatpush1.bf16.msra.mxu0 %v361
  %491 = vmatprep.subr.bf16.mxu0 %v370
  %492 = vmatpush1.bf16.msra.mxu0 %v369
  %493 = vmatprep.subr.bf16.mxu0 %v378
  %494 = vmatpush1.bf16.msra.mxu0 %v377
  %495 = vmatprep.subr.bf16.mxu0 %v386
  %496 = vmatpush1.bf16.msra.mxu0 %v385
  %497 = vmatprep.subr.bf16.mxu0 %v394
  %498 = vmatpush1.bf16.msra.mxu0 %v393
  %499 = vmatprep.subr.bf16.mxu0 %v402
  %500 = vmatpush1.bf16.msra.mxu0 %v401
  %501 = vmatprep.subr.bf16.mxu0 %v410
  %502 = vmatpush1.bf16.msra.mxu0 %v409
  %503 = vmatprep.subr.bf16.mxu0 %v418
  %504 = vmatpush1.bf16.msra.mxu0 %v417
  %505 = vmatprep.subr.bf16.mxu0 0
  %506 = vmatpush1.bf16.msra.mxu0 0
  %507 = vmatprep.subr.bf16.mxu0 0
  %508 = vmatpush1.bf16.msra.mxu0 0
  %509 = vmatprep.subr.bf16.mxu0 0
  %510 = vmatpush1.bf16.msra.mxu0 0
  %511 = vmatprep.subr.bf16.mxu0 0
  %512 = vmatpush1.bf16.msra.mxu0 0
  %513 = vmatprep.subr.bf16.mxu0 0
  %514 = vmatpush1.bf16.msra.mxu0 0
  %515 = vmatprep.subr.bf16.mxu0 0
  %516 = vmatpush1.bf16.msra.mxu0 0
  %517 = vmatprep.subr.bf16.mxu0 0
  %518 = vmatpush1.bf16.msra.mxu0 0
  %519 = vmatprep.subr.bf16.mxu0 0
  %520 = vmatpush1.bf16.msra.mxu0 0
  %521 = vmatprep.mubr.bf16.mxu0 0
  %522 = vmatmul.mubr.bf16.gmra.mrb[0].mxu0 %v157
  %v523 = vpop.f32.mrb[0].mxu0
  %v524 = vadd.f32 %v96, %v523
  %v525 = vpop.f32.mrb[0].mxu0
  %v526 = vadd.f32 %v100, %v525
  %v527 = vpop.f32.mrb[0].mxu0
  %v528 = vadd.f32 %v96, %v527
  %v529 = vpop.f32.mrb[0].mxu0
  %v530 = vadd.f32 %v100, %v529
  %531 = vmatprep.mubr.bf16.mxu0 0
  %532 = vmatmul.mubr.bf16.gmra.mrb[0].mxu0 %v158
  %v533 = vpop.f32.mrb[0].mxu0
  %v534 = vadd.f32 %v96, %v533
  %v535 = vpop.f32.mrb[0].mxu0
  %v536 = vadd.f32 %v100, %v535
  %v537 = vpop.f32.mrb[0].mxu0
  %v538 = vadd.f32 %v96, %v537
  %v539 = vpop.f32.mrb[0].mxu0
  %v540 = vadd.f32 %v100, %v539
  %541 = vmatprep.mubr.bf16.mxu0 0
  %542 = vmatmul.mubr.bf16.gmra.mrb[0].mxu0 %v159
  %v543 = vpop.f32.mrb[0].mxu0
  %v544 = vadd.f32 %v96, %v543
  %v545 = vpop.f32.mrb[0].mxu0
  %v546 = vadd.f32 %v100, %v545
  %v547 = vpop.f32.mrb[0].mxu0
  %v548 = vadd.f32 %v96, %v547
  %v549 = vpop.f32.mrb[0].mxu0
  %v550 = vadd.f32 %v100, %v549
  %551 = vmatprep.mubr.bf16.mxu0 0
  %552 = vmatmul.mubr.bf16.gmra.mrb[0].mxu0 %v160
  %v553 = vpop.f32.mrb[0].mxu0
  %v554 = vadd.f32 %v96, %v553
  %v555 = vpop.f32.mrb[0].mxu0
  %v556 = vadd.f32 %v100, %v555
  %v557 = vpop.f32.mrb[0].mxu0
  %v558 = vadd.f32 %v96, %v557
  %v559 = vpop.f32.mrb[0].mxu0
  %v560 = vadd.f32 %v100, %v559
  %561 = vmatprep.mubr.bf16.mxu0 0
  %562 = vmatmul.mubr.bf16.gmra.mrb[0].mxu0 %v161
  %v563 = vpop.f32.mrb[0].mxu0
  %v564 = vadd.f32 %v96, %v563
  %v565 = vpop.f32.mrb[0].mxu0
  %v566 = vadd.f32 %v100, %v565
  %v567 = vpop.f32.mrb[0].mxu0
  %v568 = vadd.f32 %v96, %v567
  %v569 = vpop.f32.mrb[0].mxu0
  %v570 = vadd.f32 %v100, %v569
  %571 = vmatprep.mubr.bf16.mxu0 0
  %572 = vmatmul.mubr.bf16.gmra.mrb[0].mxu0 %v162
  %v573 = vpop.f32.mrb[0].mxu0
  %v574 = vadd.f32 %v96, %v573
  %v575 = vpop.f32.mrb[0].mxu0
  %v576 = vadd.f32 %v100, %v575
  %v577 = vpop.f32.mrb[0].mxu0
  %v578 = vadd.f32 %v96, %v577
  %v579 = vpop.f32.mrb[0].mxu0
  %v580 = vadd.f32 %v100, %v579
  %581 = vdwg.mxu0
  %582 = vmatprep.subr.bf16.mxu0 %v364
  %583 = vmatpush1.bf16.msra.mxu0 %v363
  %584 = vmatprep.subr.bf16.mxu0 %v372
  %585 = vmatpush1.bf16.msra.mxu0 %v371
  %586 = vmatprep.subr.bf16.mxu0 %v380
  %587 = vmatpush1.bf16.msra.mxu0 %v379
  %588 = vmatprep.subr.bf16.mxu0 %v388
  %589 = vmatpush1.bf16.msra.mxu0 %v387
  %590 = vmatprep.subr.bf16.mxu0 %v396
  %591 = vmatpush1.bf16.msra.mxu0 %v395
  %592 = vmatprep.subr.bf16.mxu0 %v404
  %593 = vmatpush1.bf16.msra.mxu0 %v403
  %594 = vmatprep.subr.bf16.mxu0 %v412
  %595 = vmatpush1.bf16.msra.mxu0 %v411
  %596 = vmatprep.subr.bf16.mxu0 %v420
  %597 = vmatpush1.bf16.msra.mxu0 %v419
  %598 = vmatprep.subr.bf16.mxu0 0
  %599 = vmatpush1.bf16.msra.mxu0 0
  %600 = vmatprep.subr.bf16.mxu0 0
  %601 = vmatpush1.bf16.msra.mxu0 0
  %602 = vmatprep.subr.bf16.mxu0 0
  %603 = vmatpush1.bf16.msra.mxu0 0
  %604 = vmatprep.subr.bf16.mxu0 0
  %605 = vmatpush1.bf16.msra.mxu0 0
  %606 = vmatprep.subr.bf16.mxu0 0
  %607 = vmatpush1.bf16.msra.mxu0 0
  %608 = vmatprep.subr.bf16.mxu0 0
  %609 = vmatpush1.bf16.msra.mxu0 0
  %610 = vmatprep.subr.bf16.mxu0 0
  %611 = vmatpush1.bf16.msra.mxu0 0
  %612 = vmatprep.subr.bf16.mxu0 0
  %613 = vmatpush1.bf16.msra.mxu0 0
  %614 = vmatprep.mubr.bf16.mxu0 0
  %615 = vmatmul.mubr.bf16.gmra.mrb[0].mxu0 %v157
  %v616 = vpop.f32.mrb[0].mxu0
  %v617 = vadd.f32 %v104, %v616
  %v618 = vpop.f32.mrb[0].mxu0
  %v619 = vadd.f32 %v108, %v618
  %v620 = vpop.f32.mrb[0].mxu0
  %v621 = vadd.f32 %v104, %v620
  %v622 = vpop.f32.mrb[0].mxu0
  %v623 = vadd.f32 %v108, %v622
  %624 = vmatprep.mubr.bf16.mxu0 0
  %625 = vmatmul.mubr.bf16.gmra.mrb[0].mxu0 %v158
  %v626 = vpop.f32.mrb[0].mxu0
  %v627 = vadd.f32 %v104, %v626
  %v628 = vpop.f32.mrb[0].mxu0
  %v629 = vadd.f32 %v108, %v628
  %v630 = vpop.f32.mrb[0].mxu0
  %v631 = vadd.f32 %v104, %v630
  %v632 = vpop.f32.mrb[0].mxu0
  %v633 = vadd.f32 %v108, %v632
  %634 = vmatprep.mubr.bf16.mxu0 0
  %635 = vmatmul.mubr.bf16.gmra.mrb[0].mxu0 %v159
  %v636 = vpop.f32.mrb[0].mxu0
  %v637 = vadd.f32 %v104, %v636
  %v638 = vpop.f32.mrb[0].mxu0
  %v639 = vadd.f32 %v108, %v638
  %v640 = vpop.f32.mrb[0].mxu0
  %v641 = vadd.f32 %v104, %v640
  %v642 = vpop.f32.mrb[0].mxu0
  %v643 = vadd.f32 %v108, %v642
  %644 = vmatprep.mubr.bf16.mxu0 0
  %645 = vmatmul.mubr.bf16.gmra.mrb[0].mxu0 %v160
  %v646 = vpop.f32.mrb[0].mxu0
  %v647 = vadd.f32 %v104, %v646
  %v648 = vpop.f32.mrb[0].mxu0
  %v649 = vadd.f32 %v108, %v648
  %v650 = vpop.f32.mrb[0].mxu0
  %v651 = vadd.f32 %v104, %v650
  %v652 = vpop.f32.mrb[0].mxu0
  %v653 = vadd.f32 %v108, %v652
  %654 = vmatprep.mubr.bf16.mxu0 0
  %655 = vmatmul.mubr.bf16.gmra.mrb[0].mxu0 %v161
  %v656 = vpop.f32.mrb[0].mxu0
  %v657 = vadd.f32 %v104, %v656
  %v658 = vpop.f32.mrb[0].mxu0
  %v659 = vadd.f32 %v108, %v658
  %v660 = vpop.f32.mrb[0].mxu0
  %v661 = vadd.f32 %v104, %v660
  %v662 = vpop.f32.mrb[0].mxu0
  %v663 = vadd.f32 %v108, %v662
  %664 = vmatprep.mubr.bf16.mxu0 0
  %665 = vmatmul.mubr.bf16.gmra.mrb[0].mxu0 %v162
  %v666 = vpop.f32.mrb[0].mxu0
  %v667 = vadd.f32 %v104, %v666
  %v668 = vpop.f32.mrb[0].mxu0
  %v669 = vadd.f32 %v108, %v668
  %v670 = vpop.f32.mrb[0].mxu0
  %v671 = vadd.f32 %v104, %v670
  %v672 = vpop.f32.mrb[0].mxu0
  %v673 = vadd.f32 %v108, %v672
  %674 = vdwg.mxu0
  %675 = vmatprep.subr.bf16.mxu0 %v366
  %676 = vmatpush1.bf16.msra.mxu0 %v365
  %677 = vmatprep.subr.bf16.mxu0 %v374
  %678 = vmatpush1.bf16.msra.mxu0 %v373
  %679 = vmatprep.subr.bf16.mxu0 %v382
  %680 = vmatpush1.bf16.msra.mxu0 %v381
  %681 = vmatprep.subr.bf16.mxu0 %v390
  %682 = vmatpush1.bf16.msra.mxu0 %v389
  %683 = vmatprep.subr.bf16.mxu0 %v398
  %684 = vmatpush1.bf16.msra.mxu0 %v397
  %685 = vmatprep.subr.bf16.mxu0 %v406
  %686 = vmatpush1.bf16.msra.mxu0 %v405
  %687 = vmatprep.subr.bf16.mxu0 %v414
  %688 = vmatpush1.bf16.msra.mxu0 %v413
  %689 = vmatprep.subr.bf16.mxu0 %v422
  %690 = vmatpush1.bf16.msra.mxu0 %v421
  %691 = vmatprep.subr.bf16.mxu0 0
  %692 = vmatpush1.bf16.msra.mxu0 0
  %693 = vmatprep.subr.bf16.mxu0 0
  %694 = vmatpush1.bf16.msra.mxu0 0
  %695 = vmatprep.subr.bf16.mxu0 0
  %696 = vmatpush1.bf16.msra.mxu0 0
  %697 = vmatprep.subr.bf16.mxu0 0
  %698 = vmatpush1.bf16.msra.mxu0 0
  %699 = vmatprep.subr.bf16.mxu0 0
  %700 = vmatpush1.bf16.msra.mxu0 0
  %701 = vmatprep.subr.bf16.mxu0 0
  %702 = vmatpush1.bf16.msra.mxu0 0
  %703 = vmatprep.subr.bf16.mxu0 0
  %704 = vmatpush1.bf16.msra.mxu0 0
  %705 = vmatprep.subr.bf16.mxu0 0
  %706 = vmatpush1.bf16.msra.mxu0 0
  %707 = vmatprep.mubr.bf16.mxu0 0
  %708 = vmatmul.mubr.bf16.gmra.mrb[0].mxu0 %v157
  %v709 = vpop.f32.mrb[0].mxu0
  %v710 = vadd.f32 %v112, %v709
  %v711 = vpop.f32.mrb[0].mxu0
  %v712 = vadd.f32 %v116, %v711
  %v713 = vpop.f32.mrb[0].mxu0
  %v714 = vadd.f32 %v112, %v713
  %v715 = vpop.f32.mrb[0].mxu0
  %v716 = vadd.f32 %v116, %v715
  %717 = vmatprep.mubr.bf16.mxu0 0
  %718 = vmatmul.mubr.bf16.gmra.mrb[0].mxu0 %v158
  %v719 = vpop.f32.mrb[0].mxu0
  %v720 = vadd.f32 %v112, %v719
  %v721 = vpop.f32.mrb[0].mxu0
  %v722 = vadd.f32 %v116, %v721
  %v723 = vpop.f32.mrb[0].mxu0
  %v724 = vadd.f32 %v112, %v723
  %v725 = vpop.f32.mrb[0].mxu0
  %v726 = vadd.f32 %v116, %v725
  %727 = vmatprep.mubr.bf16.mxu0 0
  %728 = vmatmul.mubr.bf16.gmra.mrb[0].mxu0 %v159
  %v729 = vpop.f32.mrb[0].mxu0
  %v730 = vadd.f32 %v112, %v729
  %v731 = vpop.f32.mrb[0].mxu0
  %v732 = vadd.f32 %v116, %v731
  %v733 = vpop.f32.mrb[0].mxu0
  %v734 = vadd.f32 %v112, %v733
  %v735 = vpop.f32.mrb[0].mxu0
  %v736 = vadd.f32 %v116, %v735
  %737 = vmatprep.mubr.bf16.mxu0 0
  %738 = vmatmul.mubr.bf16.gmra.mrb[0].mxu0 %v160
  %v739 = vpop.f32.mrb[0].mxu0
  %v740 = vadd.f32 %v112, %v739
  %v741 = vpop.f32.mrb[0].mxu0
  %v742 = vadd.f32 %v116, %v741
  %v743 = vpop.f32.mrb[0].mxu0
  %v744 = vadd.f32 %v112, %v743
  %v745 = vpop.f32.mrb[0].mxu0
  %v746 = vadd.f32 %v116, %v745
  %747 = vmatprep.mubr.bf16.mxu0 0
  %748 = vmatmul.mubr.bf16.gmra.mrb[0].mxu0 %v161
  %v749 = vpop.f32.mrb[0].mxu0
  %v750 = vadd.f32 %v112, %v749
  %v751 = vpop.f32.mrb[0].mxu0
  %v752 = vadd.f32 %v116, %v751
  %v753 = vpop.f32.mrb[0].mxu0
  %v754 = vadd.f32 %v112, %v753
  %v755 = vpop.f32.mrb[0].mxu0
  %v756 = vadd.f32 %v116, %v755
  %757 = vmatprep.mubr.bf16.mxu0 0
  %758 = vmatmul.mubr.bf16.gmra.mrb[0].mxu0 %v162
  %v759 = vpop.f32.mrb[0].mxu0
  %v760 = vadd.f32 %v112, %v759
  %v761 = vpop.f32.mrb[0].mxu0
  %v762 = vadd.f32 %v116, %v761
  %v763 = vpop.f32.mrb[0].mxu0
  %v764 = vadd.f32 %v112, %v763
  %v765 = vpop.f32.mrb[0].mxu0
  %v766 = vadd.f32 %v116, %v765
  %767 = vdwg.mxu0
  %768 = vmatprep.subr.bf16.mxu0 %v368
  %769 = vmatpush1.bf16.msra.mxu0 %v367
  %770 = vmatprep.subr.bf16.mxu0 %v376
  %771 = vmatpush1.bf16.msra.mxu0 %v375
  %772 = vmatprep.subr.bf16.mxu0 %v384
  %773 = vmatpush1.bf16.msra.mxu0 %v383
  %774 = vmatprep.subr.bf16.mxu0 %v392
  %775 = vmatpush1.bf16.msra.mxu0 %v391
  %776 = vmatprep.subr.bf16.mxu0 %v400
  %777 = vmatpush1.bf16.msra.mxu0 %v399
  %778 = vmatprep.subr.bf16.mxu0 %v408
  %779 = vmatpush1.bf16.msra.mxu0 %v407
  %780 = vmatprep.subr.bf16.mxu0 %v416
  %781 = vmatpush1.bf16.msra.mxu0 %v415
  %782 = vmatprep.subr.bf16.mxu0 %v424
  %783 = vmatpush1.bf16.msra.mxu0 %v423
  %784 = vmatprep.subr.bf16.mxu0 0
  %785 = vmatpush1.bf16.msra.mxu0 0
  %786 = vmatprep.subr.bf16.mxu0 0
  %787 = vmatpush1.bf16.msra.mxu0 0
  %788 = vmatprep.subr.bf16.mxu0 0
  %789 = vmatpush1.bf16.msra.mxu0 0
  %790 = vmatprep.subr.bf16.mxu0 0
  %791 = vmatpush1.bf16.msra.mxu0 0
  %792 = vmatprep.subr.bf16.mxu0 0
  %793 = vmatpush1.bf16.msra.mxu0 0
  %794 = vmatprep.subr.bf16.mxu0 0
  %795 = vmatpush1.bf16.msra.mxu0 0
  %796 = vmatprep.subr.bf16.mxu0 0
  %797 = vmatpush1.bf16.msra.mxu0 0
  %798 = vmatprep.subr.bf16.mxu0 0
  %799 = vmatpush1.bf16.msra.mxu0 0
  %800 = vmatprep.mubr.bf16.mxu0 0
  %801 = vmatmul.mubr.bf16.gmra.mrb[0].mxu0 %v157
  %v802 = vpop.f32.mrb[0].mxu0
  %v803 = vadd.f32 %v120, %v802
  %v804 = vpop.f32.mrb[0].mxu0
  %v805 = vadd.f32 %v124, %v804
  %v806 = vpop.f32.mrb[0].mxu0
  %v807 = vadd.f32 %v120, %v806
  %v808 = vpop.f32.mrb[0].mxu0
  %v809 = vadd.f32 %v124, %v808
  %810 = vmatprep.mubr.bf16.mxu0 0
  %811 = vmatmul.mubr.bf16.gmra.mrb[0].mxu0 %v158
  %v812 = vpop.f32.mrb[0].mxu0
  %v813 = vadd.f32 %v120, %v812
  %v814 = vpop.f32.mrb[0].mxu0
  %v815 = vadd.f32 %v124, %v814
  %v816 = vpop.f32.mrb[0].mxu0
  %v817 = vadd.f32 %v120, %v816
  %v818 = vpop.f32.mrb[0].mxu0
  %v819 = vadd.f32 %v124, %v818
  %820 = vmatprep.mubr.bf16.mxu0 0
  %821 = vmatmul.mubr.bf16.gmra.mrb[0].mxu0 %v159
  %v822 = vpop.f32.mrb[0].mxu0
  %v823 = vadd.f32 %v120, %v822
  %v824 = vpop.f32.mrb[0].mxu0
  %v825 = vadd.f32 %v124, %v824
  %v826 = vpop.f32.mrb[0].mxu0
  %v827 = vadd.f32 %v120, %v826
  %v828 = vpop.f32.mrb[0].mxu0
  %v829 = vadd.f32 %v124, %v828
  %830 = vmatprep.mubr.bf16.mxu0 0
  %831 = vmatmul.mubr.bf16.gmra.mrb[0].mxu0 %v160
  %v832 = vpop.f32.mrb[0].mxu0
  %v833 = vadd.f32 %v120, %v832
  %v834 = vpop.f32.mrb[0].mxu0
  %v835 = vadd.f32 %v124, %v834
  %v836 = vpop.f32.mrb[0].mxu0
  %v837 = vadd.f32 %v120, %v836
  %v838 = vpop.f32.mrb[0].mxu0
  %v839 = vadd.f32 %v124, %v838
  %840 = vmatprep.mubr.bf16.mxu0 0
  %841 = vmatmul.mubr.bf16.gmra.mrb[0].mxu0 %v161
  %v842 = vpop.f32.mrb[0].mxu0
  %v843 = vadd.f32 %v120, %v842
  %v844 = vpop.f32.mrb[0].mxu0
  %v845 = vadd.f32 %v124, %v844
  %v846 = vpop.f32.mrb[0].mxu0
  %v847 = vadd.f32 %v120, %v846
  %v848 = vpop.f32.mrb[0].mxu0
  %v849 = vadd.f32 %v124, %v848
  %850 = vmatprep.mubr.bf16.mxu0 0
  %851 = vmatmul.mubr.bf16.gmra.mrb[0].mxu0 %v162
  %v852 = vpop.f32.mrb[0].mxu0
  %v853 = vadd.f32 %v120, %v852
  %v854 = vpop.f32.mrb[0].mxu0
  %v855 = vadd.f32 %v124, %v854
  %v856 = vpop.f32.mrb[0].mxu0
  %v857 = vadd.f32 %v120, %v856
  %v858 = vpop.f32.mrb[0].mxu0
  %v859 = vadd.f32 %v124, %v858
  %860 = vdwg.mxu0
  %861 = vst [vmem:[%s3] sm:$0xff] %v524
  %862 = vst [vmem:[%s3 + $0x8] sm:$0xff] %v526
  %863 = vst [vmem:[%s3 + $0x10] sm:$0xff] %v617
  %864 = vst [vmem:[%s3 + $0x18] sm:$0xff] %v619
  %865 = vst [vmem:[%s3 + $0x20] sm:$0xff] %v710
  %866 = vst [vmem:[%s3 + $0x28] sm:$0xff] %v712
  %867 = vst [vmem:[%s3 + $0x30] sm:$0xff] %v803
  %868 = vst [vmem:[%s3 + $0x38] sm:$0xff] %v805
  %869 = vst [vmem:[%s3 + $0x40] sm:$0xff] %v528
  %870 = vst [vmem:[%s3 + $0x48] sm:$0xff] %v530
  %871 = vst [vmem:[%s3 + $0x50] sm:$0xff] %v621
  %872 = vst [vmem:[%s3 + $0x58] sm:$0xff] %v623
  %873 = vst [vmem:[%s3 + $0x60] sm:$0xff] %v714
  %874 = vst [vmem:[%s3 + $0x68] sm:$0xff] %v716
  %875 = vst [vmem:[%s3 + $0x70] sm:$0xff] %v807
  %876 = vst [vmem:[%s3 + $0x78] sm:$0xff] %v809
  %877 = vst [vmem:[%s3 + $0x80] sm:$0xff] %v534
  %878 = vst [vmem:[%s3 + $0x88] sm:$0xff] %v536
  %879 = vst [vmem:[%s3 + $0x90] sm:$0xff] %v627
  %880 = vst [vmem:[%s3 + $0x98] sm:$0xff] %v629
  %881 = vst [vmem:[%s3 + $0xa0] sm:$0xff] %v720
  %882 = vst [vmem:[%s3 + $0xa8] sm:$0xff] %v722
  %883 = vst [vmem:[%s3 + $0xb0] sm:$0xff] %v813
  %884 = vst [vmem:[%s3 + $0xb8] sm:$0xff] %v815
  %885 = vst [vmem:[%s3 + $0xc0] sm:$0xff] %v538
  %886 = vst [vmem:[%s3 + $0xc8] sm:$0xff] %v540
  %887 = vst [vmem:[%s3 + $0xd0] sm:$0xff] %v631
  %888 = vst [vmem:[%s3 + $0xd8] sm:$0xff] %v633
  %889 = vst [vmem:[%s3 + $0xe0] sm:$0xff] %v724
  %890 = vst [vmem:[%s3 + $0xe8] sm:$0xff] %v726
  %891 = vst [vmem:[%s3 + $0xf0] sm:$0xff] %v817
  %892 = vst [vmem:[%s3 + $0xf8] sm:$0xff] %v819
  %893 = vst [vmem:[%s3 + $0x100] sm:$0xff] %v544
  %894 = vst [vmem:[%s3 + $0x108] sm:$0xff] %v546
  %895 = vst [vmem:[%s3 + $0x110] sm:$0xff] %v637
  %896 = vst [vmem:[%s3 + $0x118] sm:$0xff] %v639
  %897 = vst [vmem:[%s3 + $0x120] sm:$0xff] %v730
  %898 = vst [vmem:[%s3 + $0x128] sm:$0xff] %v732
  %899 = vst [vmem:[%s3 + $0x130] sm:$0xff] %v823
  %900 = vst [vmem:[%s3 + $0x138] sm:$0xff] %v825
  %901 = vst [vmem:[%s3 + $0x140] sm:$0xff] %v548
  %902 = vst [vmem:[%s3 + $0x148] sm:$0xff] %v550
  %903 = vst [vmem:[%s3 + $0x150] sm:$0xff] %v641
  %904 = vst [vmem:[%s3 + $0x158] sm:$0xff] %v643
  %905 = vst [vmem:[%s3 + $0x160] sm:$0xff] %v734
  %906 = vst [vmem:[%s3 + $0x168] sm:$0xff] %v736
  %907 = vst [vmem:[%s3 + $0x170] sm:$0xff] %v827
  %908 = vst [vmem:[%s3 + $0x178] sm:$0xff] %v829
  %909 = vst [vmem:[%s3 + $0x180] sm:$0xff] %v554
  %910 = vst [vmem:[%s3 + $0x188] sm:$0xff] %v556
  %911 = vst [vmem:[%s3 + $0x190] sm:$0xff] %v647
  %912 = vst [vmem:[%s3 + $0x198] sm:$0xff] %v649
  %913 = vst [vmem:[%s3 + $0x1a0] sm:$0xff] %v740
  %914 = vst [vmem:[%s3 + $0x1a8] sm:$0xff] %v742
  %915 = vst [vmem:[%s3 + $0x1b0] sm:$0xff] %v833
  %916 = vst [vmem:[%s3 + $0x1b8] sm:$0xff] %v835
  %917 = vst [vmem:[%s3 + $0x1c0] sm:$0xff] %v558
  %918 = vst [vmem:[%s3 + $0x1c8] sm:$0xff] %v560
  %919 = vst [vmem:[%s3 + $0x1d0] sm:$0xff] %v651
  %920 = vst [vmem:[%s3 + $0x1d8] sm:$0xff] %v653
  %921 = vst [vmem:[%s3 + $0x1e0] sm:$0xff] %v744
  %922 = vst [vmem:[%s3 + $0x1e8] sm:$0xff] %v746
  %923 = vst [vmem:[%s3 + $0x1f0] sm:$0xff] %v837
  %924 = vst [vmem:[%s3 + $0x1f8] sm:$0xff] %v839
  %925 = vst [vmem:[%s3 + $0x200] sm:$0xff] %v564
  %926 = vst [vmem:[%s3 + $0x208] sm:$0xff] %v566
  %927 = vst [vmem:[%s3 + $0x210] sm:$0xff] %v657
  %928 = vst [vmem:[%s3 + $0x218] sm:$0xff] %v659
  %929 = vst [vmem:[%s3 + $0x220] sm:$0xff] %v750
  %930 = vst [vmem:[%s3 + $0x228] sm:$0xff] %v752
  %931 = vst [vmem:[%s3 + $0x230] sm:$0xff] %v843
  %932 = vst [vmem:[%s3 + $0x238] sm:$0xff] %v845
  %933 = vst [vmem:[%s3 + $0x240] sm:$0xff] %v568
  %934 = vst [vmem:[%s3 + $0x248] sm:$0xff] %v570
  %935 = vst [vmem:[%s3 + $0x250] sm:$0xff] %v661
  %936 = vst [vmem:[%s3 + $0x258] sm:$0xff] %v663
  %937 = vst [vmem:[%s3 + $0x260] sm:$0xff] %v754
  %938 = vst [vmem:[%s3 + $0x268] sm:$0xff] %v756
  %939 = vst [vmem:[%s3 + $0x270] sm:$0xff] %v847
  %940 = vst [vmem:[%s3 + $0x278] sm:$0xff] %v849
  %941 = vst [vmem:[%s3 + $0x280] sm:$0xff] %v574
  %942 = vst [vmem:[%s3 + $0x288] sm:$0xff] %v576
  %943 = vst [vmem:[%s3 + $0x290] sm:$0xff] %v667
  %944 = vst [vmem:[%s3 + $0x298] sm:$0xff] %v669
  %945 = vst [vmem:[%s3 + $0x2a0] sm:$0xff] %v760
  %946 = vst [vmem:[%s3 + $0x2a8] sm:$0xff] %v762
  %947 = vst [vmem:[%s3 + $0x2b0] sm:$0xff] %v853
  %948 = vst [vmem:[%s3 + $0x2b8] sm:$0xff] %v855
  %949 = vst [vmem:[%s3 + $0x2c0] sm:$0xff] %v578
  %950 = vst [vmem:[%s3 + $0x2c8] sm:$0xff] %v580
  %951 = vst [vmem:[%s3 + $0x2d0] sm:$0xff] %v671
  %952 = vst [vmem:[%s3 + $0x2d8] sm:$0xff] %v673
  %953 = vst [vmem:[%s3 + $0x2e0] sm:$0xff] %v764
  %954 = vst [vmem:[%s3 + $0x2e8] sm:$0xff] %v766
  %955 = vst [vmem:[%s3 + $0x2f0] sm:$0xff] %v857
  %956 = vst [vmem:[%s3 + $0x2f8] sm:$0xff] %v859
  // Predicated region
  $region14: #{seq2seq_forward.5} parent=0 // pred_check
    _
  $region15: #{seq2seq_forward.5} parent=0 // pred_check_branch
    %958 = sbr.rel (0) target = $region17
  $region16: #{seq2seq_forward.5} parent=0 // pred_region
    _
  $region17: #{seq2seq_forward.5} parent=0 // pred_fallthru
    _
  // Predicated region
  $region18: #{seq2seq_forward.5} parent=0 // pred_check
    _
  $region19: #{seq2seq_forward.5} parent=0 // pred_check_branch
    %960 = sbr.rel (0) target = $region21
  $region20: #{seq2seq_forward.5} parent=0 // pred_region
    _
  $region21: #{seq2seq_forward.5} parent=0 // pred_fallthru
    _

// kernel: seq2seq_forward.7
$region0: #{seq2seq_forward.7}
  #allocation0 [shape = 'u32[]', space=smem, size = 0x4, offset = 0x4, fixed_abs, tag = 'smem constant byte address 0x4 - core index']
  #allocation1 [shape = 'u32[144,128]{1,0:T(1,128)}', space=vmem, size = 0x12000, scoped, tag = 'internal scratch']
  #allocation2 [shape = 'f32[8,128]{1,0:T(8,128)}', space=vmem, size = 0x1000, scoped, tag = 'scratch operand']
  #allocation3 [shape = 'f32[8,128]{1,0:T(8,128)}', space=vmem, size = 0x1000, scoped, tag = 'scratch operand']
  #allocation4 [shape = 'f32[8,512]{1,0:T(8,128)}', space=vmem, size = 0x4000, scoped, tag = 'scratch operand']
  #allocation5 [shape = 's32[1]{0}', space=sflag, size = 0x4, scoped, tag = 'scoped memory for seq2seq_forward.7']
  #allocation6 [shape = 'u8[512]{0}', space=smem, size = 0x200, scoped, tag = 'prefetched SMEM operand 0']
  %s0 = inlined_call_operand.vmem [shape: s32[8], index: 0, kind: input, shape index: {}]
  %s1 = inlined_call_operand.vmem [shape: f32[8,8,512], index: 1, kind: input, shape index: {}]
  %s2 = inlined_call_operand.vmem [shape: bf16[128,512], index: 2, kind: input, shape index: {}]
  %s3 = inlined_call_operand.vmem [shape: f32[8,128], index: 3, kind: input, shape index: {}]
  %s4 = inlined_call_operand.vmem [shape: f32[8,128], index: 4, kind: input, shape index: {}]
  %s5 = inlined_call_operand.vmem [shape: bf16[128,512], index: 5, kind: input, shape index: {}]
  %s6 = inlined_call_operand.vmem [shape: f32[1,512], index: 6, kind: input, shape index: {}]
  %s7 = inlined_call_operand.vmem [shape: bf16[128,128], index: 7, kind: input, shape index: {}]
  %s8 = inlined_call_operand.vmem [shape: f32[1,128], index: 8, kind: input, shape index: {}]
  %s9 = inlined_call_operand.vmem [shape: f32[7,8,128], index: 9, kind: output, shape index: {}]
  %s10 = sld [smem:[#allocation0]]
  $region73: #{seq2seq_forward.7} parent=0
    _
  %s12 = ssub.s32 1, %s10
  %s13 = scalar_select 0, %s12, %s10
  %s14 = sshll.u32 %s0, 4
  %s15 = int_to_ptr.vmem [resolvable:$true] %s14
  %17 = dma.vmem_to_smem %s15, 16, [#allocation6], [#allocation5]
  %18 = dma.done [#allocation5], 16
  %19 = sfence
  loop: start=0, step=1, limit=9
  $region2: #{seq2seq_forward.7} parent=0 // loop_pre_header
    _
  $region3: #{seq2seq_forward.7} parent=0 // loop_header
    %s21 = sphi 0, %s25
    %p22 = scmp.ge.s32.totalorder %s21, 9
    %s29 = sphi 0, %s29
    %s31 = sphi 0, %s29
    %s32 = sphi 0, %s31
    %s46 = sphi 0, %s32
    %s50 = sphi 0, %s50
    %s52 = sphi 0, %s50
    %s53 = sphi 0, %s52
    %s67 = sphi 0, %s53
    %s71 = sphi 0, %s71
    %s73 = sphi 0, %s71
    %s74 = sphi 0, %s73
    %s88 = sphi 0, %s74
    %s92 = sphi 0, %s92
    %s94 = sphi 0, %s92
    %s95 = sphi 0, %s94
    %s109 = sphi 0, %s95
    %s113 = sphi 0, %s113
    %s115 = sphi 0, %s113
    %s116 = sphi 0, %s115
    %s130 = sphi 0, %s116
    %s134 = sphi 0, %s134
    %s136 = sphi 0, %s134
    %s137 = sphi 0, %s136
    %s151 = sphi 0, %s137
    %s155 = sphi 0, %s155
    %s157 = sphi 0, %s155
    %s158 = sphi 0, %s157
    %s172 = sphi 0, %s158
    %s176 = sphi 0, %s176
    %s178 = sphi 0, %s176
    %s179 = sphi 0, %s178
    %s193 = sphi 0, %s179
    %s199 = sphi 0, %s201
    %s202 = sphi 0, %s199
    %s203 = sphi 0, %s202
    %s219 = sphi 0, %s203
  $region4: #{seq2seq_forward.7} parent=0 // loop_header_branch
    %24 = sbr.rel (%p22) target = $region8
  $region5: #{seq2seq_forward.7} parent=0 // loop_body
    %s26 = ssub.s32 %s21, 1
    %s27 = ssub.s32 %s21, 2
    %s28 = sadd.s32 %s21, 1
    %s30 = sadd.s32 %s29, 1
    %p33 = scmp.eq.s32.totalorder %s21, 6
    %p34 = scmp.ne.s32.totalorder %s29, %s31
    %p35 = scmp.eq.s32.totalorder %s21, 0
    %p36 = por %p34, %p35
    %p37 = scmp.ne.s32.totalorder %s29, %s31
    %p38 = scmp.eq.s32.totalorder %s26, 6
    %p39 = por %p37, %p38
    %p40 = scmp.ne.s32.totalorder %s31, %s32
    %p41 = scmp.eq.s32.totalorder %s26, 0
    %p42 = por %p40, %p41
    %p43 = scmp.ne.s32.totalorder %s31, %s32
    %p44 = scmp.eq.s32.totalorder %s27, 6
    %p45 = por %p43, %p44
    %p47 = scmp.ne.s32.totalorder %s32, %s46
    %p48 = scmp.eq.s32.totalorder %s27, 0
    %p49 = por %p47, %p48
    %s51 = sadd.s32 %s50, 1
    %p54 = scmp.eq.s32.totalorder %s21, 6
    %p55 = scmp.ne.s32.totalorder %s50, %s52
    %p56 = scmp.eq.s32.totalorder %s21, 0
    %p57 = por %p55, %p56
    %p58 = scmp.ne.s32.totalorder %s50, %s52
    %p59 = scmp.eq.s32.totalorder %s26, 6
    %p60 = por %p58, %p59
    %p61 = scmp.ne.s32.totalorder %s52, %s53
    %p62 = scmp.eq.s32.totalorder %s26, 0
    %p63 = por %p61, %p62
    %p64 = scmp.ne.s32.totalorder %s52, %s53
    %p65 = scmp.eq.s32.totalorder %s27, 6
    %p66 = por %p64, %p65
    %p68 = scmp.ne.s32.totalorder %s53, %s67
    %p69 = scmp.eq.s32.totalorder %s27, 0
    %p70 = por %p68, %p69
    %s72 = sadd.s32 %s71, 1
    %p75 = scmp.eq.s32.totalorder %s21, 6
    %p76 = scmp.ne.s32.totalorder %s71, %s73
    %p77 = scmp.eq.s32.totalorder %s21, 0
    %p78 = por %p76, %p77
    %p79 = scmp.ne.s32.totalorder %s71, %s73
    %p80 = scmp.eq.s32.totalorder %s26, 6
    %p81 = por %p79, %p80
    %p82 = scmp.ne.s32.totalorder %s73, %s74
    %p83 = scmp.eq.s32.totalorder %s26, 0
    %p84 = por %p82, %p83
    %p85 = scmp.ne.s32.totalorder %s73, %s74
    %p86 = scmp.eq.s32.totalorder %s27, 6
    %p87 = por %p85, %p86
    %p89 = scmp.ne.s32.totalorder %s74, %s88
    %p90 = scmp.eq.s32.totalorder %s27, 0
    %p91 = por %p89, %p90
    %s93 = sadd.s32 %s92, 1
    %p96 = scmp.eq.s32.totalorder %s21, 6
    %p97 = scmp.ne.s32.totalorder %s92, %s94
    %p98 = scmp.eq.s32.totalorder %s21, 0
    %p99 = por %p97, %p98
    %p100 = scmp.ne.s32.totalorder %s92, %s94
    %p101 = scmp.eq.s32.totalorder %s26, 6
    %p102 = por %p100, %p101
    %p103 = scmp.ne.s32.totalorder %s94, %s95
    %p104 = scmp.eq.s32.totalorder %s26, 0
    %p105 = por %p103, %p104
    %p106 = scmp.ne.s32.totalorder %s94, %s95
    %p107 = scmp.eq.s32.totalorder %s27, 6
    %p108 = por %p106, %p107
    %p110 = scmp.ne.s32.totalorder %s95, %s109
    %p111 = scmp.eq.s32.totalorder %s27, 0
    %p112 = por %p110, %p111
    %s114 = sadd.s32 %s113, 1
    %p117 = scmp.eq.s32.totalorder %s21, 6
    %p118 = scmp.ne.s32.totalorder %s113, %s115
    %p119 = scmp.eq.s32.totalorder %s21, 0
    %p120 = por %p118, %p119
    %p121 = scmp.ne.s32.totalorder %s113, %s115
    %p122 = scmp.eq.s32.totalorder %s26, 6
    %p123 = por %p121, %p122
    %p124 = scmp.ne.s32.totalorder %s115, %s116
    %p125 = scmp.eq.s32.totalorder %s26, 0
    %p126 = por %p124, %p125
    %p127 = scmp.ne.s32.totalorder %s115, %s116
    %p128 = scmp.eq.s32.totalorder %s27, 6
    %p129 = por %p127, %p128
    %p131 = scmp.ne.s32.totalorder %s116, %s130
    %p132 = scmp.eq.s32.totalorder %s27, 0
    %p133 = por %p131, %p132
    %s135 = sadd.s32 %s134, 1
    %p138 = scmp.eq.s32.totalorder %s21, 6
    %p139 = scmp.ne.s32.totalorder %s134, %s136
    %p140 = scmp.eq.s32.totalorder %s21, 0
    %p141 = por %p139, %p140
    %p142 = scmp.ne.s32.totalorder %s134, %s136
    %p143 = scmp.eq.s32.totalorder %s26, 6
    %p144 = por %p142, %p143
    %p145 = scmp.ne.s32.totalorder %s136, %s137
    %p146 = scmp.eq.s32.totalorder %s26, 0
    %p147 = por %p145, %p146
    %p148 = scmp.ne.s32.totalorder %s136, %s137
    %p149 = scmp.eq.s32.totalorder %s27, 6
    %p150 = por %p148, %p149
    %p152 = scmp.ne.s32.totalorder %s137, %s151
    %p153 = scmp.eq.s32.totalorder %s27, 0
    %p154 = por %p152, %p153
    %s156 = sadd.s32 %s155, 1
    %p159 = scmp.eq.s32.totalorder %s21, 6
    %p160 = scmp.ne.s32.totalorder %s155, %s157
    %p161 = scmp.eq.s32.totalorder %s21, 0
    %p162 = por %p160, %p161
    %p163 = scmp.ne.s32.totalorder %s155, %s157
    %p164 = scmp.eq.s32.totalorder %s26, 6
    %p165 = por %p163, %p164
    %p166 = scmp.ne.s32.totalorder %s157, %s158
    %p167 = scmp.eq.s32.totalorder %s26, 0
    %p168 = por %p166, %p167
    %p169 = scmp.ne.s32.totalorder %s157, %s158
    %p170 = scmp.eq.s32.totalorder %s27, 6
    %p171 = por %p169, %p170
    %p173 = scmp.ne.s32.totalorder %s158, %s172
    %p174 = scmp.eq.s32.totalorder %s27, 0
    %p175 = por %p173, %p174
    %s177 = sadd.s32 %s176, 1
    %p180 = scmp.eq.s32.totalorder %s21, 6
    %p181 = scmp.ne.s32.totalorder %s176, %s178
    %p182 = scmp.eq.s32.totalorder %s21, 0
    %p183 = por %p181, %p182
    %p184 = scmp.ne.s32.totalorder %s176, %s178
    %p185 = scmp.eq.s32.totalorder %s26, 6
    %p186 = por %p184, %p185
    %p187 = scmp.ne.s32.totalorder %s178, %s179
    %p188 = scmp.eq.s32.totalorder %s26, 0
    %p189 = por %p187, %p188
    %p190 = scmp.ne.s32.totalorder %s178, %s179
    %p191 = scmp.eq.s32.totalorder %s27, 6
    %p192 = por %p190, %p191
    %p194 = scmp.ne.s32.totalorder %s179, %s193
    %p195 = scmp.eq.s32.totalorder %s27, 0
    %p196 = por %p194, %p195
    %s197 = ssub.s32 %s21, %s28
    %p198 = scmp.eq.s32.totalorder %s197, 0
    %s200 = sadd.s32 %s199, 1
    %s201 = scalar_select %p198, %s199, %s200
    %p204 = pneg %p198
    %p205 = scmp.eq.s32.totalorder %s21, 6
    %p206 = por %p204, %p205
    %p207 = scmp.ne.s32.totalorder %s199, %s202
    %p208 = scmp.eq.s32.totalorder %s21, 0
    %p209 = por %p207, %p208
    %p210 = scmp.ne.s32.totalorder %s199, %s202
    %p211 = scmp.eq.s32.totalorder %s26, 6
    %p212 = por %p210, %p211
    %p213 = scmp.ne.s32.totalorder %s202, %s203
    %p214 = scmp.eq.s32.totalorder %s26, 0
    %p215 = por %p213, %p214
    %p216 = scmp.ne.s32.totalorder %s202, %s203
    %p217 = scmp.eq.s32.totalorder %s27, 6
    %p218 = por %p216, %p217
    %p220 = scmp.ne.s32.totalorder %s203, %s219
    %p221 = scmp.eq.s32.totalorder %s27, 0
    %p222 = por %p220, %p221
    %p223 = scmp.le.s32.totalorder 1, %s21
    %p224 = scmp.lt.s32.totalorder %s21, 8
    %p225 = pnand %p223, %p224
    %p226 = pneg %p225
    // Predicated region
    $region9: #{seq2seq_forward.7} parent=5 // pred_check
      _
    $region10: #{seq2seq_forward.7} parent=5 // pred_check_branch
      %228 = sbr.rel (%p225) target = $region12
    $region11: #{seq2seq_forward.7} parent=5 // pred_region
      %s229 = ssub.s32 %s21, 1
      // Predicated region
      $region13: #{seq2seq_forward.7} parent=11 // pred_check
        %p230 = pneg %p42
      $region14: #{seq2seq_forward.7} parent=11 // pred_check_branch
        %232 = sbr.rel (%p230) target = $region16
      $region15: #{seq2seq_forward.7} parent=11 // pred_region
        _
      $region16: #{seq2seq_forward.7} parent=11 // pred_fallthru
        _
      // Predicated region
      $region17: #{seq2seq_forward.7} parent=11 // pred_check
        %p233 = pneg %p63
      $region18: #{seq2seq_forward.7} parent=11 // pred_check_branch
        %235 = sbr.rel (%p233) target = $region20
      $region19: #{seq2seq_forward.7} parent=11 // pred_region
        _
      $region20: #{seq2seq_forward.7} parent=11 // pred_fallthru
        _
      // Predicated region
      $region21: #{seq2seq_forward.7} parent=11 // pred_check
        %p236 = pneg %p84
      $region22: #{seq2seq_forward.7} parent=11 // pred_check_branch
        %238 = sbr.rel (%p236) target = $region24
      $region23: #{seq2seq_forward.7} parent=11 // pred_region
        _
      $region24: #{seq2seq_forward.7} parent=11 // pred_fallthru
        _
      // Predicated region
      $region25: #{seq2seq_forward.7} parent=11 // pred_check
        %p239 = pneg %p105
      $region26: #{seq2seq_forward.7} parent=11 // pred_check_branch
        %241 = sbr.rel (%p239) target = $region28
      $region27: #{seq2seq_forward.7} parent=11 // pred_region
        _
      $region28: #{seq2seq_forward.7} parent=11 // pred_fallthru
        _
      // Predicated region
      $region29: #{seq2seq_forward.7} parent=11 // pred_check
        %p242 = pneg %p126
      $region30: #{seq2seq_forward.7} parent=11 // pred_check_branch
        %244 = sbr.rel (%p242) target = $region32
      $region31: #{seq2seq_forward.7} parent=11 // pred_region
        _
      $region32: #{seq2seq_forward.7} parent=11 // pred_fallthru
        _
      // Predicated region
      $region33: #{seq2seq_forward.7} parent=11 // pred_check
        %p245 = pneg %p147
      $region34: #{seq2seq_forward.7} parent=11 // pred_check_branch
        %247 = sbr.rel (%p245) target = $region36
      $region35: #{seq2seq_forward.7} parent=11 // pred_region
        _
      $region36: #{seq2seq_forward.7} parent=11 // pred_fallthru
        _
      // Predicated region
      $region37: #{seq2seq_forward.7} parent=11 // pred_check
        %p248 = pneg %p168
      $region38: #{seq2seq_forward.7} parent=11 // pred_check_branch
        %250 = sbr.rel (%p248) target = $region40
      $region39: #{seq2seq_forward.7} parent=11 // pred_region
        _
      $region40: #{seq2seq_forward.7} parent=11 // pred_fallthru
        _
      // Predicated region
      $region41: #{seq2seq_forward.7} parent=11 // pred_check
        %p251 = pneg %p189
      $region42: #{seq2seq_forward.7} parent=11 // pred_check_branch
        %253 = sbr.rel (%p251) target = $region44
      $region43: #{seq2seq_forward.7} parent=11 // pred_region
        _
      $region44: #{seq2seq_forward.7} parent=11 // pred_fallthru
        _
    $region12: #{seq2seq_forward.7} parent=5 // pred_fallthru
      _
    %p254 = scmp.lt.s32.totalorder %s21, 7
    // Predicated region
    $region45: #{seq2seq_forward.7} parent=5 // pred_check
      %p255 = pneg %p254
    $region46: #{seq2seq_forward.7} parent=5 // pred_check_branch
      %257 = sbr.rel (%p255) target = $region48
    $region47: #{seq2seq_forward.7} parent=5 // pred_region
      _
    $region48: #{seq2seq_forward.7} parent=5 // pred_fallthru
      _
    %p258 = scmp.le.s32.totalorder 1, %s21
    %p259 = scmp.lt.s32.totalorder %s21, 8
    %p260 = pnand %p258, %p259
    %p261 = pneg %p260
    // Predicated region
    $region49: #{seq2seq_forward.7} parent=5 // pred_check
      _
    $region50: #{seq2seq_forward.7} parent=5 // pred_check_branch
      %263 = sbr.rel (%p260) target = $region52
    $region51: #{seq2seq_forward.7} parent=5 // pred_region
      %s264 = ssub.s32 %s21, 1
      %p265 = pneg %p42
      %p266 = pneg %p39
      %p267 = pneg %p63
      %p268 = pneg %p60
      %p269 = pneg %p84
      %p270 = pneg %p81
      %p271 = pneg %p105
      %p272 = pneg %p102
      %p273 = pneg %p126
      %p274 = pneg %p123
      %p275 = pneg %p147
      %p276 = pneg %p144
      %p277 = pneg %p168
      %p278 = pneg %p165
      %p279 = pneg %p189
      %p280 = pneg %p186
      %p281 = pneg %p215
      %p282 = pneg %p212
      %p283 = scmp.lt.s32.totalorder %s26, 6
      %s284 = scalar_select %p283, %s26, 6
      %s285 = smul.addr %s284, 8
      %s286 = scalar_lea.vmem %s9, %s285
      %p287 = scmp.lt.s32.totalorder %s26, 6
      %s288 = scalar_select %p287, %s26, 6
      %s289 = smul.addr %s288, 8
      %s290 = scalar_lea.vmem %s9, %s289
      %p292 = scmp.eq.s32.totalorder %s26, 0
      // Predicated region
      $region53: #{seq2seq_forward.7} parent=51 // pred_check
        %p293 = pneg %p292
      $region54: #{seq2seq_forward.7} parent=51 // pred_check_branch
        %295 = sbr.rel (%p293) target = $region56
      $region55: #{seq2seq_forward.7} parent=51 // pred_region
        %v296 = vld [vmem:[%s3] sm:$0xff]
        %297 = vst [vmem:[#allocation2] sm:$0xff] %v296
        %v298 = vld [vmem:[%s4] sm:$0xff]
        %299 = vst [vmem:[#allocation3] sm:$0xff] %v298
        %v300 = vld [vmem:[%s1] sm:$0xff]
        %v301 = vld [vmem:[%s1 + $0x8] sm:$0xff]
        %v302 = vld [vmem:[%s1 + $0x10] sm:$0xff]
        %v303 = vld [vmem:[%s1 + $0x18] sm:$0xff]
        %304 = vst [vmem:[#allocation4] sm:$0xff] %v300
        %305 = vst [vmem:[#allocation4 + $0x8] sm:$0xff] %v301
        %306 = vst [vmem:[#allocation4 + $0x10] sm:$0xff] %v302
        %307 = vst [vmem:[#allocation4 + $0x18] sm:$0xff] %v303
      $region56: #{seq2seq_forward.7} parent=51 // pred_fallthru
        _
      %v308 = vld [vmem:[#allocation4] sm:$0xff]
      %v309 = vld [vmem:[#allocation4 + $0x8] sm:$0xff]
      %v310 = vld [vmem:[#allocation4 + $0x10] sm:$0xff]
      %v311 = vld [vmem:[#allocation4 + $0x18] sm:$0xff]
      %v312 = vld [vmem:[#allocation2] sm:$0xff]
      %v313 = vpack.c.bf16 %v312, %v312
      %v314 = vld [vmem:[%s5] sm:$0xff]
      %v315 = vld [vmem:[%s5 + $0x8] sm:$0xff]
      %v316 = vld [vmem:[%s5 + $0x10] sm:$0xff]
      %v317 = vld [vmem:[%s5 + $0x18] sm:$0xff]
      %v318 = vld [vmem:[%s5 + $0x20] sm:$0xff]
      %v319 = vld [vmem:[%s5 + $0x28] sm:$0xff]
      %v320 = vld [vmem:[%s5 + $0x30] sm:$0xff]
      %v321 = vld [vmem:[%s5 + $0x38] sm:$0xff]
      %v322 = vld [vmem:[%s5 + $0x40] sm:$0xff]
      %v323 = vld [vmem:[%s5 + $0x48] sm:$0xff]
      %v324 = vld [vmem:[%s5 + $0x50] sm:$0xff]
      %v325 = vld [vmem:[%s5 + $0x58] sm:$0xff]
      %v326 = vld [vmem:[%s5 + $0x60] sm:$0xff]
      %v327 = vld [vmem:[%s5 + $0x68] sm:$0xff]
      %v328 = vld [vmem:[%s5 + $0x70] sm:$0xff]
      %v329 = vld [vmem:[%s5 + $0x78] sm:$0xff]
      %v330 = vld [vmem:[%s5 + $0x80] sm:$0xff]
      %v331 = vld [vmem:[%s5 + $0x88] sm:$0xff]
      %v332 = vld [vmem:[%s5 + $0x90] sm:$0xff]
      %v333 = vld [vmem:[%s5 + $0x98] sm:$0xff]
      %v334 = vld [vmem:[%s5 + $0xa0] sm:$0xff]
      %v335 = vld [vmem:[%s5 + $0xa8] sm:$0xff]
      %v336 = vld [vmem:[%s5 + $0xb0] sm:$0xff]
      %v337 = vld [vmem:[%s5 + $0xb8] sm:$0xff]
      %v338 = vld [vmem:[%s5 + $0xc0] sm:$0xff]
      %v339 = vld [vmem:[%s5 + $0xc8] sm:$0xff]
      %v340 = vld [vmem:[%s5 + $0xd0] sm:$0xff]
      %v341 = vld [vmem:[%s5 + $0xd8] sm:$0xff]
      %v342 = vld [vmem:[%s5 + $0xe0] sm:$0xff]
      %v343 = vld [vmem:[%s5 + $0xe8] sm:$0xff]
      %v344 = vld [vmem:[%s5 + $0xf0] sm:$0xff]
      %v345 = vld [vmem:[%s5 + $0xf8] sm:$0xff]
      %v378 = vunpack.c.l.b16 %v314
      %v379 = vunpack.c.h.b16 %v314
      %v380 = vunpack.c.l.b16 %v315
      %v381 = vunpack.c.h.b16 %v315
      %v382 = vunpack.c.l.b16 %v316
      %v383 = vunpack.c.h.b16 %v316
      %v384 = vunpack.c.l.b16 %v317
      %v385 = vunpack.c.h.b16 %v317
      %v386 = vunpack.c.l.b16 %v318
      %v387 = vunpack.c.h.b16 %v318
      %v388 = vunpack.c.l.b16 %v319
      %v389 = vunpack.c.h.b16 %v319
      %v390 = vunpack.c.l.b16 %v320
      %v391 = vunpack.c.h.b16 %v320
      %v392 = vunpack.c.l.b16 %v321
      %v393 = vunpack.c.h.b16 %v321
      %v394 = vunpack.c.l.b16 %v322
      %v395 = vunpack.c.h.b16 %v322
      %v396 = vunpack.c.l.b16 %v323
      %v397 = vunpack.c.h.b16 %v323
      %v398 = vunpack.c.l.b16 %v324
      %v399 = vunpack.c.h.b16 %v324
      %v400 = vunpack.c.l.b16 %v325
      %v401 = vunpack.c.h.b16 %v325
      %v402 = vunpack.c.l.b16 %v326
      %v403 = vunpack.c.h.b16 %v326
      %v404 = vunpack.c.l.b16 %v327
      %v405 = vunpack.c.h.b16 %v327
      %v406 = vunpack.c.l.b16 %v328
      %v407 = vunpack.c.h.b16 %v328
      %v408 = vunpack.c.l.b16 %v329
      %v409 = vunpack.c.h.b16 %v329
      %v410 = vunpack.c.l.b16 %v330
      %v411 = vunpack.c.h.b16 %v330
      %v412 = vunpack.c.l.b16 %v331
      %v413 = vunpack.c.h.b16 %v331
      %v414 = vunpack.c.l.b16 %v332
      %v415 = vunpack.c.h.b16 %v332
      %v416 = vunpack.c.l.b16 %v333
      %v417 = vunpack.c.h.b16 %v333
      %v418 = vunpack.c.l.b16 %v334
      %v419 = vunpack.c.h.b16 %v334
      %v420 = vunpack.c.l.b16 %v335
      %v421 = vunpack.c.h.b16 %v335
      %v422 = vunpack.c.l.b16 %v336
      %v423 = vunpack.c.h.b16 %v336
      %v424 = vunpack.c.l.b16 %v337
      %v425 = vunpack.c.h.b16 %v337
      %v426 = vunpack.c.l.b16 %v338
      %v427 = vunpack.c.h.b16 %v338
      %v428 = vunpack.c.l.b16 %v339
      %v429 = vunpack.c.h.b16 %v339
      %v430 = vunpack.c.l.b16 %v340
      %v431 = vunpack.c.h.b16 %v340
      %v432 = vunpack.c.l.b16 %v341
      %v433 = vunpack.c.h.b16 %v341
      %v434 = vunpack.c.l.b16 %v342
      %v435 = vunpack.c.h.b16 %v342
      %v436 = vunpack.c.l.b16 %v343
      %v437 = vunpack.c.h.b16 %v343
      %v438 = vunpack.c.l.b16 %v344
      %v439 = vunpack.c.h.b16 %v344
      %v440 = vunpack.c.l.b16 %v345
      %v441 = vunpack.c.h.b16 %v345
      %v442 = vpack.c.b16 %v382, %v378
      %v443 = vpack.c.b16 %v383, %v379
      %v444 = vpack.c.b16 %v384, %v380
      %v445 = vpack.c.b16 %v385, %v381
      %v446 = vpack.c.b16 %v390, %v386
      %v447 = vpack.c.b16 %v391, %v387
      %v448 = vpack.c.b16 %v392, %v388
      %v449 = vpack.c.b16 %v393, %v389
      %v450 = vpack.c.b16 %v398, %v394
      %v451 = vpack.c.b16 %v399, %v395
      %v452 = vpack.c.b16 %v400, %v396
      %v453 = vpack.c.b16 %v401, %v397
      %v454 = vpack.c.b16 %v406, %v402
      %v455 = vpack.c.b16 %v407, %v403
      %v456 = vpack.c.b16 %v408, %v404
      %v457 = vpack.c.b16 %v409, %v405
      %v458 = vpack.c.b16 %v414, %v410
      %v459 = vpack.c.b16 %v415, %v411
      %v460 = vpack.c.b16 %v416, %v412
      %v461 = vpack.c.b16 %v417, %v413
      %v462 = vpack.c.b16 %v422, %v418
      %v463 = vpack.c.b16 %v423, %v419
      %v464 = vpack.c.b16 %v424, %v420
      %v465 = vpack.c.b16 %v425, %v421
      %v466 = vpack.c.b16 %v430, %v426
      %v467 = vpack.c.b16 %v431, %v427
      %v468 = vpack.c.b16 %v432, %v428
      %v469 = vpack.c.b16 %v433, %v429
      %v470 = vpack.c.b16 %v438, %v434
      %v471 = vpack.c.b16 %v439, %v435
      %v472 = vpack.c.b16 %v440, %v436
      %v473 = vpack.c.b16 %v441, %v437
      %506 = vmatprep.subr.bf16.mxu0 %v443
      %507 = vmatpush1.bf16.msra.mxu0 %v442
      %508 = vmatprep.subr.bf16.mxu0 %v447
      %509 = vmatpush1.bf16.msra.mxu0 %v446
      %510 = vmatprep.subr.bf16.mxu0 %v451
      %511 = vmatpush1.bf16.msra.mxu0 %v450
      %512 = vmatprep.subr.bf16.mxu0 %v455
      %513 = vmatpush1.bf16.msra.mxu0 %v454
      %514 = vmatprep.subr.bf16.mxu0 %v459
      %515 = vmatpush1.bf16.msra.mxu0 %v458
      %516 = vmatprep.subr.bf16.mxu0 %v463
      %517 = vmatpush1.bf16.msra.mxu0 %v462
      %518 = vmatprep.subr.bf16.mxu0 %v467
      %519 = vmatpush1.bf16.msra.mxu0 %v466
      %520 = vmatprep.subr.bf16.mxu0 %v471
      %521 = vmatpush1.bf16.msra.mxu0 %v470
      %522 = vmatprep.subr.bf16.mxu0 0
      %523 = vmatpush1.bf16.msra.mxu0 0
      %524 = vmatprep.subr.bf16.mxu0 0
      %525 = vmatpush1.bf16.msra.mxu0 0
      %526 = vmatprep.subr.bf16.mxu0 0
      %527 = vmatpush1.bf16.msra.mxu0 0
      %528 = vmatprep.subr.bf16.mxu0 0
      %529 = vmatpush1.bf16.msra.mxu0 0
      %530 = vmatprep.subr.bf16.mxu0 0
      %531 = vmatpush1.bf16.msra.mxu0 0
      %532 = vmatprep.subr.bf16.mxu0 0
      %533 = vmatpush1.bf16.msra.mxu0 0
      %534 = vmatprep.subr.bf16.mxu0 0
      %535 = vmatpush1.bf16.msra.mxu0 0
      %536 = vmatprep.subr.bf16.mxu0 0
      %537 = vmatpush1.bf16.msra.mxu0 0
      %538 = vmatprep.mubr.bf16.mxu0 0
      %539 = vmatmul.mubr.bf16.gmra.mrb[0].mxu0 %v313
      %v540 = vpop.f32.mrb[0].mxu0
      %v541 = vadd.f32 0.0, %v540
      %v542 = vpop.f32.mrb[0].mxu0
      %v543 = vadd.f32 0.0, %v542
      %v544 = vpop.f32.mrb[0].mxu0
      %v545 = vpop.f32.mrb[0].mxu0
      %546 = vdwg.mxu0
      %547 = vmatprep.subr.bf16.mxu0 %v445
      %548 = vmatpush1.bf16.msra.mxu0 %v444
      %549 = vmatprep.subr.bf16.mxu0 %v449
      %550 = vmatpush1.bf16.msra.mxu0 %v448
      %551 = vmatprep.subr.bf16.mxu0 %v453
      %552 = vmatpush1.bf16.msra.mxu0 %v452
      %553 = vmatprep.subr.bf16.mxu0 %v457
      %554 = vmatpush1.bf16.msra.mxu0 %v456
      %555 = vmatprep.subr.bf16.mxu0 %v461
      %556 = vmatpush1.bf16.msra.mxu0 %v460
      %557 = vmatprep.subr.bf16.mxu0 %v465
      %558 = vmatpush1.bf16.msra.mxu0 %v464
      %559 = vmatprep.subr.bf16.mxu0 %v469
      %560 = vmatpush1.bf16.msra.mxu0 %v468
      %561 = vmatprep.subr.bf16.mxu0 %v473
      %562 = vmatpush1.bf16.msra.mxu0 %v472
      %563 = vmatprep.subr.bf16.mxu0 0
      %564 = vmatpush1.bf16.msra.mxu0 0
      %565 = vmatprep.subr.bf16.mxu0 0
      %566 = vmatpush1.bf16.msra.mxu0 0
      %567 = vmatprep.subr.bf16.mxu0 0
      %568 = vmatpush1.bf16.msra.mxu0 0
      %569 = vmatprep.subr.bf16.mxu0 0
      %570 = vmatpush1.bf16.msra.mxu0 0
      %571 = vmatprep.subr.bf16.mxu0 0
      %572 = vmatpush1.bf16.msra.mxu0 0
      %573 = vmatprep.subr.bf16.mxu0 0
      %574 = vmatpush1.bf16.msra.mxu0 0
      %575 = vmatprep.subr.bf16.mxu0 0
      %576 = vmatpush1.bf16.msra.mxu0 0
      %577 = vmatprep.subr.bf16.mxu0 0
      %578 = vmatpush1.bf16.msra.mxu0 0
      %579 = vmatprep.mubr.bf16.mxu0 0
      %580 = vmatmul.mubr.bf16.gmra.mrb[0].mxu0 %v313
      %v581 = vpop.f32.mrb[0].mxu0
      %v582 = vadd.f32 0.0, %v581
      %v583 = vpop.f32.mrb[0].mxu0
      %v584 = vadd.f32 0.0, %v583
      %v585 = vpop.f32.mrb[0].mxu0
      %v586 = vpop.f32.mrb[0].mxu0
      %587 = vdwg.mxu0
      %v588 = vadd.f32 %v308, %v541
      %v589 = vadd.f32 %v309, %v543
      %v590 = vadd.f32 %v310, %v582
      %v591 = vadd.f32 %v311, %v584
      %v592 = vld [vmem:[%s6] sm:$0xf]
      %v594 = vlaneseq
      %v595 = vshrl.u32 %v594, 7
      %v596 = vsub.s32 0, %v595
      %v597 = vrot.slane %v592, %v596
      %v598 = vlaneseq
      %v599 = vshrl.u32 %v598, 7
      %v600 = vsub.s32 1, %v599
      %v601 = vrot.slane %v592, %v600
      %v602 = vlaneseq
      %v603 = vshrl.u32 %v602, 7
      %v604 = vsub.s32 2, %v603
      %v605 = vrot.slane %v592, %v604
      %v606 = vlaneseq
      %v607 = vshrl.u32 %v606, 7
      %v608 = vsub.s32 3, %v607
      %v609 = vrot.slane %v592, %v608
      %v614 = vadd.f32 %v588, %v597
      %v615 = vadd.f32 %v589, %v601
      %v616 = vadd.f32 %v590, %v605
      %v617 = vadd.f32 %v591, %v609
      %v618 = vxor.u32 %v614, 2147483648
      %v619 = vmul.f32 %v618, 1.442695
      %v620 = vpow.pop %v619
      %v621 = vadd.f32 %v620, 1.0
      %v622 = vrcp.pop %v621
      %v623 = vmul.f32 1.0, %v622
      %v624 = vxor.u32 %v615, 2147483648
      %v625 = vmul.f32 %v624, 1.442695
      %v626 = vpow.pop %v625
      %v627 = vadd.f32 %v626, 1.0
      %v628 = vrcp.pop %v627
      %v629 = vmul.f32 1.0, %v628
      %v630 = vtanh.pop %v616
      %v631 = vxor.u32 %v617, 2147483648
      %v632 = vmul.f32 %v631, 1.442695
      %v633 = vpow.pop %v632
      %v634 = vadd.f32 %v633, 1.0
      %v635 = vrcp.pop %v634
      %v636 = vmul.f32 1.0, %v635
      %v637 = vld [vmem:[#allocation3] sm:$0xff]
      %v638 = vmul.f32 %v629, %v637
      %v639 = vmul.f32 %v623, %v630
      %v640 = vadd.f32 %v638, %v639
      %v641 = vtanh.pop %v640
      %v642 = vmul.f32 %v636, %v641
      %v643 = vpack.c.bf16 %v642, %v642
      %v644 = vld [vmem:[%s7] sm:$0xf]
      %v645 = vld [vmem:[%s7 + $0x4] sm:$0xf]
      %v646 = vld [vmem:[%s7 + $0x8] sm:$0xf]
      %v647 = vld [vmem:[%s7 + $0xc] sm:$0xf]
      %v648 = vld [vmem:[%s7 + $0x10] sm:$0xf]
      %v649 = vld [vmem:[%s7 + $0x14] sm:$0xf]
      %v650 = vld [vmem:[%s7 + $0x18] sm:$0xf]
      %v651 = vld [vmem:[%s7 + $0x1c] sm:$0xf]
      %v652 = vld [vmem:[%s7 + $0x20] sm:$0xf]
      %v653 = vld [vmem:[%s7 + $0x24] sm:$0xf]
      %v654 = vld [vmem:[%s7 + $0x28] sm:$0xf]
      %v655 = vld [vmem:[%s7 + $0x2c] sm:$0xf]
      %v656 = vld [vmem:[%s7 + $0x30] sm:$0xf]
      %v657 = vld [vmem:[%s7 + $0x34] sm:$0xf]
      %v658 = vld [vmem:[%s7 + $0x38] sm:$0xf]
      %v659 = vld [vmem:[%s7 + $0x3c] sm:$0xf]
      %v660 = vld [vmem:[%s8] sm:$0x1]
      %v662 = vlaneseq
      %v663 = vshrl.u32 %v662, 7
      %v664 = vsub.s32 0, %v663
      %v665 = vrot.slane %v660, %v664
      %v683 = vunpack.c.l.b16 %v644
      %v684 = vunpack.c.l.b16 %v645
      %v685 = vunpack.c.l.b16 %v646
      %v686 = vunpack.c.l.b16 %v647
      %v687 = vunpack.c.l.b16 %v648
      %v688 = vunpack.c.l.b16 %v649
      %v689 = vunpack.c.l.b16 %v650
      %v690 = vunpack.c.l.b16 %v651
      %v691 = vunpack.c.l.b16 %v652
      %v692 = vunpack.c.l.b16 %v653
      %v693 = vunpack.c.l.b16 %v654
      %v694 = vunpack.c.l.b16 %v655
      %v695 = vunpack.c.l.b16 %v656
      %v696 = vunpack.c.l.b16 %v657
      %v697 = vunpack.c.l.b16 %v658
      %v698 = vunpack.c.l.b16 %v659
      %v699 = vpack.c.b16 %v684, %v683
      %v700 = vpack.c.b16 %v686, %v685
      %v701 = vpack.c.b16 %v688, %v687
      %v702 = vpack.c.b16 %v690, %v689
      %v703 = vpack.c.b16 %v692, %v691
      %v704 = vpack.c.b16 %v694, %v693
      %v705 = vpack.c.b16 %v696, %v695
      %v706 = vpack.c.b16 %v698, %v697
      %715 = vmatprep.subr.bf16.mxu0 0
      %716 = vmatpush1.bf16.msra.mxu0 %v699
      %717 = vmatprep.subr.bf16.mxu0 0
      %718 = vmatpush1.bf16.msra.mxu0 %v700
      %719 = vmatprep.subr.bf16.mxu0 0
      %720 = vmatpush1.bf16.msra.mxu0 %v701
      %721 = vmatprep.subr.bf16.mxu0 0
      %722 = vmatpush1.bf16.msra.mxu0 %v702
      %723 = vmatprep.subr.bf16.mxu0 0
      %724 = vmatpush1.bf16.msra.mxu0 %v703
      %725 = vmatprep.subr.bf16.mxu0 0
      %726 = vmatpush1.bf16.msra.mxu0 %v704
      %727 = vmatprep.subr.bf16.mxu0 0
      %728 = vmatpush1.bf16.msra.mxu0 %v705
      %729 = vmatprep.subr.bf16.mxu0 0
      %730 = vmatpush1.bf16.msra.mxu0 %v706
      %731 = vmatprep.subr.bf16.mxu0 0
      %732 = vmatpush1.bf16.msra.mxu0 0
      %733 = vmatprep.subr.bf16.mxu0 0
      %734 = vmatpush1.bf16.msra.mxu0 0
      %735 = vmatprep.subr.bf16.mxu0 0
      %736 = vmatpush1.bf16.msra.mxu0 0
      %737 = vmatprep.subr.bf16.mxu0 0
      %738 = vmatpush1.bf16.msra.mxu0 0
      %739 = vmatprep.subr.bf16.mxu0 0
      %740 = vmatpush1.bf16.msra.mxu0 0
      %741 = vmatprep.subr.bf16.mxu0 0
      %742 = vmatpush1.bf16.msra.mxu0 0
      %743 = vmatprep.subr.bf16.mxu0 0
      %744 = vmatpush1.bf16.msra.mxu0 0
      %745 = vmatprep.subr.bf16.mxu0 0
      %746 = vmatpush1.bf16.msra.mxu0 0
      %747 = vmatprep.mubr.bf16.mxu0 0
      %748 = vmatmul.mubr.bf16.gmra.mrb[0].mxu0 %v643
      %v749 = vpop.f32.mrb[0].mxu0
      %v750 = vadd.f32 %v665, %v749
      %v751 = vpop.f32.mrb[0].mxu0
      %v752 = vpop.f32.mrb[0].mxu0
      %v753 = vpop.f32.mrb[0].mxu0
      %754 = vdwg.mxu0
      %755 = vst [vmem:[%s290] sm:$0xff] %v750
      %756 = vst [vmem:[#allocation2] sm:$0xff] %v642
      %757 = vst [vmem:[#allocation3] sm:$0xff] %v640
      %s758 = sadd.s32 %s26, 1
      %p759 = scmp.lt.s32.totalorder %s758, 7
      // Predicated region
      $region57: #{seq2seq_forward.7} parent=51 // pred_check
        %p760 = pneg %p759
      $region58: #{seq2seq_forward.7} parent=51 // pred_check_branch
        %762 = sbr.rel (%p760) target = $region60
      $region59: #{seq2seq_forward.7} parent=51 // pred_region
        %v763 = vlaneseq
        %v764 = vand.u32 %v763, 127
        %765 = vmax.xlane.f32.xlu0 %v750
        %v766 = vpop.xlane.xlu0 %765
        %vm767 = vcmp.ge.f32.partialorder %v750, %v766
        %v768 = vsel %vm767, %v764, 128
        %v769 = vand.u32 %v768, 65535
        %v770 = vshra.s32 %v768, 16
        %v771 = vcvt.s32.f32 %v769
        %v772 = vcvt.s32.f32 %v770
        %773 = vmin.xlane.f32.xlu0 %v772
        %v774 = vpop.xlane.xlu0 %773
        %vm775 = vcmp.eq.f32.partialorder %v772, %v774
        %v776 = vsel %vm775, %v771, inf
        %777 = vmin.xlane.f32.xlu0 %v776
        %v778 = vpop.xlane.xlu0 %777
        %v779 = vcvt.f32.s32 %v778
        %v780 = vcvt.f32.s32 %v774
        %v781 = vshll.u32 %v780, 16
        %v782 = vadd.s32 %v781, %v779
        %vm783 = vcmp.eq.s32.totalorder %v764, %v782
        %v784 = vsel %vm783, 1, 0
        %v785 = vcvt.s32.f32 %v784
        %v786 = vpack.c.bf16 %v785, %v785
        %v787 = vld [vmem:[%s2] sm:$0xff]
        %v788 = vld [vmem:[%s2 + $0x8] sm:$0xff]
        %v789 = vld [vmem:[%s2 + $0x10] sm:$0xff]
        %v790 = vld [vmem:[%s2 + $0x18] sm:$0xff]
        %v791 = vld [vmem:[%s2 + $0x20] sm:$0xff]
        %v792 = vld [vmem:[%s2 + $0x28] sm:$0xff]
        %v793 = vld [vmem:[%s2 + $0x30] sm:$0xff]
        %v794 = vld [vmem:[%s2 + $0x38] sm:$0xff]
        %v795 = vld [vmem:[%s2 + $0x40] sm:$0xff]
        %v796 = vld [vmem:[%s2 + $0x48] sm:$0xff]
        %v797 = vld [vmem:[%s2 + $0x50] sm:$0xff]
        %v798 = vld [vmem:[%s2 + $0x58] sm:$0xff]
        %v799 = vld [vmem:[%s2 + $0x60] sm:$0xff]
        %v800 = vld [vmem:[%s2 + $0x68] sm:$0xff]
        %v801 = vld [vmem:[%s2 + $0x70] sm:$0xff]
        %v802 = vld [vmem:[%s2 + $0x78] sm:$0xff]
        %v803 = vld [vmem:[%s2 + $0x80] sm:$0xff]
        %v804 = vld [vmem:[%s2 + $0x88] sm:$0xff]
        %v805 = vld [vmem:[%s2 + $0x90] sm:$0xff]
        %v806 = vld [vmem:[%s2 + $0x98] sm:$0xff]
        %v807 = vld [vmem:[%s2 + $0xa0] sm:$0xff]
        %v808 = vld [vmem:[%s2 + $0xa8] sm:$0xff]
        %v809 = vld [vmem:[%s2 + $0xb0] sm:$0xff]
        %v810 = vld [vmem:[%s2 + $0xb8] sm:$0xff]
        %v811 = vld [vmem:[%s2 + $0xc0] sm:$0xff]
        %v812 = vld [vmem:[%s2 + $0xc8] sm:$0xff]
        %v813 = vld [vmem:[%s2 + $0xd0] sm:$0xff]
        %v814 = vld [vmem:[%s2 + $0xd8] sm:$0xff]
        %v815 = vld [vmem:[%s2 + $0xe0] sm:$0xff]
        %v816 = vld [vmem:[%s2 + $0xe8] sm:$0xff]
        %v817 = vld [vmem:[%s2 + $0xf0] sm:$0xff]
        %v818 = vld [vmem:[%s2 + $0xf8] sm:$0xff]
        %v851 = vunpack.c.l.b16 %v787
        %v852 = vunpack.c.h.b16 %v787
        %v853 = vunpack.c.l.b16 %v788
        %v854 = vunpack.c.h.b16 %v788
        %v855 = vunpack.c.l.b16 %v789
        %v856 = vunpack.c.h.b16 %v789
        %v857 = vunpack.c.l.b16 %v790
        %v858 = vunpack.c.h.b16 %v790
        %v859 = vunpack.c.l.b16 %v791
        %v860 = vunpack.c.h.b16 %v791
        %v861 = vunpack.c.l.b16 %v792
        %v862 = vunpack.c.h.b16 %v792
        %v863 = vunpack.c.l.b16 %v793
        %v864 = vunpack.c.h.b16 %v793
        %v865 = vunpack.c.l.b16 %v794
        %v866 = vunpack.c.h.b16 %v794
        %v867 = vunpack.c.l.b16 %v795
        %v868 = vunpack.c.h.b16 %v795
        %v869 = vunpack.c.l.b16 %v796
        %v870 = vunpack.c.h.b16 %v796
        %v871 = vunpack.c.l.b16 %v797
        %v872 = vunpack.c.h.b16 %v797
        %v873 = vunpack.c.l.b16 %v798
        %v874 = vunpack.c.h.b16 %v798
        %v875 = vunpack.c.l.b16 %v799
        %v876 = vunpack.c.h.b16 %v799
        %v877 = vunpack.c.l.b16 %v800
        %v878 = vunpack.c.h.b16 %v800
        %v879 = vunpack.c.l.b16 %v801
        %v880 = vunpack.c.h.b16 %v801
        %v881 = vunpack.c.l.b16 %v802
        %v882 = vunpack.c.h.b16 %v802
        %v883 = vunpack.c.l.b16 %v803
        %v884 = vunpack.c.h.b16 %v803
        %v885 = vunpack.c.l.b16 %v804
        %v886 = vunpack.c.h.b16 %v804
        %v887 = vunpack.c.l.b16 %v805
        %v888 = vunpack.c.h.b16 %v805
        %v889 = vunpack.c.l.b16 %v806
        %v890 = vunpack.c.h.b16 %v806
        %v891 = vunpack.c.l.b16 %v807
        %v892 = vunpack.c.h.b16 %v807
        %v893 = vunpack.c.l.b16 %v808
        %v894 = vunpack.c.h.b16 %v808
        %v895 = vunpack.c.l.b16 %v809
        %v896 = vunpack.c.h.b16 %v809
        %v897 = vunpack.c.l.b16 %v810
        %v898 = vunpack.c.h.b16 %v810
        %v899 = vunpack.c.l.b16 %v811
        %v900 = vunpack.c.h.b16 %v811
        %v901 = vunpack.c.l.b16 %v812
        %v902 = vunpack.c.h.b16 %v812
        %v903 = vunpack.c.l.b16 %v813
        %v904 = vunpack.c.h.b16 %v813
        %v905 = vunpack.c.l.b16 %v814
        %v906 = vunpack.c.h.b16 %v814
        %v907 = vunpack.c.l.b16 %v815
        %v908 = vunpack.c.h.b16 %v815
        %v909 = vunpack.c.l.b16 %v816
        %v910 = vunpack.c.h.b16 %v816
        %v911 = vunpack.c.l.b16 %v817
        %v912 = vunpack.c.h.b16 %v817
        %v913 = vunpack.c.l.b16 %v818
        %v914 = vunpack.c.h.b16 %v818
        %v915 = vpack.c.b16 %v855, %v851
        %v916 = vpack.c.b16 %v856, %v852
        %v917 = vpack.c.b16 %v857, %v853
        %v918 = vpack.c.b16 %v858, %v854
        %v919 = vpack.c.b16 %v863, %v859
        %v920 = vpack.c.b16 %v864, %v860
        %v921 = vpack.c.b16 %v865, %v861
        %v922 = vpack.c.b16 %v866, %v862
        %v923 = vpack.c.b16 %v871, %v867
        %v924 = vpack.c.b16 %v872, %v868
        %v925 = vpack.c.b16 %v873, %v869
        %v926 = vpack.c.b16 %v874, %v870
        %v927 = vpack.c.b16 %v879, %v875
        %v928 = vpack.c.b16 %v880, %v876
        %v929 = vpack.c.b16 %v881, %v877
        %v930 = vpack.c.b16 %v882, %v878
        %v931 = vpack.c.b16 %v887, %v883
        %v932 = vpack.c.b16 %v888, %v884
        %v933 = vpack.c.b16 %v889, %v885
        %v934 = vpack.c.b16 %v890, %v886
        %v935 = vpack.c.b16 %v895, %v891
        %v936 = vpack.c.b16 %v896, %v892
        %v937 = vpack.c.b16 %v897, %v893
        %v938 = vpack.c.b16 %v898, %v894
        %v939 = vpack.c.b16 %v903, %v899
        %v940 = vpack.c.b16 %v904, %v900
        %v941 = vpack.c.b16 %v905, %v901
        %v942 = vpack.c.b16 %v906, %v902
        %v943 = vpack.c.b16 %v911, %v907
        %v944 = vpack.c.b16 %v912, %v908
        %v945 = vpack.c.b16 %v913, %v909
        %v946 = vpack.c.b16 %v914, %v910
        %979 = vmatprep.subr.bf16.mxu0 %v916
        %980 = vmatpush1.bf16.msra.mxu0 %v915
        %981 = vmatprep.subr.bf16.mxu0 %v920
        %982 = vmatpush1.bf16.msra.mxu0 %v919
        %983 = vmatprep.subr.bf16.mxu0 %v924
        %984 = vmatpush1.bf16.msra.mxu0 %v923
        %985 = vmatprep.subr.bf16.mxu0 %v928
        %986 = vmatpush1.bf16.msra.mxu0 %v927
        %987 = vmatprep.subr.bf16.mxu0 %v932
        %988 = vmatpush1.bf16.msra.mxu0 %v931
        %989 = vmatprep.subr.bf16.mxu0 %v936
        %990 = vmatpush1.bf16.msra.mxu0 %v935
        %991 = vmatprep.subr.bf16.mxu0 %v940
        %992 = vmatpush1.bf16.msra.mxu0 %v939
        %993 = vmatprep.subr.bf16.mxu0 %v944
        %994 = vmatpush1.bf16.msra.mxu0 %v943
        %995 = vmatprep.subr.bf16.mxu0 0
        %996 = vmatpush1.bf16.msra.mxu0 0
        %997 = vmatprep.subr.bf16.mxu0 0
        %998 = vmatpush1.bf16.msra.mxu0 0
        %999 = vmatprep.subr.bf16.mxu0 0
        %1000 = vmatpush1.bf16.msra.mxu0 0
        %1001 = vmatprep.subr.bf16.mxu0 0
        %1002 = vmatpush1.bf16.msra.mxu0 0
        %1003 = vmatprep.subr.bf16.mxu0 0
        %1004 = vmatpush1.bf16.msra.mxu0 0
        %1005 = vmatprep.subr.bf16.mxu0 0
        %1006 = vmatpush1.bf16.msra.mxu0 0
        %1007 = vmatprep.subr.bf16.mxu0 0
        %1008 = vmatpush1.bf16.msra.mxu0 0
        %1009 = vmatprep.subr.bf16.mxu0 0
        %1010 = vmatpush1.bf16.msra.mxu0 0
        %1011 = vmatprep.mubr.bf16.mxu0 0
        %1012 = vmatmul.mubr.bf16.gmra.mrb[0].mxu0 %v786
        %v1013 = vpop.f32.mrb[0].mxu0
        %v1014 = vadd.f32 0.0, %v1013
        %v1015 = vpop.f32.mrb[0].mxu0
        %v1016 = vadd.f32 0.0, %v1015
        %v1017 = vpop.f32.mrb[0].mxu0
        %v1018 = vpop.f32.mrb[0].mxu0
        %1019 = vdwg.mxu0
        %1020 = vmatprep.subr.bf16.mxu0 %v918
        %1021 = vmatpush1.bf16.msra.mxu0 %v917
        %1022 = vmatprep.subr.bf16.mxu0 %v922
        %1023 = vmatpush1.bf16.msra.mxu0 %v921
        %1024 = vmatprep.subr.bf16.mxu0 %v926
        %1025 = vmatpush1.bf16.msra.mxu0 %v925
        %1026 = vmatprep.subr.bf16.mxu0 %v930
        %1027 = vmatpush1.bf16.msra.mxu0 %v929
        %1028 = vmatprep.subr.bf16.mxu0 %v934
        %1029 = vmatpush1.bf16.msra.mxu0 %v933
        %1030 = vmatprep.subr.bf16.mxu0 %v938
        %1031 = vmatpush1.bf16.msra.mxu0 %v937
        %1032 = vmatprep.subr.bf16.mxu0 %v942
        %1033 = vmatpush1.bf16.msra.mxu0 %v941
        %1034 = vmatprep.subr.bf16.mxu0 %v946
        %1035 = vmatpush1.bf16.msra.mxu0 %v945
        %1036 = vmatprep.subr.bf16.mxu0 0
        %1037 = vmatpush1.bf16.msra.mxu0 0
        %1038 = vmatprep.subr.bf16.mxu0 0
        %1039 = vmatpush1.bf16.msra.mxu0 0
        %1040 = vmatprep.subr.bf16.mxu0 0
        %1041 = vmatpush1.bf16.msra.mxu0 0
        %1042 = vmatprep.subr.bf16.mxu0 0
        %1043 = vmatpush1.bf16.msra.mxu0 0
        %1044 = vmatprep.subr.bf16.mxu0 0
        %1045 = vmatpush1.bf16.msra.mxu0 0
        %1046 = vmatprep.subr.bf16.mxu0 0
        %1047 = vmatpush1.bf16.msra.mxu0 0
        %1048 = vmatprep.subr.bf16.mxu0 0
        %1049 = vmatpush1.bf16.msra.mxu0 0
        %1050 = vmatprep.subr.bf16.mxu0 0
        %1051 = vmatpush1.bf16.msra.mxu0 0
        %1052 = vmatprep.mubr.bf16.mxu0 0
        %1053 = vmatmul.mubr.bf16.gmra.mrb[0].mxu0 %v786
        %v1054 = vpop.f32.mrb[0].mxu0
        %v1055 = vadd.f32 0.0, %v1054
        %v1056 = vpop.f32.mrb[0].mxu0
        %v1057 = vadd.f32 0.0, %v1056
        %v1058 = vpop.f32.mrb[0].mxu0
        %v1059 = vpop.f32.mrb[0].mxu0
        %1060 = vdwg.mxu0
        %s1061 = sld [smem:[#allocation6 + %s758]]
        %p1062 = scmp.gt.s32.totalorder %s1061, 0
        %s1063 = scalar_select %p1062, 1, 0
        %s1064 = scvt.s32.f32 %s1063
        %s1065 = smul.u32 %s758, 4
        %s1066 = smul.addr %s1065, 8
        %s1067 = scalar_lea.vmem %s1, %s1066
        %v1068 = vld [vmem:[%s1067] sm:$0xff]
        %v1069 = vld [vmem:[%s1067 + $0x8] sm:$0xff]
        %v1070 = vld [vmem:[%s1067 + $0x10] sm:$0xff]
        %v1071 = vld [vmem:[%s1067 + $0x18] sm:$0xff]
        %v1072 = vstv %s1064
        %v1073 = vmul.f32 %v1072, %v1068
        %v1074 = vmul.f32 %v1072, %v1069
        %v1075 = vmul.f32 %v1072, %v1070
        %v1076 = vmul.f32 %v1072, %v1071
        %s1077 = ssub.f32 1.0, %s1064
        %v1078 = vstv %s1077
        %v1079 = vmul.f32 %v1078, %v1014
        %v1080 = vmul.f32 %v1078, %v1016
        %v1081 = vmul.f32 %v1078, %v1055
        %v1082 = vmul.f32 %v1078, %v1057
        %v1083 = vadd.f32 %v1073, %v1079
        %v1084 = vadd.f32 %v1074, %v1080
        %v1085 = vadd.f32 %v1075, %v1081
        %v1086 = vadd.f32 %v1076, %v1082
        %1087 = vst [vmem:[#allocation4] sm:$0xff] %v1083
        %1088 = vst [vmem:[#allocation4 + $0x8] sm:$0xff] %v1084
        %1089 = vst [vmem:[#allocation4 + $0x10] sm:$0xff] %v1085
        %1090 = vst [vmem:[#allocation4 + $0x18] sm:$0xff] %v1086
      $region60: #{seq2seq_forward.7} parent=51 // pred_fallthru
        _
      %p1091 = scmp.lt.s32.totalorder %s26, 6
      %s1092 = scalar_select %p1091, %s26, 6
      %s1093 = smul.addr %s1092, 8
      %s1094 = scalar_lea.vmem %s9, %s1093
      // Predicated region
      $region61: #{seq2seq_forward.7} parent=51 // pred_check
        %p1095 = pneg %p212
      $region62: #{seq2seq_forward.7} parent=51 // pred_check_branch
        %1097 = sbr.rel (%p1095) target = $region64
      $region63: #{seq2seq_forward.7} parent=51 // pred_region
        _
      $region64: #{seq2seq_forward.7} parent=51 // pred_fallthru
        _
    $region52: #{seq2seq_forward.7} parent=5 // pred_fallthru
      _
    %p1098 = scmp.le.s32.totalorder 2, %s21
    // Predicated region
    $region65: #{seq2seq_forward.7} parent=5 // pred_check
      %p1099 = pneg %p1098
    $region66: #{seq2seq_forward.7} parent=5 // pred_check_branch
      %1101 = sbr.rel (%p1099) target = $region68
    $region67: #{seq2seq_forward.7} parent=5 // pred_region
      %s1102 = ssub.s32 %s21, 2
      // Predicated region
      $region69: #{seq2seq_forward.7} parent=67 // pred_check
        %p1103 = pneg %p218
      $region70: #{seq2seq_forward.7} parent=67 // pred_check_branch
        %1105 = sbr.rel (%p1103) target = $region72
      $region71: #{seq2seq_forward.7} parent=67 // pred_region
        %p1106 = scmp.lt.s32.totalorder %s27, 6
        %s1107 = scalar_select %p1106, %s27, 6
        %s1108 = smul.addr %s1107, 8
        %s1109 = scalar_lea.vmem %s9, %s1108
      $region72: #{seq2seq_forward.7} parent=67 // pred_fallthru
        _
    $region68: #{seq2seq_forward.7} parent=5 // pred_fallthru
      _
  $region6: #{seq2seq_forward.7} parent=0 // loop_footer
    %s25 = sadd.s32 1, %s21
  $region7: #{seq2seq_forward.7} parent=0 // loop_footer_branch
    %20 = sbr.rel target = $region3
  $region8: #{seq2seq_forward.7} parent=0 // loop_exit
    _

// kernel: seq2seq_forward.6
$region0: #{seq2seq_forward.6}
  #allocation0 [shape = 'u32[]', space=smem, size = 0x4, offset = 0x4, fixed_abs, tag = 'smem constant byte address 0x4 - core index']
  #allocation1 [shape = 'u32[144,128]{1,0:T(1,128)}', space=vmem, size = 0x12000, scoped, tag = 'internal scratch']
  %s0 = inlined_call_operand.vmem [shape: f32[12,8,1024], index: 0, kind: input, shape index: {}]
  %s1 = inlined_call_operand.vmem [shape: bf16[128,512], index: 1, kind: input, shape index: {}]
  %s2 = inlined_call_operand.vmem [shape: bf16[128,512], index: 2, kind: input, shape index: {}]
  %s3 = inlined_call_operand.vmem [shape: bf16[256,128], index: 3, kind: input, shape index: {}]
  %s4 = inlined_call_operand.vmem [shape: f32[1,128], index: 4, kind: input, shape index: {}]
  %s5 = inlined_call_operand.vmem [shape: bf16[256,128], index: 5, kind: input, shape index: {}]
  %s6 = inlined_call_operand.vmem [shape: f32[1,128], index: 6, kind: input, shape index: {}]
  %s7 = inlined_call_operand.vmem [shape: f32[8,128], index: 7, kind: output, shape index: {0}]
  %s8 = inlined_call_operand.vmem [shape: f32[8,128], index: 8, kind: output, shape index: {1}]
  %9 = xla_tuple %s7, %s8
  %s10 = sld [smem:[#allocation0]]
  $region46: #{seq2seq_forward.6} parent=0
    _
  %s12 = ssub.s32 1, %s10
  %s13 = scalar_select 0, %s12, %s10
  // Predicated region
  $region2: #{seq2seq_forward.6} parent=0 // pred_check
    _
  $region3: #{seq2seq_forward.6} parent=0 // pred_check_branch
    %15 = sbr.rel (0) target = $region5
  $region4: #{seq2seq_forward.6} parent=0 // pred_region
    _
  $region5: #{seq2seq_forward.6} parent=0 // pred_fallthru
    _
  // Predicated region
  $region6: #{seq2seq_forward.6} parent=0 // pred_check
    _
  $region7: #{seq2seq_forward.6} parent=0 // pred_check_branch
    %17 = sbr.rel (0) target = $region9
  $region8: #{seq2seq_forward.6} parent=0 // pred_region
    _
  $region9: #{seq2seq_forward.6} parent=0 // pred_fallthru
    _
  // Predicated region
  $region10: #{seq2seq_forward.6} parent=0 // pred_check
    _
  $region11: #{seq2seq_forward.6} parent=0 // pred_check_branch
    %19 = sbr.rel (0) target = $region13
  $region12: #{seq2seq_forward.6} parent=0 // pred_region
    _
  $region13: #{seq2seq_forward.6} parent=0 // pred_fallthru
    _
  // Predicated region
  $region14: #{seq2seq_forward.6} parent=0 // pred_check
    _
  $region15: #{seq2seq_forward.6} parent=0 // pred_check_branch
    %21 = sbr.rel (0) target = $region17
  $region16: #{seq2seq_forward.6} parent=0 // pred_region
    _
  $region17: #{seq2seq_forward.6} parent=0 // pred_fallthru
    _
  // Predicated region
  $region18: #{seq2seq_forward.6} parent=0 // pred_check
    _
  $region19: #{seq2seq_forward.6} parent=0 // pred_check_branch
    %23 = sbr.rel (0) target = $region21
  $region20: #{seq2seq_forward.6} parent=0 // pred_region
    _
  $region21: #{seq2seq_forward.6} parent=0 // pred_fallthru
    _
  // Predicated region
  $region22: #{seq2seq_forward.6} parent=0 // pred_check
    _
  $region23: #{seq2seq_forward.6} parent=0 // pred_check_branch
    %25 = sbr.rel (0) target = $region25
  $region24: #{seq2seq_forward.6} parent=0 // pred_region
    _
  $region25: #{seq2seq_forward.6} parent=0 // pred_fallthru
    _
  // Predicated region
  $region26: #{seq2seq_forward.6} parent=0 // pred_check
    _
  $region27: #{seq2seq_forward.6} parent=0 // pred_check_branch
    %27 = sbr.rel (0) target = $region29
  $region28: #{seq2seq_forward.6} parent=0 // pred_region
    _
  $region29: #{seq2seq_forward.6} parent=0 // pred_fallthru
    _
  %v29 = vld [vmem:[%s0] sm:$0xff]
  %v30 = vld [vmem:[%s0 + $0x8] sm:$0xff]
  %v31 = vld [vmem:[%s0 + $0x10] sm:$0xff]
  %v32 = vld [vmem:[%s0 + $0x18] sm:$0xff]
  %v33 = vld [vmem:[%s0 + $0x20] sm:$0xff]
  %v34 = vld [vmem:[%s0 + $0x28] sm:$0xff]
  %v35 = vld [vmem:[%s0 + $0x30] sm:$0xff]
  %v36 = vld [vmem:[%s0 + $0x38] sm:$0xff]
  %s37 = scalar_lea.vmem %s0, 704
  %v38 = vld [vmem:[%s37] sm:$0xff]
  %v39 = vld [vmem:[%s37 + $0x8] sm:$0xff]
  %v40 = vld [vmem:[%s37 + $0x10] sm:$0xff]
  %v41 = vld [vmem:[%s37 + $0x18] sm:$0xff]
  %v42 = vld [vmem:[%s37 + $0x20] sm:$0xff]
  %v43 = vld [vmem:[%s37 + $0x28] sm:$0xff]
  %v44 = vld [vmem:[%s37 + $0x30] sm:$0xff]
  %v45 = vld [vmem:[%s37 + $0x38] sm:$0xff]
  %v46 = vld [vmem:[%s1] sm:$0xff]
  %v47 = vld [vmem:[%s1 + $0x8] sm:$0xff]
  %v48 = vld [vmem:[%s1 + $0x10] sm:$0xff]
  %v49 = vld [vmem:[%s1 + $0x18] sm:$0xff]
  %v50 = vld [vmem:[%s1 + $0x20] sm:$0xff]
  %v51 = vld [vmem:[%s1 + $0x28] sm:$0xff]
  %v52 = vld [vmem:[%s1 + $0x30] sm:$0xff]
  %v53 = vld [vmem:[%s1 + $0x38] sm:$0xff]
  %v54 = vld [vmem:[%s1 + $0x40] sm:$0xff]
  %v55 = vld [vmem:[%s1 + $0x48] sm:$0xff]
  %v56 = vld [vmem:[%s1 + $0x50] sm:$0xff]
  %v57 = vld [vmem:[%s1 + $0x58] sm:$0xff]
  %v58 = vld [vmem:[%s1 + $0x60] sm:$0xff]
  %v59 = vld [vmem:[%s1 + $0x68] sm:$0xff]
  %v60 = vld [vmem:[%s1 + $0x70] sm:$0xff]
  %v61 = vld [vmem:[%s1 + $0x78] sm:$0xff]
  %v62 = vld [vmem:[%s1 + $0x80] sm:$0xff]
  %v63 = vld [vmem:[%s1 + $0x88] sm:$0xff]
  %v64 = vld [vmem:[%s1 + $0x90] sm:$0xff]
  %v65 = vld [vmem:[%s1 + $0x98] sm:$0xff]
  %v66 = vld [vmem:[%s1 + $0xa0] sm:$0xff]
  %v67 = vld [vmem:[%s1 + $0xa8] sm:$0xff]
  %v68 = vld [vmem:[%s1 + $0xb0] sm:$0xff]
  %v69 = vld [vmem:[%s1 + $0xb8] sm:$0xff]
  %v70 = vld [vmem:[%s1 + $0xc0] sm:$0xff]
  %v71 = vld [vmem:[%s1 + $0xc8] sm:$0xff]
  %v72 = vld [vmem:[%s1 + $0xd0] sm:$0xff]
  %v73 = vld [vmem:[%s1 + $0xd8] sm:$0xff]
  %v74 = vld [vmem:[%s1 + $0xe0] sm:$0xff]
  %v75 = vld [vmem:[%s1 + $0xe8] sm:$0xff]
  %v76 = vld [vmem:[%s1 + $0xf0] sm:$0xff]
  %v77 = vld [vmem:[%s1 + $0xf8] sm:$0xff]
  %v110 = vunpack.c.l.b16 %v46
  %v111 = vunpack.c.h.b16 %v46
  %v112 = vunpack.c.l.b16 %v47
  %v113 = vunpack.c.h.b16 %v47
  %v114 = vunpack.c.l.b16 %v48
  %v115 = vunpack.c.h.b16 %v48
  %v116 = vunpack.c.l.b16 %v49
  %v117 = vunpack.c.h.b16 %v49
  %v118 = vunpack.c.l.b16 %v50
  %v119 = vunpack.c.h.b16 %v50
  %v120 = vunpack.c.l.b16 %v51
  %v121 = vunpack.c.h.b16 %v51
  %v122 = vunpack.c.l.b16 %v52
  %v123 = vunpack.c.h.b16 %v52
  %v124 = vunpack.c.l.b16 %v53
  %v125 = vunpack.c.h.b16 %v53
  %v126 = vunpack.c.l.b16 %v54
  %v127 = vunpack.c.h.b16 %v54
  %v128 = vunpack.c.l.b16 %v55
  %v129 = vunpack.c.h.b16 %v55
  %v130 = vunpack.c.l.b16 %v56
  %v131 = vunpack.c.h.b16 %v56
  %v132 = vunpack.c.l.b16 %v57
  %v133 = vunpack.c.h.b16 %v57
  %v134 = vunpack.c.l.b16 %v58
  %v135 = vunpack.c.h.b16 %v58
  %v136 = vunpack.c.l.b16 %v59
  %v137 = vunpack.c.h.b16 %v59
  %v138 = vunpack.c.l.b16 %v60
  %v139 = vunpack.c.h.b16 %v60
  %v140 = vunpack.c.l.b16 %v61
  %v141 = vunpack.c.h.b16 %v61
  %v142 = vunpack.c.l.b16 %v62
  %v143 = vunpack.c.h.b16 %v62
  %v144 = vunpack.c.l.b16 %v63
  %v145 = vunpack.c.h.b16 %v63
  %v146 = vunpack.c.l.b16 %v64
  %v147 = vunpack.c.h.b16 %v64
  %v148 = vunpack.c.l.b16 %v65
  %v149 = vunpack.c.h.b16 %v65
  %v150 = vunpack.c.l.b16 %v66
  %v151 = vunpack.c.h.b16 %v66
  %v152 = vunpack.c.l.b16 %v67
  %v153 = vunpack.c.h.b16 %v67
  %v154 = vunpack.c.l.b16 %v68
  %v155 = vunpack.c.h.b16 %v68
  %v156 = vunpack.c.l.b16 %v69
  %v157 = vunpack.c.h.b16 %v69
  %v158 = vunpack.c.l.b16 %v70
  %v159 = vunpack.c.h.b16 %v70
  %v160 = vunpack.c.l.b16 %v71
  %v161 = vunpack.c.h.b16 %v71
  %v162 = vunpack.c.l.b16 %v72
  %v163 = vunpack.c.h.b16 %v72
  %v164 = vunpack.c.l.b16 %v73
  %v165 = vunpack.c.h.b16 %v73
  %v166 = vunpack.c.l.b16 %v74
  %v167 = vunpack.c.h.b16 %v74
  %v168 = vunpack.c.l.b16 %v75
  %v169 = vunpack.c.h.b16 %v75
  %v170 = vunpack.c.l.b16 %v76
  %v171 = vunpack.c.h.b16 %v76
  %v172 = vunpack.c.l.b16 %v77
  %v173 = vunpack.c.h.b16 %v77
  %v174 = vpack.c.b16 %v114, %v110
  %v175 = vpack.c.b16 %v115, %v111
  %v176 = vpack.c.b16 %v116, %v112
  %v177 = vpack.c.b16 %v117, %v113
  %v178 = vpack.c.b16 %v122, %v118
  %v179 = vpack.c.b16 %v123, %v119
  %v180 = vpack.c.b16 %v124, %v120
  %v181 = vpack.c.b16 %v125, %v121
  %v182 = vpack.c.b16 %v130, %v126
  %v183 = vpack.c.b16 %v131, %v127
  %v184 = vpack.c.b16 %v132, %v128
  %v185 = vpack.c.b16 %v133, %v129
  %v186 = vpack.c.b16 %v138, %v134
  %v187 = vpack.c.b16 %v139, %v135
  %v188 = vpack.c.b16 %v140, %v136
  %v189 = vpack.c.b16 %v141, %v137
  %v190 = vpack.c.b16 %v146, %v142
  %v191 = vpack.c.b16 %v147, %v143
  %v192 = vpack.c.b16 %v148, %v144
  %v193 = vpack.c.b16 %v149, %v145
  %v194 = vpack.c.b16 %v154, %v150
  %v195 = vpack.c.b16 %v155, %v151
  %v196 = vpack.c.b16 %v156, %v152
  %v197 = vpack.c.b16 %v157, %v153
  %v198 = vpack.c.b16 %v162, %v158
  %v199 = vpack.c.b16 %v163, %v159
  %v200 = vpack.c.b16 %v164, %v160
  %v201 = vpack.c.b16 %v165, %v161
  %v202 = vpack.c.b16 %v170, %v166
  %v203 = vpack.c.b16 %v171, %v167
  %v204 = vpack.c.b16 %v172, %v168
  %v205 = vpack.c.b16 %v173, %v169
  %238 = vmatprep.subr.bf16.mxu0 %v175
  %239 = vmatpush1.bf16.msra.mxu0 %v174
  %240 = vmatprep.subr.bf16.mxu0 %v179
  %241 = vmatpush1.bf16.msra.mxu0 %v178
  %242 = vmatprep.subr.bf16.mxu0 %v183
  %243 = vmatpush1.bf16.msra.mxu0 %v182
  %244 = vmatprep.subr.bf16.mxu0 %v187
  %245 = vmatpush1.bf16.msra.mxu0 %v186
  %246 = vmatprep.subr.bf16.mxu0 %v191
  %247 = vmatpush1.bf16.msra.mxu0 %v190
  %248 = vmatprep.subr.bf16.mxu0 %v195
  %249 = vmatpush1.bf16.msra.mxu0 %v194
  %250 = vmatprep.subr.bf16.mxu0 %v199
  %251 = vmatpush1.bf16.msra.mxu0 %v198
  %252 = vmatprep.subr.bf16.mxu0 %v203
  %253 = vmatpush1.bf16.msra.mxu0 %v202
  %254 = vmatprep.subr.bf16.mxu0 0
  %255 = vmatpush1.bf16.msra.mxu0 0
  %256 = vmatprep.subr.bf16.mxu0 0
  %257 = vmatpush1.bf16.msra.mxu0 0
  %258 = vmatprep.subr.bf16.mxu0 0
  %259 = vmatpush1.bf16.msra.mxu0 0
  %260 = vmatprep.subr.bf16.mxu0 0
  %261 = vmatpush1.bf16.msra.mxu0 0
  %262 = vmatprep.subr.bf16.mxu0 0
  %263 = vmatpush1.bf16.msra.mxu0 0
  %264 = vmatprep.subr.bf16.mxu0 0
  %265 = vmatpush1.bf16.msra.mxu0 0
  %266 = vmatprep.subr.bf16.mxu0 0
  %267 = vmatpush1.bf16.msra.mxu0 0
  %268 = vmatprep.subr.bf16.mxu0 0
  %269 = vmatpush1.bf16.msra.mxu0 0
  %270 = vmatprep.mubr.bf16.mxu0 0
  %271 = vmatmul.mubr.bf16.gmra.mrb[0].mxu0 0
  %v272 = vpop.f32.mrb[0].mxu0
  %v273 = vadd.f32 0.0, %v272
  %v274 = vpop.f32.mrb[0].mxu0
  %v275 = vadd.f32 0.0, %v274
  %v276 = vpop.f32.mrb[0].mxu0
  %v277 = vpop.f32.mrb[0].mxu0
  %278 = vdwg.mxu0
  %279 = vmatprep.subr.bf16.mxu0 %v177
  %280 = vmatpush1.bf16.msra.mxu0 %v176
  %281 = vmatprep.subr.bf16.mxu0 %v181
  %282 = vmatpush1.bf16.msra.mxu0 %v180
  %283 = vmatprep.subr.bf16.mxu0 %v185
  %284 = vmatpush1.bf16.msra.mxu0 %v184
  %285 = vmatprep.subr.bf16.mxu0 %v189
  %286 = vmatpush1.bf16.msra.mxu0 %v188
  %287 = vmatprep.subr.bf16.mxu0 %v193
  %288 = vmatpush1.bf16.msra.mxu0 %v192
  %289 = vmatprep.subr.bf16.mxu0 %v197
  %290 = vmatpush1.bf16.msra.mxu0 %v196
  %291 = vmatprep.subr.bf16.mxu0 %v201
  %292 = vmatpush1.bf16.msra.mxu0 %v200
  %293 = vmatprep.subr.bf16.mxu0 %v205
  %294 = vmatpush1.bf16.msra.mxu0 %v204
  %295 = vmatprep.subr.bf16.mxu0 0
  %296 = vmatpush1.bf16.msra.mxu0 0
  %297 = vmatprep.subr.bf16.mxu0 0
  %298 = vmatpush1.bf16.msra.mxu0 0
  %299 = vmatprep.subr.bf16.mxu0 0
  %300 = vmatpush1.bf16.msra.mxu0 0
  %301 = vmatprep.subr.bf16.mxu0 0
  %302 = vmatpush1.bf16.msra.mxu0 0
  %303 = vmatprep.subr.bf16.mxu0 0
  %304 = vmatpush1.bf16.msra.mxu0 0
  %305 = vmatprep.subr.bf16.mxu0 0
  %306 = vmatpush1.bf16.msra.mxu0 0
  %307 = vmatprep.subr.bf16.mxu0 0
  %308 = vmatpush1.bf16.msra.mxu0 0
  %309 = vmatprep.subr.bf16.mxu0 0
  %310 = vmatpush1.bf16.msra.mxu0 0
  %311 = vmatprep.mubr.bf16.mxu0 0
  %312 = vmatmul.mubr.bf16.gmra.mrb[0].mxu0 0
  %v313 = vpop.f32.mrb[0].mxu0
  %v314 = vadd.f32 0.0, %v313
  %v315 = vpop.f32.mrb[0].mxu0
  %v316 = vadd.f32 0.0, %v315
  %v317 = vpop.f32.mrb[0].mxu0
  %v318 = vpop.f32.mrb[0].mxu0
  %319 = vdwg.mxu0
  %v320 = vadd.f32 %v29, %v273
  %v321 = vadd.f32 %v30, %v275
  %v322 = vadd.f32 %v31, %v314
  %v323 = vadd.f32 %v32, %v316
  %v324 = vld [vmem:[%s2] sm:$0xff]
  %v325 = vld [vmem:[%s2 + $0x8] sm:$0xff]
  %v326 = vld [vmem:[%s2 + $0x10] sm:$0xff]
  %v327 = vld [vmem:[%s2 + $0x18] sm:$0xff]
  %v328 = vld [vmem:[%s2 + $0x20] sm:$0xff]
  %v329 = vld [vmem:[%s2 + $0x28] sm:$0xff]
  %v330 = vld [vmem:[%s2 + $0x30] sm:$0xff]
  %v331 = vld [vmem:[%s2 + $0x38] sm:$0xff]
  %v332 = vld [vmem:[%s2 + $0x40] sm:$0xff]
  %v333 = vld [vmem:[%s2 + $0x48] sm:$0xff]
  %v334 = vld [vmem:[%s2 + $0x50] sm:$0xff]
  %v335 = vld [vmem:[%s2 + $0x58] sm:$0xff]
  %v336 = vld [vmem:[%s2 + $0x60] sm:$0xff]
  %v337 = vld [vmem:[%s2 + $0x68] sm:$0xff]
  %v338 = vld [vmem:[%s2 + $0x70] sm:$0xff]
  %v339 = vld [vmem:[%s2 + $0x78] sm:$0xff]
  %v340 = vld [vmem:[%s2 + $0x80] sm:$0xff]
  %v341 = vld [vmem:[%s2 + $0x88] sm:$0xff]
  %v342 = vld [vmem:[%s2 + $0x90] sm:$0xff]
  %v343 = vld [vmem:[%s2 + $0x98] sm:$0xff]
  %v344 = vld [vmem:[%s2 + $0xa0] sm:$0xff]
  %v345 = vld [vmem:[%s2 + $0xa8] sm:$0xff]
  %v346 = vld [vmem:[%s2 + $0xb0] sm:$0xff]
  %v347 = vld [vmem:[%s2 + $0xb8] sm:$0xff]
  %v348 = vld [vmem:[%s2 + $0xc0] sm:$0xff]
  %v349 = vld [vmem:[%s2 + $0xc8] sm:$0xff]
  %v350 = vld [vmem:[%s2 + $0xd0] sm:$0xff]
  %v351 = vld [vmem:[%s2 + $0xd8] sm:$0xff]
  %v352 = vld [vmem:[%s2 + $0xe0] sm:$0xff]
  %v353 = vld [vmem:[%s2 + $0xe8] sm:$0xff]
  %v354 = vld [vmem:[%s2 + $0xf0] sm:$0xff]
  %v355 = vld [vmem:[%s2 + $0xf8] sm:$0xff]
  %v388 = vunpack.c.l.b16 %v324
  %v389 = vunpack.c.h.b16 %v324
  %v390 = vunpack.c.l.b16 %v325
  %v391 = vunpack.c.h.b16 %v325
  %v392 = vunpack.c.l.b16 %v326
  %v393 = vunpack.c.h.b16 %v326
  %v394 = vunpack.c.l.b16 %v327
  %v395 = vunpack.c.h.b16 %v327
  %v396 = vunpack.c.l.b16 %v328
  %v397 = vunpack.c.h.b16 %v328
  %v398 = vunpack.c.l.b16 %v329
  %v399 = vunpack.c.h.b16 %v329
  %v400 = vunpack.c.l.b16 %v330
  %v401 = vunpack.c.h.b16 %v330
  %v402 = vunpack.c.l.b16 %v331
  %v403 = vunpack.c.h.b16 %v331
  %v404 = vunpack.c.l.b16 %v332
  %v405 = vunpack.c.h.b16 %v332
  %v406 = vunpack.c.l.b16 %v333
  %v407 = vunpack.c.h.b16 %v333
  %v408 = vunpack.c.l.b16 %v334
  %v409 = vunpack.c.h.b16 %v334
  %v410 = vunpack.c.l.b16 %v335
  %v411 = vunpack.c.h.b16 %v335
  %v412 = vunpack.c.l.b16 %v336
  %v413 = vunpack.c.h.b16 %v336
  %v414 = vunpack.c.l.b16 %v337
  %v415 = vunpack.c.h.b16 %v337
  %v416 = vunpack.c.l.b16 %v338
  %v417 = vunpack.c.h.b16 %v338
  %v418 = vunpack.c.l.b16 %v339
  %v419 = vunpack.c.h.b16 %v339
  %v420 = vunpack.c.l.b16 %v340
  %v421 = vunpack.c.h.b16 %v340
  %v422 = vunpack.c.l.b16 %v341
  %v423 = vunpack.c.h.b16 %v341
  %v424 = vunpack.c.l.b16 %v342
  %v425 = vunpack.c.h.b16 %v342
  %v426 = vunpack.c.l.b16 %v343
  %v427 = vunpack.c.h.b16 %v343
  %v428 = vunpack.c.l.b16 %v344
  %v429 = vunpack.c.h.b16 %v344
  %v430 = vunpack.c.l.b16 %v345
  %v431 = vunpack.c.h.b16 %v345
  %v432 = vunpack.c.l.b16 %v346
  %v433 = vunpack.c.h.b16 %v346
  %v434 = vunpack.c.l.b16 %v347
  %v435 = vunpack.c.h.b16 %v347
  %v436 = vunpack.c.l.b16 %v348
  %v437 = vunpack.c.h.b16 %v348
  %v438 = vunpack.c.l.b16 %v349
  %v439 = vunpack.c.h.b16 %v349
  %v440 = vunpack.c.l.b16 %v350
  %v441 = vunpack.c.h.b16 %v350
  %v442 = vunpack.c.l.b16 %v351
  %v443 = vunpack.c.h.b16 %v351
  %v444 = vunpack.c.l.b16 %v352
  %v445 = vunpack.c.h.b16 %v352
  %v446 = vunpack.c.l.b16 %v353
  %v447 = vunpack.c.h.b16 %v353
  %v448 = vunpack.c.l.b16 %v354
  %v449 = vunpack.c.h.b16 %v354
  %v450 = vunpack.c.l.b16 %v355
  %v451 = vunpack.c.h.b16 %v355
  %v452 = vpack.c.b16 %v392, %v388
  %v453 = vpack.c.b16 %v393, %v389
  %v454 = vpack.c.b16 %v394, %v390
  %v455 = vpack.c.b16 %v395, %v391
  %v456 = vpack.c.b16 %v400, %v396
  %v457 = vpack.c.b16 %v401, %v397
  %v458 = vpack.c.b16 %v402, %v398
  %v459 = vpack.c.b16 %v403, %v399
  %v460 = vpack.c.b16 %v408, %v404
  %v461 = vpack.c.b16 %v409, %v405
  %v462 = vpack.c.b16 %v410, %v406
  %v463 = vpack.c.b16 %v411, %v407
  %v464 = vpack.c.b16 %v416, %v412
  %v465 = vpack.c.b16 %v417, %v413
  %v466 = vpack.c.b16 %v418, %v414
  %v467 = vpack.c.b16 %v419, %v415
  %v468 = vpack.c.b16 %v424, %v420
  %v469 = vpack.c.b16 %v425, %v421
  %v470 = vpack.c.b16 %v426, %v422
  %v471 = vpack.c.b16 %v427, %v423
  %v472 = vpack.c.b16 %v432, %v428
  %v473 = vpack.c.b16 %v433, %v429
  %v474 = vpack.c.b16 %v434, %v430
  %v475 = vpack.c.b16 %v435, %v431
  %v476 = vpack.c.b16 %v440, %v436
  %v477 = vpack.c.b16 %v441, %v437
  %v478 = vpack.c.b16 %v442, %v438
  %v479 = vpack.c.b16 %v443, %v439
  %v480 = vpack.c.b16 %v448, %v444
  %v481 = vpack.c.b16 %v449, %v445
  %v482 = vpack.c.b16 %v450, %v446
  %v483 = vpack.c.b16 %v451, %v447
  %516 = vmatprep.subr.bf16.mxu0 %v453
  %517 = vmatpush1.bf16.msra.mxu0 %v452
  %518 = vmatprep.subr.bf16.mxu0 %v457
  %519 = vmatpush1.bf16.msra.mxu0 %v456
  %520 = vmatprep.subr.bf16.mxu0 %v461
  %521 = vmatpush1.bf16.msra.mxu0 %v460
  %522 = vmatprep.subr.bf16.mxu0 %v465
  %523 = vmatpush1.bf16.msra.mxu0 %v464
  %524 = vmatprep.subr.bf16.mxu0 %v469
  %525 = vmatpush1.bf16.msra.mxu0 %v468
  %526 = vmatprep.subr.bf16.mxu0 %v473
  %527 = vmatpush1.bf16.msra.mxu0 %v472
  %528 = vmatprep.subr.bf16.mxu0 %v477
  %529 = vmatpush1.bf16.msra.mxu0 %v476
  %530 = vmatprep.subr.bf16.mxu0 %v481
  %531 = vmatpush1.bf16.msra.mxu0 %v480
  %532 = vmatprep.subr.bf16.mxu0 0
  %533 = vmatpush1.bf16.msra.mxu0 0
  %534 = vmatprep.subr.bf16.mxu0 0
  %535 = vmatpush1.bf16.msra.mxu0 0
  %536 = vmatprep.subr.bf16.mxu0 0
  %537 = vmatpush1.bf16.msra.mxu0 0
  %538 = vmatprep.subr.bf16.mxu0 0
  %539 = vmatpush1.bf16.msra.mxu0 0
  %540 = vmatprep.subr.bf16.mxu0 0
  %541 = vmatpush1.bf16.msra.mxu0 0
  %542 = vmatprep.subr.bf16.mxu0 0
  %543 = vmatpush1.bf16.msra.mxu0 0
  %544 = vmatprep.subr.bf16.mxu0 0
  %545 = vmatpush1.bf16.msra.mxu0 0
  %546 = vmatprep.subr.bf16.mxu0 0
  %547 = vmatpush1.bf16.msra.mxu0 0
  %548 = vmatprep.mubr.bf16.mxu0 0
  %549 = vmatmul.mubr.bf16.gmra.mrb[0].mxu0 0
  %v550 = vpop.f32.mrb[0].mxu0
  %v551 = vadd.f32 0.0, %v550
  %v552 = vpop.f32.mrb[0].mxu0
  %v553 = vadd.f32 0.0, %v552
  %v554 = vpop.f32.mrb[0].mxu0
  %v555 = vpop.f32.mrb[0].mxu0
  %556 = vdwg.mxu0
  %557 = vmatprep.subr.bf16.mxu0 %v455
  %558 = vmatpush1.bf16.msra.mxu0 %v454
  %559 = vmatprep.subr.bf16.mxu0 %v459
  %560 = vmatpush1.bf16.msra.mxu0 %v458
  %561 = vmatprep.subr.bf16.mxu0 %v463
  %562 = vmatpush1.bf16.msra.mxu0 %v462
  %563 = vmatprep.subr.bf16.mxu0 %v467
  %564 = vmatpush1.bf16.msra.mxu0 %v466
  %565 = vmatprep.subr.bf16.mxu0 %v471
  %566 = vmatpush1.bf16.msra.mxu0 %v470
  %567 = vmatprep.subr.bf16.mxu0 %v475
  %568 = vmatpush1.bf16.msra.mxu0 %v474
  %569 = vmatprep.subr.bf16.mxu0 %v479
  %570 = vmatpush1.bf16.msra.mxu0 %v478
  %571 = vmatprep.subr.bf16.mxu0 %v483
  %572 = vmatpush1.bf16.msra.mxu0 %v482
  %573 = vmatprep.subr.bf16.mxu0 0
  %574 = vmatpush1.bf16.msra.mxu0 0
  %575 = vmatprep.subr.bf16.mxu0 0
  %576 = vmatpush1.bf16.msra.mxu0 0
  %577 = vmatprep.subr.bf16.mxu0 0
  %578 = vmatpush1.bf16.msra.mxu0 0
  %579 = vmatprep.subr.bf16.mxu0 0
  %580 = vmatpush1.bf16.msra.mxu0 0
  %581 = vmatprep.subr.bf16.mxu0 0
  %582 = vmatpush1.bf16.msra.mxu0 0
  %583 = vmatprep.subr.bf16.mxu0 0
  %584 = vmatpush1.bf16.msra.mxu0 0
  %585 = vmatprep.subr.bf16.mxu0 0
  %586 = vmatpush1.bf16.msra.mxu0 0
  %587 = vmatprep.subr.bf16.mxu0 0
  %588 = vmatpush1.bf16.msra.mxu0 0
  %589 = vmatprep.mubr.bf16.mxu0 0
  %590 = vmatmul.mubr.bf16.gmra.mrb[0].mxu0 0
  %v591 = vpop.f32.mrb[0].mxu0
  %v592 = vadd.f32 0.0, %v591
  %v593 = vpop.f32.mrb[0].mxu0
  %v594 = vadd.f32 0.0, %v593
  %v595 = vpop.f32.mrb[0].mxu0
  %v596 = vpop.f32.mrb[0].mxu0
  %597 = vdwg.mxu0
  %v598 = vadd.f32 %v42, %v551
  %v599 = vadd.f32 %v43, %v553
  %v600 = vadd.f32 %v44, %v592
  %v601 = vadd.f32 %v45, %v594
  %v602 = vxor.u32 %v320, 2147483648
  %v603 = vmul.f32 %v602, 1.442695
  %v604 = vpow.pop %v603
  %v605 = vadd.f32 %v604, 1.0
  %v606 = vrcp.pop %v605
  %v607 = vmul.f32 1.0, %v606
  %v608 = vxor.u32 %v321, 2147483648
  %v609 = vmul.f32 %v608, 1.442695
  %v610 = vpow.pop %v609
  %v611 = vadd.f32 %v610, 1.0
  %v612 = vrcp.pop %v611
  %v613 = vmul.f32 1.0, %v612
  %v614 = vtanh.pop %v322
  %v615 = vxor.u32 %v323, 2147483648
  %v616 = vmul.f32 %v615, 1.442695
  %v617 = vpow.pop %v616
  %v618 = vadd.f32 %v617, 1.0
  %v619 = vrcp.pop %v618
  %v620 = vmul.f32 1.0, %v619
  %v621 = vmul.f32 %v613, 0.0
  %v622 = vmul.f32 %v607, %v614
  %v623 = vadd.f32 %v621, %v622
  %v624 = vtanh.pop %v623
  %v625 = vmul.f32 %v620, %v624
  %v626 = vxor.u32 %v598, 2147483648
  %v627 = vmul.f32 %v626, 1.442695
  %v628 = vpow.pop %v627
  %v629 = vadd.f32 %v628, 1.0
  %v630 = vrcp.pop %v629
  %v631 = vmul.f32 1.0, %v630
  %v632 = vxor.u32 %v599, 2147483648
  %v633 = vmul.f32 %v632, 1.442695
  %v634 = vpow.pop %v633
  %v635 = vadd.f32 %v634, 1.0
  %v636 = vrcp.pop %v635
  %v637 = vmul.f32 1.0, %v636
  %v638 = vtanh.pop %v600
  %v639 = vxor.u32 %v601, 2147483648
  %v640 = vmul.f32 %v639, 1.442695
  %v641 = vpow.pop %v640
  %v642 = vadd.f32 %v641, 1.0
  %v643 = vrcp.pop %v642
  %v644 = vmul.f32 1.0, %v643
  %v645 = vmul.f32 %v637, 0.0
  %v646 = vmul.f32 %v631, %v638
  %v647 = vadd.f32 %v645, %v646
  %v648 = vtanh.pop %v647
  %v649 = vmul.f32 %v644, %v648
  %s650 = scalar_lea.vmem %s0, 64
  %v651 = vld [vmem:[%s650] sm:$0xff]
  %v652 = vld [vmem:[%s650 + $0x8] sm:$0xff]
  %v653 = vld [vmem:[%s650 + $0x10] sm:$0xff]
  %v654 = vld [vmem:[%s650 + $0x18] sm:$0xff]
  %v655 = vld [vmem:[%s650 + $0x20] sm:$0xff]
  %v656 = vld [vmem:[%s650 + $0x28] sm:$0xff]
  %v657 = vld [vmem:[%s650 + $0x30] sm:$0xff]
  %v658 = vld [vmem:[%s650 + $0x38] sm:$0xff]
  %s659 = scalar_lea.vmem %s0, 640
  %v660 = vld [vmem:[%s659] sm:$0xff]
  %v661 = vld [vmem:[%s659 + $0x8] sm:$0xff]
  %v662 = vld [vmem:[%s659 + $0x10] sm:$0xff]
  %v663 = vld [vmem:[%s659 + $0x18] sm:$0xff]
  %v664 = vld [vmem:[%s659 + $0x20] sm:$0xff]
  %v665 = vld [vmem:[%s659 + $0x28] sm:$0xff]
  %v666 = vld [vmem:[%s659 + $0x30] sm:$0xff]
  %v667 = vld [vmem:[%s659 + $0x38] sm:$0xff]
  %v668 = vpack.c.bf16 %v625, %v625
  %669 = vmatprep.subr.bf16.mxu0 %v175
  %670 = vmatpush1.bf16.msra.mxu0 %v174
  %671 = vmatprep.subr.bf16.mxu0 %v179
  %672 = vmatpush1.bf16.msra.mxu0 %v178
  %673 = vmatprep.subr.bf16.mxu0 %v183
  %674 = vmatpush1.bf16.msra.mxu0 %v182
  %675 = vmatprep.subr.bf16.mxu0 %v187
  %676 = vmatpush1.bf16.msra.mxu0 %v186
  %677 = vmatprep.subr.bf16.mxu0 %v191
  %678 = vmatpush1.bf16.msra.mxu0 %v190
  %679 = vmatprep.subr.bf16.mxu0 %v195
  %680 = vmatpush1.bf16.msra.mxu0 %v194
  %681 = vmatprep.subr.bf16.mxu0 %v199
  %682 = vmatpush1.bf16.msra.mxu0 %v198
  %683 = vmatprep.subr.bf16.mxu0 %v203
  %684 = vmatpush1.bf16.msra.mxu0 %v202
  %685 = vmatprep.subr.bf16.mxu0 0
  %686 = vmatpush1.bf16.msra.mxu0 0
  %687 = vmatprep.subr.bf16.mxu0 0
  %688 = vmatpush1.bf16.msra.mxu0 0
  %689 = vmatprep.subr.bf16.mxu0 0
  %690 = vmatpush1.bf16.msra.mxu0 0
  %691 = vmatprep.subr.bf16.mxu0 0
  %692 = vmatpush1.bf16.msra.mxu0 0
  %693 = vmatprep.subr.bf16.mxu0 0
  %694 = vmatpush1.bf16.msra.mxu0 0
  %695 = vmatprep.subr.bf16.mxu0 0
  %696 = vmatpush1.bf16.msra.mxu0 0
  %697 = vmatprep.subr.bf16.mxu0 0
  %698 = vmatpush1.bf16.msra.mxu0 0
  %699 = vmatprep.subr.bf16.mxu0 0
  %700 = vmatpush1.bf16.msra.mxu0 0
  %701 = vmatprep.mubr.bf16.mxu0 0
  %702 = vmatmul.mubr.bf16.gmra.mrb[0].mxu0 %v668
  %v703 = vpop.f32.mrb[0].mxu0
  %v704 = vadd.f32 0.0, %v703
  %v705 = vpop.f32.mrb[0].mxu0
  %v706 = vadd.f32 0.0, %v705
  %v707 = vpop.f32.mrb[0].mxu0
  %v708 = vpop.f32.mrb[0].mxu0
  %709 = vdwg.mxu0
  %710 = vmatprep.subr.bf16.mxu0 %v177
  %711 = vmatpush1.bf16.msra.mxu0 %v176
  %712 = vmatprep.subr.bf16.mxu0 %v181
  %713 = vmatpush1.bf16.msra.mxu0 %v180
  %714 = vmatprep.subr.bf16.mxu0 %v185
  %715 = vmatpush1.bf16.msra.mxu0 %v184
  %716 = vmatprep.subr.bf16.mxu0 %v189
  %717 = vmatpush1.bf16.msra.mxu0 %v188
  %718 = vmatprep.subr.bf16.mxu0 %v193
  %719 = vmatpush1.bf16.msra.mxu0 %v192
  %720 = vmatprep.subr.bf16.mxu0 %v197
  %721 = vmatpush1.bf16.msra.mxu0 %v196
  %722 = vmatprep.subr.bf16.mxu0 %v201
  %723 = vmatpush1.bf16.msra.mxu0 %v200
  %724 = vmatprep.subr.bf16.mxu0 %v205
  %725 = vmatpush1.bf16.msra.mxu0 %v204
  %726 = vmatprep.subr.bf16.mxu0 0
  %727 = vmatpush1.bf16.msra.mxu0 0
  %728 = vmatprep.subr.bf16.mxu0 0
  %729 = vmatpush1.bf16.msra.mxu0 0
  %730 = vmatprep.subr.bf16.mxu0 0
  %731 = vmatpush1.bf16.msra.mxu0 0
  %732 = vmatprep.subr.bf16.mxu0 0
  %733 = vmatpush1.bf16.msra.mxu0 0
  %734 = vmatprep.subr.bf16.mxu0 0
  %735 = vmatpush1.bf16.msra.mxu0 0
  %736 = vmatprep.subr.bf16.mxu0 0
  %737 = vmatpush1.bf16.msra.mxu0 0
  %738 = vmatprep.subr.bf16.mxu0 0
  %739 = vmatpush1.bf16.msra.mxu0 0
  %740 = vmatprep.subr.bf16.mxu0 0
  %741 = vmatpush1.bf16.msra.mxu0 0
  %742 = vmatprep.mubr.bf16.mxu0 0
  %743 = vmatmul.mubr.bf16.gmra.mrb[0].mxu0 %v668
  %v744 = vpop.f32.mrb[0].mxu0
  %v745 = vadd.f32 0.0, %v744
  %v746 = vpop.f32.mrb[0].mxu0
  %v747 = vadd.f32 0.0, %v746
  %v748 = vpop.f32.mrb[0].mxu0
  %v749 = vpop.f32.mrb[0].mxu0
  %750 = vdwg.mxu0
  %v751 = vadd.f32 %v651, %v704
  %v752 = vadd.f32 %v652, %v706
  %v753 = vadd.f32 %v653, %v745
  %v754 = vadd.f32 %v654, %v747
  %v755 = vpack.c.bf16 %v649, %v649
  %756 = vmatprep.subr.bf16.mxu0 %v453
  %757 = vmatpush1.bf16.msra.mxu0 %v452
  %758 = vmatprep.subr.bf16.mxu0 %v457
  %759 = vmatpush1.bf16.msra.mxu0 %v456
  %760 = vmatprep.subr.bf16.mxu0 %v461
  %761 = vmatpush1.bf16.msra.mxu0 %v460
  %762 = vmatprep.subr.bf16.mxu0 %v465
  %763 = vmatpush1.bf16.msra.mxu0 %v464
  %764 = vmatprep.subr.bf16.mxu0 %v469
  %765 = vmatpush1.bf16.msra.mxu0 %v468
  %766 = vmatprep.subr.bf16.mxu0 %v473
  %767 = vmatpush1.bf16.msra.mxu0 %v472
  %768 = vmatprep.subr.bf16.mxu0 %v477
  %769 = vmatpush1.bf16.msra.mxu0 %v476
  %770 = vmatprep.subr.bf16.mxu0 %v481
  %771 = vmatpush1.bf16.msra.mxu0 %v480
  %772 = vmatprep.subr.bf16.mxu0 0
  %773 = vmatpush1.bf16.msra.mxu0 0
  %774 = vmatprep.subr.bf16.mxu0 0
  %775 = vmatpush1.bf16.msra.mxu0 0
  %776 = vmatprep.subr.bf16.mxu0 0
  %777 = vmatpush1.bf16.msra.mxu0 0
  %778 = vmatprep.subr.bf16.mxu0 0
  %779 = vmatpush1.bf16.msra.mxu0 0
  %780 = vmatprep.subr.bf16.mxu0 0
  %781 = vmatpush1.bf16.msra.mxu0 0
  %782 = vmatprep.subr.bf16.mxu0 0
  %783 = vmatpush1.bf16.msra.mxu0 0
  %784 = vmatprep.subr.bf16.mxu0 0
  %785 = vmatpush1.bf16.msra.mxu0 0
  %786 = vmatprep.subr.bf16.mxu0 0
  %787 = vmatpush1.bf16.msra.mxu0 0
  %788 = vmatprep.mubr.bf16.mxu0 0
  %789 = vmatmul.mubr.bf16.gmra.mrb[0].mxu0 %v755
  %v790 = vpop.f32.mrb[0].mxu0
  %v791 = vadd.f32 0.0, %v790
  %v792 = vpop.f32.mrb[0].mxu0
  %v793 = vadd.f32 0.0, %v792
  %v794 = vpop.f32.mrb[0].mxu0
  %v795 = vpop.f32.mrb[0].mxu0
  %796 = vdwg.mxu0
  %797 = vmatprep.subr.bf16.mxu0 %v455
  %798 = vmatpush1.bf16.msra.mxu0 %v454
  %799 = vmatprep.subr.bf16.mxu0 %v459
  %800 = vmatpush1.bf16.msra.mxu0 %v458
  %801 = vmatprep.subr.bf16.mxu0 %v463
  %802 = vmatpush1.bf16.msra.mxu0 %v462
  %803 = vmatprep.subr.bf16.mxu0 %v467
  %804 = vmatpush1.bf16.msra.mxu0 %v466
  %805 = vmatprep.subr.bf16.mxu0 %v471
  %806 = vmatpush1.bf16.msra.mxu0 %v470
  %807 = vmatprep.subr.bf16.mxu0 %v475
  %808 = vmatpush1.bf16.msra.mxu0 %v474
  %809 = vmatprep.subr.bf16.mxu0 %v479
  %810 = vmatpush1.bf16.msra.mxu0 %v478
  %811 = vmatprep.subr.bf16.mxu0 %v483
  %812 = vmatpush1.bf16.msra.mxu0 %v482
  %813 = vmatprep.subr.bf16.mxu0 0
  %814 = vmatpush1.bf16.msra.mxu0 0
  %815 = vmatprep.subr.bf16.mxu0 0
  %816 = vmatpush1.bf16.msra.mxu0 0
  %817 = vmatprep.subr.bf16.mxu0 0
  %818 = vmatpush1.bf16.msra.mxu0 0
  %819 = vmatprep.subr.bf16.mxu0 0
  %820 = vmatpush1.bf16.msra.mxu0 0
  %821 = vmatprep.subr.bf16.mxu0 0
  %822 = vmatpush1.bf16.msra.mxu0 0
  %823 = vmatprep.subr.bf16.mxu0 0
  %824 = vmatpush1.bf16.msra.mxu0 0
  %825 = vmatprep.subr.bf16.mxu0 0
  %826 = vmatpush1.bf16.msra.mxu0 0
  %827 = vmatprep.subr.bf16.mxu0 0
  %828 = vmatpush1.bf16.msra.mxu0 0
  %829 = vmatprep.mubr.bf16.mxu0 0
  %830 = vmatmul.mubr.bf16.gmra.mrb[0].mxu0 %v755
  %v831 = vpop.f32.mrb[0].mxu0
  %v832 = vadd.f32 0.0, %v831
  %v833 = vpop.f32.mrb[0].mxu0
  %v834 = vadd.f32 0.0, %v833
  %v835 = vpop.f32.mrb[0].mxu0
  %v836 = vpop.f32.mrb[0].mxu0
  %837 = vdwg.mxu0
  %v838 = vadd.f32 %v664, %v791
  %v839 = vadd.f32 %v665, %v793
  %v840 = vadd.f32 %v666, %v832
  %v841 = vadd.f32 %v667, %v834
  %v842 = vxor.u32 %v751, 2147483648
  %v843 = vmul.f32 %v842, 1.442695
  %v844 = vpow.pop %v843
  %v845 = vadd.f32 %v844, 1.0
  %v846 = vrcp.pop %v845
  %v847 = vmul.f32 1.0, %v846
  %v848 = vxor.u32 %v752, 2147483648
  %v849 = vmul.f32 %v848, 1.442695
  %v850 = vpow.pop %v849
  %v851 = vadd.f32 %v850, 1.0
  %v852 = vrcp.pop %v851
  %v853 = vmul.f32 1.0, %v852
  %v854 = vtanh.pop %v753
  %v855 = vxor.u32 %v754, 2147483648
  %v856 = vmul.f32 %v855, 1.442695
  %v857 = vpow.pop %v856
  %v858 = vadd.f32 %v857, 1.0
  %v859 = vrcp.pop %v858
  %v860 = vmul.f32 1.0, %v859
  %v861 = vmul.f32 %v853, %v623
  %v862 = vmul.f32 %v847, %v854
  %v863 = vadd.f32 %v861, %v862
  %v864 = vtanh.pop %v863
  %v865 = vmul.f32 %v860, %v864
  %v866 = vxor.u32 %v838, 2147483648
  %v867 = vmul.f32 %v866, 1.442695
  %v868 = vpow.pop %v867
  %v869 = vadd.f32 %v868, 1.0
  %v870 = vrcp.pop %v869
  %v871 = vmul.f32 1.0, %v870
  %v872 = vxor.u32 %v839, 2147483648
  %v873 = vmul.f32 %v872, 1.442695
  %v874 = vpow.pop %v873
  %v875 = vadd.f32 %v874, 1.0
  %v876 = vrcp.pop %v875
  %v877 = vmul.f32 1.0, %v876
  %v878 = vtanh.pop %v840
  %v879 = vxor.u32 %v841, 2147483648
  %v880 = vmul.f32 %v879, 1.442695
  %v881 = vpow.pop %v880
  %v882 = vadd.f32 %v881, 1.0
  %v883 = vrcp.pop %v882
  %v884 = vmul.f32 1.0, %v883
  %v885 = vmul.f32 %v877, %v647
  %v886 = vmul.f32 %v871, %v878
  %v887 = vadd.f32 %v885, %v886
  %v888 = vtanh.pop %v887
  %v889 = vmul.f32 %v884, %v888
  %s890 = scalar_lea.vmem %s0, 128
  %v891 = vld [vmem:[%s890] sm:$0xff]
  %v892 = vld [vmem:[%s890 + $0x8] sm:$0xff]
  %v893 = vld [vmem:[%s890 + $0x10] sm:$0xff]
  %v894 = vld [vmem:[%s890 + $0x18] sm:$0xff]
  %v895 = vld [vmem:[%s890 + $0x20] sm:$0xff]
  %v896 = vld [vmem:[%s890 + $0x28] sm:$0xff]
  %v897 = vld [vmem:[%s890 + $0x30] sm:$0xff]
  %v898 = vld [vmem:[%s890 + $0x38] sm:$0xff]
  %s899 = scalar_lea.vmem %s0, 576
  %v900 = vld [vmem:[%s899] sm:$0xff]
  %v901 = vld [vmem:[%s899 + $0x8] sm:$0xff]
  %v902 = vld [vmem:[%s899 + $0x10] sm:$0xff]
  %v903 = vld [vmem:[%s899 + $0x18] sm:$0xff]
  %v904 = vld [vmem:[%s899 + $0x20] sm:$0xff]
  %v905 = vld [vmem:[%s899 + $0x28] sm:$0xff]
  %v906 = vld [vmem:[%s899 + $0x30] sm:$0xff]
  %v907 = vld [vmem:[%s899 + $0x38] sm:$0xff]
  %v908 = vpack.c.bf16 %v865, %v865
  %909 = vmatprep.subr.bf16.mxu0 %v175
  %910 = vmatpush1.bf16.msra.mxu0 %v174
  %911 = vmatprep.subr.bf16.mxu0 %v179
  %912 = vmatpush1.bf16.msra.mxu0 %v178
  %913 = vmatprep.subr.bf16.mxu0 %v183
  %914 = vmatpush1.bf16.msra.mxu0 %v182
  %915 = vmatprep.subr.bf16.mxu0 %v187
  %916 = vmatpush1.bf16.msra.mxu0 %v186
  %917 = vmatprep.subr.bf16.mxu0 %v191
  %918 = vmatpush1.bf16.msra.mxu0 %v190
  %919 = vmatprep.subr.bf16.mxu0 %v195
  %920 = vmatpush1.bf16.msra.mxu0 %v194
  %921 = vmatprep.subr.bf16.mxu0 %v199
  %922 = vmatpush1.bf16.msra.mxu0 %v198
  %923 = vmatprep.subr.bf16.mxu0 %v203
  %924 = vmatpush1.bf16.msra.mxu0 %v202
  %925 = vmatprep.subr.bf16.mxu0 0
  %926 = vmatpush1.bf16.msra.mxu0 0
  %927 = vmatprep.subr.bf16.mxu0 0
  %928 = vmatpush1.bf16.msra.mxu0 0
  %929 = vmatprep.subr.bf16.mxu0 0
  %930 = vmatpush1.bf16.msra.mxu0 0
  %931 = vmatprep.subr.bf16.mxu0 0
  %932 = vmatpush1.bf16.msra.mxu0 0
  %933 = vmatprep.subr.bf16.mxu0 0
  %934 = vmatpush1.bf16.msra.mxu0 0
  %935 = vmatprep.subr.bf16.mxu0 0
  %936 = vmatpush1.bf16.msra.mxu0 0
  %937 = vmatprep.subr.bf16.mxu0 0
  %938 = vmatpush1.bf16.msra.mxu0 0
  %939 = vmatprep.subr.bf16.mxu0 0
  %940 = vmatpush1.bf16.msra.mxu0 0
  %941 = vmatprep.mubr.bf16.mxu0 0
  %942 = vmatmul.mubr.bf16.gmra.mrb[0].mxu0 %v908
  %v943 = vpop.f32.mrb[0].mxu0
  %v944 = vadd.f32 0.0, %v943
  %v945 = vpop.f32.mrb[0].mxu0
  %v946 = vadd.f32 0.0, %v945
  %v947 = vpop.f32.mrb[0].mxu0
  %v948 = vpop.f32.mrb[0].mxu0
  %949 = vdwg.mxu0
  %950 = vmatprep.subr.bf16.mxu0 %v177
  %951 = vmatpush1.bf16.msra.mxu0 %v176
  %952 = vmatprep.subr.bf16.mxu0 %v181
  %953 = vmatpush1.bf16.msra.mxu0 %v180
  %954 = vmatprep.subr.bf16.mxu0 %v185
  %955 = vmatpush1.bf16.msra.mxu0 %v184
  %956 = vmatprep.subr.bf16.mxu0 %v189
  %957 = vmatpush1.bf16.msra.mxu0 %v188
  %958 = vmatprep.subr.bf16.mxu0 %v193
  %959 = vmatpush1.bf16.msra.mxu0 %v192
  %960 = vmatprep.subr.bf16.mxu0 %v197
  %961 = vmatpush1.bf16.msra.mxu0 %v196
  %962 = vmatprep.subr.bf16.mxu0 %v201
  %963 = vmatpush1.bf16.msra.mxu0 %v200
  %964 = vmatprep.subr.bf16.mxu0 %v205
  %965 = vmatpush1.bf16.msra.mxu0 %v204
  %966 = vmatprep.subr.bf16.mxu0 0
  %967 = vmatpush1.bf16.msra.mxu0 0
  %968 = vmatprep.subr.bf16.mxu0 0
  %969 = vmatpush1.bf16.msra.mxu0 0
  %970 = vmatprep.subr.bf16.mxu0 0
  %971 = vmatpush1.bf16.msra.mxu0 0
  %972 = vmatprep.subr.bf16.mxu0 0
  %973 = vmatpush1.bf16.msra.mxu0 0
  %974 = vmatprep.subr.bf16.mxu0 0
  %975 = vmatpush1.bf16.msra.mxu0 0
  %976 = vmatprep.subr.bf16.mxu0 0
  %977 = vmatpush1.bf16.msra.mxu0 0
  %978 = vmatprep.subr.bf16.mxu0 0
  %979 = vmatpush1.bf16.msra.mxu0 0
  %980 = vmatprep.subr.bf16.mxu0 0
  %981 = vmatpush1.bf16.msra.mxu0 0
  %982 = vmatprep.mubr.bf16.mxu0 0
  %983 = vmatmul.mubr.bf16.gmra.mrb[0].mxu0 %v908
  %v984 = vpop.f32.mrb[0].mxu0
  %v985 = vadd.f32 0.0, %v984
  %v986 = vpop.f32.mrb[0].mxu0
  %v987 = vadd.f32 0.0, %v986
  %v988 = vpop.f32.mrb[0].mxu0
  %v989 = vpop.f32.mrb[0].mxu0
  %990 = vdwg.mxu0
  %v991 = vadd.f32 %v891, %v944
  %v992 = vadd.f32 %v892, %v946
  %v993 = vadd.f32 %v893, %v985
  %v994 = vadd.f32 %v894, %v987
  %v995 = vpack.c.bf16 %v889, %v889
  %996 = vmatprep.subr.bf16.mxu0 %v453
  %997 = vmatpush1.bf16.msra.mxu0 %v452
  %998 = vmatprep.subr.bf16.mxu0 %v457
  %999 = vmatpush1.bf16.msra.mxu0 %v456
  %1000 = vmatprep.subr.bf16.mxu0 %v461
  %1001 = vmatpush1.bf16.msra.mxu0 %v460
  %1002 = vmatprep.subr.bf16.mxu0 %v465
  %1003 = vmatpush1.bf16.msra.mxu0 %v464
  %1004 = vmatprep.subr.bf16.mxu0 %v469
  %1005 = vmatpush1.bf16.msra.mxu0 %v468
  %1006 = vmatprep.subr.bf16.mxu0 %v473
  %1007 = vmatpush1.bf16.msra.mxu0 %v472
  %1008 = vmatprep.subr.bf16.mxu0 %v477
  %1009 = vmatpush1.bf16.msra.mxu0 %v476
  %1010 = vmatprep.subr.bf16.mxu0 %v481
  %1011 = vmatpush1.bf16.msra.mxu0 %v480
  %1012 = vmatprep.subr.bf16.mxu0 0
  %1013 = vmatpush1.bf16.msra.mxu0 0
  %1014 = vmatprep.subr.bf16.mxu0 0
  %1015 = vmatpush1.bf16.msra.mxu0 0
  %1016 = vmatprep.subr.bf16.mxu0 0
  %1017 = vmatpush1.bf16.msra.mxu0 0
  %1018 = vmatprep.subr.bf16.mxu0 0
  %1019 = vmatpush1.bf16.msra.mxu0 0
  %1020 = vmatprep.subr.bf16.mxu0 0
  %1021 = vmatpush1.bf16.msra.mxu0 0
  %1022 = vmatprep.subr.bf16.mxu0 0
  %1023 = vmatpush1.bf16.msra.mxu0 0
  %1024 = vmatprep.subr.bf16.mxu0 0
  %1025 = vmatpush1.bf16.msra.mxu0 0
  %1026 = vmatprep.subr.bf16.mxu0 0
  %1027 = vmatpush1.bf16.msra.mxu0 0
  %1028 = vmatprep.mubr.bf16.mxu0 0
  %1029 = vmatmul.mubr.bf16.gmra.mrb[0].mxu0 %v995
  %v1030 = vpop.f32.mrb[0].mxu0
  %v1031 = vadd.f32 0.0, %v1030
  %v1032 = vpop.f32.mrb[0].mxu0
  %v1033 = vadd.f32 0.0, %v1032
  %v1034 = vpop.f32.mrb[0].mxu0
  %v1035 = vpop.f32.mrb[0].mxu0
  %1036 = vdwg.mxu0
  %1037 = vmatprep.subr.bf16.mxu0 %v455
  %1038 = vmatpush1.bf16.msra.mxu0 %v454
  %1039 = vmatprep.subr.bf16.mxu0 %v459
  %1040 = vmatpush1.bf16.msra.mxu0 %v458
  %1041 = vmatprep.subr.bf16.mxu0 %v463
  %1042 = vmatpush1.bf16.msra.mxu0 %v462
  %1043 = vmatprep.subr.bf16.mxu0 %v467
  %1044 = vmatpush1.bf16.msra.mxu0 %v466
  %1045 = vmatprep.subr.bf16.mxu0 %v471
  %1046 = vmatpush1.bf16.msra.mxu0 %v470
  %1047 = vmatprep.subr.bf16.mxu0 %v475
  %1048 = vmatpush1.bf16.msra.mxu0 %v474
  %1049 = vmatprep.subr.bf16.mxu0 %v479
  %1050 = vmatpush1.bf16.msra.mxu0 %v478
  %1051 = vmatprep.subr.bf16.mxu0 %v483
  %1052 = vmatpush1.bf16.msra.mxu0 %v482
  %1053 = vmatprep.subr.bf16.mxu0 0
  %1054 = vmatpush1.bf16.msra.mxu0 0
  %1055 = vmatprep.subr.bf16.mxu0 0
  %1056 = vmatpush1.bf16.msra.mxu0 0
  %1057 = vmatprep.subr.bf16.mxu0 0
  %1058 = vmatpush1.bf16.msra.mxu0 0
  %1059 = vmatprep.subr.bf16.mxu0 0
  %1060 = vmatpush1.bf16.msra.mxu0 0
  %1061 = vmatprep.subr.bf16.mxu0 0
  %1062 = vmatpush1.bf16.msra.mxu0 0
  %1063 = vmatprep.subr.bf16.mxu0 0
  %1064 = vmatpush1.bf16.msra.mxu0 0
  %1065 = vmatprep.subr.bf16.mxu0 0
  %1066 = vmatpush1.bf16.msra.mxu0 0
  %1067 = vmatprep.subr.bf16.mxu0 0
  %1068 = vmatpush1.bf16.msra.mxu0 0
  %1069 = vmatprep.mubr.bf16.mxu0 0
  %1070 = vmatmul.mubr.bf16.gmra.mrb[0].mxu0 %v995
  %v1071 = vpop.f32.mrb[0].mxu0
  %v1072 = vadd.f32 0.0, %v1071
  %v1073 = vpop.f32.mrb[0].mxu0
  %v1074 = vadd.f32 0.0, %v1073
  %v1075 = vpop.f32.mrb[0].mxu0
  %v1076 = vpop.f32.mrb[0].mxu0
  %1077 = vdwg.mxu0
  %v1078 = vadd.f32 %v904, %v1031
  %v1079 = vadd.f32 %v905, %v1033
  %v1080 = vadd.f32 %v906, %v1072
  %v1081 = vadd.f32 %v907, %v1074
  %v1082 = vxor.u32 %v991, 2147483648
  %v1083 = vmul.f32 %v1082, 1.442695
  %v1084 = vpow.pop %v1083
  %v1085 = vadd.f32 %v1084, 1.0
  %v1086 = vrcp.pop %v1085
  %v1087 = vmul.f32 1.0, %v1086
  %v1088 = vxor.u32 %v992, 2147483648
  %v1089 = vmul.f32 %v1088, 1.442695
  %v1090 = vpow.pop %v1089
  %v1091 = vadd.f32 %v1090, 1.0
  %v1092 = vrcp.pop %v1091
  %v1093 = vmul.f32 1.0, %v1092
  %v1094 = vtanh.pop %v993
  %v1095 = vxor.u32 %v994, 2147483648
  %v1096 = vmul.f32 %v1095, 1.442695
  %v1097 = vpow.pop %v1096
  %v1098 = vadd.f32 %v1097, 1.0
  %v1099 = vrcp.pop %v1098
  %v1100 = vmul.f32 1.0, %v1099
  %v1101 = vmul.f32 %v1093, %v863
  %v1102 = vmul.f32 %v1087, %v1094
  %v1103 = vadd.f32 %v1101, %v1102
  %v1104 = vtanh.pop %v1103
  %v1105 = vmul.f32 %v1100, %v1104
  %v1106 = vxor.u32 %v1078, 2147483648
  %v1107 = vmul.f32 %v1106, 1.442695
  %v1108 = vpow.pop %v1107
  %v1109 = vadd.f32 %v1108, 1.0
  %v1110 = vrcp.pop %v1109
  %v1111 = vmul.f32 1.0, %v1110
  %v1112 = vxor.u32 %v1079, 2147483648
  %v1113 = vmul.f32 %v1112, 1.442695
  %v1114 = vpow.pop %v1113
  %v1115 = vadd.f32 %v1114, 1.0
  %v1116 = vrcp.pop %v1115
  %v1117 = vmul.f32 1.0, %v1116
  %v1118 = vtanh.pop %v1080
  %v1119 = vxor.u32 %v1081, 2147483648
  %v1120 = vmul.f32 %v1119, 1.442695
  %v1121 = vpow.pop %v1120
  %v1122 = vadd.f32 %v1121, 1.0
  %v1123 = vrcp.pop %v1122
  %v1124 = vmul.f32 1.0, %v1123
  %v1125 = vmul.f32 %v1117, %v887
  %v1126 = vmul.f32 %v1111, %v1118
  %v1127 = vadd.f32 %v1125, %v1126
  %v1128 = vtanh.pop %v1127
  %v1129 = vmul.f32 %v1124, %v1128
  %s1130 = scalar_lea.vmem %s0, 192
  %v1131 = vld [vmem:[%s1130] sm:$0xff]
  %v1132 = vld [vmem:[%s1130 + $0x8] sm:$0xff]
  %v1133 = vld [vmem:[%s1130 + $0x10] sm:$0xff]
  %v1134 = vld [vmem:[%s1130 + $0x18] sm:$0xff]
  %v1135 = vld [vmem:[%s1130 + $0x20] sm:$0xff]
  %v1136 = vld [vmem:[%s1130 + $0x28] sm:$0xff]
  %v1137 = vld [vmem:[%s1130 + $0x30] sm:$0xff]
  %v1138 = vld [vmem:[%s1130 + $0x38] sm:$0xff]
  %s1139 = scalar_lea.vmem %s0, 512
  %v1140 = vld [vmem:[%s1139] sm:$0xff]
  %v1141 = vld [vmem:[%s1139 + $0x8] sm:$0xff]
  %v1142 = vld [vmem:[%s1139 + $0x10] sm:$0xff]
  %v1143 = vld [vmem:[%s1139 + $0x18] sm:$0xff]
  %v1144 = vld [vmem:[%s1139 + $0x20] sm:$0xff]
  %v1145 = vld [vmem:[%s1139 + $0x28] sm:$0xff]
  %v1146 = vld [vmem:[%s1139 + $0x30] sm:$0xff]
  %v1147 = vld [vmem:[%s1139 + $0x38] sm:$0xff]
  %v1148 = vpack.c.bf16 %v1105, %v1105
  %1149 = vmatprep.subr.bf16.mxu0 %v175
  %1150 = vmatpush1.bf16.msra.mxu0 %v174
  %1151 = vmatprep.subr.bf16.mxu0 %v179
  %1152 = vmatpush1.bf16.msra.mxu0 %v178
  %1153 = vmatprep.subr.bf16.mxu0 %v183
  %1154 = vmatpush1.bf16.msra.mxu0 %v182
  %1155 = vmatprep.subr.bf16.mxu0 %v187
  %1156 = vmatpush1.bf16.msra.mxu0 %v186
  %1157 = vmatprep.subr.bf16.mxu0 %v191
  %1158 = vmatpush1.bf16.msra.mxu0 %v190
  %1159 = vmatprep.subr.bf16.mxu0 %v195
  %1160 = vmatpush1.bf16.msra.mxu0 %v194
  %1161 = vmatprep.subr.bf16.mxu0 %v199
  %1162 = vmatpush1.bf16.msra.mxu0 %v198
  %1163 = vmatprep.subr.bf16.mxu0 %v203
  %1164 = vmatpush1.bf16.msra.mxu0 %v202
  %1165 = vmatprep.subr.bf16.mxu0 0
  %1166 = vmatpush1.bf16.msra.mxu0 0
  %1167 = vmatprep.subr.bf16.mxu0 0
  %1168 = vmatpush1.bf16.msra.mxu0 0
  %1169 = vmatprep.subr.bf16.mxu0 0
  %1170 = vmatpush1.bf16.msra.mxu0 0
  %1171 = vmatprep.subr.bf16.mxu0 0
  %1172 = vmatpush1.bf16.msra.mxu0 0
  %1173 = vmatprep.subr.bf16.mxu0 0
  %1174 = vmatpush1.bf16.msra.mxu0 0
  %1175 = vmatprep.subr.bf16.mxu0 0
  %1176 = vmatpush1.bf16.msra.mxu0 0
  %1177 = vmatprep.subr.bf16.mxu0 0
  %1178 = vmatpush1.bf16.msra.mxu0 0
  %1179 = vmatprep.subr.bf16.mxu0 0
  %1180 = vmatpush1.bf16.msra.mxu0 0
  %1181 = vmatprep.mubr.bf16.mxu0 0
  %1182 = vmatmul.mubr.bf16.gmra.mrb[0].mxu0 %v1148
  %v1183 = vpop.f32.mrb[0].mxu0
  %v1184 = vadd.f32 0.0, %v1183
  %v1185 = vpop.f32.mrb[0].mxu0
  %v1186 = vadd.f32 0.0, %v1185
  %v1187 = vpop.f32.mrb[0].mxu0
  %v1188 = vpop.f32.mrb[0].mxu0
  %1189 = vdwg.mxu0
  %1190 = vmatprep.subr.bf16.mxu0 %v177
  %1191 = vmatpush1.bf16.msra.mxu0 %v176
  %1192 = vmatprep.subr.bf16.mxu0 %v181
  %1193 = vmatpush1.bf16.msra.mxu0 %v180
  %1194 = vmatprep.subr.bf16.mxu0 %v185
  %1195 = vmatpush1.bf16.msra.mxu0 %v184
  %1196 = vmatprep.subr.bf16.mxu0 %v189
  %1197 = vmatpush1.bf16.msra.mxu0 %v188
  %1198 = vmatprep.subr.bf16.mxu0 %v193
  %1199 = vmatpush1.bf16.msra.mxu0 %v192
  %1200 = vmatprep.subr.bf16.mxu0 %v197
  %1201 = vmatpush1.bf16.msra.mxu0 %v196
  %1202 = vmatprep.subr.bf16.mxu0 %v201
  %1203 = vmatpush1.bf16.msra.mxu0 %v200
  %1204 = vmatprep.subr.bf16.mxu0 %v205
  %1205 = vmatpush1.bf16.msra.mxu0 %v204
  %1206 = vmatprep.subr.bf16.mxu0 0
  %1207 = vmatpush1.bf16.msra.mxu0 0
  %1208 = vmatprep.subr.bf16.mxu0 0
  %1209 = vmatpush1.bf16.msra.mxu0 0
  %1210 = vmatprep.subr.bf16.mxu0 0
  %1211 = vmatpush1.bf16.msra.mxu0 0
  %1212 = vmatprep.subr.bf16.mxu0 0
  %1213 = vmatpush1.bf16.msra.mxu0 0
  %1214 = vmatprep.subr.bf16.mxu0 0
  %1215 = vmatpush1.bf16.msra.mxu0 0
  %1216 = vmatprep.subr.bf16.mxu0 0
  %1217 = vmatpush1.bf16.msra.mxu0 0
  %1218 = vmatprep.subr.bf16.mxu0 0
  %1219 = vmatpush1.bf16.msra.mxu0 0
  %1220 = vmatprep.subr.bf16.mxu0 0
  %1221 = vmatpush1.bf16.msra.mxu0 0
  %1222 = vmatprep.mubr.bf16.mxu0 0
  %1223 = vmatmul.mubr.bf16.gmra.mrb[0].mxu0 %v1148
  %v1224 = vpop.f32.mrb[0].mxu0
  %v1225 = vadd.f32 0.0, %v1224
  %v1226 = vpop.f32.mrb[0].mxu0
  %v1227 = vadd.f32 0.0, %v1226
  %v1228 = vpop.f32.mrb[0].mxu0
  %v1229 = vpop.f32.mrb[0].mxu0
  %1230 = vdwg.mxu0
  %v1231 = vadd.f32 %v1131, %v1184
  %v1232 = vadd.f32 %v1132, %v1186
  %v1233 = vadd.f32 %v1133, %v1225
  %v1234 = vadd.f32 %v1134, %v1227
  %v1235 = vpack.c.bf16 %v1129, %v1129
  %1236 = vmatprep.subr.bf16.mxu0 %v453
  %1237 = vmatpush1.bf16.msra.mxu0 %v452
  %1238 = vmatprep.subr.bf16.mxu0 %v457
  %1239 = vmatpush1.bf16.msra.mxu0 %v456
  %1240 = vmatprep.subr.bf16.mxu0 %v461
  %1241 = vmatpush1.bf16.msra.mxu0 %v460
  %1242 = vmatprep.subr.bf16.mxu0 %v465
  %1243 = vmatpush1.bf16.msra.mxu0 %v464
  %1244 = vmatprep.subr.bf16.mxu0 %v469
  %1245 = vmatpush1.bf16.msra.mxu0 %v468
  %1246 = vmatprep.subr.bf16.mxu0 %v473
  %1247 = vmatpush1.bf16.msra.mxu0 %v472
  %1248 = vmatprep.subr.bf16.mxu0 %v477
  %1249 = vmatpush1.bf16.msra.mxu0 %v476
  %1250 = vmatprep.subr.bf16.mxu0 %v481
  %1251 = vmatpush1.bf16.msra.mxu0 %v480
  %1252 = vmatprep.subr.bf16.mxu0 0
  %1253 = vmatpush1.bf16.msra.mxu0 0
  %1254 = vmatprep.subr.bf16.mxu0 0
  %1255 = vmatpush1.bf16.msra.mxu0 0
  %1256 = vmatprep.subr.bf16.mxu0 0
  %1257 = vmatpush1.bf16.msra.mxu0 0
  %1258 = vmatprep.subr.bf16.mxu0 0
  %1259 = vmatpush1.bf16.msra.mxu0 0
  %1260 = vmatprep.subr.bf16.mxu0 0
  %1261 = vmatpush1.bf16.msra.mxu0 0
  %1262 = vmatprep.subr.bf16.mxu0 0
  %1263 = vmatpush1.bf16.msra.mxu0 0
  %1264 = vmatprep.subr.bf16.mxu0 0
  %1265 = vmatpush1.bf16.msra.mxu0 0
  %1266 = vmatprep.subr.bf16.mxu0 0
  %1267 = vmatpush1.bf16.msra.mxu0 0
  %1268 = vmatprep.mubr.bf16.mxu0 0
  %1269 = vmatmul.mubr.bf16.gmra.mrb[0].mxu0 %v1235
  %v1270 = vpop.f32.mrb[0].mxu0
  %v1271 = vadd.f32 0.0, %v1270
  %v1272 = vpop.f32.mrb[0].mxu0
  %v1273 = vadd.f32 0.0, %v1272
  %v1274 = vpop.f32.mrb[0].mxu0
  %v1275 = vpop.f32.mrb[0].mxu0
  %1276 = vdwg.mxu0
  %1277 = vmatprep.subr.bf16.mxu0 %v455
  %1278 = vmatpush1.bf16.msra.mxu0 %v454
  %1279 = vmatprep.subr.bf16.mxu0 %v459
  %1280 = vmatpush1.bf16.msra.mxu0 %v458
  %1281 = vmatprep.subr.bf16.mxu0 %v463
  %1282 = vmatpush1.bf16.msra.mxu0 %v462
  %1283 = vmatprep.subr.bf16.mxu0 %v467
  %1284 = vmatpush1.bf16.msra.mxu0 %v466
  %1285 = vmatprep.subr.bf16.mxu0 %v471
  %1286 = vmatpush1.bf16.msra.mxu0 %v470
  %1287 = vmatprep.subr.bf16.mxu0 %v475
  %1288 = vmatpush1.bf16.msra.mxu0 %v474
  %1289 = vmatprep.subr.bf16.mxu0 %v479
  %1290 = vmatpush1.bf16.msra.mxu0 %v478
  %1291 = vmatprep.subr.bf16.mxu0 %v483
  %1292 = vmatpush1.bf16.msra.mxu0 %v482
  %1293 = vmatprep.subr.bf16.mxu0 0
  %1294 = vmatpush1.bf16.msra.mxu0 0
  %1295 = vmatprep.subr.bf16.mxu0 0
  %1296 = vmatpush1.bf16.msra.mxu0 0
  %1297 = vmatprep.subr.bf16.mxu0 0
  %1298 = vmatpush1.bf16.msra.mxu0 0
  %1299 = vmatprep.subr.bf16.mxu0 0
  %1300 = vmatpush1.bf16.msra.mxu0 0
  %1301 = vmatprep.subr.bf16.mxu0 0
  %1302 = vmatpush1.bf16.msra.mxu0 0
  %1303 = vmatprep.subr.bf16.mxu0 0
  %1304 = vmatpush1.bf16.msra.mxu0 0
  %1305 = vmatprep.subr.bf16.mxu0 0
  %1306 = vmatpush1.bf16.msra.mxu0 0
  %1307 = vmatprep.subr.bf16.mxu0 0
  %1308 = vmatpush1.bf16.msra.mxu0 0
  %1309 = vmatprep.mubr.bf16.mxu0 0
  %1310 = vmatmul.mubr.bf16.gmra.mrb[0].mxu0 %v1235
  %v1311 = vpop.f32.mrb[0].mxu0
  %v1312 = vadd.f32 0.0, %v1311
  %v1313 = vpop.f32.mrb[0].mxu0
  %v1314 = vadd.f32 0.0, %v1313
  %v1315 = vpop.f32.mrb[0].mxu0
  %v1316 = vpop.f32.mrb[0].mxu0
  %1317 = vdwg.mxu0
  %v1318 = vadd.f32 %v1144, %v1271
  %v1319 = vadd.f32 %v1145, %v1273
  %v1320 = vadd.f32 %v1146, %v1312
  %v1321 = vadd.f32 %v1147, %v1314
  %v1322 = vxor.u32 %v1231, 2147483648
  %v1323 = vmul.f32 %v1322, 1.442695
  %v1324 = vpow.pop %v1323
  %v1325 = vadd.f32 %v1324, 1.0
  %v1326 = vrcp.pop %v1325
  %v1327 = vmul.f32 1.0, %v1326
  %v1328 = vxor.u32 %v1232, 2147483648
  %v1329 = vmul.f32 %v1328, 1.442695
  %v1330 = vpow.pop %v1329
  %v1331 = vadd.f32 %v1330, 1.0
  %v1332 = vrcp.pop %v1331
  %v1333 = vmul.f32 1.0, %v1332
  %v1334 = vtanh.pop %v1233
  %v1335 = vxor.u32 %v1234, 2147483648
  %v1336 = vmul.f32 %v1335, 1.442695
  %v1337 = vpow.pop %v1336
  %v1338 = vadd.f32 %v1337, 1.0
  %v1339 = vrcp.pop %v1338
  %v1340 = vmul.f32 1.0, %v1339
  %v1341 = vmul.f32 %v1333, %v1103
  %v1342 = vmul.f32 %v1327, %v1334
  %v1343 = vadd.f32 %v1341, %v1342
  %v1344 = vtanh.pop %v1343
  %v1345 = vmul.f32 %v1340, %v1344
  %v1346 = vxor.u32 %v1318, 2147483648
  %v1347 = vmul.f32 %v1346, 1.442695
  %v1348 = vpow.pop %v1347
  %v1349 = vadd.f32 %v1348, 1.0
  %v1350 = vrcp.pop %v1349
  %v1351 = vmul.f32 1.0, %v1350
  %v1352 = vxor.u32 %v1319, 2147483648
  %v1353 = vmul.f32 %v1352, 1.442695
  %v1354 = vpow.pop %v1353
  %v1355 = vadd.f32 %v1354, 1.0
  %v1356 = vrcp.pop %v1355
  %v1357 = vmul.f32 1.0, %v1356
  %v1358 = vtanh.pop %v1320
  %v1359 = vxor.u32 %v1321, 2147483648
  %v1360 = vmul.f32 %v1359, 1.442695
  %v1361 = vpow.pop %v1360
  %v1362 = vadd.f32 %v1361, 1.0
  %v1363 = vrcp.pop %v1362
  %v1364 = vmul.f32 1.0, %v1363
  %v1365 = vmul.f32 %v1357, %v1127
  %v1366 = vmul.f32 %v1351, %v1358
  %v1367 = vadd.f32 %v1365, %v1366
  %v1368 = vtanh.pop %v1367
  %v1369 = vmul.f32 %v1364, %v1368
  %s1370 = scalar_lea.vmem %s0, 256
  %v1371 = vld [vmem:[%s1370] sm:$0xff]
  %v1372 = vld [vmem:[%s1370 + $0x8] sm:$0xff]
  %v1373 = vld [vmem:[%s1370 + $0x10] sm:$0xff]
  %v1374 = vld [vmem:[%s1370 + $0x18] sm:$0xff]
  %v1375 = vld [vmem:[%s1370 + $0x20] sm:$0xff]
  %v1376 = vld [vmem:[%s1370 + $0x28] sm:$0xff]
  %v1377 = vld [vmem:[%s1370 + $0x30] sm:$0xff]
  %v1378 = vld [vmem:[%s1370 + $0x38] sm:$0xff]
  %s1379 = scalar_lea.vmem %s0, 448
  %v1380 = vld [vmem:[%s1379] sm:$0xff]
  %v1381 = vld [vmem:[%s1379 + $0x8] sm:$0xff]
  %v1382 = vld [vmem:[%s1379 + $0x10] sm:$0xff]
  %v1383 = vld [vmem:[%s1379 + $0x18] sm:$0xff]
  %v1384 = vld [vmem:[%s1379 + $0x20] sm:$0xff]
  %v1385 = vld [vmem:[%s1379 + $0x28] sm:$0xff]
  %v1386 = vld [vmem:[%s1379 + $0x30] sm:$0xff]
  %v1387 = vld [vmem:[%s1379 + $0x38] sm:$0xff]
  %v1388 = vpack.c.bf16 %v1345, %v1345
  %1389 = vmatprep.subr.bf16.mxu0 %v175
  %1390 = vmatpush1.bf16.msra.mxu0 %v174
  %1391 = vmatprep.subr.bf16.mxu0 %v179
  %1392 = vmatpush1.bf16.msra.mxu0 %v178
  %1393 = vmatprep.subr.bf16.mxu0 %v183
  %1394 = vmatpush1.bf16.msra.mxu0 %v182
  %1395 = vmatprep.subr.bf16.mxu0 %v187
  %1396 = vmatpush1.bf16.msra.mxu0 %v186
  %1397 = vmatprep.subr.bf16.mxu0 %v191
  %1398 = vmatpush1.bf16.msra.mxu0 %v190
  %1399 = vmatprep.subr.bf16.mxu0 %v195
  %1400 = vmatpush1.bf16.msra.mxu0 %v194
  %1401 = vmatprep.subr.bf16.mxu0 %v199
  %1402 = vmatpush1.bf16.msra.mxu0 %v198
  %1403 = vmatprep.subr.bf16.mxu0 %v203
  %1404 = vmatpush1.bf16.msra.mxu0 %v202
  %1405 = vmatprep.subr.bf16.mxu0 0
  %1406 = vmatpush1.bf16.msra.mxu0 0
  %1407 = vmatprep.subr.bf16.mxu0 0
  %1408 = vmatpush1.bf16.msra.mxu0 0
  %1409 = vmatprep.subr.bf16.mxu0 0
  %1410 = vmatpush1.bf16.msra.mxu0 0
  %1411 = vmatprep.subr.bf16.mxu0 0
  %1412 = vmatpush1.bf16.msra.mxu0 0
  %1413 = vmatprep.subr.bf16.mxu0 0
  %1414 = vmatpush1.bf16.msra.mxu0 0
  %1415 = vmatprep.subr.bf16.mxu0 0
  %1416 = vmatpush1.bf16.msra.mxu0 0
  %1417 = vmatprep.subr.bf16.mxu0 0
  %1418 = vmatpush1.bf16.msra.mxu0 0
  %1419 = vmatprep.subr.bf16.mxu0 0
  %1420 = vmatpush1.bf16.msra.mxu0 0
  %1421 = vmatprep.mubr.bf16.mxu0 0
  %1422 = vmatmul.mubr.bf16.gmra.mrb[0].mxu0 %v1388
  %v1423 = vpop.f32.mrb[0].mxu0
  %v1424 = vadd.f32 0.0, %v1423
  %v1425 = vpop.f32.mrb[0].mxu0
  %v1426 = vadd.f32 0.0, %v1425
  %v1427 = vpop.f32.mrb[0].mxu0
  %v1428 = vpop.f32.mrb[0].mxu0
  %1429 = vdwg.mxu0
  %1430 = vmatprep.subr.bf16.mxu0 %v177
  %1431 = vmatpush1.bf16.msra.mxu0 %v176
  %1432 = vmatprep.subr.bf16.mxu0 %v181
  %1433 = vmatpush1.bf16.msra.mxu0 %v180
  %1434 = vmatprep.subr.bf16.mxu0 %v185
  %1435 = vmatpush1.bf16.msra.mxu0 %v184
  %1436 = vmatprep.subr.bf16.mxu0 %v189
  %1437 = vmatpush1.bf16.msra.mxu0 %v188
  %1438 = vmatprep.subr.bf16.mxu0 %v193
  %1439 = vmatpush1.bf16.msra.mxu0 %v192
  %1440 = vmatprep.subr.bf16.mxu0 %v197
  %1441 = vmatpush1.bf16.msra.mxu0 %v196
  %1442 = vmatprep.subr.bf16.mxu0 %v201
  %1443 = vmatpush1.bf16.msra.mxu0 %v200
  %1444 = vmatprep.subr.bf16.mxu0 %v205
  %1445 = vmatpush1.bf16.msra.mxu0 %v204
  %1446 = vmatprep.subr.bf16.mxu0 0
  %1447 = vmatpush1.bf16.msra.mxu0 0
  %1448 = vmatprep.subr.bf16.mxu0 0
  %1449 = vmatpush1.bf16.msra.mxu0 0
  %1450 = vmatprep.subr.bf16.mxu0 0
  %1451 = vmatpush1.bf16.msra.mxu0 0
  %1452 = vmatprep.subr.bf16.mxu0 0
  %1453 = vmatpush1.bf16.msra.mxu0 0
  %1454 = vmatprep.subr.bf16.mxu0 0
  %1455 = vmatpush1.bf16.msra.mxu0 0
  %1456 = vmatprep.subr.bf16.mxu0 0
  %1457 = vmatpush1.bf16.msra.mxu0 0
  %1458 = vmatprep.subr.bf16.mxu0 0
  %1459 = vmatpush1.bf16.msra.mxu0 0
  %1460 = vmatprep.subr.bf16.mxu0 0
  %1461 = vmatpush1.bf16.msra.mxu0 0
  %1462 = vmatprep.mubr.bf16.mxu0 0
  %1463 = vmatmul.mubr.bf16.gmra.mrb[0].mxu0 %v1388
  %v1464 = vpop.f32.mrb[0].mxu0
  %v1465 = vadd.f32 0.0, %v1464
  %v1466 = vpop.f32.mrb[0].mxu0
  %v1467 = vadd.f32 0.0, %v1466
  %v1468 = vpop.f32.mrb[0].mxu0
  %v1469 = vpop.f32.mrb[0].mxu0
  %1470 = vdwg.mxu0
  %v1471 = vadd.f32 %v1371, %v1424
  %v1472 = vadd.f32 %v1372, %v1426
  %v1473 = vadd.f32 %v1373, %v1465
  %v1474 = vadd.f32 %v1374, %v1467
  %v1475 = vpack.c.bf16 %v1369, %v1369
  %1476 = vmatprep.subr.bf16.mxu0 %v453
  %1477 = vmatpush1.bf16.msra.mxu0 %v452
  %1478 = vmatprep.subr.bf16.mxu0 %v457
  %1479 = vmatpush1.bf16.msra.mxu0 %v456
  %1480 = vmatprep.subr.bf16.mxu0 %v461
  %1481 = vmatpush1.bf16.msra.mxu0 %v460
  %1482 = vmatprep.subr.bf16.mxu0 %v465
  %1483 = vmatpush1.bf16.msra.mxu0 %v464
  %1484 = vmatprep.subr.bf16.mxu0 %v469
  %1485 = vmatpush1.bf16.msra.mxu0 %v468
  %1486 = vmatprep.subr.bf16.mxu0 %v473
  %1487 = vmatpush1.bf16.msra.mxu0 %v472
  %1488 = vmatprep.subr.bf16.mxu0 %v477
  %1489 = vmatpush1.bf16.msra.mxu0 %v476
  %1490 = vmatprep.subr.bf16.mxu0 %v481
  %1491 = vmatpush1.bf16.msra.mxu0 %v480
  %1492 = vmatprep.subr.bf16.mxu0 0
  %1493 = vmatpush1.bf16.msra.mxu0 0
  %1494 = vmatprep.subr.bf16.mxu0 0
  %1495 = vmatpush1.bf16.msra.mxu0 0
  %1496 = vmatprep.subr.bf16.mxu0 0
  %1497 = vmatpush1.bf16.msra.mxu0 0
  %1498 = vmatprep.subr.bf16.mxu0 0
  %1499 = vmatpush1.bf16.msra.mxu0 0
  %1500 = vmatprep.subr.bf16.mxu0 0
  %1501 = vmatpush1.bf16.msra.mxu0 0
  %1502 = vmatprep.subr.bf16.mxu0 0
  %1503 = vmatpush1.bf16.msra.mxu0 0
  %1504 = vmatprep.subr.bf16.mxu0 0
  %1505 = vmatpush1.bf16.msra.mxu0 0
  %1506 = vmatprep.subr.bf16.mxu0 0
  %1507 = vmatpush1.bf16.msra.mxu0 0
  %1508 = vmatprep.mubr.bf16.mxu0 0
  %1509 = vmatmul.mubr.bf16.gmra.mrb[0].mxu0 %v1475
  %v1510 = vpop.f32.mrb[0].mxu0
  %v1511 = vadd.f32 0.0, %v1510
  %v1512 = vpop.f32.mrb[0].mxu0
  %v1513 = vadd.f32 0.0, %v1512
  %v1514 = vpop.f32.mrb[0].mxu0
  %v1515 = vpop.f32.mrb[0].mxu0
  %1516 = vdwg.mxu0
  %1517 = vmatprep.subr.bf16.mxu0 %v455
  %1518 = vmatpush1.bf16.msra.mxu0 %v454
  %1519 = vmatprep.subr.bf16.mxu0 %v459
  %1520 = vmatpush1.bf16.msra.mxu0 %v458
  %1521 = vmatprep.subr.bf16.mxu0 %v463
  %1522 = vmatpush1.bf16.msra.mxu0 %v462
  %1523 = vmatprep.subr.bf16.mxu0 %v467
  %1524 = vmatpush1.bf16.msra.mxu0 %v466
  %1525 = vmatprep.subr.bf16.mxu0 %v471
  %1526 = vmatpush1.bf16.msra.mxu0 %v470
  %1527 = vmatprep.subr.bf16.mxu0 %v475
  %1528 = vmatpush1.bf16.msra.mxu0 %v474
  %1529 = vmatprep.subr.bf16.mxu0 %v479
  %1530 = vmatpush1.bf16.msra.mxu0 %v478
  %1531 = vmatprep.subr.bf16.mxu0 %v483
  %1532 = vmatpush1.bf16.msra.mxu0 %v482
  %1533 = vmatprep.subr.bf16.mxu0 0
  %1534 = vmatpush1.bf16.msra.mxu0 0
  %1535 = vmatprep.subr.bf16.mxu0 0
  %1536 = vmatpush1.bf16.msra.mxu0 0
  %1537 = vmatprep.subr.bf16.mxu0 0
  %1538 = vmatpush1.bf16.msra.mxu0 0
  %1539 = vmatprep.subr.bf16.mxu0 0
  %1540 = vmatpush1.bf16.msra.mxu0 0
  %1541 = vmatprep.subr.bf16.mxu0 0
  %1542 = vmatpush1.bf16.msra.mxu0 0
  %1543 = vmatprep.subr.bf16.mxu0 0
  %1544 = vmatpush1.bf16.msra.mxu0 0
  %1545 = vmatprep.subr.bf16.mxu0 0
  %1546 = vmatpush1.bf16.msra.mxu0 0
  %1547 = vmatprep.subr.bf16.mxu0 0
  %1548 = vmatpush1.bf16.msra.mxu0 0
  %1549 = vmatprep.mubr.bf16.mxu0 0
  %1550 = vmatmul.mubr.bf16.gmra.mrb[0].mxu0 %v1475
  %v1551 = vpop.f32.mrb[0].mxu0
  %v1552 = vadd.f32 0.0, %v1551
  %v1553 = vpop.f32.mrb[0].mxu0
  %v1554 = vadd.f32 0.0, %v1553
  %v1555 = vpop.f32.mrb[0].mxu0
  %v1556 = vpop.f32.mrb[0].mxu0
  %1557 = vdwg.mxu0
  %v1558 = vadd.f32 %v1384, %v1511
  %v1559 = vadd.f32 %v1385, %v1513
  %v1560 = vadd.f32 %v1386, %v1552
  %v1561 = vadd.f32 %v1387, %v1554
  %v1562 = vxor.u32 %v1471, 2147483648
  %v1563 = vmul.f32 %v1562, 1.442695
  %v1564 = vpow.pop %v1563
  %v1565 = vadd.f32 %v1564, 1.0
  %v1566 = vrcp.pop %v1565
  %v1567 = vmul.f32 1.0, %v1566
  %v1568 = vxor.u32 %v1472, 2147483648
  %v1569 = vmul.f32 %v1568, 1.442695
  %v1570 = vpow.pop %v1569
  %v1571 = vadd.f32 %v1570, 1.0
  %v1572 = vrcp.pop %v1571
  %v1573 = vmul.f32 1.0, %v1572
  %v1574 = vtanh.pop %v1473
  %v1575 = vxor.u32 %v1474, 2147483648
  %v1576 = vmul.f32 %v1575, 1.442695
  %v1577 = vpow.pop %v1576
  %v1578 = vadd.f32 %v1577, 1.0
  %v1579 = vrcp.pop %v1578
  %v1580 = vmul.f32 1.0, %v1579
  %v1581 = vmul.f32 %v1573, %v1343
  %v1582 = vmul.f32 %v1567, %v1574
  %v1583 = vadd.f32 %v1581, %v1582
  %v1584 = vtanh.pop %v1583
  %v1585 = vmul.f32 %v1580, %v1584
  %v1586 = vxor.u32 %v1558, 2147483648
  %v1587 = vmul.f32 %v1586, 1.442695
  %v1588 = vpow.pop %v1587
  %v1589 = vadd.f32 %v1588, 1.0
  %v1590 = vrcp.pop %v1589
  %v1591 = vmul.f32 1.0, %v1590
  %v1592 = vxor.u32 %v1559, 2147483648
  %v1593 = vmul.f32 %v1592, 1.442695
  %v1594 = vpow.pop %v1593
  %v1595 = vadd.f32 %v1594, 1.0
  %v1596 = vrcp.pop %v1595
  %v1597 = vmul.f32 1.0, %v1596
  %v1598 = vtanh.pop %v1560
  %v1599 = vxor.u32 %v1561, 2147483648
  %v1600 = vmul.f32 %v1599, 1.442695
  %v1601 = vpow.pop %v1600
  %v1602 = vadd.f32 %v1601, 1.0
  %v1603 = vrcp.pop %v1602
  %v1604 = vmul.f32 1.0, %v1603
  %v1605 = vmul.f32 %v1597, %v1367
  %v1606 = vmul.f32 %v1591, %v1598
  %v1607 = vadd.f32 %v1605, %v1606
  %v1608 = vtanh.pop %v1607
  %v1609 = vmul.f32 %v1604, %v1608
  %s1610 = scalar_lea.vmem %s0, 320
  %v1611 = vld [vmem:[%s1610] sm:$0xff]
  %v1612 = vld [vmem:[%s1610 + $0x8] sm:$0xff]
  %v1613 = vld [vmem:[%s1610 + $0x10] sm:$0xff]
  %v1614 = vld [vmem:[%s1610 + $0x18] sm:$0xff]
  %v1615 = vld [vmem:[%s1610 + $0x20] sm:$0xff]
  %v1616 = vld [vmem:[%s1610 + $0x28] sm:$0xff]
  %v1617 = vld [vmem:[%s1610 + $0x30] sm:$0xff]
  %v1618 = vld [vmem:[%s1610 + $0x38] sm:$0xff]
  %s1619 = scalar_lea.vmem %s0, 384
  %v1620 = vld [vmem:[%s1619] sm:$0xff]
  %v1621 = vld [vmem:[%s1619 + $0x8] sm:$0xff]
  %v1622 = vld [vmem:[%s1619 + $0x10] sm:$0xff]
  %v1623 = vld [vmem:[%s1619 + $0x18] sm:$0xff]
  %v1624 = vld [vmem:[%s1619 + $0x20] sm:$0xff]
  %v1625 = vld [vmem:[%s1619 + $0x28] sm:$0xff]
  %v1626 = vld [vmem:[%s1619 + $0x30] sm:$0xff]
  %v1627 = vld [vmem:[%s1619 + $0x38] sm:$0xff]
  %v1628 = vpack.c.bf16 %v1585, %v1585
  %1629 = vmatprep.subr.bf16.mxu0 %v175
  %1630 = vmatpush1.bf16.msra.mxu0 %v174
  %1631 = vmatprep.subr.bf16.mxu0 %v179
  %1632 = vmatpush1.bf16.msra.mxu0 %v178
  %1633 = vmatprep.subr.bf16.mxu0 %v183
  %1634 = vmatpush1.bf16.msra.mxu0 %v182
  %1635 = vmatprep.subr.bf16.mxu0 %v187
  %1636 = vmatpush1.bf16.msra.mxu0 %v186
  %1637 = vmatprep.subr.bf16.mxu0 %v191
  %1638 = vmatpush1.bf16.msra.mxu0 %v190
  %1639 = vmatprep.subr.bf16.mxu0 %v195
  %1640 = vmatpush1.bf16.msra.mxu0 %v194
  %1641 = vmatprep.subr.bf16.mxu0 %v199
  %1642 = vmatpush1.bf16.msra.mxu0 %v198
  %1643 = vmatprep.subr.bf16.mxu0 %v203
  %1644 = vmatpush1.bf16.msra.mxu0 %v202
  %1645 = vmatprep.subr.bf16.mxu0 0
  %1646 = vmatpush1.bf16.msra.mxu0 0
  %1647 = vmatprep.subr.bf16.mxu0 0
  %1648 = vmatpush1.bf16.msra.mxu0 0
  %1649 = vmatprep.subr.bf16.mxu0 0
  %1650 = vmatpush1.bf16.msra.mxu0 0
  %1651 = vmatprep.subr.bf16.mxu0 0
  %1652 = vmatpush1.bf16.msra.mxu0 0
  %1653 = vmatprep.subr.bf16.mxu0 0
  %1654 = vmatpush1.bf16.msra.mxu0 0
  %1655 = vmatprep.subr.bf16.mxu0 0
  %1656 = vmatpush1.bf16.msra.mxu0 0
  %1657 = vmatprep.subr.bf16.mxu0 0
  %1658 = vmatpush1.bf16.msra.mxu0 0
  %1659 = vmatprep.subr.bf16.mxu0 0
  %1660 = vmatpush1.bf16.msra.mxu0 0
  %1661 = vmatprep.mubr.bf16.mxu0 0
  %1662 = vmatmul.mubr.bf16.gmra.mrb[0].mxu0 %v1628
  %v1663 = vpop.f32.mrb[0].mxu0
  %v1664 = vadd.f32 0.0, %v1663
  %v1665 = vpop.f32.mrb[0].mxu0
  %v1666 = vadd.f32 0.0, %v1665
  %v1667 = vpop.f32.mrb[0].mxu0
  %v1668 = vpop.f32.mrb[0].mxu0
  %1669 = vdwg.mxu0
  %1670 = vmatprep.subr.bf16.mxu0 %v177
  %1671 = vmatpush1.bf16.msra.mxu0 %v176
  %1672 = vmatprep.subr.bf16.mxu0 %v181
  %1673 = vmatpush1.bf16.msra.mxu0 %v180
  %1674 = vmatprep.subr.bf16.mxu0 %v185
  %1675 = vmatpush1.bf16.msra.mxu0 %v184
  %1676 = vmatprep.subr.bf16.mxu0 %v189
  %1677 = vmatpush1.bf16.msra.mxu0 %v188
  %1678 = vmatprep.subr.bf16.mxu0 %v193
  %1679 = vmatpush1.bf16.msra.mxu0 %v192
  %1680 = vmatprep.subr.bf16.mxu0 %v197
  %1681 = vmatpush1.bf16.msra.mxu0 %v196
  %1682 = vmatprep.subr.bf16.mxu0 %v201
  %1683 = vmatpush1.bf16.msra.mxu0 %v200
  %1684 = vmatprep.subr.bf16.mxu0 %v205
  %1685 = vmatpush1.bf16.msra.mxu0 %v204
  %1686 = vmatprep.subr.bf16.mxu0 0
  %1687 = vmatpush1.bf16.msra.mxu0 0
  %1688 = vmatprep.subr.bf16.mxu0 0
  %1689 = vmatpush1.bf16.msra.mxu0 0
  %1690 = vmatprep.subr.bf16.mxu0 0
  %1691 = vmatpush1.bf16.msra.mxu0 0
  %1692 = vmatprep.subr.bf16.mxu0 0
  %1693 = vmatpush1.bf16.msra.mxu0 0
  %1694 = vmatprep.subr.bf16.mxu0 0
  %1695 = vmatpush1.bf16.msra.mxu0 0
  %1696 = vmatprep.subr.bf16.mxu0 0
  %1697 = vmatpush1.bf16.msra.mxu0 0
  %1698 = vmatprep.subr.bf16.mxu0 0
  %1699 = vmatpush1.bf16.msra.mxu0 0
  %1700 = vmatprep.subr.bf16.mxu0 0
  %1701 = vmatpush1.bf16.msra.mxu0 0
  %1702 = vmatprep.mubr.bf16.mxu0 0
  %1703 = vmatmul.mubr.bf16.gmra.mrb[0].mxu0 %v1628
  %v1704 = vpop.f32.mrb[0].mxu0
  %v1705 = vadd.f32 0.0, %v1704
  %v1706 = vpop.f32.mrb[0].mxu0
  %v1707 = vadd.f32 0.0, %v1706
  %v1708 = vpop.f32.mrb[0].mxu0
  %v1709 = vpop.f32.mrb[0].mxu0
  %1710 = vdwg.mxu0
  %v1711 = vadd.f32 %v1611, %v1664
  %v1712 = vadd.f32 %v1612, %v1666
  %v1713 = vadd.f32 %v1613, %v1705
  %v1714 = vadd.f32 %v1614, %v1707
  %v1715 = vpack.c.bf16 %v1609, %v1609
  %1716 = vmatprep.subr.bf16.mxu0 %v453
  %1717 = vmatpush1.bf16.msra.mxu0 %v452
  %1718 = vmatprep.subr.bf16.mxu0 %v457
  %1719 = vmatpush1.bf16.msra.mxu0 %v456
  %1720 = vmatprep.subr.bf16.mxu0 %v461
  %1721 = vmatpush1.bf16.msra.mxu0 %v460
  %1722 = vmatprep.subr.bf16.mxu0 %v465
  %1723 = vmatpush1.bf16.msra.mxu0 %v464
  %1724 = vmatprep.subr.bf16.mxu0 %v469
  %1725 = vmatpush1.bf16.msra.mxu0 %v468
  %1726 = vmatprep.subr.bf16.mxu0 %v473
  %1727 = vmatpush1.bf16.msra.mxu0 %v472
  %1728 = vmatprep.subr.bf16.mxu0 %v477
  %1729 = vmatpush1.bf16.msra.mxu0 %v476
  %1730 = vmatprep.subr.bf16.mxu0 %v481
  %1731 = vmatpush1.bf16.msra.mxu0 %v480
  %1732 = vmatprep.subr.bf16.mxu0 0
  %1733 = vmatpush1.bf16.msra.mxu0 0
  %1734 = vmatprep.subr.bf16.mxu0 0
  %1735 = vmatpush1.bf16.msra.mxu0 0
  %1736 = vmatprep.subr.bf16.mxu0 0
  %1737 = vmatpush1.bf16.msra.mxu0 0
  %1738 = vmatprep.subr.bf16.mxu0 0
  %1739 = vmatpush1.bf16.msra.mxu0 0
  %1740 = vmatprep.subr.bf16.mxu0 0
  %1741 = vmatpush1.bf16.msra.mxu0 0
  %1742 = vmatprep.subr.bf16.mxu0 0
  %1743 = vmatpush1.bf16.msra.mxu0 0
  %1744 = vmatprep.subr.bf16.mxu0 0
  %1745 = vmatpush1.bf16.msra.mxu0 0
  %1746 = vmatprep.subr.bf16.mxu0 0
  %1747 = vmatpush1.bf16.msra.mxu0 0
  %1748 = vmatprep.mubr.bf16.mxu0 0
  %1749 = vmatmul.mubr.bf16.gmra.mrb[0].mxu0 %v1715
  %v1750 = vpop.f32.mrb[0].mxu0
  %v1751 = vadd.f32 0.0, %v1750
  %v1752 = vpop.f32.mrb[0].mxu0
  %v1753 = vadd.f32 0.0, %v1752
  %v1754 = vpop.f32.mrb[0].mxu0
  %v1755 = vpop.f32.mrb[0].mxu0
  %1756 = vdwg.mxu0
  %1757 = vmatprep.subr.bf16.mxu0 %v455
  %1758 = vmatpush1.bf16.msra.mxu0 %v454
  %1759 = vmatprep.subr.bf16.mxu0 %v459
  %1760 = vmatpush1.bf16.msra.mxu0 %v458
  %1761 = vmatprep.subr.bf16.mxu0 %v463
  %1762 = vmatpush1.bf16.msra.mxu0 %v462
  %1763 = vmatprep.subr.bf16.mxu0 %v467
  %1764 = vmatpush1.bf16.msra.mxu0 %v466
  %1765 = vmatprep.subr.bf16.mxu0 %v471
  %1766 = vmatpush1.bf16.msra.mxu0 %v470
  %1767 = vmatprep.subr.bf16.mxu0 %v475
  %1768 = vmatpush1.bf16.msra.mxu0 %v474
  %1769 = vmatprep.subr.bf16.mxu0 %v479
  %1770 = vmatpush1.bf16.msra.mxu0 %v478
  %1771 = vmatprep.subr.bf16.mxu0 %v483
  %1772 = vmatpush1.bf16.msra.mxu0 %v482
  %1773 = vmatprep.subr.bf16.mxu0 0
  %1774 = vmatpush1.bf16.msra.mxu0 0
  %1775 = vmatprep.subr.bf16.mxu0 0
  %1776 = vmatpush1.bf16.msra.mxu0 0
  %1777 = vmatprep.subr.bf16.mxu0 0
  %1778 = vmatpush1.bf16.msra.mxu0 0
  %1779 = vmatprep.subr.bf16.mxu0 0
  %1780 = vmatpush1.bf16.msra.mxu0 0
  %1781 = vmatprep.subr.bf16.mxu0 0
  %1782 = vmatpush1.bf16.msra.mxu0 0
  %1783 = vmatprep.subr.bf16.mxu0 0
  %1784 = vmatpush1.bf16.msra.mxu0 0
  %1785 = vmatprep.subr.bf16.mxu0 0
  %1786 = vmatpush1.bf16.msra.mxu0 0
  %1787 = vmatprep.subr.bf16.mxu0 0
  %1788 = vmatpush1.bf16.msra.mxu0 0
  %1789 = vmatprep.mubr.bf16.mxu0 0
  %1790 = vmatmul.mubr.bf16.gmra.mrb[0].mxu0 %v1715
  %v1791 = vpop.f32.mrb[0].mxu0
  %v1792 = vadd.f32 0.0, %v1791
  %v1793 = vpop.f32.mrb[0].mxu0
  %v1794 = vadd.f32 0.0, %v1793
  %v1795 = vpop.f32.mrb[0].mxu0
  %v1796 = vpop.f32.mrb[0].mxu0
  %1797 = vdwg.mxu0
  %v1798 = vadd.f32 %v1624, %v1751
  %v1799 = vadd.f32 %v1625, %v1753
  %v1800 = vadd.f32 %v1626, %v1792
  %v1801 = vadd.f32 %v1627, %v1794
  %v1802 = vxor.u32 %v1711, 2147483648
  %v1803 = vmul.f32 %v1802, 1.442695
  %v1804 = vpow.pop %v1803
  %v1805 = vadd.f32 %v1804, 1.0
  %v1806 = vrcp.pop %v1805
  %v1807 = vmul.f32 1.0, %v1806
  %v1808 = vxor.u32 %v1712, 2147483648
  %v1809 = vmul.f32 %v1808, 1.442695
  %v1810 = vpow.pop %v1809
  %v1811 = vadd.f32 %v1810, 1.0
  %v1812 = vrcp.pop %v1811
  %v1813 = vmul.f32 1.0, %v1812
  %v1814 = vtanh.pop %v1713
  %v1815 = vxor.u32 %v1714, 2147483648
  %v1816 = vmul.f32 %v1815, 1.442695
  %v1817 = vpow.pop %v1816
  %v1818 = vadd.f32 %v1817, 1.0
  %v1819 = vrcp.pop %v1818
  %v1820 = vmul.f32 1.0, %v1819
  %v1821 = vmul.f32 %v1813, %v1583
  %v1822 = vmul.f32 %v1807, %v1814
  %v1823 = vadd.f32 %v1821, %v1822
  %v1824 = vtanh.pop %v1823
  %v1825 = vmul.f32 %v1820, %v1824
  %v1826 = vxor.u32 %v1798, 2147483648
  %v1827 = vmul.f32 %v1826, 1.442695
  %v1828 = vpow.pop %v1827
  %v1829 = vadd.f32 %v1828, 1.0
  %v1830 = vrcp.pop %v1829
  %v1831 = vmul.f32 1.0, %v1830
  %v1832 = vxor.u32 %v1799, 2147483648
  %v1833 = vmul.f32 %v1832, 1.442695
  %v1834 = vpow.pop %v1833
  %v1835 = vadd.f32 %v1834, 1.0
  %v1836 = vrcp.pop %v1835
  %v1837 = vmul.f32 1.0, %v1836
  %v1838 = vtanh.pop %v1800
  %v1839 = vxor.u32 %v1801, 2147483648
  %v1840 = vmul.f32 %v1839, 1.442695
  %v1841 = vpow.pop %v1840
  %v1842 = vadd.f32 %v1841, 1.0
  %v1843 = vrcp.pop %v1842
  %v1844 = vmul.f32 1.0, %v1843
  %v1845 = vmul.f32 %v1837, %v1607
  %v1846 = vmul.f32 %v1831, %v1838
  %v1847 = vadd.f32 %v1845, %v1846
  %v1848 = vtanh.pop %v1847
  %v1849 = vmul.f32 %v1844, %v1848
  %v1850 = vpack.c.bf16 %v1825, %v1825
  %1851 = vmatprep.subr.bf16.mxu0 %v175
  %1852 = vmatpush1.bf16.msra.mxu0 %v174
  %1853 = vmatprep.subr.bf16.mxu0 %v179
  %1854 = vmatpush1.bf16.msra.mxu0 %v178
  %1855 = vmatprep.subr.bf16.mxu0 %v183
  %1856 = vmatpush1.bf16.msra.mxu0 %v182
  %1857 = vmatprep.subr.bf16.mxu0 %v187
  %1858 = vmatpush1.bf16.msra.mxu0 %v186
  %1859 = vmatprep.subr.bf16.mxu0 %v191
  %1860 = vmatpush1.bf16.msra.mxu0 %v190
  %1861 = vmatprep.subr.bf16.mxu0 %v195
  %1862 = vmatpush1.bf16.msra.mxu0 %v194
  %1863 = vmatprep.subr.bf16.mxu0 %v199
  %1864 = vmatpush1.bf16.msra.mxu0 %v198
  %1865 = vmatprep.subr.bf16.mxu0 %v203
  %1866 = vmatpush1.bf16.msra.mxu0 %v202
  %1867 = vmatprep.subr.bf16.mxu0 0
  %1868 = vmatpush1.bf16.msra.mxu0 0
  %1869 = vmatprep.subr.bf16.mxu0 0
  %1870 = vmatpush1.bf16.msra.mxu0 0
  %1871 = vmatprep.subr.bf16.mxu0 0
  %1872 = vmatpush1.bf16.msra.mxu0 0
  %1873 = vmatprep.subr.bf16.mxu0 0
  %1874 = vmatpush1.bf16.msra.mxu0 0
  %1875 = vmatprep.subr.bf16.mxu0 0
  %1876 = vmatpush1.bf16.msra.mxu0 0
  %1877 = vmatprep.subr.bf16.mxu0 0
  %1878 = vmatpush1.bf16.msra.mxu0 0
  %1879 = vmatprep.subr.bf16.mxu0 0
  %1880 = vmatpush1.bf16.msra.mxu0 0
  %1881 = vmatprep.subr.bf16.mxu0 0
  %1882 = vmatpush1.bf16.msra.mxu0 0
  %1883 = vmatprep.mubr.bf16.mxu0 0
  %1884 = vmatmul.mubr.bf16.gmra.mrb[0].mxu0 %v1850
  %v1885 = vpop.f32.mrb[0].mxu0
  %v1886 = vadd.f32 0.0, %v1885
  %v1887 = vpop.f32.mrb[0].mxu0
  %v1888 = vadd.f32 0.0, %v1887
  %v1889 = vpop.f32.mrb[0].mxu0
  %v1890 = vpop.f32.mrb[0].mxu0
  %1891 = vdwg.mxu0
  %1892 = vmatprep.subr.bf16.mxu0 %v177
  %1893 = vmatpush1.bf16.msra.mxu0 %v176
  %1894 = vmatprep.subr.bf16.mxu0 %v181
  %1895 = vmatpush1.bf16.msra.mxu0 %v180
  %1896 = vmatprep.subr.bf16.mxu0 %v185
  %1897 = vmatpush1.bf16.msra.mxu0 %v184
  %1898 = vmatprep.subr.bf16.mxu0 %v189
  %1899 = vmatpush1.bf16.msra.mxu0 %v188
  %1900 = vmatprep.subr.bf16.mxu0 %v193
  %1901 = vmatpush1.bf16.msra.mxu0 %v192
  %1902 = vmatprep.subr.bf16.mxu0 %v197
  %1903 = vmatpush1.bf16.msra.mxu0 %v196
  %1904 = vmatprep.subr.bf16.mxu0 %v201
  %1905 = vmatpush1.bf16.msra.mxu0 %v200
  %1906 = vmatprep.subr.bf16.mxu0 %v205
  %1907 = vmatpush1.bf16.msra.mxu0 %v204
  %1908 = vmatprep.subr.bf16.mxu0 0
  %1909 = vmatpush1.bf16.msra.mxu0 0
  %1910 = vmatprep.subr.bf16.mxu0 0
  %1911 = vmatpush1.bf16.msra.mxu0 0
  %1912 = vmatprep.subr.bf16.mxu0 0
  %1913 = vmatpush1.bf16.msra.mxu0 0
  %1914 = vmatprep.subr.bf16.mxu0 0
  %1915 = vmatpush1.bf16.msra.mxu0 0
  %1916 = vmatprep.subr.bf16.mxu0 0
  %1917 = vmatpush1.bf16.msra.mxu0 0
  %1918 = vmatprep.subr.bf16.mxu0 0
  %1919 = vmatpush1.bf16.msra.mxu0 0
  %1920 = vmatprep.subr.bf16.mxu0 0
  %1921 = vmatpush1.bf16.msra.mxu0 0
  %1922 = vmatprep.subr.bf16.mxu0 0
  %1923 = vmatpush1.bf16.msra.mxu0 0
  %1924 = vmatprep.mubr.bf16.mxu0 0
  %1925 = vmatmul.mubr.bf16.gmra.mrb[0].mxu0 %v1850
  %v1926 = vpop.f32.mrb[0].mxu0
  %v1927 = vadd.f32 0.0, %v1926
  %v1928 = vpop.f32.mrb[0].mxu0
  %v1929 = vadd.f32 0.0, %v1928
  %v1930 = vpop.f32.mrb[0].mxu0
  %v1931 = vpop.f32.mrb[0].mxu0
  %1932 = vdwg.mxu0
  %v1933 = vadd.f32 %v1620, %v1886
  %v1934 = vadd.f32 %v1621, %v1888
  %v1935 = vadd.f32 %v1622, %v1927
  %v1936 = vadd.f32 %v1623, %v1929
  %v1937 = vpack.c.bf16 %v1849, %v1849
  %1938 = vmatprep.subr.bf16.mxu0 %v453
  %1939 = vmatpush1.bf16.msra.mxu0 %v452
  %1940 = vmatprep.subr.bf16.mxu0 %v457
  %1941 = vmatpush1.bf16.msra.mxu0 %v456
  %1942 = vmatprep.subr.bf16.mxu0 %v461
  %1943 = vmatpush1.bf16.msra.mxu0 %v460
  %1944 = vmatprep.subr.bf16.mxu0 %v465
  %1945 = vmatpush1.bf16.msra.mxu0 %v464
  %1946 = vmatprep.subr.bf16.mxu0 %v469
  %1947 = vmatpush1.bf16.msra.mxu0 %v468
  %1948 = vmatprep.subr.bf16.mxu0 %v473
  %1949 = vmatpush1.bf16.msra.mxu0 %v472
  %1950 = vmatprep.subr.bf16.mxu0 %v477
  %1951 = vmatpush1.bf16.msra.mxu0 %v476
  %1952 = vmatprep.subr.bf16.mxu0 %v481
  %1953 = vmatpush1.bf16.msra.mxu0 %v480
  %1954 = vmatprep.subr.bf16.mxu0 0
  %1955 = vmatpush1.bf16.msra.mxu0 0
  %1956 = vmatprep.subr.bf16.mxu0 0
  %1957 = vmatpush1.bf16.msra.mxu0 0
  %1958 = vmatprep.subr.bf16.mxu0 0
  %1959 = vmatpush1.bf16.msra.mxu0 0
  %1960 = vmatprep.subr.bf16.mxu0 0
  %1961 = vmatpush1.bf16.msra.mxu0 0
  %1962 = vmatprep.subr.bf16.mxu0 0
  %1963 = vmatpush1.bf16.msra.mxu0 0
  %1964 = vmatprep.subr.bf16.mxu0 0
  %1965 = vmatpush1.bf16.msra.mxu0 0
  %1966 = vmatprep.subr.bf16.mxu0 0
  %1967 = vmatpush1.bf16.msra.mxu0 0
  %1968 = vmatprep.subr.bf16.mxu0 0
  %1969 = vmatpush1.bf16.msra.mxu0 0
  %1970 = vmatprep.mubr.bf16.mxu0 0
  %1971 = vmatmul.mubr.bf16.gmra.mrb[0].mxu0 %v1937
  %v1972 = vpop.f32.mrb[0].mxu0
  %v1973 = vadd.f32 0.0, %v1972
  %v1974 = vpop.f32.mrb[0].mxu0
  %v1975 = vadd.f32 0.0, %v1974
  %v1976 = vpop.f32.mrb[0].mxu0
  %v1977 = vpop.f32.mrb[0].mxu0
  %1978 = vdwg.mxu0
  %1979 = vmatprep.subr.bf16.mxu0 %v455
  %1980 = vmatpush1.bf16.msra.mxu0 %v454
  %1981 = vmatprep.subr.bf16.mxu0 %v459
  %1982 = vmatpush1.bf16.msra.mxu0 %v458
  %1983 = vmatprep.subr.bf16.mxu0 %v463
  %1984 = vmatpush1.bf16.msra.mxu0 %v462
  %1985 = vmatprep.subr.bf16.mxu0 %v467
  %1986 = vmatpush1.bf16.msra.mxu0 %v466
  %1987 = vmatprep.subr.bf16.mxu0 %v471
  %1988 = vmatpush1.bf16.msra.mxu0 %v470
  %1989 = vmatprep.subr.bf16.mxu0 %v475
  %1990 = vmatpush1.bf16.msra.mxu0 %v474
  %1991 = vmatprep.subr.bf16.mxu0 %v479
  %1992 = vmatpush1.bf16.msra.mxu0 %v478
  %1993 = vmatprep.subr.bf16.mxu0 %v483
  %1994 = vmatpush1.bf16.msra.mxu0 %v482
  %1995 = vmatprep.subr.bf16.mxu0 0
  %1996 = vmatpush1.bf16.msra.mxu0 0
  %1997 = vmatprep.subr.bf16.mxu0 0
  %1998 = vmatpush1.bf16.msra.mxu0 0
  %1999 = vmatprep.subr.bf16.mxu0 0
  %2000 = vmatpush1.bf16.msra.mxu0 0
  %2001 = vmatprep.subr.bf16.mxu0 0
  %2002 = vmatpush1.bf16.msra.mxu0 0
  %2003 = vmatprep.subr.bf16.mxu0 0
  %2004 = vmatpush1.bf16.msra.mxu0 0
  %2005 = vmatprep.subr.bf16.mxu0 0
  %2006 = vmatpush1.bf16.msra.mxu0 0
  %2007 = vmatprep.subr.bf16.mxu0 0
  %2008 = vmatpush1.bf16.msra.mxu0 0
  %2009 = vmatprep.subr.bf16.mxu0 0
  %2010 = vmatpush1.bf16.msra.mxu0 0
  %2011 = vmatprep.mubr.bf16.mxu0 0
  %2012 = vmatmul.mubr.bf16.gmra.mrb[0].mxu0 %v1937
  %v2013 = vpop.f32.mrb[0].mxu0
  %v2014 = vadd.f32 0.0, %v2013
  %v2015 = vpop.f32.mrb[0].mxu0
  %v2016 = vadd.f32 0.0, %v2015
  %v2017 = vpop.f32.mrb[0].mxu0
  %v2018 = vpop.f32.mrb[0].mxu0
  %2019 = vdwg.mxu0
  %v2020 = vadd.f32 %v1615, %v1973
  %v2021 = vadd.f32 %v1616, %v1975
  %v2022 = vadd.f32 %v1617, %v2014
  %v2023 = vadd.f32 %v1618, %v2016
  %v2024 = vxor.u32 %v1933, 2147483648
  %v2025 = vmul.f32 %v2024, 1.442695
  %v2026 = vpow.pop %v2025
  %v2027 = vadd.f32 %v2026, 1.0
  %v2028 = vrcp.pop %v2027
  %v2029 = vmul.f32 1.0, %v2028
  %v2030 = vxor.u32 %v1934, 2147483648
  %v2031 = vmul.f32 %v2030, 1.442695
  %v2032 = vpow.pop %v2031
  %v2033 = vadd.f32 %v2032, 1.0
  %v2034 = vrcp.pop %v2033
  %v2035 = vmul.f32 1.0, %v2034
  %v2036 = vtanh.pop %v1935
  %v2037 = vxor.u32 %v1936, 2147483648
  %v2038 = vmul.f32 %v2037, 1.442695
  %v2039 = vpow.pop %v2038
  %v2040 = vadd.f32 %v2039, 1.0
  %v2041 = vrcp.pop %v2040
  %v2042 = vmul.f32 1.0, %v2041
  %v2043 = vmul.f32 %v2035, %v1823
  %v2044 = vmul.f32 %v2029, %v2036
  %v2045 = vadd.f32 %v2043, %v2044
  %v2046 = vtanh.pop %v2045
  %v2047 = vmul.f32 %v2042, %v2046
  %v2048 = vxor.u32 %v2020, 2147483648
  %v2049 = vmul.f32 %v2048, 1.442695
  %v2050 = vpow.pop %v2049
  %v2051 = vadd.f32 %v2050, 1.0
  %v2052 = vrcp.pop %v2051
  %v2053 = vmul.f32 1.0, %v2052
  %v2054 = vxor.u32 %v2021, 2147483648
  %v2055 = vmul.f32 %v2054, 1.442695
  %v2056 = vpow.pop %v2055
  %v2057 = vadd.f32 %v2056, 1.0
  %v2058 = vrcp.pop %v2057
  %v2059 = vmul.f32 1.0, %v2058
  %v2060 = vtanh.pop %v2022
  %v2061 = vxor.u32 %v2023, 2147483648
  %v2062 = vmul.f32 %v2061, 1.442695
  %v2063 = vpow.pop %v2062
  %v2064 = vadd.f32 %v2063, 1.0
  %v2065 = vrcp.pop %v2064
  %v2066 = vmul.f32 1.0, %v2065
  %v2067 = vmul.f32 %v2059, %v1847
  %v2068 = vmul.f32 %v2053, %v2060
  %v2069 = vadd.f32 %v2067, %v2068
  %v2070 = vtanh.pop %v2069
  %v2071 = vmul.f32 %v2066, %v2070
  %v2072 = vpack.c.bf16 %v2047, %v2047
  %2073 = vmatprep.subr.bf16.mxu0 %v175
  %2074 = vmatpush1.bf16.msra.mxu0 %v174
  %2075 = vmatprep.subr.bf16.mxu0 %v179
  %2076 = vmatpush1.bf16.msra.mxu0 %v178
  %2077 = vmatprep.subr.bf16.mxu0 %v183
  %2078 = vmatpush1.bf16.msra.mxu0 %v182
  %2079 = vmatprep.subr.bf16.mxu0 %v187
  %2080 = vmatpush1.bf16.msra.mxu0 %v186
  %2081 = vmatprep.subr.bf16.mxu0 %v191
  %2082 = vmatpush1.bf16.msra.mxu0 %v190
  %2083 = vmatprep.subr.bf16.mxu0 %v195
  %2084 = vmatpush1.bf16.msra.mxu0 %v194
  %2085 = vmatprep.subr.bf16.mxu0 %v199
  %2086 = vmatpush1.bf16.msra.mxu0 %v198
  %2087 = vmatprep.subr.bf16.mxu0 %v203
  %2088 = vmatpush1.bf16.msra.mxu0 %v202
  %2089 = vmatprep.subr.bf16.mxu0 0
  %2090 = vmatpush1.bf16.msra.mxu0 0
  %2091 = vmatprep.subr.bf16.mxu0 0
  %2092 = vmatpush1.bf16.msra.mxu0 0
  %2093 = vmatprep.subr.bf16.mxu0 0
  %2094 = vmatpush1.bf16.msra.mxu0 0
  %2095 = vmatprep.subr.bf16.mxu0 0
  %2096 = vmatpush1.bf16.msra.mxu0 0
  %2097 = vmatprep.subr.bf16.mxu0 0
  %2098 = vmatpush1.bf16.msra.mxu0 0
  %2099 = vmatprep.subr.bf16.mxu0 0
  %2100 = vmatpush1.bf16.msra.mxu0 0
  %2101 = vmatprep.subr.bf16.mxu0 0
  %2102 = vmatpush1.bf16.msra.mxu0 0
  %2103 = vmatprep.subr.bf16.mxu0 0
  %2104 = vmatpush1.bf16.msra.mxu0 0
  %2105 = vmatprep.mubr.bf16.mxu0 0
  %2106 = vmatmul.mubr.bf16.gmra.mrb[0].mxu0 %v2072
  %v2107 = vpop.f32.mrb[0].mxu0
  %v2108 = vadd.f32 0.0, %v2107
  %v2109 = vpop.f32.mrb[0].mxu0
  %v2110 = vadd.f32 0.0, %v2109
  %v2111 = vpop.f32.mrb[0].mxu0
  %v2112 = vpop.f32.mrb[0].mxu0
  %2113 = vdwg.mxu0
  %2114 = vmatprep.subr.bf16.mxu0 %v177
  %2115 = vmatpush1.bf16.msra.mxu0 %v176
  %2116 = vmatprep.subr.bf16.mxu0 %v181
  %2117 = vmatpush1.bf16.msra.mxu0 %v180
  %2118 = vmatprep.subr.bf16.mxu0 %v185
  %2119 = vmatpush1.bf16.msra.mxu0 %v184
  %2120 = vmatprep.subr.bf16.mxu0 %v189
  %2121 = vmatpush1.bf16.msra.mxu0 %v188
  %2122 = vmatprep.subr.bf16.mxu0 %v193
  %2123 = vmatpush1.bf16.msra.mxu0 %v192
  %2124 = vmatprep.subr.bf16.mxu0 %v197
  %2125 = vmatpush1.bf16.msra.mxu0 %v196
  %2126 = vmatprep.subr.bf16.mxu0 %v201
  %2127 = vmatpush1.bf16.msra.mxu0 %v200
  %2128 = vmatprep.subr.bf16.mxu0 %v205
  %2129 = vmatpush1.bf16.msra.mxu0 %v204
  %2130 = vmatprep.subr.bf16.mxu0 0
  %2131 = vmatpush1.bf16.msra.mxu0 0
  %2132 = vmatprep.subr.bf16.mxu0 0
  %2133 = vmatpush1.bf16.msra.mxu0 0
  %2134 = vmatprep.subr.bf16.mxu0 0
  %2135 = vmatpush1.bf16.msra.mxu0 0
  %2136 = vmatprep.subr.bf16.mxu0 0
  %2137 = vmatpush1.bf16.msra.mxu0 0
  %2138 = vmatprep.subr.bf16.mxu0 0
  %2139 = vmatpush1.bf16.msra.mxu0 0
  %2140 = vmatprep.subr.bf16.mxu0 0
  %2141 = vmatpush1.bf16.msra.mxu0 0
  %2142 = vmatprep.subr.bf16.mxu0 0
  %2143 = vmatpush1.bf16.msra.mxu0 0
  %2144 = vmatprep.subr.bf16.mxu0 0
  %2145 = vmatpush1.bf16.msra.mxu0 0
  %2146 = vmatprep.mubr.bf16.mxu0 0
  %2147 = vmatmul.mubr.bf16.gmra.mrb[0].mxu0 %v2072
  %v2148 = vpop.f32.mrb[0].mxu0
  %v2149 = vadd.f32 0.0, %v2148
  %v2150 = vpop.f32.mrb[0].mxu0
  %v2151 = vadd.f32 0.0, %v2150
  %v2152 = vpop.f32.mrb[0].mxu0
  %v2153 = vpop.f32.mrb[0].mxu0
  %2154 = vdwg.mxu0
  %v2155 = vadd.f32 %v1380, %v2108
  %v2156 = vadd.f32 %v1381, %v2110
  %v2157 = vadd.f32 %v1382, %v2149
  %v2158 = vadd.f32 %v1383, %v2151
  %v2159 = vpack.c.bf16 %v2071, %v2071
  %2160 = vmatprep.subr.bf16.mxu0 %v453
  %2161 = vmatpush1.bf16.msra.mxu0 %v452
  %2162 = vmatprep.subr.bf16.mxu0 %v457
  %2163 = vmatpush1.bf16.msra.mxu0 %v456
  %2164 = vmatprep.subr.bf16.mxu0 %v461
  %2165 = vmatpush1.bf16.msra.mxu0 %v460
  %2166 = vmatprep.subr.bf16.mxu0 %v465
  %2167 = vmatpush1.bf16.msra.mxu0 %v464
  %2168 = vmatprep.subr.bf16.mxu0 %v469
  %2169 = vmatpush1.bf16.msra.mxu0 %v468
  %2170 = vmatprep.subr.bf16.mxu0 %v473
  %2171 = vmatpush1.bf16.msra.mxu0 %v472
  %2172 = vmatprep.subr.bf16.mxu0 %v477
  %2173 = vmatpush1.bf16.msra.mxu0 %v476
  %2174 = vmatprep.subr.bf16.mxu0 %v481
  %2175 = vmatpush1.bf16.msra.mxu0 %v480
  %2176 = vmatprep.subr.bf16.mxu0 0
  %2177 = vmatpush1.bf16.msra.mxu0 0
  %2178 = vmatprep.subr.bf16.mxu0 0
  %2179 = vmatpush1.bf16.msra.mxu0 0
  %2180 = vmatprep.subr.bf16.mxu0 0
  %2181 = vmatpush1.bf16.msra.mxu0 0
  %2182 = vmatprep.subr.bf16.mxu0 0
  %2183 = vmatpush1.bf16.msra.mxu0 0
  %2184 = vmatprep.subr.bf16.mxu0 0
  %2185 = vmatpush1.bf16.msra.mxu0 0
  %2186 = vmatprep.subr.bf16.mxu0 0
  %2187 = vmatpush1.bf16.msra.mxu0 0
  %2188 = vmatprep.subr.bf16.mxu0 0
  %2189 = vmatpush1.bf16.msra.mxu0 0
  %2190 = vmatprep.subr.bf16.mxu0 0
  %2191 = vmatpush1.bf16.msra.mxu0 0
  %2192 = vmatprep.mubr.bf16.mxu0 0
  %2193 = vmatmul.mubr.bf16.gmra.mrb[0].mxu0 %v2159
  %v2194 = vpop.f32.mrb[0].mxu0
  %v2195 = vadd.f32 0.0, %v2194
  %v2196 = vpop.f32.mrb[0].mxu0
  %v2197 = vadd.f32 0.0, %v2196
  %v2198 = vpop.f32.mrb[0].mxu0
  %v2199 = vpop.f32.mrb[0].mxu0
  %2200 = vdwg.mxu0
  %2201 = vmatprep.subr.bf16.mxu0 %v455
  %2202 = vmatpush1.bf16.msra.mxu0 %v454
  %2203 = vmatprep.subr.bf16.mxu0 %v459
  %2204 = vmatpush1.bf16.msra.mxu0 %v458
  %2205 = vmatprep.subr.bf16.mxu0 %v463
  %2206 = vmatpush1.bf16.msra.mxu0 %v462
  %2207 = vmatprep.subr.bf16.mxu0 %v467
  %2208 = vmatpush1.bf16.msra.mxu0 %v466
  %2209 = vmatprep.subr.bf16.mxu0 %v471
  %2210 = vmatpush1.bf16.msra.mxu0 %v470
  %2211 = vmatprep.subr.bf16.mxu0 %v475
  %2212 = vmatpush1.bf16.msra.mxu0 %v474
  %2213 = vmatprep.subr.bf16.mxu0 %v479
  %2214 = vmatpush1.bf16.msra.mxu0 %v478
  %2215 = vmatprep.subr.bf16.mxu0 %v483
  %2216 = vmatpush1.bf16.msra.mxu0 %v482
  %2217 = vmatprep.subr.bf16.mxu0 0
  %2218 = vmatpush1.bf16.msra.mxu0 0
  %2219 = vmatprep.subr.bf16.mxu0 0
  %2220 = vmatpush1.bf16.msra.mxu0 0
  %2221 = vmatprep.subr.bf16.mxu0 0
  %2222 = vmatpush1.bf16.msra.mxu0 0
  %2223 = vmatprep.subr.bf16.mxu0 0
  %2224 = vmatpush1.bf16.msra.mxu0 0
  %2225 = vmatprep.subr.bf16.mxu0 0
  %2226 = vmatpush1.bf16.msra.mxu0 0
  %2227 = vmatprep.subr.bf16.mxu0 0
  %2228 = vmatpush1.bf16.msra.mxu0 0
  %2229 = vmatprep.subr.bf16.mxu0 0
  %2230 = vmatpush1.bf16.msra.mxu0 0
  %2231 = vmatprep.subr.bf16.mxu0 0
  %2232 = vmatpush1.bf16.msra.mxu0 0
  %2233 = vmatprep.mubr.bf16.mxu0 0
  %2234 = vmatmul.mubr.bf16.gmra.mrb[0].mxu0 %v2159
  %v2235 = vpop.f32.mrb[0].mxu0
  %v2236 = vadd.f32 0.0, %v2235
  %v2237 = vpop.f32.mrb[0].mxu0
  %v2238 = vadd.f32 0.0, %v2237
  %v2239 = vpop.f32.mrb[0].mxu0
  %v2240 = vpop.f32.mrb[0].mxu0
  %2241 = vdwg.mxu0
  %v2242 = vadd.f32 %v1375, %v2195
  %v2243 = vadd.f32 %v1376, %v2197
  %v2244 = vadd.f32 %v1377, %v2236
  %v2245 = vadd.f32 %v1378, %v2238
  %v2246 = vxor.u32 %v2155, 2147483648
  %v2247 = vmul.f32 %v2246, 1.442695
  %v2248 = vpow.pop %v2247
  %v2249 = vadd.f32 %v2248, 1.0
  %v2250 = vrcp.pop %v2249
  %v2251 = vmul.f32 1.0, %v2250
  %v2252 = vxor.u32 %v2156, 2147483648
  %v2253 = vmul.f32 %v2252, 1.442695
  %v2254 = vpow.pop %v2253
  %v2255 = vadd.f32 %v2254, 1.0
  %v2256 = vrcp.pop %v2255
  %v2257 = vmul.f32 1.0, %v2256
  %v2258 = vtanh.pop %v2157
  %v2259 = vxor.u32 %v2158, 2147483648
  %v2260 = vmul.f32 %v2259, 1.442695
  %v2261 = vpow.pop %v2260
  %v2262 = vadd.f32 %v2261, 1.0
  %v2263 = vrcp.pop %v2262
  %v2264 = vmul.f32 1.0, %v2263
  %v2265 = vmul.f32 %v2257, %v2045
  %v2266 = vmul.f32 %v2251, %v2258
  %v2267 = vadd.f32 %v2265, %v2266
  %v2268 = vtanh.pop %v2267
  %v2269 = vmul.f32 %v2264, %v2268
  %v2270 = vxor.u32 %v2242, 2147483648
  %v2271 = vmul.f32 %v2270, 1.442695
  %v2272 = vpow.pop %v2271
  %v2273 = vadd.f32 %v2272, 1.0
  %v2274 = vrcp.pop %v2273
  %v2275 = vmul.f32 1.0, %v2274
  %v2276 = vxor.u32 %v2243, 2147483648
  %v2277 = vmul.f32 %v2276, 1.442695
  %v2278 = vpow.pop %v2277
  %v2279 = vadd.f32 %v2278, 1.0
  %v2280 = vrcp.pop %v2279
  %v2281 = vmul.f32 1.0, %v2280
  %v2282 = vtanh.pop %v2244
  %v2283 = vxor.u32 %v2245, 2147483648
  %v2284 = vmul.f32 %v2283, 1.442695
  %v2285 = vpow.pop %v2284
  %v2286 = vadd.f32 %v2285, 1.0
  %v2287 = vrcp.pop %v2286
  %v2288 = vmul.f32 1.0, %v2287
  %v2289 = vmul.f32 %v2281, %v2069
  %v2290 = vmul.f32 %v2275, %v2282
  %v2291 = vadd.f32 %v2289, %v2290
  %v2292 = vtanh.pop %v2291
  %v2293 = vmul.f32 %v2288, %v2292
  %v2294 = vpack.c.bf16 %v2269, %v2269
  %2295 = vmatprep.subr.bf16.mxu0 %v175
  %2296 = vmatpush1.bf16.msra.mxu0 %v174
  %2297 = vmatprep.subr.bf16.mxu0 %v179
  %2298 = vmatpush1.bf16.msra.mxu0 %v178
  %2299 = vmatprep.subr.bf16.mxu0 %v183
  %2300 = vmatpush1.bf16.msra.mxu0 %v182
  %2301 = vmatprep.subr.bf16.mxu0 %v187
  %2302 = vmatpush1.bf16.msra.mxu0 %v186
  %2303 = vmatprep.subr.bf16.mxu0 %v191
  %2304 = vmatpush1.bf16.msra.mxu0 %v190
  %2305 = vmatprep.subr.bf16.mxu0 %v195
  %2306 = vmatpush1.bf16.msra.mxu0 %v194
  %2307 = vmatprep.subr.bf16.mxu0 %v199
  %2308 = vmatpush1.bf16.msra.mxu0 %v198
  %2309 = vmatprep.subr.bf16.mxu0 %v203
  %2310 = vmatpush1.bf16.msra.mxu0 %v202
  %2311 = vmatprep.subr.bf16.mxu0 0
  %2312 = vmatpush1.bf16.msra.mxu0 0
  %2313 = vmatprep.subr.bf16.mxu0 0
  %2314 = vmatpush1.bf16.msra.mxu0 0
  %2315 = vmatprep.subr.bf16.mxu0 0
  %2316 = vmatpush1.bf16.msra.mxu0 0
  %2317 = vmatprep.subr.bf16.mxu0 0
  %2318 = vmatpush1.bf16.msra.mxu0 0
  %2319 = vmatprep.subr.bf16.mxu0 0
  %2320 = vmatpush1.bf16.msra.mxu0 0
  %2321 = vmatprep.subr.bf16.mxu0 0
  %2322 = vmatpush1.bf16.msra.mxu0 0
  %2323 = vmatprep.subr.bf16.mxu0 0
  %2324 = vmatpush1.bf16.msra.mxu0 0
  %2325 = vmatprep.subr.bf16.mxu0 0
  %2326 = vmatpush1.bf16.msra.mxu0 0
  %2327 = vmatprep.mubr.bf16.mxu0 0
  %2328 = vmatmul.mubr.bf16.gmra.mrb[0].mxu0 %v2294
  %v2329 = vpop.f32.mrb[0].mxu0
  %v2330 = vadd.f32 0.0, %v2329
  %v2331 = vpop.f32.mrb[0].mxu0
  %v2332 = vadd.f32 0.0, %v2331
  %v2333 = vpop.f32.mrb[0].mxu0
  %v2334 = vpop.f32.mrb[0].mxu0
  %2335 = vdwg.mxu0
  %2336 = vmatprep.subr.bf16.mxu0 %v177
  %2337 = vmatpush1.bf16.msra.mxu0 %v176
  %2338 = vmatprep.subr.bf16.mxu0 %v181
  %2339 = vmatpush1.bf16.msra.mxu0 %v180
  %2340 = vmatprep.subr.bf16.mxu0 %v185
  %2341 = vmatpush1.bf16.msra.mxu0 %v184
  %2342 = vmatprep.subr.bf16.mxu0 %v189
  %2343 = vmatpush1.bf16.msra.mxu0 %v188
  %2344 = vmatprep.subr.bf16.mxu0 %v193
  %2345 = vmatpush1.bf16.msra.mxu0 %v192
  %2346 = vmatprep.subr.bf16.mxu0 %v197
  %2347 = vmatpush1.bf16.msra.mxu0 %v196
  %2348 = vmatprep.subr.bf16.mxu0 %v201
  %2349 = vmatpush1.bf16.msra.mxu0 %v200
  %2350 = vmatprep.subr.bf16.mxu0 %v205
  %2351 = vmatpush1.bf16.msra.mxu0 %v204
  %2352 = vmatprep.subr.bf16.mxu0 0
  %2353 = vmatpush1.bf16.msra.mxu0 0
  %2354 = vmatprep.subr.bf16.mxu0 0
  %2355 = vmatpush1.bf16.msra.mxu0 0
  %2356 = vmatprep.subr.bf16.mxu0 0
  %2357 = vmatpush1.bf16.msra.mxu0 0
  %2358 = vmatprep.subr.bf16.mxu0 0
  %2359 = vmatpush1.bf16.msra.mxu0 0
  %2360 = vmatprep.subr.bf16.mxu0 0
  %2361 = vmatpush1.bf16.msra.mxu0 0
  %2362 = vmatprep.subr.bf16.mxu0 0
  %2363 = vmatpush1.bf16.msra.mxu0 0
  %2364 = vmatprep.subr.bf16.mxu0 0
  %2365 = vmatpush1.bf16.msra.mxu0 0
  %2366 = vmatprep.subr.bf16.mxu0 0
  %2367 = vmatpush1.bf16.msra.mxu0 0
  %2368 = vmatprep.mubr.bf16.mxu0 0
  %2369 = vmatmul.mubr.bf16.gmra.mrb[0].mxu0 %v2294
  %v2370 = vpop.f32.mrb[0].mxu0
  %v2371 = vadd.f32 0.0, %v2370
  %v2372 = vpop.f32.mrb[0].mxu0
  %v2373 = vadd.f32 0.0, %v2372
  %v2374 = vpop.f32.mrb[0].mxu0
  %v2375 = vpop.f32.mrb[0].mxu0
  %2376 = vdwg.mxu0
  %v2377 = vadd.f32 %v1140, %v2330
  %v2378 = vadd.f32 %v1141, %v2332
  %v2379 = vadd.f32 %v1142, %v2371
  %v2380 = vadd.f32 %v1143, %v2373
  %v2381 = vpack.c.bf16 %v2293, %v2293
  %2382 = vmatprep.subr.bf16.mxu0 %v453
  %2383 = vmatpush1.bf16.msra.mxu0 %v452
  %2384 = vmatprep.subr.bf16.mxu0 %v457
  %2385 = vmatpush1.bf16.msra.mxu0 %v456
  %2386 = vmatprep.subr.bf16.mxu0 %v461
  %2387 = vmatpush1.bf16.msra.mxu0 %v460
  %2388 = vmatprep.subr.bf16.mxu0 %v465
  %2389 = vmatpush1.bf16.msra.mxu0 %v464
  %2390 = vmatprep.subr.bf16.mxu0 %v469
  %2391 = vmatpush1.bf16.msra.mxu0 %v468
  %2392 = vmatprep.subr.bf16.mxu0 %v473
  %2393 = vmatpush1.bf16.msra.mxu0 %v472
  %2394 = vmatprep.subr.bf16.mxu0 %v477
  %2395 = vmatpush1.bf16.msra.mxu0 %v476
  %2396 = vmatprep.subr.bf16.mxu0 %v481
  %2397 = vmatpush1.bf16.msra.mxu0 %v480
  %2398 = vmatprep.subr.bf16.mxu0 0
  %2399 = vmatpush1.bf16.msra.mxu0 0
  %2400 = vmatprep.subr.bf16.mxu0 0
  %2401 = vmatpush1.bf16.msra.mxu0 0
  %2402 = vmatprep.subr.bf16.mxu0 0
  %2403 = vmatpush1.bf16.msra.mxu0 0
  %2404 = vmatprep.subr.bf16.mxu0 0
  %2405 = vmatpush1.bf16.msra.mxu0 0
  %2406 = vmatprep.subr.bf16.mxu0 0
  %2407 = vmatpush1.bf16.msra.mxu0 0
  %2408 = vmatprep.subr.bf16.mxu0 0
  %2409 = vmatpush1.bf16.msra.mxu0 0
  %2410 = vmatprep.subr.bf16.mxu0 0
  %2411 = vmatpush1.bf16.msra.mxu0 0
  %2412 = vmatprep.subr.bf16.mxu0 0
  %2413 = vmatpush1.bf16.msra.mxu0 0
  %2414 = vmatprep.mubr.bf16.mxu0 0
  %2415 = vmatmul.mubr.bf16.gmra.mrb[0].mxu0 %v2381
  %v2416 = vpop.f32.mrb[0].mxu0
  %v2417 = vadd.f32 0.0, %v2416
  %v2418 = vpop.f32.mrb[0].mxu0
  %v2419 = vadd.f32 0.0, %v2418
  %v2420 = vpop.f32.mrb[0].mxu0
  %v2421 = vpop.f32.mrb[0].mxu0
  %2422 = vdwg.mxu0
  %2423 = vmatprep.subr.bf16.mxu0 %v455
  %2424 = vmatpush1.bf16.msra.mxu0 %v454
  %2425 = vmatprep.subr.bf16.mxu0 %v459
  %2426 = vmatpush1.bf16.msra.mxu0 %v458
  %2427 = vmatprep.subr.bf16.mxu0 %v463
  %2428 = vmatpush1.bf16.msra.mxu0 %v462
  %2429 = vmatprep.subr.bf16.mxu0 %v467
  %2430 = vmatpush1.bf16.msra.mxu0 %v466
  %2431 = vmatprep.subr.bf16.mxu0 %v471
  %2432 = vmatpush1.bf16.msra.mxu0 %v470
  %2433 = vmatprep.subr.bf16.mxu0 %v475
  %2434 = vmatpush1.bf16.msra.mxu0 %v474
  %2435 = vmatprep.subr.bf16.mxu0 %v479
  %2436 = vmatpush1.bf16.msra.mxu0 %v478
  %2437 = vmatprep.subr.bf16.mxu0 %v483
  %2438 = vmatpush1.bf16.msra.mxu0 %v482
  %2439 = vmatprep.subr.bf16.mxu0 0
  %2440 = vmatpush1.bf16.msra.mxu0 0
  %2441 = vmatprep.subr.bf16.mxu0 0
  %2442 = vmatpush1.bf16.msra.mxu0 0
  %2443 = vmatprep.subr.bf16.mxu0 0
  %2444 = vmatpush1.bf16.msra.mxu0 0
  %2445 = vmatprep.subr.bf16.mxu0 0
  %2446 = vmatpush1.bf16.msra.mxu0 0
  %2447 = vmatprep.subr.bf16.mxu0 0
  %2448 = vmatpush1.bf16.msra.mxu0 0
  %2449 = vmatprep.subr.bf16.mxu0 0
  %2450 = vmatpush1.bf16.msra.mxu0 0
  %2451 = vmatprep.subr.bf16.mxu0 0
  %2452 = vmatpush1.bf16.msra.mxu0 0
  %2453 = vmatprep.subr.bf16.mxu0 0
  %2454 = vmatpush1.bf16.msra.mxu0 0
  %2455 = vmatprep.mubr.bf16.mxu0 0
  %2456 = vmatmul.mubr.bf16.gmra.mrb[0].mxu0 %v2381
  %v2457 = vpop.f32.mrb[0].mxu0
  %v2458 = vadd.f32 0.0, %v2457
  %v2459 = vpop.f32.mrb[0].mxu0
  %v2460 = vadd.f32 0.0, %v2459
  %v2461 = vpop.f32.mrb[0].mxu0
  %v2462 = vpop.f32.mrb[0].mxu0
  %2463 = vdwg.mxu0
  %v2464 = vadd.f32 %v1135, %v2417
  %v2465 = vadd.f32 %v1136, %v2419
  %v2466 = vadd.f32 %v1137, %v2458
  %v2467 = vadd.f32 %v1138, %v2460
  %v2468 = vxor.u32 %v2377, 2147483648
  %v2469 = vmul.f32 %v2468, 1.442695
  %v2470 = vpow.pop %v2469
  %v2471 = vadd.f32 %v2470, 1.0
  %v2472 = vrcp.pop %v2471
  %v2473 = vmul.f32 1.0, %v2472
  %v2474 = vxor.u32 %v2378, 2147483648
  %v2475 = vmul.f32 %v2474, 1.442695
  %v2476 = vpow.pop %v2475
  %v2477 = vadd.f32 %v2476, 1.0
  %v2478 = vrcp.pop %v2477
  %v2479 = vmul.f32 1.0, %v2478
  %v2480 = vtanh.pop %v2379
  %v2481 = vxor.u32 %v2380, 2147483648
  %v2482 = vmul.f32 %v2481, 1.442695
  %v2483 = vpow.pop %v2482
  %v2484 = vadd.f32 %v2483, 1.0
  %v2485 = vrcp.pop %v2484
  %v2486 = vmul.f32 1.0, %v2485
  %v2487 = vmul.f32 %v2479, %v2267
  %v2488 = vmul.f32 %v2473, %v2480
  %v2489 = vadd.f32 %v2487, %v2488
  %v2490 = vtanh.pop %v2489
  %v2491 = vmul.f32 %v2486, %v2490
  %v2492 = vxor.u32 %v2464, 2147483648
  %v2493 = vmul.f32 %v2492, 1.442695
  %v2494 = vpow.pop %v2493
  %v2495 = vadd.f32 %v2494, 1.0
  %v2496 = vrcp.pop %v2495
  %v2497 = vmul.f32 1.0, %v2496
  %v2498 = vxor.u32 %v2465, 2147483648
  %v2499 = vmul.f32 %v2498, 1.442695
  %v2500 = vpow.pop %v2499
  %v2501 = vadd.f32 %v2500, 1.0
  %v2502 = vrcp.pop %v2501
  %v2503 = vmul.f32 1.0, %v2502
  %v2504 = vtanh.pop %v2466
  %v2505 = vxor.u32 %v2467, 2147483648
  %v2506 = vmul.f32 %v2505, 1.442695
  %v2507 = vpow.pop %v2506
  %v2508 = vadd.f32 %v2507, 1.0
  %v2509 = vrcp.pop %v2508
  %v2510 = vmul.f32 1.0, %v2509
  %v2511 = vmul.f32 %v2503, %v2291
  %v2512 = vmul.f32 %v2497, %v2504
  %v2513 = vadd.f32 %v2511, %v2512
  %v2514 = vtanh.pop %v2513
  %v2515 = vmul.f32 %v2510, %v2514
  %v2516 = vpack.c.bf16 %v2491, %v2491
  %2517 = vmatprep.subr.bf16.mxu0 %v175
  %2518 = vmatpush1.bf16.msra.mxu0 %v174
  %2519 = vmatprep.subr.bf16.mxu0 %v179
  %2520 = vmatpush1.bf16.msra.mxu0 %v178
  %2521 = vmatprep.subr.bf16.mxu0 %v183
  %2522 = vmatpush1.bf16.msra.mxu0 %v182
  %2523 = vmatprep.subr.bf16.mxu0 %v187
  %2524 = vmatpush1.bf16.msra.mxu0 %v186
  %2525 = vmatprep.subr.bf16.mxu0 %v191
  %2526 = vmatpush1.bf16.msra.mxu0 %v190
  %2527 = vmatprep.subr.bf16.mxu0 %v195
  %2528 = vmatpush1.bf16.msra.mxu0 %v194
  %2529 = vmatprep.subr.bf16.mxu0 %v199
  %2530 = vmatpush1.bf16.msra.mxu0 %v198
  %2531 = vmatprep.subr.bf16.mxu0 %v203
  %2532 = vmatpush1.bf16.msra.mxu0 %v202
  %2533 = vmatprep.subr.bf16.mxu0 0
  %2534 = vmatpush1.bf16.msra.mxu0 0
  %2535 = vmatprep.subr.bf16.mxu0 0
  %2536 = vmatpush1.bf16.msra.mxu0 0
  %2537 = vmatprep.subr.bf16.mxu0 0
  %2538 = vmatpush1.bf16.msra.mxu0 0
  %2539 = vmatprep.subr.bf16.mxu0 0
  %2540 = vmatpush1.bf16.msra.mxu0 0
  %2541 = vmatprep.subr.bf16.mxu0 0
  %2542 = vmatpush1.bf16.msra.mxu0 0
  %2543 = vmatprep.subr.bf16.mxu0 0
  %2544 = vmatpush1.bf16.msra.mxu0 0
  %2545 = vmatprep.subr.bf16.mxu0 0
  %2546 = vmatpush1.bf16.msra.mxu0 0
  %2547 = vmatprep.subr.bf16.mxu0 0
  %2548 = vmatpush1.bf16.msra.mxu0 0
  %2549 = vmatprep.mubr.bf16.mxu0 0
  %2550 = vmatmul.mubr.bf16.gmra.mrb[0].mxu0 %v2516
  %v2551 = vpop.f32.mrb[0].mxu0
  %v2552 = vadd.f32 0.0, %v2551
  %v2553 = vpop.f32.mrb[0].mxu0
  %v2554 = vadd.f32 0.0, %v2553
  %v2555 = vpop.f32.mrb[0].mxu0
  %v2556 = vpop.f32.mrb[0].mxu0
  %2557 = vdwg.mxu0
  %2558 = vmatprep.subr.bf16.mxu0 %v177
  %2559 = vmatpush1.bf16.msra.mxu0 %v176
  %2560 = vmatprep.subr.bf16.mxu0 %v181
  %2561 = vmatpush1.bf16.msra.mxu0 %v180
  %2562 = vmatprep.subr.bf16.mxu0 %v185
  %2563 = vmatpush1.bf16.msra.mxu0 %v184
  %2564 = vmatprep.subr.bf16.mxu0 %v189
  %2565 = vmatpush1.bf16.msra.mxu0 %v188
  %2566 = vmatprep.subr.bf16.mxu0 %v193
  %2567 = vmatpush1.bf16.msra.mxu0 %v192
  %2568 = vmatprep.subr.bf16.mxu0 %v197
  %2569 = vmatpush1.bf16.msra.mxu0 %v196
  %2570 = vmatprep.subr.bf16.mxu0 %v201
  %2571 = vmatpush1.bf16.msra.mxu0 %v200
  %2572 = vmatprep.subr.bf16.mxu0 %v205
  %2573 = vmatpush1.bf16.msra.mxu0 %v204
  %2574 = vmatprep.subr.bf16.mxu0 0
  %2575 = vmatpush1.bf16.msra.mxu0 0
  %2576 = vmatprep.subr.bf16.mxu0 0
  %2577 = vmatpush1.bf16.msra.mxu0 0
  %2578 = vmatprep.subr.bf16.mxu0 0
  %2579 = vmatpush1.bf16.msra.mxu0 0
  %2580 = vmatprep.subr.bf16.mxu0 0
  %2581 = vmatpush1.bf16.msra.mxu0 0
  %2582 = vmatprep.subr.bf16.mxu0 0
  %2583 = vmatpush1.bf16.msra.mxu0 0
  %2584 = vmatprep.subr.bf16.mxu0 0
  %2585 = vmatpush1.bf16.msra.mxu0 0
  %2586 = vmatprep.subr.bf16.mxu0 0
  %2587 = vmatpush1.bf16.msra.mxu0 0
  %2588 = vmatprep.subr.bf16.mxu0 0
  %2589 = vmatpush1.bf16.msra.mxu0 0
  %2590 = vmatprep.mubr.bf16.mxu0 0
  %2591 = vmatmul.mubr.bf16.gmra.mrb[0].mxu0 %v2516
  %v2592 = vpop.f32.mrb[0].mxu0
  %v2593 = vadd.f32 0.0, %v2592
  %v2594 = vpop.f32.mrb[0].mxu0
  %v2595 = vadd.f32 0.0, %v2594
  %v2596 = vpop.f32.mrb[0].mxu0
  %v2597 = vpop.f32.mrb[0].mxu0
  %2598 = vdwg.mxu0
  %v2599 = vadd.f32 %v900, %v2552
  %v2600 = vadd.f32 %v901, %v2554
  %v2601 = vadd.f32 %v902, %v2593
  %v2602 = vadd.f32 %v903, %v2595
  %v2603 = vpack.c.bf16 %v2515, %v2515
  %2604 = vmatprep.subr.bf16.mxu0 %v453
  %2605 = vmatpush1.bf16.msra.mxu0 %v452
  %2606 = vmatprep.subr.bf16.mxu0 %v457
  %2607 = vmatpush1.bf16.msra.mxu0 %v456
  %2608 = vmatprep.subr.bf16.mxu0 %v461
  %2609 = vmatpush1.bf16.msra.mxu0 %v460
  %2610 = vmatprep.subr.bf16.mxu0 %v465
  %2611 = vmatpush1.bf16.msra.mxu0 %v464
  %2612 = vmatprep.subr.bf16.mxu0 %v469
  %2613 = vmatpush1.bf16.msra.mxu0 %v468
  %2614 = vmatprep.subr.bf16.mxu0 %v473
  %2615 = vmatpush1.bf16.msra.mxu0 %v472
  %2616 = vmatprep.subr.bf16.mxu0 %v477
  %2617 = vmatpush1.bf16.msra.mxu0 %v476
  %2618 = vmatprep.subr.bf16.mxu0 %v481
  %2619 = vmatpush1.bf16.msra.mxu0 %v480
  %2620 = vmatprep.subr.bf16.mxu0 0
  %2621 = vmatpush1.bf16.msra.mxu0 0
  %2622 = vmatprep.subr.bf16.mxu0 0
  %2623 = vmatpush1.bf16.msra.mxu0 0
  %2624 = vmatprep.subr.bf16.mxu0 0
  %2625 = vmatpush1.bf16.msra.mxu0 0
  %2626 = vmatprep.subr.bf16.mxu0 0
  %2627 = vmatpush1.bf16.msra.mxu0 0
  %2628 = vmatprep.subr.bf16.mxu0 0
  %2629 = vmatpush1.bf16.msra.mxu0 0
  %2630 = vmatprep.subr.bf16.mxu0 0
  %2631 = vmatpush1.bf16.msra.mxu0 0
  %2632 = vmatprep.subr.bf16.mxu0 0
  %2633 = vmatpush1.bf16.msra.mxu0 0
  %2634 = vmatprep.subr.bf16.mxu0 0
  %2635 = vmatpush1.bf16.msra.mxu0 0
  %2636 = vmatprep.mubr.bf16.mxu0 0
  %2637 = vmatmul.mubr.bf16.gmra.mrb[0].mxu0 %v2603
  %v2638 = vpop.f32.mrb[0].mxu0
  %v2639 = vadd.f32 0.0, %v2638
  %v2640 = vpop.f32.mrb[0].mxu0
  %v2641 = vadd.f32 0.0, %v2640
  %v2642 = vpop.f32.mrb[0].mxu0
  %v2643 = vpop.f32.mrb[0].mxu0
  %2644 = vdwg.mxu0
  %2645 = vmatprep.subr.bf16.mxu0 %v455
  %2646 = vmatpush1.bf16.msra.mxu0 %v454
  %2647 = vmatprep.subr.bf16.mxu0 %v459
  %2648 = vmatpush1.bf16.msra.mxu0 %v458
  %2649 = vmatprep.subr.bf16.mxu0 %v463
  %2650 = vmatpush1.bf16.msra.mxu0 %v462
  %2651 = vmatprep.subr.bf16.mxu0 %v467
  %2652 = vmatpush1.bf16.msra.mxu0 %v466
  %2653 = vmatprep.subr.bf16.mxu0 %v471
  %2654 = vmatpush1.bf16.msra.mxu0 %v470
  %2655 = vmatprep.subr.bf16.mxu0 %v475
  %2656 = vmatpush1.bf16.msra.mxu0 %v474
  %2657 = vmatprep.subr.bf16.mxu0 %v479
  %2658 = vmatpush1.bf16.msra.mxu0 %v478
  %2659 = vmatprep.subr.bf16.mxu0 %v483
  %2660 = vmatpush1.bf16.msra.mxu0 %v482
  %2661 = vmatprep.subr.bf16.mxu0 0
  %2662 = vmatpush1.bf16.msra.mxu0 0
  %2663 = vmatprep.subr.bf16.mxu0 0
  %2664 = vmatpush1.bf16.msra.mxu0 0
  %2665 = vmatprep.subr.bf16.mxu0 0
  %2666 = vmatpush1.bf16.msra.mxu0 0
  %2667 = vmatprep.subr.bf16.mxu0 0
  %2668 = vmatpush1.bf16.msra.mxu0 0
  %2669 = vmatprep.subr.bf16.mxu0 0
  %2670 = vmatpush1.bf16.msra.mxu0 0
  %2671 = vmatprep.subr.bf16.mxu0 0
  %2672 = vmatpush1.bf16.msra.mxu0 0
  %2673 = vmatprep.subr.bf16.mxu0 0
  %2674 = vmatpush1.bf16.msra.mxu0 0
  %2675 = vmatprep.subr.bf16.mxu0 0
  %2676 = vmatpush1.bf16.msra.mxu0 0
  %2677 = vmatprep.mubr.bf16.mxu0 0
  %2678 = vmatmul.mubr.bf16.gmra.mrb[0].mxu0 %v2603
  %v2679 = vpop.f32.mrb[0].mxu0
  %v2680 = vadd.f32 0.0, %v2679
  %v2681 = vpop.f32.mrb[0].mxu0
  %v2682 = vadd.f32 0.0, %v2681
  %v2683 = vpop.f32.mrb[0].mxu0
  %v2684 = vpop.f32.mrb[0].mxu0
  %2685 = vdwg.mxu0
  %v2686 = vadd.f32 %v895, %v2639
  %v2687 = vadd.f32 %v896, %v2641
  %v2688 = vadd.f32 %v897, %v2680
  %v2689 = vadd.f32 %v898, %v2682
  %v2690 = vxor.u32 %v2599, 2147483648
  %v2691 = vmul.f32 %v2690, 1.442695
  %v2692 = vpow.pop %v2691
  %v2693 = vadd.f32 %v2692, 1.0
  %v2694 = vrcp.pop %v2693
  %v2695 = vmul.f32 1.0, %v2694
  %v2696 = vxor.u32 %v2600, 2147483648
  %v2697 = vmul.f32 %v2696, 1.442695
  %v2698 = vpow.pop %v2697
  %v2699 = vadd.f32 %v2698, 1.0
  %v2700 = vrcp.pop %v2699
  %v2701 = vmul.f32 1.0, %v2700
  %v2702 = vtanh.pop %v2601
  %v2703 = vxor.u32 %v2602, 2147483648
  %v2704 = vmul.f32 %v2703, 1.442695
  %v2705 = vpow.pop %v2704
  %v2706 = vadd.f32 %v2705, 1.0
  %v2707 = vrcp.pop %v2706
  %v2708 = vmul.f32 1.0, %v2707
  %v2709 = vmul.f32 %v2701, %v2489
  %v2710 = vmul.f32 %v2695, %v2702
  %v2711 = vadd.f32 %v2709, %v2710
  %v2712 = vtanh.pop %v2711
  %v2713 = vmul.f32 %v2708, %v2712
  %v2714 = vxor.u32 %v2686, 2147483648
  %v2715 = vmul.f32 %v2714, 1.442695
  %v2716 = vpow.pop %v2715
  %v2717 = vadd.f32 %v2716, 1.0
  %v2718 = vrcp.pop %v2717
  %v2719 = vmul.f32 1.0, %v2718
  %v2720 = vxor.u32 %v2687, 2147483648
  %v2721 = vmul.f32 %v2720, 1.442695
  %v2722 = vpow.pop %v2721
  %v2723 = vadd.f32 %v2722, 1.0
  %v2724 = vrcp.pop %v2723
  %v2725 = vmul.f32 1.0, %v2724
  %v2726 = vtanh.pop %v2688
  %v2727 = vxor.u32 %v2689, 2147483648
  %v2728 = vmul.f32 %v2727, 1.442695
  %v2729 = vpow.pop %v2728
  %v2730 = vadd.f32 %v2729, 1.0
  %v2731 = vrcp.pop %v2730
  %v2732 = vmul.f32 1.0, %v2731
  %v2733 = vmul.f32 %v2725, %v2513
  %v2734 = vmul.f32 %v2719, %v2726
  %v2735 = vadd.f32 %v2733, %v2734
  %v2736 = vtanh.pop %v2735
  %v2737 = vmul.f32 %v2732, %v2736
  %v2738 = vpack.c.bf16 %v2713, %v2713
  %2739 = vmatprep.subr.bf16.mxu0 %v175
  %2740 = vmatpush1.bf16.msra.mxu0 %v174
  %2741 = vmatprep.subr.bf16.mxu0 %v179
  %2742 = vmatpush1.bf16.msra.mxu0 %v178
  %2743 = vmatprep.subr.bf16.mxu0 %v183
  %2744 = vmatpush1.bf16.msra.mxu0 %v182
  %2745 = vmatprep.subr.bf16.mxu0 %v187
  %2746 = vmatpush1.bf16.msra.mxu0 %v186
  %2747 = vmatprep.subr.bf16.mxu0 %v191
  %2748 = vmatpush1.bf16.msra.mxu0 %v190
  %2749 = vmatprep.subr.bf16.mxu0 %v195
  %2750 = vmatpush1.bf16.msra.mxu0 %v194
  %2751 = vmatprep.subr.bf16.mxu0 %v199
  %2752 = vmatpush1.bf16.msra.mxu0 %v198
  %2753 = vmatprep.subr.bf16.mxu0 %v203
  %2754 = vmatpush1.bf16.msra.mxu0 %v202
  %2755 = vmatprep.subr.bf16.mxu0 0
  %2756 = vmatpush1.bf16.msra.mxu0 0
  %2757 = vmatprep.subr.bf16.mxu0 0
  %2758 = vmatpush1.bf16.msra.mxu0 0
  %2759 = vmatprep.subr.bf16.mxu0 0
  %2760 = vmatpush1.bf16.msra.mxu0 0
  %2761 = vmatprep.subr.bf16.mxu0 0
  %2762 = vmatpush1.bf16.msra.mxu0 0
  %2763 = vmatprep.subr.bf16.mxu0 0
  %2764 = vmatpush1.bf16.msra.mxu0 0
  %2765 = vmatprep.subr.bf16.mxu0 0
  %2766 = vmatpush1.bf16.msra.mxu0 0
  %2767 = vmatprep.subr.bf16.mxu0 0
  %2768 = vmatpush1.bf16.msra.mxu0 0
  %2769 = vmatprep.subr.bf16.mxu0 0
  %2770 = vmatpush1.bf16.msra.mxu0 0
  %2771 = vmatprep.mubr.bf16.mxu0 0
  %2772 = vmatmul.mubr.bf16.gmra.mrb[0].mxu0 %v2738
  %v2773 = vpop.f32.mrb[0].mxu0
  %v2774 = vadd.f32 0.0, %v2773
  %v2775 = vpop.f32.mrb[0].mxu0
  %v2776 = vadd.f32 0.0, %v2775
  %v2777 = vpop.f32.mrb[0].mxu0
  %v2778 = vpop.f32.mrb[0].mxu0
  %2779 = vdwg.mxu0
  %2780 = vmatprep.subr.bf16.mxu0 %v177
  %2781 = vmatpush1.bf16.msra.mxu0 %v176
  %2782 = vmatprep.subr.bf16.mxu0 %v181
  %2783 = vmatpush1.bf16.msra.mxu0 %v180
  %2784 = vmatprep.subr.bf16.mxu0 %v185
  %2785 = vmatpush1.bf16.msra.mxu0 %v184
  %2786 = vmatprep.subr.bf16.mxu0 %v189
  %2787 = vmatpush1.bf16.msra.mxu0 %v188
  %2788 = vmatprep.subr.bf16.mxu0 %v193
  %2789 = vmatpush1.bf16.msra.mxu0 %v192
  %2790 = vmatprep.subr.bf16.mxu0 %v197
  %2791 = vmatpush1.bf16.msra.mxu0 %v196
  %2792 = vmatprep.subr.bf16.mxu0 %v201
  %2793 = vmatpush1.bf16.msra.mxu0 %v200
  %2794 = vmatprep.subr.bf16.mxu0 %v205
  %2795 = vmatpush1.bf16.msra.mxu0 %v204
  %2796 = vmatprep.subr.bf16.mxu0 0
  %2797 = vmatpush1.bf16.msra.mxu0 0
  %2798 = vmatprep.subr.bf16.mxu0 0
  %2799 = vmatpush1.bf16.msra.mxu0 0
  %2800 = vmatprep.subr.bf16.mxu0 0
  %2801 = vmatpush1.bf16.msra.mxu0 0
  %2802 = vmatprep.subr.bf16.mxu0 0
  %2803 = vmatpush1.bf16.msra.mxu0 0
  %2804 = vmatprep.subr.bf16.mxu0 0
  %2805 = vmatpush1.bf16.msra.mxu0 0
  %2806 = vmatprep.subr.bf16.mxu0 0
  %2807 = vmatpush1.bf16.msra.mxu0 0
  %2808 = vmatprep.subr.bf16.mxu0 0
  %2809 = vmatpush1.bf16.msra.mxu0 0
  %2810 = vmatprep.subr.bf16.mxu0 0
  %2811 = vmatpush1.bf16.msra.mxu0 0
  %2812 = vmatprep.mubr.bf16.mxu0 0
  %2813 = vmatmul.mubr.bf16.gmra.mrb[0].mxu0 %v2738
  %v2814 = vpop.f32.mrb[0].mxu0
  %v2815 = vadd.f32 0.0, %v2814
  %v2816 = vpop.f32.mrb[0].mxu0
  %v2817 = vadd.f32 0.0, %v2816
  %v2818 = vpop.f32.mrb[0].mxu0
  %v2819 = vpop.f32.mrb[0].mxu0
  %2820 = vdwg.mxu0
  %v2821 = vadd.f32 %v660, %v2774
  %v2822 = vadd.f32 %v661, %v2776
  %v2823 = vadd.f32 %v662, %v2815
  %v2824 = vadd.f32 %v663, %v2817
  %v2825 = vpack.c.bf16 %v2737, %v2737
  %2826 = vmatprep.subr.bf16.mxu0 %v453
  %2827 = vmatpush1.bf16.msra.mxu0 %v452
  %2828 = vmatprep.subr.bf16.mxu0 %v457
  %2829 = vmatpush1.bf16.msra.mxu0 %v456
  %2830 = vmatprep.subr.bf16.mxu0 %v461
  %2831 = vmatpush1.bf16.msra.mxu0 %v460
  %2832 = vmatprep.subr.bf16.mxu0 %v465
  %2833 = vmatpush1.bf16.msra.mxu0 %v464
  %2834 = vmatprep.subr.bf16.mxu0 %v469
  %2835 = vmatpush1.bf16.msra.mxu0 %v468
  %2836 = vmatprep.subr.bf16.mxu0 %v473
  %2837 = vmatpush1.bf16.msra.mxu0 %v472
  %2838 = vmatprep.subr.bf16.mxu0 %v477
  %2839 = vmatpush1.bf16.msra.mxu0 %v476
  %2840 = vmatprep.subr.bf16.mxu0 %v481
  %2841 = vmatpush1.bf16.msra.mxu0 %v480
  %2842 = vmatprep.subr.bf16.mxu0 0
  %2843 = vmatpush1.bf16.msra.mxu0 0
  %2844 = vmatprep.subr.bf16.mxu0 0
  %2845 = vmatpush1.bf16.msra.mxu0 0
  %2846 = vmatprep.subr.bf16.mxu0 0
  %2847 = vmatpush1.bf16.msra.mxu0 0
  %2848 = vmatprep.subr.bf16.mxu0 0
  %2849 = vmatpush1.bf16.msra.mxu0 0
  %2850 = vmatprep.subr.bf16.mxu0 0
  %2851 = vmatpush1.bf16.msra.mxu0 0
  %2852 = vmatprep.subr.bf16.mxu0 0
  %2853 = vmatpush1.bf16.msra.mxu0 0
  %2854 = vmatprep.subr.bf16.mxu0 0
  %2855 = vmatpush1.bf16.msra.mxu0 0
  %2856 = vmatprep.subr.bf16.mxu0 0
  %2857 = vmatpush1.bf16.msra.mxu0 0
  %2858 = vmatprep.mubr.bf16.mxu0 0
  %2859 = vmatmul.mubr.bf16.gmra.mrb[0].mxu0 %v2825
  %v2860 = vpop.f32.mrb[0].mxu0
  %v2861 = vadd.f32 0.0, %v2860
  %v2862 = vpop.f32.mrb[0].mxu0
  %v2863 = vadd.f32 0.0, %v2862
  %v2864 = vpop.f32.mrb[0].mxu0
  %v2865 = vpop.f32.mrb[0].mxu0
  %2866 = vdwg.mxu0
  %2867 = vmatprep.subr.bf16.mxu0 %v455
  %2868 = vmatpush1.bf16.msra.mxu0 %v454
  %2869 = vmatprep.subr.bf16.mxu0 %v459
  %2870 = vmatpush1.bf16.msra.mxu0 %v458
  %2871 = vmatprep.subr.bf16.mxu0 %v463
  %2872 = vmatpush1.bf16.msra.mxu0 %v462
  %2873 = vmatprep.subr.bf16.mxu0 %v467
  %2874 = vmatpush1.bf16.msra.mxu0 %v466
  %2875 = vmatprep.subr.bf16.mxu0 %v471
  %2876 = vmatpush1.bf16.msra.mxu0 %v470
  %2877 = vmatprep.subr.bf16.mxu0 %v475
  %2878 = vmatpush1.bf16.msra.mxu0 %v474
  %2879 = vmatprep.subr.bf16.mxu0 %v479
  %2880 = vmatpush1.bf16.msra.mxu0 %v478
  %2881 = vmatprep.subr.bf16.mxu0 %v483
  %2882 = vmatpush1.bf16.msra.mxu0 %v482
  %2883 = vmatprep.subr.bf16.mxu0 0
  %2884 = vmatpush1.bf16.msra.mxu0 0
  %2885 = vmatprep.subr.bf16.mxu0 0
  %2886 = vmatpush1.bf16.msra.mxu0 0
  %2887 = vmatprep.subr.bf16.mxu0 0
  %2888 = vmatpush1.bf16.msra.mxu0 0
  %2889 = vmatprep.subr.bf16.mxu0 0
  %2890 = vmatpush1.bf16.msra.mxu0 0
  %2891 = vmatprep.subr.bf16.mxu0 0
  %2892 = vmatpush1.bf16.msra.mxu0 0
  %2893 = vmatprep.subr.bf16.mxu0 0
  %2894 = vmatpush1.bf16.msra.mxu0 0
  %2895 = vmatprep.subr.bf16.mxu0 0
  %2896 = vmatpush1.bf16.msra.mxu0 0
  %2897 = vmatprep.subr.bf16.mxu0 0
  %2898 = vmatpush1.bf16.msra.mxu0 0
  %2899 = vmatprep.mubr.bf16.mxu0 0
  %2900 = vmatmul.mubr.bf16.gmra.mrb[0].mxu0 %v2825
  %v2901 = vpop.f32.mrb[0].mxu0
  %v2902 = vadd.f32 0.0, %v2901
  %v2903 = vpop.f32.mrb[0].mxu0
  %v2904 = vadd.f32 0.0, %v2903
  %v2905 = vpop.f32.mrb[0].mxu0
  %v2906 = vpop.f32.mrb[0].mxu0
  %2907 = vdwg.mxu0
  %v2908 = vadd.f32 %v655, %v2861
  %v2909 = vadd.f32 %v656, %v2863
  %v2910 = vadd.f32 %v657, %v2902
  %v2911 = vadd.f32 %v658, %v2904
  %v2912 = vxor.u32 %v2821, 2147483648
  %v2913 = vmul.f32 %v2912, 1.442695
  %v2914 = vpow.pop %v2913
  %v2915 = vadd.f32 %v2914, 1.0
  %v2916 = vrcp.pop %v2915
  %v2917 = vmul.f32 1.0, %v2916
  %v2918 = vxor.u32 %v2822, 2147483648
  %v2919 = vmul.f32 %v2918, 1.442695
  %v2920 = vpow.pop %v2919
  %v2921 = vadd.f32 %v2920, 1.0
  %v2922 = vrcp.pop %v2921
  %v2923 = vmul.f32 1.0, %v2922
  %v2924 = vtanh.pop %v2823
  %v2925 = vxor.u32 %v2824, 2147483648
  %v2926 = vmul.f32 %v2925, 1.442695
  %v2927 = vpow.pop %v2926
  %v2928 = vadd.f32 %v2927, 1.0
  %v2929 = vrcp.pop %v2928
  %v2930 = vmul.f32 1.0, %v2929
  %v2931 = vmul.f32 %v2923, %v2711
  %v2932 = vmul.f32 %v2917, %v2924
  %v2933 = vadd.f32 %v2931, %v2932
  %v2934 = vtanh.pop %v2933
  %v2935 = vmul.f32 %v2930, %v2934
  %v2936 = vxor.u32 %v2908, 2147483648
  %v2937 = vmul.f32 %v2936, 1.442695
  %v2938 = vpow.pop %v2937
  %v2939 = vadd.f32 %v2938, 1.0
  %v2940 = vrcp.pop %v2939
  %v2941 = vmul.f32 1.0, %v2940
  %v2942 = vxor.u32 %v2909, 2147483648
  %v2943 = vmul.f32 %v2942, 1.442695
  %v2944 = vpow.pop %v2943
  %v2945 = vadd.f32 %v2944, 1.0
  %v2946 = vrcp.pop %v2945
  %v2947 = vmul.f32 1.0, %v2946
  %v2948 = vtanh.pop %v2910
  %v2949 = vxor.u32 %v2911, 2147483648
  %v2950 = vmul.f32 %v2949, 1.442695
  %v2951 = vpow.pop %v2950
  %v2952 = vadd.f32 %v2951, 1.0
  %v2953 = vrcp.pop %v2952
  %v2954 = vmul.f32 1.0, %v2953
  %v2955 = vmul.f32 %v2947, %v2735
  %v2956 = vmul.f32 %v2941, %v2948
  %v2957 = vadd.f32 %v2955, %v2956
  %v2958 = vtanh.pop %v2957
  %v2959 = vmul.f32 %v2954, %v2958
  %v2960 = vpack.c.bf16 %v2935, %v2935
  %2961 = vmatprep.subr.bf16.mxu0 %v175
  %2962 = vmatpush1.bf16.msra.mxu0 %v174
  %2963 = vmatprep.subr.bf16.mxu0 %v179
  %2964 = vmatpush1.bf16.msra.mxu0 %v178
  %2965 = vmatprep.subr.bf16.mxu0 %v183
  %2966 = vmatpush1.bf16.msra.mxu0 %v182
  %2967 = vmatprep.subr.bf16.mxu0 %v187
  %2968 = vmatpush1.bf16.msra.mxu0 %v186
  %2969 = vmatprep.subr.bf16.mxu0 %v191
  %2970 = vmatpush1.bf16.msra.mxu0 %v190
  %2971 = vmatprep.subr.bf16.mxu0 %v195
  %2972 = vmatpush1.bf16.msra.mxu0 %v194
  %2973 = vmatprep.subr.bf16.mxu0 %v199
  %2974 = vmatpush1.bf16.msra.mxu0 %v198
  %2975 = vmatprep.subr.bf16.mxu0 %v203
  %2976 = vmatpush1.bf16.msra.mxu0 %v202
  %2977 = vmatprep.subr.bf16.mxu0 0
  %2978 = vmatpush1.bf16.msra.mxu0 0
  %2979 = vmatprep.subr.bf16.mxu0 0
  %2980 = vmatpush1.bf16.msra.mxu0 0
  %2981 = vmatprep.subr.bf16.mxu0 0
  %2982 = vmatpush1.bf16.msra.mxu0 0
  %2983 = vmatprep.subr.bf16.mxu0 0
  %2984 = vmatpush1.bf16.msra.mxu0 0
  %2985 = vmatprep.subr.bf16.mxu0 0
  %2986 = vmatpush1.bf16.msra.mxu0 0
  %2987 = vmatprep.subr.bf16.mxu0 0
  %2988 = vmatpush1.bf16.msra.mxu0 0
  %2989 = vmatprep.subr.bf16.mxu0 0
  %2990 = vmatpush1.bf16.msra.mxu0 0
  %2991 = vmatprep.subr.bf16.mxu0 0
  %2992 = vmatpush1.bf16.msra.mxu0 0
  %2993 = vmatprep.mubr.bf16.mxu0 0
  %2994 = vmatmul.mubr.bf16.gmra.mrb[0].mxu0 %v2960
  %v2995 = vpop.f32.mrb[0].mxu0
  %v2996 = vadd.f32 0.0, %v2995
  %v2997 = vpop.f32.mrb[0].mxu0
  %v2998 = vadd.f32 0.0, %v2997
  %v2999 = vpop.f32.mrb[0].mxu0
  %v3000 = vpop.f32.mrb[0].mxu0
  %3001 = vdwg.mxu0
  %3002 = vmatprep.subr.bf16.mxu0 %v177
  %3003 = vmatpush1.bf16.msra.mxu0 %v176
  %3004 = vmatprep.subr.bf16.mxu0 %v181
  %3005 = vmatpush1.bf16.msra.mxu0 %v180
  %3006 = vmatprep.subr.bf16.mxu0 %v185
  %3007 = vmatpush1.bf16.msra.mxu0 %v184
  %3008 = vmatprep.subr.bf16.mxu0 %v189
  %3009 = vmatpush1.bf16.msra.mxu0 %v188
  %3010 = vmatprep.subr.bf16.mxu0 %v193
  %3011 = vmatpush1.bf16.msra.mxu0 %v192
  %3012 = vmatprep.subr.bf16.mxu0 %v197
  %3013 = vmatpush1.bf16.msra.mxu0 %v196
  %3014 = vmatprep.subr.bf16.mxu0 %v201
  %3015 = vmatpush1.bf16.msra.mxu0 %v200
  %3016 = vmatprep.subr.bf16.mxu0 %v205
  %3017 = vmatpush1.bf16.msra.mxu0 %v204
  %3018 = vmatprep.subr.bf16.mxu0 0
  %3019 = vmatpush1.bf16.msra.mxu0 0
  %3020 = vmatprep.subr.bf16.mxu0 0
  %3021 = vmatpush1.bf16.msra.mxu0 0
  %3022 = vmatprep.subr.bf16.mxu0 0
  %3023 = vmatpush1.bf16.msra.mxu0 0
  %3024 = vmatprep.subr.bf16.mxu0 0
  %3025 = vmatpush1.bf16.msra.mxu0 0
  %3026 = vmatprep.subr.bf16.mxu0 0
  %3027 = vmatpush1.bf16.msra.mxu0 0
  %3028 = vmatprep.subr.bf16.mxu0 0
  %3029 = vmatpush1.bf16.msra.mxu0 0
  %3030 = vmatprep.subr.bf16.mxu0 0
  %3031 = vmatpush1.bf16.msra.mxu0 0
  %3032 = vmatprep.subr.bf16.mxu0 0
  %3033 = vmatpush1.bf16.msra.mxu0 0
  %3034 = vmatprep.mubr.bf16.mxu0 0
  %3035 = vmatmul.mubr.bf16.gmra.mrb[0].mxu0 %v2960
  %v3036 = vpop.f32.mrb[0].mxu0
  %v3037 = vadd.f32 0.0, %v3036
  %v3038 = vpop.f32.mrb[0].mxu0
  %v3039 = vadd.f32 0.0, %v3038
  %v3040 = vpop.f32.mrb[0].mxu0
  %v3041 = vpop.f32.mrb[0].mxu0
  %3042 = vdwg.mxu0
  %v3043 = vadd.f32 %v38, %v2996
  %v3044 = vadd.f32 %v39, %v2998
  %v3045 = vadd.f32 %v40, %v3037
  %v3046 = vadd.f32 %v41, %v3039
  %v3047 = vpack.c.bf16 %v2959, %v2959
  %3048 = vmatprep.subr.bf16.mxu0 %v453
  %3049 = vmatpush1.bf16.msra.mxu0 %v452
  %3050 = vmatprep.subr.bf16.mxu0 %v457
  %3051 = vmatpush1.bf16.msra.mxu0 %v456
  %3052 = vmatprep.subr.bf16.mxu0 %v461
  %3053 = vmatpush1.bf16.msra.mxu0 %v460
  %3054 = vmatprep.subr.bf16.mxu0 %v465
  %3055 = vmatpush1.bf16.msra.mxu0 %v464
  %3056 = vmatprep.subr.bf16.mxu0 %v469
  %3057 = vmatpush1.bf16.msra.mxu0 %v468
  %3058 = vmatprep.subr.bf16.mxu0 %v473
  %3059 = vmatpush1.bf16.msra.mxu0 %v472
  %3060 = vmatprep.subr.bf16.mxu0 %v477
  %3061 = vmatpush1.bf16.msra.mxu0 %v476
  %3062 = vmatprep.subr.bf16.mxu0 %v481
  %3063 = vmatpush1.bf16.msra.mxu0 %v480
  %3064 = vmatprep.subr.bf16.mxu0 0
  %3065 = vmatpush1.bf16.msra.mxu0 0
  %3066 = vmatprep.subr.bf16.mxu0 0
  %3067 = vmatpush1.bf16.msra.mxu0 0
  %3068 = vmatprep.subr.bf16.mxu0 0
  %3069 = vmatpush1.bf16.msra.mxu0 0
  %3070 = vmatprep.subr.bf16.mxu0 0
  %3071 = vmatpush1.bf16.msra.mxu0 0
  %3072 = vmatprep.subr.bf16.mxu0 0
  %3073 = vmatpush1.bf16.msra.mxu0 0
  %3074 = vmatprep.subr.bf16.mxu0 0
  %3075 = vmatpush1.bf16.msra.mxu0 0
  %3076 = vmatprep.subr.bf16.mxu0 0
  %3077 = vmatpush1.bf16.msra.mxu0 0
  %3078 = vmatprep.subr.bf16.mxu0 0
  %3079 = vmatpush1.bf16.msra.mxu0 0
  %3080 = vmatprep.mubr.bf16.mxu0 0
  %3081 = vmatmul.mubr.bf16.gmra.mrb[0].mxu0 %v3047
  %v3082 = vpop.f32.mrb[0].mxu0
  %v3083 = vadd.f32 0.0, %v3082
  %v3084 = vpop.f32.mrb[0].mxu0
  %v3085 = vadd.f32 0.0, %v3084
  %v3086 = vpop.f32.mrb[0].mxu0
  %v3087 = vpop.f32.mrb[0].mxu0
  %3088 = vdwg.mxu0
  %3089 = vmatprep.subr.bf16.mxu0 %v455
  %3090 = vmatpush1.bf16.msra.mxu0 %v454
  %3091 = vmatprep.subr.bf16.mxu0 %v459
  %3092 = vmatpush1.bf16.msra.mxu0 %v458
  %3093 = vmatprep.subr.bf16.mxu0 %v463
  %3094 = vmatpush1.bf16.msra.mxu0 %v462
  %3095 = vmatprep.subr.bf16.mxu0 %v467
  %3096 = vmatpush1.bf16.msra.mxu0 %v466
  %3097 = vmatprep.subr.bf16.mxu0 %v471
  %3098 = vmatpush1.bf16.msra.mxu0 %v470
  %3099 = vmatprep.subr.bf16.mxu0 %v475
  %3100 = vmatpush1.bf16.msra.mxu0 %v474
  %3101 = vmatprep.subr.bf16.mxu0 %v479
  %3102 = vmatpush1.bf16.msra.mxu0 %v478
  %3103 = vmatprep.subr.bf16.mxu0 %v483
  %3104 = vmatpush1.bf16.msra.mxu0 %v482
  %3105 = vmatprep.subr.bf16.mxu0 0
  %3106 = vmatpush1.bf16.msra.mxu0 0
  %3107 = vmatprep.subr.bf16.mxu0 0
  %3108 = vmatpush1.bf16.msra.mxu0 0
  %3109 = vmatprep.subr.bf16.mxu0 0
  %3110 = vmatpush1.bf16.msra.mxu0 0
  %3111 = vmatprep.subr.bf16.mxu0 0
  %3112 = vmatpush1.bf16.msra.mxu0 0
  %3113 = vmatprep.subr.bf16.mxu0 0
  %3114 = vmatpush1.bf16.msra.mxu0 0
  %3115 = vmatprep.subr.bf16.mxu0 0
  %3116 = vmatpush1.bf16.msra.mxu0 0
  %3117 = vmatprep.subr.bf16.mxu0 0
  %3118 = vmatpush1.bf16.msra.mxu0 0
  %3119 = vmatprep.subr.bf16.mxu0 0
  %3120 = vmatpush1.bf16.msra.mxu0 0
  %3121 = vmatprep.mubr.bf16.mxu0 0
  %3122 = vmatmul.mubr.bf16.gmra.mrb[0].mxu0 %v3047
  %v3123 = vpop.f32.mrb[0].mxu0
  %v3124 = vadd.f32 0.0, %v3123
  %v3125 = vpop.f32.mrb[0].mxu0
  %v3126 = vadd.f32 0.0, %v3125
  %v3127 = vpop.f32.mrb[0].mxu0
  %v3128 = vpop.f32.mrb[0].mxu0
  %3129 = vdwg.mxu0
  %v3130 = vadd.f32 %v33, %v3083
  %v3131 = vadd.f32 %v34, %v3085
  %v3132 = vadd.f32 %v35, %v3124
  %v3133 = vadd.f32 %v36, %v3126
  %v3134 = vxor.u32 %v3043, 2147483648
  %v3135 = vmul.f32 %v3134, 1.442695
  %v3136 = vpow.pop %v3135
  %v3137 = vadd.f32 %v3136, 1.0
  %v3138 = vrcp.pop %v3137
  %v3139 = vmul.f32 1.0, %v3138
  %v3140 = vxor.u32 %v3044, 2147483648
  %v3141 = vmul.f32 %v3140, 1.442695
  %v3142 = vpow.pop %v3141
  %v3143 = vadd.f32 %v3142, 1.0
  %v3144 = vrcp.pop %v3143
  %v3145 = vmul.f32 1.0, %v3144
  %v3146 = vtanh.pop %v3045
  %v3147 = vxor.u32 %v3046, 2147483648
  %v3148 = vmul.f32 %v3147, 1.442695
  %v3149 = vpow.pop %v3148
  %v3150 = vadd.f32 %v3149, 1.0
  %v3151 = vrcp.pop %v3150
  %v3152 = vmul.f32 1.0, %v3151
  %v3153 = vmul.f32 %v3145, %v2933
  %v3154 = vmul.f32 %v3139, %v3146
  %v3155 = vadd.f32 %v3153, %v3154
  %v3156 = vtanh.pop %v3155
  %v3157 = vmul.f32 %v3152, %v3156
  %v3158 = vxor.u32 %v3130, 2147483648
  %v3159 = vmul.f32 %v3158, 1.442695
  %v3160 = vpow.pop %v3159
  %v3161 = vadd.f32 %v3160, 1.0
  %v3162 = vrcp.pop %v3161
  %v3163 = vmul.f32 1.0, %v3162
  %v3164 = vxor.u32 %v3131, 2147483648
  %v3165 = vmul.f32 %v3164, 1.442695
  %v3166 = vpow.pop %v3165
  %v3167 = vadd.f32 %v3166, 1.0
  %v3168 = vrcp.pop %v3167
  %v3169 = vmul.f32 1.0, %v3168
  %v3170 = vtanh.pop %v3132
  %v3171 = vxor.u32 %v3133, 2147483648
  %v3172 = vmul.f32 %v3171, 1.442695
  %v3173 = vpow.pop %v3172
  %v3174 = vadd.f32 %v3173, 1.0
  %v3175 = vrcp.pop %v3174
  %v3176 = vmul.f32 1.0, %v3175
  %v3177 = vmul.f32 %v3169, %v2957
  %v3178 = vmul.f32 %v3163, %v3170
  %v3179 = vadd.f32 %v3177, %v3178
  %v3180 = vtanh.pop %v3179
  %v3181 = vmul.f32 %v3176, %v3180
  %v3182 = vpack.c.bf16 %v3157, %v3157
  %v3183 = vpack.c.bf16 %v3181, %v3181
  %v3184 = vpack.c.bf16 %v3155, %v3155
  %v3185 = vpack.c.bf16 %v3179, %v3179
  %v3186 = vld [vmem:[%s3] sm:$0xf]
  %v3187 = vld [vmem:[%s3 + $0x4] sm:$0xf]
  %v3188 = vld [vmem:[%s3 + $0x8] sm:$0xf]
  %v3189 = vld [vmem:[%s3 + $0xc] sm:$0xf]
  %v3190 = vld [vmem:[%s3 + $0x10] sm:$0xf]
  %v3191 = vld [vmem:[%s3 + $0x14] sm:$0xf]
  %v3192 = vld [vmem:[%s3 + $0x18] sm:$0xf]
  %v3193 = vld [vmem:[%s3 + $0x1c] sm:$0xf]
  %v3194 = vld [vmem:[%s3 + $0x20] sm:$0xf]
  %v3195 = vld [vmem:[%s3 + $0x24] sm:$0xf]
  %v3196 = vld [vmem:[%s3 + $0x28] sm:$0xf]
  %v3197 = vld [vmem:[%s3 + $0x2c] sm:$0xf]
  %v3198 = vld [vmem:[%s3 + $0x30] sm:$0xf]
  %v3199 = vld [vmem:[%s3 + $0x34] sm:$0xf]
  %v3200 = vld [vmem:[%s3 + $0x38] sm:$0xf]
  %v3201 = vld [vmem:[%s3 + $0x3c] sm:$0xf]
  %v3202 = vld [vmem:[%s3 + $0x40] sm:$0xf]
  %v3203 = vld [vmem:[%s3 + $0x44] sm:$0xf]
  %v3204 = vld [vmem:[%s3 + $0x48] sm:$0xf]
  %v3205 = vld [vmem:[%s3 + $0x4c] sm:$0xf]
  %v3206 = vld [vmem:[%s3 + $0x50] sm:$0xf]
  %v3207 = vld [vmem:[%s3 + $0x54] sm:$0xf]
  %v3208 = vld [vmem:[%s3 + $0x58] sm:$0xf]
  %v3209 = vld [vmem:[%s3 + $0x5c] sm:$0xf]
  %v3210 = vld [vmem:[%s3 + $0x60] sm:$0xf]
  %v3211 = vld [vmem:[%s3 + $0x64] sm:$0xf]
  %v3212 = vld [vmem:[%s3 + $0x68] sm:$0xf]
  %v3213 = vld [vmem:[%s3 + $0x6c] sm:$0xf]
  %v3214 = vld [vmem:[%s3 + $0x70] sm:$0xf]
  %v3215 = vld [vmem:[%s3 + $0x74] sm:$0xf]
  %v3216 = vld [vmem:[%s3 + $0x78] sm:$0xf]
  %v3217 = vld [vmem:[%s3 + $0x7c] sm:$0xf]
  %v3218 = vld [vmem:[%s4] sm:$0x1]
  %v3220 = vlaneseq
  %v3221 = vshrl.u32 %v3220, 7
  %v3222 = vsub.s32 0, %v3221
  %v3223 = vrot.slane %v3218, %v3222
  %v3257 = vunpack.c.l.b16 %v3186
  %v3258 = vunpack.c.l.b16 %v3187
  %v3259 = vunpack.c.l.b16 %v3188
  %v3260 = vunpack.c.l.b16 %v3189
  %v3261 = vunpack.c.l.b16 %v3190
  %v3262 = vunpack.c.l.b16 %v3191
  %v3263 = vunpack.c.l.b16 %v3192
  %v3264 = vunpack.c.l.b16 %v3193
  %v3265 = vunpack.c.l.b16 %v3194
  %v3266 = vunpack.c.l.b16 %v3195
  %v3267 = vunpack.c.l.b16 %v3196
  %v3268 = vunpack.c.l.b16 %v3197
  %v3269 = vunpack.c.l.b16 %v3198
  %v3270 = vunpack.c.l.b16 %v3199
  %v3271 = vunpack.c.l.b16 %v3200
  %v3272 = vunpack.c.l.b16 %v3201
  %v3273 = vunpack.c.l.b16 %v3202
  %v3274 = vunpack.c.l.b16 %v3203
  %v3275 = vunpack.c.l.b16 %v3204
  %v3276 = vunpack.c.l.b16 %v3205
  %v3277 = vunpack.c.l.b16 %v3206
  %v3278 = vunpack.c.l.b16 %v3207
  %v3279 = vunpack.c.l.b16 %v3208
  %v3280 = vunpack.c.l.b16 %v3209
  %v3281 = vunpack.c.l.b16 %v3210
  %v3282 = vunpack.c.l.b16 %v3211
  %v3283 = vunpack.c.l.b16 %v3212
  %v3284 = vunpack.c.l.b16 %v3213
  %v3285 = vunpack.c.l.b16 %v3214
  %v3286 = vunpack.c.l.b16 %v3215
  %v3287 = vunpack.c.l.b16 %v3216
  %v3288 = vunpack.c.l.b16 %v3217
  %v3289 = vpack.c.b16 %v3258, %v3257
  %v3290 = vpack.c.b16 %v3260, %v3259
  %v3291 = vpack.c.b16 %v3262, %v3261
  %v3292 = vpack.c.b16 %v3264, %v3263
  %v3293 = vpack.c.b16 %v3266, %v3265
  %v3294 = vpack.c.b16 %v3268, %v3267
  %v3295 = vpack.c.b16 %v3270, %v3269
  %v3296 = vpack.c.b16 %v3272, %v3271
  %v3297 = vpack.c.b16 %v3274, %v3273
  %v3298 = vpack.c.b16 %v3276, %v3275
  %v3299 = vpack.c.b16 %v3278, %v3277
  %v3300 = vpack.c.b16 %v3280, %v3279
  %v3301 = vpack.c.b16 %v3282, %v3281
  %v3302 = vpack.c.b16 %v3284, %v3283
  %v3303 = vpack.c.b16 %v3286, %v3285
  %v3304 = vpack.c.b16 %v3288, %v3287
  %3321 = vmatprep.subr.bf16.mxu0 0
  %3322 = vmatpush1.bf16.msra.mxu0 %v3289
  %3323 = vmatprep.subr.bf16.mxu0 0
  %3324 = vmatpush1.bf16.msra.mxu0 %v3290
  %3325 = vmatprep.subr.bf16.mxu0 0
  %3326 = vmatpush1.bf16.msra.mxu0 %v3291
  %3327 = vmatprep.subr.bf16.mxu0 0
  %3328 = vmatpush1.bf16.msra.mxu0 %v3292
  %3329 = vmatprep.subr.bf16.mxu0 0
  %3330 = vmatpush1.bf16.msra.mxu0 %v3293
  %3331 = vmatprep.subr.bf16.mxu0 0
  %3332 = vmatpush1.bf16.msra.mxu0 %v3294
  %3333 = vmatprep.subr.bf16.mxu0 0
  %3334 = vmatpush1.bf16.msra.mxu0 %v3295
  %3335 = vmatprep.subr.bf16.mxu0 0
  %3336 = vmatpush1.bf16.msra.mxu0 %v3296
  %3337 = vmatprep.subr.bf16.mxu0 0
  %3338 = vmatpush1.bf16.msra.mxu0 %v3297
  %3339 = vmatprep.subr.bf16.mxu0 0
  %3340 = vmatpush1.bf16.msra.mxu0 %v3298
  %3341 = vmatprep.subr.bf16.mxu0 0
  %3342 = vmatpush1.bf16.msra.mxu0 %v3299
  %3343 = vmatprep.subr.bf16.mxu0 0
  %3344 = vmatpush1.bf16.msra.mxu0 %v3300
  %3345 = vmatprep.subr.bf16.mxu0 0
  %3346 = vmatpush1.bf16.msra.mxu0 %v3301
  %3347 = vmatprep.subr.bf16.mxu0 0
  %3348 = vmatpush1.bf16.msra.mxu0 %v3302
  %3349 = vmatprep.subr.bf16.mxu0 0
  %3350 = vmatpush1.bf16.msra.mxu0 %v3303
  %3351 = vmatprep.subr.bf16.mxu0 0
  %3352 = vmatpush1.bf16.msra.mxu0 %v3304
  %3353 = vmatprep.mubr.bf16.mxu0 %v3183
  %3354 = vmatmul.mubr.bf16.gmra.mrb[0].mxu0 %v3182
  %v3355 = vpop.f32.mrb[0].mxu0
  %v3356 = vadd.f32 %v3223, %v3355
  %v3357 = vpop.f32.mrb[0].mxu0
  %v3358 = vpop.f32.mrb[0].mxu0
  %v3359 = vpop.f32.mrb[0].mxu0
  %3360 = vdwg.mxu0
  %3361 = vst [vmem:[%s7] sm:$0xff] %v3356
  %v3362 = vld [vmem:[%s5] sm:$0xf]
  %v3363 = vld [vmem:[%s5 + $0x4] sm:$0xf]
  %v3364 = vld [vmem:[%s5 + $0x8] sm:$0xf]
  %v3365 = vld [vmem:[%s5 + $0xc] sm:$0xf]
  %v3366 = vld [vmem:[%s5 + $0x10] sm:$0xf]
  %v3367 = vld [vmem:[%s5 + $0x14] sm:$0xf]
  %v3368 = vld [vmem:[%s5 + $0x18] sm:$0xf]
  %v3369 = vld [vmem:[%s5 + $0x1c] sm:$0xf]
  %v3370 = vld [vmem:[%s5 + $0x20] sm:$0xf]
  %v3371 = vld [vmem:[%s5 + $0x24] sm:$0xf]
  %v3372 = vld [vmem:[%s5 + $0x28] sm:$0xf]
  %v3373 = vld [vmem:[%s5 + $0x2c] sm:$0xf]
  %v3374 = vld [vmem:[%s5 + $0x30] sm:$0xf]
  %v3375 = vld [vmem:[%s5 + $0x34] sm:$0xf]
  %v3376 = vld [vmem:[%s5 + $0x38] sm:$0xf]
  %v3377 = vld [vmem:[%s5 + $0x3c] sm:$0xf]
  %v3378 = vld [vmem:[%s5 + $0x40] sm:$0xf]
  %v3379 = vld [vmem:[%s5 + $0x44] sm:$0xf]
  %v3380 = vld [vmem:[%s5 + $0x48] sm:$0xf]
  %v3381 = vld [vmem:[%s5 + $0x4c] sm:$0xf]
  %v3382 = vld [vmem:[%s5 + $0x50] sm:$0xf]
  %v3383 = vld [vmem:[%s5 + $0x54] sm:$0xf]
  %v3384 = vld [vmem:[%s5 + $0x58] sm:$0xf]
  %v3385 = vld [vmem:[%s5 + $0x5c] sm:$0xf]
  %v3386 = vld [vmem:[%s5 + $0x60] sm:$0xf]
  %v3387 = vld [vmem:[%s5 + $0x64] sm:$0xf]
  %v3388 = vld [vmem:[%s5 + $0x68] sm:$0xf]
  %v3389 = vld [vmem:[%s5 + $0x6c] sm:$0xf]
  %v3390 = vld [vmem:[%s5 + $0x70] sm:$0xf]
  %v3391 = vld [vmem:[%s5 + $0x74] sm:$0xf]
  %v3392 = vld [vmem:[%s5 + $0x78] sm:$0xf]
  %v3393 = vld [vmem:[%s5 + $0x7c] sm:$0xf]
  %v3394 = vld [vmem:[%s6] sm:$0x1]
  %v3396 = vlaneseq
  %v3397 = vshrl.u32 %v3396, 7
  %v3398 = vsub.s32 0, %v3397
  %v3399 = vrot.slane %v3394, %v3398
  %v3433 = vunpack.c.l.b16 %v3362
  %v3434 = vunpack.c.l.b16 %v3363
  %v3435 = vunpack.c.l.b16 %v3364
  %v3436 = vunpack.c.l.b16 %v3365
  %v3437 = vunpack.c.l.b16 %v3366
  %v3438 = vunpack.c.l.b16 %v3367
  %v3439 = vunpack.c.l.b16 %v3368
  %v3440 = vunpack.c.l.b16 %v3369
  %v3441 = vunpack.c.l.b16 %v3370
  %v3442 = vunpack.c.l.b16 %v3371
  %v3443 = vunpack.c.l.b16 %v3372
  %v3444 = vunpack.c.l.b16 %v3373
  %v3445 = vunpack.c.l.b16 %v3374
  %v3446 = vunpack.c.l.b16 %v3375
  %v3447 = vunpack.c.l.b16 %v3376
  %v3448 = vunpack.c.l.b16 %v3377
  %v3449 = vunpack.c.l.b16 %v3378
  %v3450 = vunpack.c.l.b16 %v3379
  %v3451 = vunpack.c.l.b16 %v3380
  %v3452 = vunpack.c.l.b16 %v3381
  %v3453 = vunpack.c.l.b16 %v3382
  %v3454 = vunpack.c.l.b16 %v3383
  %v3455 = vunpack.c.l.b16 %v3384
  %v3456 = vunpack.c.l.b16 %v3385
  %v3457 = vunpack.c.l.b16 %v3386
  %v3458 = vunpack.c.l.b16 %v3387
  %v3459 = vunpack.c.l.b16 %v3388
  %v3460 = vunpack.c.l.b16 %v3389
  %v3461 = vunpack.c.l.b16 %v3390
  %v3462 = vunpack.c.l.b16 %v3391
  %v3463 = vunpack.c.l.b16 %v3392
  %v3464 = vunpack.c.l.b16 %v3393
  %v3465 = vpack.c.b16 %v3434, %v3433
  %v3466 = vpack.c.b16 %v3436, %v3435
  %v3467 = vpack.c.b16 %v3438, %v3437
  %v3468 = vpack.c.b16 %v3440, %v3439
  %v3469 = vpack.c.b16 %v3442, %v3441
  %v3470 = vpack.c.b16 %v3444, %v3443
  %v3471 = vpack.c.b16 %v3446, %v3445
  %v3472 = vpack.c.b16 %v3448, %v3447
  %v3473 = vpack.c.b16 %v3450, %v3449
  %v3474 = vpack.c.b16 %v3452, %v3451
  %v3475 = vpack.c.b16 %v3454, %v3453
  %v3476 = vpack.c.b16 %v3456, %v3455
  %v3477 = vpack.c.b16 %v3458, %v3457
  %v3478 = vpack.c.b16 %v3460, %v3459
  %v3479 = vpack.c.b16 %v3462, %v3461
  %v3480 = vpack.c.b16 %v3464, %v3463
  %3497 = vmatprep.subr.bf16.mxu0 0
  %3498 = vmatpush1.bf16.msra.mxu0 %v3465
  %3499 = vmatprep.subr.bf16.mxu0 0
  %3500 = vmatpush1.bf16.msra.mxu0 %v3466
  %3501 = vmatprep.subr.bf16.mxu0 0
  %3502 = vmatpush1.bf16.msra.mxu0 %v3467
  %3503 = vmatprep.subr.bf16.mxu0 0
  %3504 = vmatpush1.bf16.msra.mxu0 %v3468
  %3505 = vmatprep.subr.bf16.mxu0 0
  %3506 = vmatpush1.bf16.msra.mxu0 %v3469
  %3507 = vmatprep.subr.bf16.mxu0 0
  %3508 = vmatpush1.bf16.msra.mxu0 %v3470
  %3509 = vmatprep.subr.bf16.mxu0 0
  %3510 = vmatpush1.bf16.msra.mxu0 %v3471
  %3511 = vmatprep.subr.bf16.mxu0 0
  %3512 = vmatpush1.bf16.msra.mxu0 %v3472
  %3513 = vmatprep.subr.bf16.mxu0 0
  %3514 = vmatpush1.bf16.msra.mxu0 %v3473
  %3515 = vmatprep.subr.bf16.mxu0 0
  %3516 = vmatpush1.bf16.msra.mxu0 %v3474
  %3517 = vmatprep.subr.bf16.mxu0 0
  %3518 = vmatpush1.bf16.msra.mxu0 %v3475
  %3519 = vmatprep.subr.bf16.mxu0 0
  %3520 = vmatpush1.bf16.msra.mxu0 %v3476
  %3521 = vmatprep.subr.bf16.mxu0 0
  %3522 = vmatpush1.bf16.msra.mxu0 %v3477
  %3523 = vmatprep.subr.bf16.mxu0 0
  %3524 = vmatpush1.bf16.msra.mxu0 %v3478
  %3525 = vmatprep.subr.bf16.mxu0 0
  %3526 = vmatpush1.bf16.msra.mxu0 %v3479
  %3527 = vmatprep.subr.bf16.mxu0 0
  %3528 = vmatpush1.bf16.msra.mxu0 %v3480
  %3529 = vmatprep.mubr.bf16.mxu0 %v3185
  %3530 = vmatmul.mubr.bf16.gmra.mrb[0].mxu0 %v3184
  %v3531 = vpop.f32.mrb[0].mxu0
  %v3532 = vadd.f32 %v3399, %v3531
  %v3533 = vpop.f32.mrb[0].mxu0
  %v3534 = vpop.f32.mrb[0].mxu0
  %v3535 = vpop.f32.mrb[0].mxu0
  %3536 = vdwg.mxu0
  %3537 = vst [vmem:[%s8] sm:$0xff] %v3532
  // Predicated region
  $region30: #{seq2seq_forward.6} parent=0 // pred_check
    _
  $region31: #{seq2seq_forward.6} parent=0 // pred_check_branch
    %3539 = sbr.rel (0) target = $region33
  $region32: #{seq2seq_forward.6} parent=0 // pred_region
    _
  $region33: #{seq2seq_forward.6} parent=0 // pred_fallthru
    _
  // Predicated region
  $region34: #{seq2seq_forward.6} parent=0 // pred_check
    _
  $region35: #{seq2seq_forward.6} parent=0 // pred_check_branch
    %3541 = sbr.rel (0) target = $region37
  $region36: #{seq2seq_forward.6} parent=0 // pred_region
    _
  $region37: #{seq2seq_forward.6} parent=0 // pred_fallthru
    _
  // Predicated region
  $region38: #{seq2seq_forward.6} parent=0 // pred_check
    _
  $region39: #{seq2seq_forward.6} parent=0 // pred_check_branch
    %3543 = sbr.rel (0) target = $region41
  $region40: #{seq2seq_forward.6} parent=0 // pred_region
    _
  $region41: #{seq2seq_forward.6} parent=0 // pred_fallthru
    _
  // Predicated region
  $region42: #{seq2seq_forward.6} parent=0 // pred_check
    _
  $region43: #{seq2seq_forward.6} parent=0 // pred_check_branch
    %3545 = sbr.rel (0) target = $region45
  $region44: #{seq2seq_forward.6} parent=0 // pred_region
    _
  $region45: #{seq2seq_forward.6} parent=0 // pred_fallthru
    _

</llo_original>
